<compile_context>
chip_gen: v5e
topology: v5e:2x2
jax: 0.10.0
libtpu: 0.0.40
codegen_flags: <defaults>
</compile_context>

<pallas_src>
import functools

import jax
import jax.numpy as jnp
from jax import lax
from jax.experimental import pallas as pl
from jax.experimental.pallas import tpu as pltpu


# ------------------------------ fused kernel --------------------------------

def _moe_fused_kernel(x_ref, wg_ref, bg_ref, w1_ref, b1_ref, w2_ref, b2_ref,
                      y_ref, gates_ref, *, k, num_experts, hidden):
    x = x_ref[...]                                                  # (TB, D) f32

    # ---- gating (f32): logits -> top-k -> softmax over top-k -> dense gates
    logits = jnp.dot(x, wg_ref[...],
                     preferred_element_type=jnp.float32) + bg_ref[...]  # (TB, GP)
    tb, gp = logits.shape
    iota = lax.broadcasted_iota(jnp.int32, (tb, gp), 1)

    remaining = logits
    top_vals, onehots = [], []
    for _ in range(k):
        m = jnp.max(remaining, axis=1, keepdims=True)               # (TB, 1)
        # first occurrence of the max (matches lax.top_k / torch.topk ties)
        idx = jnp.min(jnp.where(remaining == m, iota, gp),
                      axis=1, keepdims=True)
        oh = (iota == idx).astype(jnp.float32)                      # (TB, GP)
        top_vals.append(m)
        onehots.append(oh)
        remaining = jnp.where(oh > 0, -jnp.inf, remaining)

    denom = jnp.zeros((tb, 1), jnp.float32)
    exps = []
    for j in range(k):
        ej = jnp.exp(top_vals[j] - top_vals[0])    # top_vals[0] is the row max
        exps.append(ej)
        denom = denom + ej
    inv = pl.reciprocal(denom, approx=False)

    gates = jnp.zeros((tb, gp), jnp.float32)
    for j in range(k):
        gates = gates + (exps[j] * inv) * onehots[j]
    gates_ref[...] = gates                         # lane-dense (TB, 128) store

    # ---- experts: two wide MXU dots (bf16 operands, f32 accumulation) -------
    cdt = w1_ref.dtype
    h = jnp.dot(x.astype(cdt), w1_ref[...],
                preferred_element_type=jnp.float32) + b1_ref[...]   # (TB, E*H)
    h = jnp.maximum(h, 0.0)                                         # f32 VPU

    # broadcast each expert's gate across that expert's H hidden lanes
    gate_b = jnp.concatenate(
        [jnp.broadcast_to(gates[:, e:e + 1], (tb, hidden))
         for e in range(num_experts)], axis=1)                      # (TB, E*H)
    # 0*inf guard: unrouted experts contribute exactly zero
    gated_h = jnp.where(gate_b > 0.0, gate_b * h, 0.0)

    y = jnp.dot(gated_h.astype(cdt), w2_ref[...],
                preferred_element_type=jnp.float32)                 # (TB, O)

    # gated bias: sum_e gates[:, e] * b2[e]  (tiny; stays on the VPU)
    b2 = b2_ref[...]                                                # (E, O)
    for e in range(num_experts):
        y = y + gates[:, e:e + 1] * b2[e:e + 1, :]
    y_ref[...] = y.astype(y_ref.dtype)


# ------------------------------ host wrappers --------------------------------

def prepare_params(params, *, compute_dtype=jnp.bfloat16):
    """One-time layout prep (NOT per-forward): pad gate weight/bias to 128
    lane-dense expert columns, concat W1 / stack W2 along the hidden axis,
    and cast MXU weight operands to the compute dtype."""
    E, D, H = params["w1"].shape
    O = params["w2"].shape[2]
    GP = ((E + 127) // 128) * 128                 # lane-dense padded expert axis

    wg = jnp.asarray(params["wg"], jnp.float32)
    bg = jnp.asarray(params["bg"], jnp.float32).reshape(1, E)
    wgp = jnp.zeros((D, GP), jnp.float32).at[:, :E].set(wg)
    bgp = jnp.full((1, GP), -1e30, jnp.float32).at[:, :E].set(bg)

    return {
        "wgp": wgp,                                                 # (D, GP)  f32
        "bgp": bgp,                                                 # (1, GP)  f32
        "w1cat": jnp.transpose(jnp.asarray(params["w1"]), (1, 0, 2))
                    .reshape(D, E * H).astype(compute_dtype),       # (D, E*H) bf16
        "b1cat": jnp.asarray(params["b1"], jnp.float32).reshape(1, E * H),
        "w2cat": jnp.asarray(params["w2"]).reshape(E * H, O)
                    .astype(compute_dtype),                         # (E*H, O) bf16
        "b2": jnp.asarray(params["b2"], jnp.float32),               # (E, O)   f32
    }


def _default_batch_tile(batch):
    # Big M for the MXU (>=128/256 rows) while keeping >=2 grid programs so
    # dimension_semantics=("parallel",) can use both v7x TensorCores.
    for tb in (256, 128):
        if batch >= 2 * tb and batch % tb == 0:
            return tb
    return batch


def moe_forward(x, prep, k, loss_coef, batch_tile=None,
                single_buffer_weights=True):
    B, D = x.shape
    GP = prep["wgp"].shape[1]
    EH = prep["w1cat"].shape[1]
    O = prep["w2cat"].shape[1]
    E = prep["b2"].shape[0]
    H = EH // E
    TB = _default_batch_tile(B) if batch_tile is None else batch_tile
    assert B % TB == 0

    def _wspec(shape):
        # Grid-invariant weight input: constant index_map; single-buffer when
        # supported to halve resident weight VMEM (v7x: 64 MiB per TC).
        if single_buffer_weights:
            return pl.BlockSpec(shape, lambda i: (0, 0),
                                pipeline_mode=pl.Buffered(1))
        return pl.BlockSpec(shape, lambda i: (0, 0))

    kern = functools.partial(_moe_fused_kernel, k=k, num_experts=E, hidden=H)
    y, gates_pad = pl.pallas_call(
        kern,
        out_shape=(jax.ShapeDtypeStruct((B, O), jnp.float32),
                   jax.ShapeDtypeStruct((B, GP), jnp.float32)),
        grid=(B // TB,),
        in_specs=[
            pl.BlockSpec((TB, D), lambda i: (i, 0)),    # x batch tile
            _wspec((D, GP)),                            # padded gate weight
            _wspec((1, GP)),                            # padded gate bias
            _wspec((D, EH)),                            # concatenated W1 (bf16)
            _wspec((1, EH)),                            # concatenated b1
            _wspec((EH, O)),                            # stacked W2 (bf16)
            _wspec((E, O)),                             # stacked b2
        ],
        out_specs=(pl.BlockSpec((TB, O), lambda i: (i, 0)),
                   pl.BlockSpec((TB, GP), lambda i: (i, 0))),
        compiler_params=pltpu.CompilerParams(
            dimension_semantics=("parallel",),
            vmem_limit_bytes=48 * 1024 * 1024),
    )(x, prep["wgp"], prep["bgp"], prep["w1cat"], prep["b1cat"],
      prep["w2cat"], prep["b2"])

    gates = gates_pad[:, :E]
    # load-balancing loss (module's cv_squared is literally std/mean; torch
    # .std() is unbiased -> ddof=1).  Trivial [E]-sized reduction: JAX glue.
    importance = jnp.mean(gates, axis=0)
    loss = (jnp.std(importance, ddof=1) / jnp.mean(importance)) * loss_coef
    return y, loss, gates


# ------------------------------ pure-JAX reference ---------------------------

def moe_reference(x, params, k, loss_coef):
    logits = x @ params["wg"] + params["bg"]
    top_v, top_i = lax.top_k(logits, k)
    gate_vals = jax.nn.softmax(top_v, axis=1)
    B, E = logits.shape
    gates = jnp.zeros((B, E), jnp.float32).at[
        jnp.arange(B)[:, None], top_i].set(gate_vals)
    outs = []
    for e in range(E):
        h = jnp.maximum(x @ params["w1"][e] + params["b1"][e], 0.0)
        outs.append(h @ params["w2"][e] + params["b2"][e])
    stacked = jnp.stack(outs, axis=1)                 # (B, E, O)
    y = jnp.sum(gates[:, :, None] * stacked, axis=1)  # (B, O)
    importance = jnp.mean(gates, axis=0)
    loss = (jnp.std(importance, ddof=1) / jnp.mean(importance)) * loss_coef
    return y, loss, gates


# ----------------------------------- main ------------------------------------

if __name__ == "__main__":
    # FLAGS-equivalent hyperparameters
    NUM_EXPERTS = 4     # FLAGS.moe_num_experts
    K = 2               # FLAGS.moe_k
    LOSS_COEF = 0.01    # FLAGS.moe_lmbda

    # batch, input_size, expert hidden, output_size (lane-dense feature dims;
    # B=512 so the default TB=256 gives full MXU rows and a 2-program grid)
    B, D, H, O = 512, 128, 128, 128

    key = jax.random.PRNGKey(0)
    kx, kwg, kbg, kw1, kb1, kw2, kb2 = jax.random.split(key, 7)

    x = jax.random.normal(kx, (B, D), jnp.float32)
    params = {
        "wg": jax.random.normal(kwg, (D, NUM_EXPERTS), jnp.float32) * 0.1,
        "bg": jax.random.normal(kbg, (1, NUM_EXPERTS), jnp.float32) * 0.1,
        "w1": jax.random.normal(kw1, (NUM_EXPERTS, D, H), jnp.float32) * 0.1,
        "b1": jax.random.normal(kb1, (NUM_EXPERTS, H), jnp.float32) * 0.1,
        "w2": jax.random.normal(kw2, (NUM_EXPERTS, H, O), jnp.float32) * 0.1,
        "b2": jax.random.normal(kb2, (NUM_EXPERTS, O), jnp.float32) * 0.1,
    }

    prep = prepare_params(params, compute_dtype=jnp.bfloat16)

    fwd = jax.jit(functools.partial(moe_forward, k=K, loss_coef=LOSS_COEF,
                                    single_buffer_weights=True))
    try:
        y, loss, gates = jax.block_until_ready(fwd(x, prep))
    except Exception:
        # pl.Buffered(1) single-buffering of grid-invariant weights is a v7x
        # VMEM optimization; fall back to default double buffering if this
        # jaxlib rejects pipeline_mode.
        fwd = jax.jit(functools.partial(moe_forward, k=K, loss_coef=LOSS_COEF,
                                        single_buffer_weights=False))
        y, loss, gates = jax.block_until_ready(fwd(x, prep))

    y_ref, loss_ref, gates_ref = moe_reference(x, params, K, LOSS_COEF)
    # Gating runs in f32 -> tight tolerances; expert matmuls use bf16 operands
    # with f32 accumulation -> relaxed tolerance on y (per perf review).
    assert jnp.allclose(gates, gates_ref, rtol=1e-5, atol=1e-5), "gates mismatch"
    assert jnp.allclose(loss, loss_ref, rtol=1e-5, atol=1e-6), "loss mismatch"
    assert jnp.allclose(y, y_ref, rtol=2e-2, atol=2e-2), "output mismatch"

    print("KERNEL_OK")
</pallas_src>

<mosaic_0001>
module attributes {stable_mosaic.version = 11 : i64} {
  func.func @_moe_fused_kernel(%arg0: i32, %arg1: memref<256x128xf32, #tpu.memory_space<vmem>>, %arg2: memref<128x128xf32, #tpu.memory_space<vmem>>, %arg3: memref<1x128xf32, #tpu.memory_space<vmem>>, %arg4: memref<128x512xbf16, #tpu.memory_space<vmem>>, %arg5: memref<1x512xf32, #tpu.memory_space<vmem>>, %arg6: memref<512x128xbf16, #tpu.memory_space<vmem>>, %arg7: memref<4x128xf32, #tpu.memory_space<vmem>>, %arg8: memref<256x128xf32, #tpu.memory_space<vmem>>, %arg9: memref<256x128xf32, #tpu.memory_space<vmem>>) attributes {dimension_semantics = [#tpu.dimension_semantics<parallel>], iteration_bounds = array<i64: 2>, scalar_prefetch = 0 : i64, scratch_operands = 0 : i64, tpu.core_type = #tpu.core_type<tc>, window_params = [{transform_indices = @transform_0, window_bounds = array<i64: 256, 128>}, {pipeline_mode = #tpu.pipeline_mode<synchronous>, transform_indices = @transform_1, window_bounds = array<i64: 128, 128>}, {pipeline_mode = #tpu.pipeline_mode<synchronous>, transform_indices = @transform_2, window_bounds = array<i64: 1, 128>}, {pipeline_mode = #tpu.pipeline_mode<synchronous>, transform_indices = @transform_3, window_bounds = array<i64: 128, 512>}, {pipeline_mode = #tpu.pipeline_mode<synchronous>, transform_indices = @transform_4, window_bounds = array<i64: 1, 512>}, {pipeline_mode = #tpu.pipeline_mode<synchronous>, transform_indices = @transform_5, window_bounds = array<i64: 512, 128>}, {pipeline_mode = #tpu.pipeline_mode<synchronous>, transform_indices = @transform_6, window_bounds = array<i64: 4, 128>}, {transform_indices = @transform_7, window_bounds = array<i64: 256, 128>}, {transform_indices = @transform_8, window_bounds = array<i64: 256, 128>}]} {
    %c0 = arith.constant 0 : index
    %c0_0 = arith.constant 0 : index
    %0 = vector.load %arg1[%c0, %c0_0] : memref<256x128xf32, #tpu.memory_space<vmem>>, vector<256x128xf32>
    %c0_1 = arith.constant 0 : index
    %c0_2 = arith.constant 0 : index
    %1 = vector.load %arg2[%c0_1, %c0_2] : memref<128x128xf32, #tpu.memory_space<vmem>>, vector<128x128xf32>
    %cst = arith.constant dense<0.000000e+00> : vector<256x128xf32>
    %2 = tpu.matmul %0, %1, %cst {dimension_numbers = #tpu.dot_dimension_numbers<[1], [0], [0], [1], [0, 0, 1, 1], [], []>} : vector<256x128xf32>, vector<128x128xf32>, vector<256x128xf32> -> vector<256x128xf32>
    %c0_3 = arith.constant 0 : index
    %c0_4 = arith.constant 0 : index
    %3 = vector.load %arg3[%c0_3, %c0_4] : memref<1x128xf32, #tpu.memory_space<vmem>>, vector<1x128xf32>
    %4 = vector.broadcast %3 : vector<1x128xf32> to vector<256x128xf32>
    %5 = arith.addf %2, %4 : vector<256x128xf32>
    %6 = tpu.iota {dimensions = array<i32: 1>} : vector<256x128xi32>
    %cst_5 = arith.constant dense<0xFF800000> : vector<256xf32>
    %7 = vector.multi_reduction <maximumf>, %5, %cst_5 [1] : vector<256x128xf32> to vector<256xf32>
    %8 = vector.shape_cast %7 : vector<256xf32> to vector<256x1xf32>
    %9 = vector.broadcast %8 : vector<256x1xf32> to vector<256x128xf32>
    %10 = arith.cmpf oeq, %5, %9 : vector<256x128xf32>
    %c128_i32 = arith.constant 128 : i32
    %11 = vector.broadcast %c128_i32 : i32 to vector<256x128xi32>
    %12 = arith.select %10, %6, %11 : vector<256x128xi1>, vector<256x128xi32>
    %cst_6 = arith.constant dense<2147483647> : vector<256xi32>
    %13 = vector.multi_reduction <minsi>, %12, %cst_6 [1] : vector<256x128xi32> to vector<256xi32>
    %14 = vector.shape_cast %13 : vector<256xi32> to vector<256x1xi32>
    %15 = vector.broadcast %14 : vector<256x1xi32> to vector<256x128xi32>
    %16 = arith.cmpi eq, %6, %15 : vector<256x128xi32>
    %17 = arith.extui %16 : vector<256x128xi1> to vector<256x128xi32>
    %18 = arith.sitofp %17 : vector<256x128xi32> to vector<256x128xf32>
    %cst_7 = arith.constant 0.000000e+00 : f32
    %19 = vector.broadcast %cst_7 : f32 to vector<256x128xf32>
    %20 = arith.cmpf ogt, %18, %19 : vector<256x128xf32>
    %cst_8 = arith.constant 0xFF800000 : f32
    %21 = vector.broadcast %cst_8 : f32 to vector<256x128xf32>
    %22 = arith.select %20, %21, %5 : vector<256x128xi1>, vector<256x128xf32>
    %cst_9 = arith.constant dense<0xFF800000> : vector<256xf32>
    %23 = vector.multi_reduction <maximumf>, %22, %cst_9 [1] : vector<256x128xf32> to vector<256xf32>
    %24 = vector.shape_cast %23 : vector<256xf32> to vector<256x1xf32>
    %25 = vector.broadcast %24 : vector<256x1xf32> to vector<256x128xf32>
    %26 = arith.cmpf oeq, %22, %25 : vector<256x128xf32>
    %c128_i32_10 = arith.constant 128 : i32
    %27 = vector.broadcast %c128_i32_10 : i32 to vector<256x128xi32>
    %28 = arith.select %26, %6, %27 : vector<256x128xi1>, vector<256x128xi32>
    %cst_11 = arith.constant dense<2147483647> : vector<256xi32>
    %29 = vector.multi_reduction <minsi>, %28, %cst_11 [1] : vector<256x128xi32> to vector<256xi32>
    %30 = vector.shape_cast %29 : vector<256xi32> to vector<256x1xi32>
    %31 = vector.broadcast %30 : vector<256x1xi32> to vector<256x128xi32>
    %32 = arith.cmpi eq, %6, %31 : vector<256x128xi32>
    %33 = arith.extui %32 : vector<256x128xi1> to vector<256x128xi32>
    %34 = arith.sitofp %33 : vector<256x128xi32> to vector<256x128xf32>
    %cst_12 = arith.constant 0.000000e+00 : f32
    %35 = vector.broadcast %cst_12 : f32 to vector<256x1xf32>
    %36 = arith.subf %8, %8 : vector<256x1xf32>
    %37 = math.exp %36 : vector<256x1xf32>
    %38 = arith.addf %35, %37 : vector<256x1xf32>
    %39 = arith.subf %24, %8 : vector<256x1xf32>
    %40 = math.exp %39 : vector<256x1xf32>
    %41 = arith.addf %38, %40 : vector<256x1xf32>
    %42 = tpu.reciprocal %41 : vector<256x1xf32> -> vector<256x1xf32>
    %cst_13 = arith.constant 0.000000e+00 : f32
    %43 = vector.broadcast %cst_13 : f32 to vector<256x128xf32>
    %44 = arith.mulf %37, %42 : vector<256x1xf32>
    %45 = vector.broadcast %44 : vector<256x1xf32> to vector<256x128xf32>
    %46 = arith.mulf %45, %18 : vector<256x128xf32>
    %47 = arith.addf %43, %46 : vector<256x128xf32>
    %48 = arith.mulf %40, %42 : vector<256x1xf32>
    %49 = vector.broadcast %48 : vector<256x1xf32> to vector<256x128xf32>
    %50 = arith.mulf %49, %34 : vector<256x128xf32>
    %51 = arith.addf %47, %50 : vector<256x128xf32>
    %c0_14 = arith.constant 0 : index
    %c0_15 = arith.constant 0 : index
    %52 = vector.load %arg9[%c0_14, %c0_15] : memref<256x128xf32, #tpu.memory_space<vmem>>, vector<256x128xf32>
    tpu.vector_store %arg9[%c0_14, %c0_15], %51 {strides = array<i32>} : memref<256x128xf32, #tpu.memory_space<vmem>>, vector<256x128xf32>,
    %53 = arith.truncf %0 : vector<256x128xf32> to vector<256x128xbf16>
    %c0_16 = arith.constant 0 : index
    %c0_17 = arith.constant 0 : index
    %54 = vector.load %arg4[%c0_16, %c0_17] : memref<128x512xbf16, #tpu.memory_space<vmem>>, vector<128x512xbf16>
    %cst_18 = arith.constant dense<0.000000e+00> : vector<256x512xf32>
    %55 = tpu.matmul %53, %54, %cst_18 {dimension_numbers = #tpu.dot_dimension_numbers<[1], [0], [0], [1], [0, 0, 1, 1], [], []>} : vector<256x128xbf16>, vector<128x512xbf16>, vector<256x512xf32> -> vector<256x512xf32>
    %c0_19 = arith.constant 0 : index
    %c0_20 = arith.constant 0 : index
    %56 = vector.load %arg5[%c0_19, %c0_20] : memref<1x512xf32, #tpu.memory_space<vmem>>, vector<1x512xf32>
    %57 = vector.broadcast %56 : vector<1x512xf32> to vector<256x512xf32>
    %58 = arith.addf %55, %57 : vector<256x512xf32>
    %cst_21 = arith.constant 0.000000e+00 : f32
    %59 = vector.broadcast %cst_21 : f32 to vector<256x512xf32>
    %60 = arith.maximumf %58, %59 : vector<256x512xf32>
    %61 = vector.extract_strided_slice %51 {offsets = [0, 0], sizes = [256, 1], strides = [1, 1]} : vector<256x128xf32> to vector<256x1xf32>
    %62 = vector.shape_cast %61 : vector<256x1xf32> to vector<256x1xf32>
    %63 = vector.broadcast %62 : vector<256x1xf32> to vector<256x128xf32>
    %64 = vector.extract_strided_slice %51 {offsets = [0, 1], sizes = [256, 1], strides = [1, 1]} : vector<256x128xf32> to vector<256x1xf32>
    %65 = vector.shape_cast %64 : vector<256x1xf32> to vector<256x1xf32>
    %66 = vector.broadcast %65 : vector<256x1xf32> to vector<256x128xf32>
    %67 = vector.extract_strided_slice %51 {offsets = [0, 2], sizes = [256, 1], strides = [1, 1]} : vector<256x128xf32> to vector<256x1xf32>
    %68 = vector.shape_cast %67 : vector<256x1xf32> to vector<256x1xf32>
    %69 = vector.broadcast %68 : vector<256x1xf32> to vector<256x128xf32>
    %70 = vector.extract_strided_slice %51 {offsets = [0, 3], sizes = [256, 1], strides = [1, 1]} : vector<256x128xf32> to vector<256x1xf32>
    %71 = vector.shape_cast %70 : vector<256x1xf32> to vector<256x1xf32>
    %72 = vector.broadcast %71 : vector<256x1xf32> to vector<256x128xf32>
    %73 = tpu.concatenate %63, %66, %69, %72 in 1 : vector<256x128xf32>, vector<256x128xf32>, vector<256x128xf32>, vector<256x128xf32> -> vector<256x512xf32>
    %cst_22 = arith.constant 0.000000e+00 : f32
    %74 = vector.broadcast %cst_22 : f32 to vector<256x512xf32>
    %75 = arith.cmpf ogt, %73, %74 : vector<256x512xf32>
    %76 = arith.mulf %73, %60 : vector<256x512xf32>
    %cst_23 = arith.constant 0.000000e+00 : f32
    %77 = vector.broadcast %cst_23 : f32 to vector<256x512xf32>
    %78 = arith.select %75, %76, %77 : vector<256x512xi1>, vector<256x512xf32>
    %79 = arith.truncf %78 : vector<256x512xf32> to vector<256x512xbf16>
    %c0_24 = arith.constant 0 : index
    %c0_25 = arith.constant 0 : index
    %80 = vector.load %arg6[%c0_24, %c0_25] : memref<512x128xbf16, #tpu.memory_space<vmem>>, vector<512x128xbf16>
    %cst_26 = arith.constant dense<0.000000e+00> : vector<256x128xf32>
    %81 = tpu.matmul %79, %80, %cst_26 {dimension_numbers = #tpu.dot_dimension_numbers<[1], [0], [0], [1], [0, 0, 1, 1], [], []>} : vector<256x512xbf16>, vector<512x128xbf16>, vector<256x128xf32> -> vector<256x128xf32>
    %c0_27 = arith.constant 0 : index
    %c0_28 = arith.constant 0 : index
    %82 = vector.load %arg7[%c0_27, %c0_28] : memref<4x128xf32, #tpu.memory_space<vmem>>, vector<4x128xf32>
    %83 = vector.extract_strided_slice %51 {offsets = [0, 0], sizes = [256, 1], strides = [1, 1]} : vector<256x128xf32> to vector<256x1xf32>
    %84 = vector.extract_strided_slice %82 {offsets = [0, 0], sizes = [1, 128], strides = [1, 1]} : vector<4x128xf32> to vector<1x128xf32>
    %85 = vector.broadcast %83 : vector<256x1xf32> to vector<256x128xf32>
    %86 = vector.broadcast %84 : vector<1x128xf32> to vector<256x128xf32>
    %87 = arith.mulf %85, %86 : vector<256x128xf32>
    %88 = arith.addf %81, %87 : vector<256x128xf32>
    %89 = vector.extract_strided_slice %51 {offsets = [0, 1], sizes = [256, 1], strides = [1, 1]} : vector<256x128xf32> to vector<256x1xf32>
    %90 = vector.extract_strided_slice %82 {offsets = [1, 0], sizes = [1, 128], strides = [1, 1]} : vector<4x128xf32> to vector<1x128xf32>
    %91 = vector.broadcast %89 : vector<256x1xf32> to vector<256x128xf32>
    %92 = vector.broadcast %90 : vector<1x128xf32> to vector<256x128xf32>
    %93 = arith.mulf %91, %92 : vector<256x128xf32>
    %94 = arith.addf %88, %93 : vector<256x128xf32>
    %95 = vector.extract_strided_slice %51 {offsets = [0, 2], sizes = [256, 1], strides = [1, 1]} : vector<256x128xf32> to vector<256x1xf32>
    %96 = vector.extract_strided_slice %82 {offsets = [2, 0], sizes = [1, 128], strides = [1, 1]} : vector<4x128xf32> to vector<1x128xf32>
    %97 = vector.broadcast %95 : vector<256x1xf32> to vector<256x128xf32>
    %98 = vector.broadcast %96 : vector<1x128xf32> to vector<256x128xf32>
    %99 = arith.mulf %97, %98 : vector<256x128xf32>
    %100 = arith.addf %94, %99 : vector<256x128xf32>
    %101 = vector.extract_strided_slice %51 {offsets = [0, 3], sizes = [256, 1], strides = [1, 1]} : vector<256x128xf32> to vector<256x1xf32>
    %102 = vector.extract_strided_slice %82 {offsets = [3, 0], sizes = [1, 128], strides = [1, 1]} : vector<4x128xf32> to vector<1x128xf32>
    %103 = vector.broadcast %101 : vector<256x1xf32> to vector<256x128xf32>
    %104 = vector.broadcast %102 : vector<1x128xf32> to vector<256x128xf32>
    %105 = arith.mulf %103, %104 : vector<256x128xf32>
    %106 = arith.addf %100, %105 : vector<256x128xf32>
    %c0_29 = arith.constant 0 : index
    %c0_30 = arith.constant 0 : index
    %107 = vector.load %arg8[%c0_29, %c0_30] : memref<256x128xf32, #tpu.memory_space<vmem>>, vector<256x128xf32>
    tpu.vector_store %arg8[%c0_29, %c0_30], %106 {strides = array<i32>} : memref<256x128xf32, #tpu.memory_space<vmem>>, vector<256x128xf32>,
    return
  }
  func.func @transform_0(%arg0: i32) -> (i32, i32) {
    %c0_i32 = arith.constant 0 : i32
    %c0_i32_0 = arith.constant 0 : i32
    return %arg0, %c0_i32 : i32, i32
  }
  func.func @transform_1(%arg0: i32) -> (i32, i32) {
    %c0_i32 = arith.constant 0 : i32
    %c0_i32_0 = arith.constant 0 : i32
    %c0_i32_1 = arith.constant 0 : i32
    return %c0_i32, %c0_i32_0 : i32, i32
  }
  func.func @transform_2(%arg0: i32) -> (i32, i32) {
    %c0_i32 = arith.constant 0 : i32
    %c0_i32_0 = arith.constant 0 : i32
    %c0_i32_1 = arith.constant 0 : i32
    return %c0_i32, %c0_i32_0 : i32, i32
  }
  func.func @transform_3(%arg0: i32) -> (i32, i32) {
    %c0_i32 = arith.constant 0 : i32
    %c0_i32_0 = arith.constant 0 : i32
    %c0_i32_1 = arith.constant 0 : i32
    return %c0_i32, %c0_i32_0 : i32, i32
  }
  func.func @transform_4(%arg0: i32) -> (i32, i32) {
    %c0_i32 = arith.constant 0 : i32
    %c0_i32_0 = arith.constant 0 : i32
    %c0_i32_1 = arith.constant 0 : i32
    return %c0_i32, %c0_i32_0 : i32, i32
  }
  func.func @transform_5(%arg0: i32) -> (i32, i32) {
    %c0_i32 = arith.constant 0 : i32
    %c0_i32_0 = arith.constant 0 : i32
    %c0_i32_1 = arith.constant 0 : i32
    return %c0_i32, %c0_i32_0 : i32, i32
  }
  func.func @transform_6(%arg0: i32) -> (i32, i32) {
    %c0_i32 = arith.constant 0 : i32
    %c0_i32_0 = arith.constant 0 : i32
    %c0_i32_1 = arith.constant 0 : i32
    return %c0_i32, %c0_i32_0 : i32, i32
  }
  func.func @transform_7(%arg0: i32) -> (i32, i32) {
    %c0_i32 = arith.constant 0 : i32
    %c0_i32_0 = arith.constant 0 : i32
    return %arg0, %c0_i32 : i32, i32
  }
  func.func @transform_8(%arg0: i32) -> (i32, i32) {
    %c0_i32 = arith.constant 0 : i32
    %c0_i32_0 = arith.constant 0 : i32
    return %arg0, %c0_i32 : i32, i32
  }
}

module attributes {stable_mosaic.version = 11 : i64} {
  func.func @_moe_fused_kernel(%arg0: i32, %arg1: memref<256x128xf32, #tpu.memory_space<vmem>>, %arg2: memref<128x128xf32, #tpu.memory_space<vmem>>, %arg3: memref<1x128xf32, #tpu.memory_space<vmem>>, %arg4: memref<128x512xbf16, #tpu.memory_space<vmem>>, %arg5: memref<1x512xf32, #tpu.memory_space<vmem>>, %arg6: memref<512x128xbf16, #tpu.memory_space<vmem>>, %arg7: memref<4x128xf32, #tpu.memory_space<vmem>>, %arg8: memref<256x128xf32, #tpu.memory_space<vmem>>, %arg9: memref<256x128xf32, #tpu.memory_space<vmem>>) attributes {dimension_semantics = [#tpu.dimension_semantics<parallel>], iteration_bounds = array<i64: 2>, scalar_prefetch = 0 : i64, scratch_operands = 0 : i64, tpu.core_type = #tpu.core_type<tc>, window_params = [{transform_indices = @transform_0, window_bounds = array<i64: 256, 128>}, {pipeline_mode = #tpu.pipeline_mode<synchronous>, transform_indices = @transform_1, window_bounds = array<i64: 128, 128>}, {pipeline_mode = #tpu.pipeline_mode<synchronous>, transform_indices = @transform_2, window_bounds = array<i64: 1, 128>}, {pipeline_mode = #tpu.pipeline_mode<synchronous>, transform_indices = @transform_3, window_bounds = array<i64: 128, 512>}, {pipeline_mode = #tpu.pipeline_mode<synchronous>, transform_indices = @transform_4, window_bounds = array<i64: 1, 512>}, {pipeline_mode = #tpu.pipeline_mode<synchronous>, transform_indices = @transform_5, window_bounds = array<i64: 512, 128>}, {pipeline_mode = #tpu.pipeline_mode<synchronous>, transform_indices = @transform_6, window_bounds = array<i64: 4, 128>}, {transform_indices = @transform_7, window_bounds = array<i64: 256, 128>}, {transform_indices = @transform_8, window_bounds = array<i64: 256, 128>}]} {
    %c0 = arith.constant 0 : index
    %c0_0 = arith.constant 0 : index
    %0 = vector.load %arg1[%c0, %c0_0] : memref<256x128xf32, #tpu.memory_space<vmem>>, vector<256x128xf32>
    %c0_1 = arith.constant 0 : index
    %c0_2 = arith.constant 0 : index
    %1 = vector.load %arg2[%c0_1, %c0_2] : memref<128x128xf32, #tpu.memory_space<vmem>>, vector<128x128xf32>
    %cst = arith.constant dense<0.000000e+00> : vector<256x128xf32>
    %2 = tpu.matmul %0, %1, %cst {dimension_numbers = #tpu.dot_dimension_numbers<[1], [0], [0], [1], [0, 0, 1, 1], [], []>} : vector<256x128xf32>, vector<128x128xf32>, vector<256x128xf32> -> vector<256x128xf32>
    %c0_3 = arith.constant 0 : index
    %c0_4 = arith.constant 0 : index
    %3 = vector.load %arg3[%c0_3, %c0_4] : memref<1x128xf32, #tpu.memory_space<vmem>>, vector<1x128xf32>
    %4 = vector.broadcast %3 : vector<1x128xf32> to vector<256x128xf32>
    %5 = arith.addf %2, %4 : vector<256x128xf32>
    %6 = tpu.iota {dimensions = array<i32: 1>} : vector<256x128xi32>
    %cst_5 = arith.constant dense<0xFF800000> : vector<256xf32>
    %7 = vector.multi_reduction <maximumf>, %5, %cst_5 [1] : vector<256x128xf32> to vector<256xf32>
    %8 = vector.shape_cast %7 : vector<256xf32> to vector<256x1xf32>
    %9 = vector.broadcast %8 : vector<256x1xf32> to vector<256x128xf32>
    %10 = arith.cmpf oeq, %5, %9 : vector<256x128xf32>
    %c128_i32 = arith.constant 128 : i32
    %11 = vector.broadcast %c128_i32 : i32 to vector<256x128xi32>
    %12 = arith.select %10, %6, %11 : vector<256x128xi1>, vector<256x128xi32>
    %cst_6 = arith.constant dense<2147483647> : vector<256xi32>
    %13 = vector.multi_reduction <minsi>, %12, %cst_6 [1] : vector<256x128xi32> to vector<256xi32>
    %14 = vector.shape_cast %13 : vector<256xi32> to vector<256x1xi32>
    %15 = vector.broadcast %14 : vector<256x1xi32> to vector<256x128xi32>
    %16 = arith.cmpi eq, %6, %15 : vector<256x128xi32>
    %17 = arith.extui %16 : vector<256x128xi1> to vector<256x128xi32>
    %18 = arith.sitofp %17 : vector<256x128xi32> to vector<256x128xf32>
    %cst_7 = arith.constant 0.000000e+00 : f32
    %19 = vector.broadcast %cst_7 : f32 to vector<256x128xf32>
    %20 = arith.cmpf ogt, %18, %19 : vector<256x128xf32>
    %cst_8 = arith.constant 0xFF800000 : f32
    %21 = vector.broadcast %cst_8 : f32 to vector<256x128xf32>
    %22 = arith.select %20, %21, %5 : vector<256x128xi1>, vector<256x128xf32>
    %cst_9 = arith.constant dense<0xFF800000> : vector<256xf32>
    %23 = vector.multi_reduction <maximumf>, %22, %cst_9 [1] : vector<256x128xf32> to vector<256xf32>
    %24 = vector.shape_cast %23 : vector<256xf32> to vector<256x1xf32>
    %25 = vector.broadcast %24 : vector<256x1xf32> to vector<256x128xf32>
    %26 = arith.cmpf oeq, %22, %25 : vector<256x128xf32>
    %c128_i32_10 = arith.constant 128 : i32
    %27 = vector.broadcast %c128_i32_10 : i32 to vector<256x128xi32>
    %28 = arith.select %26, %6, %27 : vector<256x128xi1>, vector<256x128xi32>
    %cst_11 = arith.constant dense<2147483647> : vector<256xi32>
    %29 = vector.multi_reduction <minsi>, %28, %cst_11 [1] : vector<256x128xi32> to vector<256xi32>
    %30 = vector.shape_cast %29 : vector<256xi32> to vector<256x1xi32>
    %31 = vector.broadcast %30 : vector<256x1xi32> to vector<256x128xi32>
    %32 = arith.cmpi eq, %6, %31 : vector<256x128xi32>
    %33 = arith.extui %32 : vector<256x128xi1> to vector<256x128xi32>
    %34 = arith.sitofp %33 : vector<256x128xi32> to vector<256x128xf32>
    %cst_12 = arith.constant 0.000000e+00 : f32
    %35 = vector.broadcast %cst_12 : f32 to vector<256x1xf32>
    %36 = arith.subf %8, %8 : vector<256x1xf32>
    %37 = math.exp %36 : vector<256x1xf32>
    %38 = arith.addf %35, %37 : vector<256x1xf32>
    %39 = arith.subf %24, %8 : vector<256x1xf32>
    %40 = math.exp %39 : vector<256x1xf32>
    %41 = arith.addf %38, %40 : vector<256x1xf32>
    %42 = tpu.reciprocal %41 : vector<256x1xf32> -> vector<256x1xf32>
    %cst_13 = arith.constant 0.000000e+00 : f32
    %43 = vector.broadcast %cst_13 : f32 to vector<256x128xf32>
    %44 = arith.mulf %37, %42 : vector<256x1xf32>
    %45 = vector.broadcast %44 : vector<256x1xf32> to vector<256x128xf32>
    %46 = arith.mulf %45, %18 : vector<256x128xf32>
    %47 = arith.addf %43, %46 : vector<256x128xf32>
    %48 = arith.mulf %40, %42 : vector<256x1xf32>
    %49 = vector.broadcast %48 : vector<256x1xf32> to vector<256x128xf32>
    %50 = arith.mulf %49, %34 : vector<256x128xf32>
    %51 = arith.addf %47, %50 : vector<256x128xf32>
    %c0_14 = arith.constant 0 : index
    %c0_15 = arith.constant 0 : index
    %52 = vector.load %arg9[%c0_14, %c0_15] : memref<256x128xf32, #tpu.memory_space<vmem>>, vector<256x128xf32>
    tpu.vector_store %arg9[%c0_14, %c0_15], %51 {strides = array<i32>} : memref<256x128xf32, #tpu.memory_space<vmem>>, vector<256x128xf32>,
    %53 = arith.truncf %0 : vector<256x128xf32> to vector<256x128xbf16>
    %c0_16 = arith.constant 0 : index
    %c0_17 = arith.constant 0 : index
    %54 = vector.load %arg4[%c0_16, %c0_17] : memref<128x512xbf16, #tpu.memory_space<vmem>>, vector<128x512xbf16>
    %cst_18 = arith.constant dense<0.000000e+00> : vector<256x512xf32>
    %55 = tpu.matmul %53, %54, %cst_18 {dimension_numbers = #tpu.dot_dimension_numbers<[1], [0], [0], [1], [0, 0, 1, 1], [], []>} : vector<256x128xbf16>, vector<128x512xbf16>, vector<256x512xf32> -> vector<256x512xf32>
    %c0_19 = arith.constant 0 : index
    %c0_20 = arith.constant 0 : index
    %56 = vector.load %arg5[%c0_19, %c0_20] : memref<1x512xf32, #tpu.memory_space<vmem>>, vector<1x512xf32>
    %57 = vector.broadcast %56 : vector<1x512xf32> to vector<256x512xf32>
    %58 = arith.addf %55, %57 : vector<256x512xf32>
    %cst_21 = arith.constant 0.000000e+00 : f32
    %59 = vector.broadcast %cst_21 : f32 to vector<256x512xf32>
    %60 = arith.maximumf %58, %59 : vector<256x512xf32>
    %61 = vector.extract_strided_slice %51 {offsets = [0, 0], sizes = [256, 1], strides = [1, 1]} : vector<256x128xf32> to vector<256x1xf32>
    %62 = vector.shape_cast %61 : vector<256x1xf32> to vector<256x1xf32>
    %63 = vector.broadcast %62 : vector<256x1xf32> to vector<256x128xf32>
    %64 = vector.extract_strided_slice %51 {offsets = [0, 1], sizes = [256, 1], strides = [1, 1]} : vector<256x128xf32> to vector<256x1xf32>
    %65 = vector.shape_cast %64 : vector<256x1xf32> to vector<256x1xf32>
    %66 = vector.broadcast %65 : vector<256x1xf32> to vector<256x128xf32>
    %67 = vector.extract_strided_slice %51 {offsets = [0, 2], sizes = [256, 1], strides = [1, 1]} : vector<256x128xf32> to vector<256x1xf32>
    %68 = vector.shape_cast %67 : vector<256x1xf32> to vector<256x1xf32>
    %69 = vector.broadcast %68 : vector<256x1xf32> to vector<256x128xf32>
    %70 = vector.extract_strided_slice %51 {offsets = [0, 3], sizes = [256, 1], strides = [1, 1]} : vector<256x128xf32> to vector<256x1xf32>
    %71 = vector.shape_cast %70 : vector<256x1xf32> to vector<256x1xf32>
    %72 = vector.broadcast %71 : vector<256x1xf32> to vector<256x128xf32>
    %73 = tpu.concatenate %63, %66, %69, %72 in 1 : vector<256x128xf32>, vector<256x128xf32>, vector<256x128xf32>, vector<256x128xf32> -> vector<256x512xf32>
    %cst_22 = arith.constant 0.000000e+00 : f32
    %74 = vector.broadcast %cst_22 : f32 to vector<256x512xf32>
    %75 = arith.cmpf ogt, %73, %74 : vector<256x512xf32>
    %76 = arith.mulf %73, %60 : vector<256x512xf32>
    %cst_23 = arith.constant 0.000000e+00 : f32
    %77 = vector.broadcast %cst_23 : f32 to vector<256x512xf32>
    %78 = arith.select %75, %76, %77 : vector<256x512xi1>, vector<256x512xf32>
    %79 = arith.truncf %78 : vector<256x512xf32> to vector<256x512xbf16>
    %c0_24 = arith.constant 0 : index
    %c0_25 = arith.constant 0 : index
    %80 = vector.load %arg6[%c0_24, %c0_25] : memref<512x128xbf16, #tpu.memory_space<vmem>>, vector<512x128xbf16>
    %cst_26 = arith.constant dense<0.000000e+00> : vector<256x128xf32>
    %81 = tpu.matmul %79, %80, %cst_26 {dimension_numbers = #tpu.dot_dimension_numbers<[1], [0], [0], [1], [0, 0, 1, 1], [], []>} : vector<256x512xbf16>, vector<512x128xbf16>, vector<256x128xf32> -> vector<256x128xf32>
    %c0_27 = arith.constant 0 : index
    %c0_28 = arith.constant 0 : index
    %82 = vector.load %arg7[%c0_27, %c0_28] : memref<4x128xf32, #tpu.memory_space<vmem>>, vector<4x128xf32>
    %83 = vector.extract_strided_slice %51 {offsets = [0, 0], sizes = [256, 1], strides = [1, 1]} : vector<256x128xf32> to vector<256x1xf32>
    %84 = vector.extract_strided_slice %82 {offsets = [0, 0], sizes = [1, 128], strides = [1, 1]} : vector<4x128xf32> to vector<1x128xf32>
    %85 = vector.broadcast %83 : vector<256x1xf32> to vector<256x128xf32>
    %86 = vector.broadcast %84 : vector<1x128xf32> to vector<256x128xf32>
    %87 = arith.mulf %85, %86 : vector<256x128xf32>
    %88 = arith.addf %81, %87 : vector<256x128xf32>
    %89 = vector.extract_strided_slice %51 {offsets = [0, 1], sizes = [256, 1], strides = [1, 1]} : vector<256x128xf32> to vector<256x1xf32>
    %90 = vector.extract_strided_slice %82 {offsets = [1, 0], sizes = [1, 128], strides = [1, 1]} : vector<4x128xf32> to vector<1x128xf32>
    %91 = vector.broadcast %89 : vector<256x1xf32> to vector<256x128xf32>
    %92 = vector.broadcast %90 : vector<1x128xf32> to vector<256x128xf32>
    %93 = arith.mulf %91, %92 : vector<256x128xf32>
    %94 = arith.addf %88, %93 : vector<256x128xf32>
    %95 = vector.extract_strided_slice %51 {offsets = [0, 2], sizes = [256, 1], strides = [1, 1]} : vector<256x128xf32> to vector<256x1xf32>
    %96 = vector.extract_strided_slice %82 {offsets = [2, 0], sizes = [1, 128], strides = [1, 1]} : vector<4x128xf32> to vector<1x128xf32>
    %97 = vector.broadcast %95 : vector<256x1xf32> to vector<256x128xf32>
    %98 = vector.broadcast %96 : vector<1x128xf32> to vector<256x128xf32>
    %99 = arith.mulf %97, %98 : vector<256x128xf32>
    %100 = arith.addf %94, %99 : vector<256x128xf32>
    %101 = vector.extract_strided_slice %51 {offsets = [0, 3], sizes = [256, 1], strides = [1, 1]} : vector<256x128xf32> to vector<256x1xf32>
    %102 = vector.extract_strided_slice %82 {offsets = [3, 0], sizes = [1, 128], strides = [1, 1]} : vector<4x128xf32> to vector<1x128xf32>
    %103 = vector.broadcast %101 : vector<256x1xf32> to vector<256x128xf32>
    %104 = vector.broadcast %102 : vector<1x128xf32> to vector<256x128xf32>
    %105 = arith.mulf %103, %104 : vector<256x128xf32>
    %106 = arith.addf %100, %105 : vector<256x128xf32>
    %c0_29 = arith.constant 0 : index
    %c0_30 = arith.constant 0 : index
    %107 = vector.load %arg8[%c0_29, %c0_30] : memref<256x128xf32, #tpu.memory_space<vmem>>, vector<256x128xf32>
    tpu.vector_store %arg8[%c0_29, %c0_30], %106 {strides = array<i32>} : memref<256x128xf32, #tpu.memory_space<vmem>>, vector<256x128xf32>,
    return
  }
  func.func @transform_0(%arg0: i32) -> (i32, i32) {
    %c0_i32 = arith.constant 0 : i32
    %c0_i32_0 = arith.constant 0 : i32
    return %arg0, %c0_i32 : i32, i32
  }
  func.func @transform_1(%arg0: i32) -> (i32, i32) {
    %c0_i32 = arith.constant 0 : i32
    %c0_i32_0 = arith.constant 0 : i32
    %c0_i32_1 = arith.constant 0 : i32
    return %c0_i32, %c0_i32_0 : i32, i32
  }
  func.func @transform_2(%arg0: i32) -> (i32, i32) {
    %c0_i32 = arith.constant 0 : i32
    %c0_i32_0 = arith.constant 0 : i32
    %c0_i32_1 = arith.constant 0 : i32
    return %c0_i32, %c0_i32_0 : i32, i32
  }
  func.func @transform_3(%arg0: i32) -> (i32, i32) {
    %c0_i32 = arith.constant 0 : i32
    %c0_i32_0 = arith.constant 0 : i32
    %c0_i32_1 = arith.constant 0 : i32
    return %c0_i32, %c0_i32_0 : i32, i32
  }
  func.func @transform_4(%arg0: i32) -> (i32, i32) {
    %c0_i32 = arith.constant 0 : i32
    %c0_i32_0 = arith.constant 0 : i32
    %c0_i32_1 = arith.constant 0 : i32
    return %c0_i32, %c0_i32_0 : i32, i32
  }
  func.func @transform_5(%arg0: i32) -> (i32, i32) {
    %c0_i32 = arith.constant 0 : i32
    %c0_i32_0 = arith.constant 0 : i32
    %c0_i32_1 = arith.constant 0 : i32
    return %c0_i32, %c0_i32_0 : i32, i32
  }
  func.func @transform_6(%arg0: i32) -> (i32, i32) {
    %c0_i32 = arith.constant 0 : i32
    %c0_i32_0 = arith.constant 0 : i32
    %c0_i32_1 = arith.constant 0 : i32
    return %c0_i32, %c0_i32_0 : i32, i32
  }
  func.func @transform_7(%arg0: i32) -> (i32, i32) {
    %c0_i32 = arith.constant 0 : i32
    %c0_i32_0 = arith.constant 0 : i32
    return %arg0, %c0_i32 : i32, i32
  }
  func.func @transform_8(%arg0: i32) -> (i32, i32) {
    %c0_i32 = arith.constant 0 : i32
    %c0_i32_0 = arith.constant 0 : i32
    return %arg0, %c0_i32 : i32, i32
  }
}

</mosaic_0001>

<llo_original>
// kernel: moe_forward.1
$region0: #{moe_forward.1}
  #allocation0 [shape = 'u32[]', space=smem, size = 0x4, offset = 0x4, fixed_abs, tag = 'smem constant byte address 0x4 - core index']
  #allocation1 [shape = 'u32[72,128]{1,0:T(1,128)}', space=vmem, size = 0x9000, scoped, tag = 'internal scratch']
  %s0 = inlined_call_operand.hbm [shape: f32[512,128], index: 0, kind: input, shape index: {}]
  %s1 = inlined_call_operand.hbm [shape: f32[128,128], index: 1, kind: input, shape index: {}]
  %s2 = inlined_call_operand.vmem [shape: f32[1,128], index: 2, kind: input, shape index: {}]
  %s3 = inlined_call_operand.hbm [shape: bf16[128,512], index: 3, kind: input, shape index: {}]
  %s4 = inlined_call_operand.hbm [shape: f32[1,512], index: 4, kind: input, shape index: {}]
  %s5 = inlined_call_operand.hbm [shape: bf16[512,128], index: 5, kind: input, shape index: {}]
  %s6 = inlined_call_operand.hbm [shape: f32[4,128], index: 6, kind: input, shape index: {}]
  %s7 = inlined_call_operand.hbm [shape: f32[512,128], index: 7, kind: output, shape index: {0}]
  %s8 = inlined_call_operand.vmem [shape: f32[512,128], index: 8, kind: output, shape index: {1}]
  %9 = xla_tuple %s7, %s8
  %s10 = sld [smem:[#allocation0]]
  $region93: #{moe_forward.1} parent=0
    _
  %s12 = ssub.s32 1, %s10
  %s13 = scalar_select 0, %s12, %s10
  $region1: #{moe_forward.1} parent=0
    #allocation2 [shape = 'u8[262144]{0}', space=vmem, size = 0x40000, scoped, tag = 'input window, operand 0']
    #allocation3 [shape = 's32[2]{0}', space=sflag, size = 0x8, scoped, tag = 'scoped memory for moe_forward.1']
    #allocation4 [shape = 's32[2]{0}', space=sflag, size = 0x8, scoped, tag = 'scoped memory for moe_forward.1']
    #allocation5 [shape = 'u8[65536]{0}', space=vmem, size = 0x10000, scoped, tag = 'input window, operand 1, single buffered']
    #allocation6 [shape = 's32[1]{0}', space=sflag, size = 0x4, scoped, tag = 'scoped memory for moe_forward.1']
    #allocation7 [shape = 'u8[131072]{0}', space=vmem, size = 0x20000, scoped, tag = 'input window, operand 3, single buffered']
    #allocation8 [shape = 'u8[2048]{0}', space=vmem, size = 0x800, scoped, tag = 'input window, operand 4, single buffered']
    #allocation9 [shape = 's32[1]{0}', space=sflag, size = 0x4, scoped, tag = 'scoped memory for moe_forward.1']
    #allocation10 [shape = 'u8[131072]{0}', space=vmem, size = 0x20000, scoped, tag = 'input window, operand 5, single buffered']
    #allocation11 [shape = 'u8[2048]{0}', space=vmem, size = 0x800, scoped, tag = 'input window, operand 6, single buffered']
    #allocation12 [shape = 's32[1]{0}', space=sflag, size = 0x4, scoped, tag = 'scoped memory for moe_forward.1']
    #allocation13 [shape = 'u8[262144]{0}', space=vmem, size = 0x40000, scoped, tag = 'output window, operand 0']
    %14 = vsyncpa [#allocation3], 0
    %s15 = scalar_lea.sflag [#allocation3], 1
    %16 = vsyncpa %s15, 0
    %17 = vsyncpa [#allocation6], 0
    %18 = vsyncpa [#allocation9], 0
    %19 = vsyncpa [#allocation12], 0
    %20 = vsyncpa [#allocation4], 0
    %s21 = scalar_lea.sflag [#allocation4], 1
    %22 = vsyncpa %s21, 0
    loop: start=0, step=1, limit=4
    $region2: #{moe_forward.1} parent=1 // loop_pre_header
      _
    $region3: #{moe_forward.1} parent=1 // loop_header
      %s24 = sphi 0, %s28
      %p25 = scmp.ge.s32.totalorder %s24, 4
      %s34 = sphi 0, %s36
      %s37 = sphi 0, %s34
      %s38 = sphi 0, %s37
      %s54 = sphi 0, %s38
      %s58 = sphi 0, %s58
      %s60 = sphi 0, %s58
      %s61 = sphi 0, %s60
      %s75 = sphi 0, %s61
      %s79 = sphi 0, %s79
      %s81 = sphi 0, %s79
      %s82 = sphi 0, %s81
      %s96 = sphi 0, %s82
      %s100 = sphi 0, %s100
      %s102 = sphi 0, %s100
      %s103 = sphi 0, %s102
      %s117 = sphi 0, %s103
      %s121 = sphi 0, %s121
      %s123 = sphi 0, %s121
      %s124 = sphi 0, %s123
      %s138 = sphi 0, %s124
      %s142 = sphi 0, %s142
      %s144 = sphi 0, %s142
      %s145 = sphi 0, %s144
      %s159 = sphi 0, %s145
      %s163 = sphi 0, %s163
      %s165 = sphi 0, %s163
      %s166 = sphi 0, %s165
      %s180 = sphi 0, %s166
      %s186 = sphi 0, %s188
      %s189 = sphi 0, %s186
      %s190 = sphi 0, %s189
      %s206 = sphi 0, %s190
      %s212 = sphi 0, %s214
      %s215 = sphi 0, %s212
      %s216 = sphi 0, %s215
      %s232 = sphi 0, %s216
    $region4: #{moe_forward.1} parent=1 // loop_header_branch
      %27 = sbr.rel (%p25) target = $region8
    $region5: #{moe_forward.1} parent=1 // loop_body
      %s29 = ssub.s32 %s24, 1
      %s30 = ssub.s32 %s24, 2
      %s31 = sadd.s32 %s24, 1
      %s32 = ssub.s32 %s24, %s31
      %p33 = scmp.eq.s32.totalorder %s32, 0
      %s35 = sadd.s32 %s34, 1
      %s36 = scalar_select %p33, %s34, %s35
      %p39 = pneg %p33
      %p40 = scmp.eq.s32.totalorder %s24, 1
      %p41 = por %p39, %p40
      %p42 = scmp.ne.s32.totalorder %s34, %s37
      %p43 = scmp.eq.s32.totalorder %s24, 0
      %p44 = por %p42, %p43
      %p45 = scmp.ne.s32.totalorder %s34, %s37
      %p46 = scmp.eq.s32.totalorder %s29, 1
      %p47 = por %p45, %p46
      %p48 = scmp.ne.s32.totalorder %s37, %s38
      %p49 = scmp.eq.s32.totalorder %s29, 0
      %p50 = por %p48, %p49
      %p51 = scmp.ne.s32.totalorder %s37, %s38
      %p52 = scmp.eq.s32.totalorder %s30, 1
      %p53 = por %p51, %p52
      %p55 = scmp.ne.s32.totalorder %s38, %s54
      %p56 = scmp.eq.s32.totalorder %s30, 0
      %p57 = por %p55, %p56
      %s59 = sadd.s32 %s58, 1
      %p62 = scmp.eq.s32.totalorder %s24, 1
      %p63 = scmp.ne.s32.totalorder %s58, %s60
      %p64 = scmp.eq.s32.totalorder %s24, 0
      %p65 = por %p63, %p64
      %p66 = scmp.ne.s32.totalorder %s58, %s60
      %p67 = scmp.eq.s32.totalorder %s29, 1
      %p68 = por %p66, %p67
      %p69 = scmp.ne.s32.totalorder %s60, %s61
      %p70 = scmp.eq.s32.totalorder %s29, 0
      %p71 = por %p69, %p70
      %p72 = scmp.ne.s32.totalorder %s60, %s61
      %p73 = scmp.eq.s32.totalorder %s30, 1
      %p74 = por %p72, %p73
      %p76 = scmp.ne.s32.totalorder %s61, %s75
      %p77 = scmp.eq.s32.totalorder %s30, 0
      %p78 = por %p76, %p77
      %s80 = sadd.s32 %s79, 1
      %p83 = scmp.eq.s32.totalorder %s24, 1
      %p84 = scmp.ne.s32.totalorder %s79, %s81
      %p85 = scmp.eq.s32.totalorder %s24, 0
      %p86 = por %p84, %p85
      %p87 = scmp.ne.s32.totalorder %s79, %s81
      %p88 = scmp.eq.s32.totalorder %s29, 1
      %p89 = por %p87, %p88
      %p90 = scmp.ne.s32.totalorder %s81, %s82
      %p91 = scmp.eq.s32.totalorder %s29, 0
      %p92 = por %p90, %p91
      %p93 = scmp.ne.s32.totalorder %s81, %s82
      %p94 = scmp.eq.s32.totalorder %s30, 1
      %p95 = por %p93, %p94
      %p97 = scmp.ne.s32.totalorder %s82, %s96
      %p98 = scmp.eq.s32.totalorder %s30, 0
      %p99 = por %p97, %p98
      %s101 = sadd.s32 %s100, 1
      %p104 = scmp.eq.s32.totalorder %s24, 1
      %p105 = scmp.ne.s32.totalorder %s100, %s102
      %p106 = scmp.eq.s32.totalorder %s24, 0
      %p107 = por %p105, %p106
      %p108 = scmp.ne.s32.totalorder %s100, %s102
      %p109 = scmp.eq.s32.totalorder %s29, 1
      %p110 = por %p108, %p109
      %p111 = scmp.ne.s32.totalorder %s102, %s103
      %p112 = scmp.eq.s32.totalorder %s29, 0
      %p113 = por %p111, %p112
      %p114 = scmp.ne.s32.totalorder %s102, %s103
      %p115 = scmp.eq.s32.totalorder %s30, 1
      %p116 = por %p114, %p115
      %p118 = scmp.ne.s32.totalorder %s103, %s117
      %p119 = scmp.eq.s32.totalorder %s30, 0
      %p120 = por %p118, %p119
      %s122 = sadd.s32 %s121, 1
      %p125 = scmp.eq.s32.totalorder %s24, 1
      %p126 = scmp.ne.s32.totalorder %s121, %s123
      %p127 = scmp.eq.s32.totalorder %s24, 0
      %p128 = por %p126, %p127
      %p129 = scmp.ne.s32.totalorder %s121, %s123
      %p130 = scmp.eq.s32.totalorder %s29, 1
      %p131 = por %p129, %p130
      %p132 = scmp.ne.s32.totalorder %s123, %s124
      %p133 = scmp.eq.s32.totalorder %s29, 0
      %p134 = por %p132, %p133
      %p135 = scmp.ne.s32.totalorder %s123, %s124
      %p136 = scmp.eq.s32.totalorder %s30, 1
      %p137 = por %p135, %p136
      %p139 = scmp.ne.s32.totalorder %s124, %s138
      %p140 = scmp.eq.s32.totalorder %s30, 0
      %p141 = por %p139, %p140
      %s143 = sadd.s32 %s142, 1
      %p146 = scmp.eq.s32.totalorder %s24, 1
      %p147 = scmp.ne.s32.totalorder %s142, %s144
      %p148 = scmp.eq.s32.totalorder %s24, 0
      %p149 = por %p147, %p148
      %p150 = scmp.ne.s32.totalorder %s142, %s144
      %p151 = scmp.eq.s32.totalorder %s29, 1
      %p152 = por %p150, %p151
      %p153 = scmp.ne.s32.totalorder %s144, %s145
      %p154 = scmp.eq.s32.totalorder %s29, 0
      %p155 = por %p153, %p154
      %p156 = scmp.ne.s32.totalorder %s144, %s145
      %p157 = scmp.eq.s32.totalorder %s30, 1
      %p158 = por %p156, %p157
      %p160 = scmp.ne.s32.totalorder %s145, %s159
      %p161 = scmp.eq.s32.totalorder %s30, 0
      %p162 = por %p160, %p161
      %s164 = sadd.s32 %s163, 1
      %p167 = scmp.eq.s32.totalorder %s24, 1
      %p168 = scmp.ne.s32.totalorder %s163, %s165
      %p169 = scmp.eq.s32.totalorder %s24, 0
      %p170 = por %p168, %p169
      %p171 = scmp.ne.s32.totalorder %s163, %s165
      %p172 = scmp.eq.s32.totalorder %s29, 1
      %p173 = por %p171, %p172
      %p174 = scmp.ne.s32.totalorder %s165, %s166
      %p175 = scmp.eq.s32.totalorder %s29, 0
      %p176 = por %p174, %p175
      %p177 = scmp.ne.s32.totalorder %s165, %s166
      %p178 = scmp.eq.s32.totalorder %s30, 1
      %p179 = por %p177, %p178
      %p181 = scmp.ne.s32.totalorder %s166, %s180
      %p182 = scmp.eq.s32.totalorder %s30, 0
      %p183 = por %p181, %p182
      %s184 = ssub.s32 %s24, %s31
      %p185 = scmp.eq.s32.totalorder %s184, 0
      %s187 = sadd.s32 %s186, 1
      %s188 = scalar_select %p185, %s186, %s187
      %p191 = pneg %p185
      %p192 = scmp.eq.s32.totalorder %s24, 1
      %p193 = por %p191, %p192
      %p194 = scmp.ne.s32.totalorder %s186, %s189
      %p195 = scmp.eq.s32.totalorder %s24, 0
      %p196 = por %p194, %p195
      %p197 = scmp.ne.s32.totalorder %s186, %s189
      %p198 = scmp.eq.s32.totalorder %s29, 1
      %p199 = por %p197, %p198
      %p200 = scmp.ne.s32.totalorder %s189, %s190
      %p201 = scmp.eq.s32.totalorder %s29, 0
      %p202 = por %p200, %p201
      %p203 = scmp.ne.s32.totalorder %s189, %s190
      %p204 = scmp.eq.s32.totalorder %s30, 1
      %p205 = por %p203, %p204
      %p207 = scmp.ne.s32.totalorder %s190, %s206
      %p208 = scmp.eq.s32.totalorder %s30, 0
      %p209 = por %p207, %p208
      %s210 = ssub.s32 %s24, %s31
      %p211 = scmp.eq.s32.totalorder %s210, 0
      %s213 = sadd.s32 %s212, 1
      %s214 = scalar_select %p211, %s212, %s213
      %p217 = pneg %p211
      %p218 = scmp.eq.s32.totalorder %s24, 1
      %p219 = por %p217, %p218
      %p220 = scmp.ne.s32.totalorder %s212, %s215
      %p221 = scmp.eq.s32.totalorder %s24, 0
      %p222 = por %p220, %p221
      %p223 = scmp.ne.s32.totalorder %s212, %s215
      %p224 = scmp.eq.s32.totalorder %s29, 1
      %p225 = por %p223, %p224
      %p226 = scmp.ne.s32.totalorder %s215, %s216
      %p227 = scmp.eq.s32.totalorder %s29, 0
      %p228 = por %p226, %p227
      %p229 = scmp.ne.s32.totalorder %s215, %s216
      %p230 = scmp.eq.s32.totalorder %s30, 1
      %p231 = por %p229, %p230
      %p233 = scmp.ne.s32.totalorder %s216, %s232
      %p234 = scmp.eq.s32.totalorder %s30, 0
      %p235 = por %p233, %p234
      %p236 = scmp.le.s32.totalorder 1, %s24
      %p237 = scmp.lt.s32.totalorder %s24, 3
      %p238 = pnand %p236, %p237
      %p239 = pneg %p238
      // Predicated region
      $region9: #{moe_forward.1} parent=5 // pred_check
        _
      $region10: #{moe_forward.1} parent=5 // pred_check_branch
        %241 = sbr.rel (%p238) target = $region12
      $region11: #{moe_forward.1} parent=5 // pred_region
        %s242 = ssub.s32 %s24, 1
        // Predicated region
        $region13: #{moe_forward.1} parent=11 // pred_check
          %p243 = pneg %p71
        $region14: #{moe_forward.1} parent=11 // pred_check_branch
          %245 = sbr.rel (%p243) target = $region16
        $region15: #{moe_forward.1} parent=11 // pred_region
          %247 = vsyncadd [#allocation6], 0
          %s248 = sshll.u32 %s1, 4
          %s249 = int_to_ptr.hbm [resolvable:$true] %s248
          %s250 = sshll.u32 [#allocation5], 4
          %s251 = int_to_ptr.vmem [resolvable:$true] %s250
          %256 = dma.hbm_to_vmem [thread:$0]  %s249, 2048, %s251, [#allocation6], 128, 128, 8
        $region16: #{moe_forward.1} parent=11 // pred_fallthru
          _
        // Predicated region
        $region17: #{moe_forward.1} parent=11 // pred_check
          %p257 = pneg %p92
        $region18: #{moe_forward.1} parent=11 // pred_check_branch
          %259 = sbr.rel (%p257) target = $region20
        $region19: #{moe_forward.1} parent=11 // pred_region
          _
        $region20: #{moe_forward.1} parent=11 // pred_fallthru
          _
        // Predicated region
        $region21: #{moe_forward.1} parent=11 // pred_check
          %p260 = pneg %p113
        $region22: #{moe_forward.1} parent=11 // pred_check_branch
          %262 = sbr.rel (%p260) target = $region24
        $region23: #{moe_forward.1} parent=11 // pred_region
          %264 = vsyncadd [#allocation6], 0
          %s265 = sshll.u32 %s3, 4
          %s266 = int_to_ptr.hbm [resolvable:$true] %s265
          %s267 = sshll.u32 [#allocation7], 4
          %s268 = int_to_ptr.vmem [resolvable:$true] %s267
          %273 = dma.hbm_to_vmem [thread:$0]  %s266, 4096, %s268, [#allocation6], 256, 256, 16
        $region24: #{moe_forward.1} parent=11 // pred_fallthru
          _
        // Predicated region
        $region25: #{moe_forward.1} parent=11 // pred_check
          %p274 = pneg %p134
        $region26: #{moe_forward.1} parent=11 // pred_check_branch
          %276 = sbr.rel (%p274) target = $region28
        $region27: #{moe_forward.1} parent=11 // pred_region
          %278 = vsyncadd [#allocation9], 0
          %s280 = sshll.u32 %s4, 4
          %s281 = int_to_ptr.hbm [resolvable:$true] %s280
          %s282 = sshll.u32 [#allocation8], 4
          %s283 = int_to_ptr.vmem [resolvable:$true] %s282
          %285 = dma.hbm_to_vmem [thread:$0]  %s281, 64, %s283, [#allocation9]
        $region28: #{moe_forward.1} parent=11 // pred_fallthru
          _
        // Predicated region
        $region29: #{moe_forward.1} parent=11 // pred_check
          %p286 = pneg %p155
        $region30: #{moe_forward.1} parent=11 // pred_check_branch
          %288 = sbr.rel (%p286) target = $region32
        $region31: #{moe_forward.1} parent=11 // pred_region
          %290 = vsyncadd [#allocation9], 0
          %s291 = sshll.u32 %s5, 4
          %s292 = int_to_ptr.hbm [resolvable:$true] %s291
          %s293 = sshll.u32 [#allocation10], 4
          %s294 = int_to_ptr.vmem [resolvable:$true] %s293
          %299 = dma.hbm_to_vmem [thread:$0]  %s292, 4096, %s294, [#allocation9], 64, 64, 4
        $region32: #{moe_forward.1} parent=11 // pred_fallthru
          _
        // Predicated region
        $region33: #{moe_forward.1} parent=11 // pred_check
          %p300 = pneg %p176
        $region34: #{moe_forward.1} parent=11 // pred_check_branch
          %302 = sbr.rel (%p300) target = $region36
        $region35: #{moe_forward.1} parent=11 // pred_region
          %304 = vsyncadd [#allocation12], 0
          %s306 = sshll.u32 %s6, 4
          %s307 = int_to_ptr.hbm [resolvable:$true] %s306
          %s308 = sshll.u32 [#allocation11], 4
          %s309 = int_to_ptr.vmem [resolvable:$true] %s308
          %311 = dma.hbm_to_vmem [thread:$0]  %s307, 64, %s309, [#allocation12]
        $region36: #{moe_forward.1} parent=11 // pred_fallthru
          _
      $region12: #{moe_forward.1} parent=5 // pred_fallthru
        _
      %p312 = scmp.lt.s32.totalorder %s24, 2
      // Predicated region
      $region37: #{moe_forward.1} parent=5 // pred_check
        %p313 = pneg %p312
      $region38: #{moe_forward.1} parent=5 // pred_check_branch
        %315 = sbr.rel (%p313) target = $region40
      $region39: #{moe_forward.1} parent=5 // pred_region
        // Predicated region
        $region41: #{moe_forward.1} parent=39 // pred_check
          %p316 = pneg %p44
        $region42: #{moe_forward.1} parent=39 // pred_check_branch
          %318 = sbr.rel (%p316) target = $region44
        $region43: #{moe_forward.1} parent=39 // pred_region
          %s319 = sand.u32 %s34, 1
          %s320 = scalar_lea.sflag [#allocation3], %s319
          %s321 = sand.u32 %s34, 1
          %s322 = smul.addr %s321, 256
          %s323 = scalar_lea.vmem [#allocation2], %s322
          %s324 = smul.u32 32, %s24
          %326 = vsyncadd %s320, 0
          %s327 = smul.addr %s324, 8
          %s328 = scalar_lea.hbm %s0, %s327
          %s329 = sshll.u32 %s328, 4
          %s330 = int_to_ptr.hbm [resolvable:$true] %s329
          %s331 = sshll.u32 %s323, 4
          %s332 = int_to_ptr.vmem [resolvable:$true] %s331
          %337 = dma.hbm_to_vmem [thread:$0]  %s330, 4096, %s332, %s320, 128, 128, 8
        $region44: #{moe_forward.1} parent=39 // pred_fallthru
          _
      $region40: #{moe_forward.1} parent=5 // pred_fallthru
        _
      %p338 = scmp.le.s32.totalorder 1, %s24
      %p339 = scmp.lt.s32.totalorder %s24, 3
      %p340 = pnand %p338, %p339
      %p341 = pneg %p340
      // Predicated region
      $region45: #{moe_forward.1} parent=5 // pred_check
        _
      $region46: #{moe_forward.1} parent=5 // pred_check_branch
        %343 = sbr.rel (%p340) target = $region48
      $region47: #{moe_forward.1} parent=5 // pred_region
        %s344 = ssub.s32 %s24, 1
        %s345 = sand.u32 %s37, 1
        %s346 = scalar_lea.sflag [#allocation3], %s345
        %s347 = sand.u32 %s37, 1
        %s348 = smul.addr %s347, 256
        %s349 = scalar_lea.vmem [#allocation2], %s348
        // Predicated region
        $region49: #{moe_forward.1} parent=47 // pred_check
          %p350 = pneg %p50
        $region50: #{moe_forward.1} parent=47 // pred_check_branch
          %352 = sbr.rel (%p350) target = $region52
        $region51: #{moe_forward.1} parent=47 // pred_region
          %354 = dma.done %s346, 4096
        $region52: #{moe_forward.1} parent=47 // pred_fallthru
          _
        // Predicated region
        $region53: #{moe_forward.1} parent=47 // pred_check
          %p355 = pneg %p71
        $region54: #{moe_forward.1} parent=47 // pred_check_branch
          %357 = sbr.rel (%p355) target = $region56
        $region55: #{moe_forward.1} parent=47 // pred_region
          %359 = dma.done [#allocation6], 2048
        $region56: #{moe_forward.1} parent=47 // pred_fallthru
          _
        // Predicated region
        $region57: #{moe_forward.1} parent=47 // pred_check
          %p360 = pneg %p113
        $region58: #{moe_forward.1} parent=47 // pred_check_branch
          %362 = sbr.rel (%p360) target = $region60
        $region59: #{moe_forward.1} parent=47 // pred_region
          %364 = dma.done [#allocation6], 4096
        $region60: #{moe_forward.1} parent=47 // pred_fallthru
          _
        // Predicated region
        $region61: #{moe_forward.1} parent=47 // pred_check
          %p365 = pneg %p134
        $region62: #{moe_forward.1} parent=47 // pred_check_branch
          %367 = sbr.rel (%p365) target = $region64
        $region63: #{moe_forward.1} parent=47 // pred_region
          %369 = dma.done [#allocation9], 64
        $region64: #{moe_forward.1} parent=47 // pred_fallthru
          _
        // Predicated region
        $region65: #{moe_forward.1} parent=47 // pred_check
          %p370 = pneg %p155
        $region66: #{moe_forward.1} parent=47 // pred_check_branch
          %372 = sbr.rel (%p370) target = $region68
        $region67: #{moe_forward.1} parent=47 // pred_region
          %374 = dma.done [#allocation9], 4096
        $region68: #{moe_forward.1} parent=47 // pred_fallthru
          _
        // Predicated region
        $region69: #{moe_forward.1} parent=47 // pred_check
          %p375 = pneg %p176
        $region70: #{moe_forward.1} parent=47 // pred_check_branch
          %377 = sbr.rel (%p375) target = $region72
        $region71: #{moe_forward.1} parent=47 // pred_region
          %379 = dma.done [#allocation12], 64
        $region72: #{moe_forward.1} parent=47 // pred_fallthru
          _
        %s380 = sand.u32 %s37, 1
        %s381 = scalar_lea.sflag [#allocation3], %s380
        %s382 = sand.u32 %s37, 1
        %s383 = smul.addr %s382, 256
        %s384 = scalar_lea.vmem [#allocation2], %s383
        %p385 = pneg %p50
        %p386 = pneg %p47
        %p387 = pneg %p71
        %p388 = pneg %p68
        %p389 = pneg %p92
        %p390 = pneg %p89
        %p391 = pneg %p113
        %p392 = pneg %p110
        %p393 = pneg %p134
        %p394 = pneg %p131
        %p395 = pneg %p155
        %p396 = pneg %p152
        %p397 = pneg %p176
        %p398 = pneg %p173
        %p399 = pneg %p202
        %p400 = pneg %p199
        %s401 = sand.u32 %s189, 1
        %s402 = scalar_lea.sflag [#allocation4], %s401
        %s403 = sand.u32 %s189, 1
        %s404 = smul.addr %s403, 256
        %s405 = scalar_lea.vmem [#allocation13], %s404
        %p406 = pneg %p228
        %p407 = pneg %p225
        %s408 = smul.u32 32, %s29
        %p409 = scmp.lt.s32.totalorder %s408, 63
        %s410 = scalar_select %p409, %s408, 63
        %s411 = smul.addr %s410, 8
        %s412 = scalar_lea.vmem %s8, %s411
        %s413 = smul.u32 32, %s29
        %s414 = smul.u32 32, %s29
        %s415 = smul.u32 32, %s29
        %p416 = scmp.lt.s32.totalorder %s415, 63
        %s417 = scalar_select %p416, %s415, 63
        %s418 = smul.addr %s417, 8
        %s419 = scalar_lea.vmem %s8, %s418
        %s420 = smul.u32 32, %s29
        %v421 = vld [vmem:[%s349] sm:$0xff]
        %v422 = vld [vmem:[%s349 + $0x8] sm:$0xff]
        %v423 = vld [vmem:[%s349 + $0x10] sm:$0xff]
        %v424 = vld [vmem:[%s349 + $0x18] sm:$0xff]
        %v425 = vld [vmem:[%s349 + $0x20] sm:$0xff]
        %v426 = vld [vmem:[%s349 + $0x28] sm:$0xff]
        %v427 = vld [vmem:[%s349 + $0x30] sm:$0xff]
        %v428 = vld [vmem:[%s349 + $0x38] sm:$0xff]
        %v429 = vld [vmem:[%s349 + $0x40] sm:$0xff]
        %v430 = vld [vmem:[%s349 + $0x48] sm:$0xff]
        %v431 = vld [vmem:[%s349 + $0x50] sm:$0xff]
        %v432 = vld [vmem:[%s349 + $0x58] sm:$0xff]
        %v433 = vld [vmem:[%s349 + $0x60] sm:$0xff]
        %v434 = vld [vmem:[%s349 + $0x68] sm:$0xff]
        %v435 = vld [vmem:[%s349 + $0x70] sm:$0xff]
        %v436 = vld [vmem:[%s349 + $0x78] sm:$0xff]
        %v437 = vld [vmem:[%s349 + $0x80] sm:$0xff]
        %v438 = vld [vmem:[%s349 + $0x88] sm:$0xff]
        %v439 = vld [vmem:[%s349 + $0x90] sm:$0xff]
        %v440 = vld [vmem:[%s349 + $0x98] sm:$0xff]
        %v441 = vld [vmem:[%s349 + $0xa0] sm:$0xff]
        %v442 = vld [vmem:[%s349 + $0xa8] sm:$0xff]
        %v443 = vld [vmem:[%s349 + $0xb0] sm:$0xff]
        %v444 = vld [vmem:[%s349 + $0xb8] sm:$0xff]
        %v445 = vld [vmem:[%s349 + $0xc0] sm:$0xff]
        %v446 = vld [vmem:[%s349 + $0xc8] sm:$0xff]
        %v447 = vld [vmem:[%s349 + $0xd0] sm:$0xff]
        %v448 = vld [vmem:[%s349 + $0xd8] sm:$0xff]
        %v449 = vld [vmem:[%s349 + $0xe0] sm:$0xff]
        %v450 = vld [vmem:[%s349 + $0xe8] sm:$0xff]
        %v451 = vld [vmem:[%s349 + $0xf0] sm:$0xff]
        %v452 = vld [vmem:[%s349 + $0xf8] sm:$0xff]
        %v453 = vld [vmem:[#allocation5] sm:$0xff]
        %v454 = vld [vmem:[#allocation5 + $0x8] sm:$0xff]
        %v455 = vld [vmem:[#allocation5 + $0x10] sm:$0xff]
        %v456 = vld [vmem:[#allocation5 + $0x18] sm:$0xff]
        %v457 = vld [vmem:[#allocation5 + $0x20] sm:$0xff]
        %v458 = vld [vmem:[#allocation5 + $0x28] sm:$0xff]
        %v459 = vld [vmem:[#allocation5 + $0x30] sm:$0xff]
        %v460 = vld [vmem:[#allocation5 + $0x38] sm:$0xff]
        %v461 = vld [vmem:[#allocation5 + $0x40] sm:$0xff]
        %v462 = vld [vmem:[#allocation5 + $0x48] sm:$0xff]
        %v463 = vld [vmem:[#allocation5 + $0x50] sm:$0xff]
        %v464 = vld [vmem:[#allocation5 + $0x58] sm:$0xff]
        %v465 = vld [vmem:[#allocation5 + $0x60] sm:$0xff]
        %v466 = vld [vmem:[#allocation5 + $0x68] sm:$0xff]
        %v467 = vld [vmem:[#allocation5 + $0x70] sm:$0xff]
        %v468 = vld [vmem:[#allocation5 + $0x78] sm:$0xff]
        %v469 = vld [vmem:[%s2] sm:$0x1]
        %v471 = vperm.slane %v469, 0
        %473 = vmatpush.msra.mxu0 %v468
        %474 = vmatpush.msra.mxu0 %v467
        %475 = vmatpush.msra.mxu0 %v466
        %476 = vmatpush.msra.mxu0 %v465
        %477 = vmatpush.msra.mxu0 %v464
        %478 = vmatpush.msra.mxu0 %v463
        %479 = vmatpush.msra.mxu0 %v462
        %480 = vmatpush.msra.mxu0 %v461
        %481 = vmatpush.msra.mxu0 %v460
        %482 = vmatpush.msra.mxu0 %v459
        %483 = vmatpush.msra.mxu0 %v458
        %484 = vmatpush.msra.mxu0 %v457
        %485 = vmatpush.msra.mxu0 %v456
        %486 = vmatpush.msra.mxu0 %v455
        %487 = vmatpush.msra.mxu0 %v454
        %488 = vmatpush.msra.mxu0 %v453
        %489 = vmatmul.f32.gmra.mxu0 %v421
        %v490 = vpop.f32.mrf.mxu0
        %v491 = vadd.f32 %v471, %v490
        %492 = vmatmul.f32.gmra.mxu0 %v422
        %v493 = vpop.f32.mrf.mxu0
        %v494 = vadd.f32 %v471, %v493
        %495 = vmatmul.f32.gmra.mxu0 %v423
        %v496 = vpop.f32.mrf.mxu0
        %v497 = vadd.f32 %v471, %v496
        %498 = vmatmul.f32.gmra.mxu0 %v424
        %v499 = vpop.f32.mrf.mxu0
        %v500 = vadd.f32 %v471, %v499
        %501 = vmatmul.f32.gmra.mxu0 %v425
        %v502 = vpop.f32.mrf.mxu0
        %v503 = vadd.f32 %v471, %v502
        %504 = vmatmul.f32.gmra.mxu0 %v426
        %v505 = vpop.f32.mrf.mxu0
        %v506 = vadd.f32 %v471, %v505
        %507 = vmatmul.f32.gmra.mxu0 %v427
        %v508 = vpop.f32.mrf.mxu0
        %v509 = vadd.f32 %v471, %v508
        %510 = vmatmul.f32.gmra.mxu0 %v428
        %v511 = vpop.f32.mrf.mxu0
        %v512 = vadd.f32 %v471, %v511
        %513 = vmatmul.f32.gmra.mxu0 %v429
        %v514 = vpop.f32.mrf.mxu0
        %v515 = vadd.f32 %v471, %v514
        %516 = vmatmul.f32.gmra.mxu0 %v430
        %v517 = vpop.f32.mrf.mxu0
        %v518 = vadd.f32 %v471, %v517
        %519 = vmatmul.f32.gmra.mxu0 %v431
        %v520 = vpop.f32.mrf.mxu0
        %v521 = vadd.f32 %v471, %v520
        %522 = vmatmul.f32.gmra.mxu0 %v432
        %v523 = vpop.f32.mrf.mxu0
        %v524 = vadd.f32 %v471, %v523
        %525 = vmatmul.f32.gmra.mxu0 %v433
        %v526 = vpop.f32.mrf.mxu0
        %v527 = vadd.f32 %v471, %v526
        %528 = vmatmul.f32.gmra.mxu0 %v434
        %v529 = vpop.f32.mrf.mxu0
        %v530 = vadd.f32 %v471, %v529
        %531 = vmatmul.f32.gmra.mxu0 %v435
        %v532 = vpop.f32.mrf.mxu0
        %v533 = vadd.f32 %v471, %v532
        %534 = vmatmul.f32.gmra.mxu0 %v436
        %v535 = vpop.f32.mrf.mxu0
        %v536 = vadd.f32 %v471, %v535
        %537 = vmatmul.f32.gmra.mxu0 %v437
        %v538 = vpop.f32.mrf.mxu0
        %v539 = vadd.f32 %v471, %v538
        %540 = vmatmul.f32.gmra.mxu0 %v438
        %v541 = vpop.f32.mrf.mxu0
        %v542 = vadd.f32 %v471, %v541
        %543 = vmatmul.f32.gmra.mxu0 %v439
        %v544 = vpop.f32.mrf.mxu0
        %v545 = vadd.f32 %v471, %v544
        %546 = vmatmul.f32.gmra.mxu0 %v440
        %v547 = vpop.f32.mrf.mxu0
        %v548 = vadd.f32 %v471, %v547
        %549 = vmatmul.f32.gmra.mxu0 %v441
        %v550 = vpop.f32.mrf.mxu0
        %v551 = vadd.f32 %v471, %v550
        %552 = vmatmul.f32.gmra.mxu0 %v442
        %v553 = vpop.f32.mrf.mxu0
        %v554 = vadd.f32 %v471, %v553
        %555 = vmatmul.f32.gmra.mxu0 %v443
        %v556 = vpop.f32.mrf.mxu0
        %v557 = vadd.f32 %v471, %v556
        %558 = vmatmul.f32.gmra.mxu0 %v444
        %v559 = vpop.f32.mrf.mxu0
        %v560 = vadd.f32 %v471, %v559
        %561 = vmatmul.f32.gmra.mxu0 %v445
        %v562 = vpop.f32.mrf.mxu0
        %v563 = vadd.f32 %v471, %v562
        %564 = vmatmul.f32.gmra.mxu0 %v446
        %v565 = vpop.f32.mrf.mxu0
        %v566 = vadd.f32 %v471, %v565
        %567 = vmatmul.f32.gmra.mxu0 %v447
        %v568 = vpop.f32.mrf.mxu0
        %v569 = vadd.f32 %v471, %v568
        %570 = vmatmul.f32.gmra.mxu0 %v448
        %v571 = vpop.f32.mrf.mxu0
        %v572 = vadd.f32 %v471, %v571
        %573 = vmatmul.f32.gmra.mxu0 %v449
        %v574 = vpop.f32.mrf.mxu0
        %v575 = vadd.f32 %v471, %v574
        %576 = vmatmul.f32.gmra.mxu0 %v450
        %v577 = vpop.f32.mrf.mxu0
        %v578 = vadd.f32 %v471, %v577
        %579 = vmatmul.f32.gmra.mxu0 %v451
        %v580 = vpop.f32.mrf.mxu0
        %v581 = vadd.f32 %v471, %v580
        %582 = vmatmul.f32.gmra.mxu0 %v452
        %v583 = vpop.f32.mrf.mxu0
        %v584 = vadd.f32 %v471, %v583
        %585 = vdwg.mxu0
        %v586 = vlaneseq
        %v587 = vand.u32 %v586, 127
        %588 = vmax.xlane.f32.xlu0 %v491
        %v589 = vpop.xlane.xlu0 %588
        %590 = vmax.xlane.f32.xlu0 %v494
        %v591 = vpop.xlane.xlu0 %590
        %592 = vmax.xlane.f32.xlu0 %v497
        %v593 = vpop.xlane.xlu0 %592
        %594 = vmax.xlane.f32.xlu0 %v500
        %v595 = vpop.xlane.xlu0 %594
        %596 = vmax.xlane.f32.xlu0 %v503
        %v597 = vpop.xlane.xlu0 %596
        %598 = vmax.xlane.f32.xlu0 %v506
        %v599 = vpop.xlane.xlu0 %598
        %600 = vmax.xlane.f32.xlu0 %v509
        %v601 = vpop.xlane.xlu0 %600
        %602 = vmax.xlane.f32.xlu0 %v512
        %v603 = vpop.xlane.xlu0 %602
        %604 = vmax.xlane.f32.xlu0 %v515
        %v605 = vpop.xlane.xlu0 %604
        %606 = vmax.xlane.f32.xlu0 %v518
        %v607 = vpop.xlane.xlu0 %606
        %608 = vmax.xlane.f32.xlu0 %v521
        %v609 = vpop.xlane.xlu0 %608
        %610 = vmax.xlane.f32.xlu0 %v524
        %v611 = vpop.xlane.xlu0 %610
        %612 = vmax.xlane.f32.xlu0 %v527
        %v613 = vpop.xlane.xlu0 %612
        %614 = vmax.xlane.f32.xlu0 %v530
        %v615 = vpop.xlane.xlu0 %614
        %616 = vmax.xlane.f32.xlu0 %v533
        %v617 = vpop.xlane.xlu0 %616
        %618 = vmax.xlane.f32.xlu0 %v536
        %v619 = vpop.xlane.xlu0 %618
        %620 = vmax.xlane.f32.xlu0 %v539
        %v621 = vpop.xlane.xlu0 %620
        %622 = vmax.xlane.f32.xlu0 %v542
        %v623 = vpop.xlane.xlu0 %622
        %624 = vmax.xlane.f32.xlu0 %v545
        %v625 = vpop.xlane.xlu0 %624
        %626 = vmax.xlane.f32.xlu0 %v548
        %v627 = vpop.xlane.xlu0 %626
        %628 = vmax.xlane.f32.xlu0 %v551
        %v629 = vpop.xlane.xlu0 %628
        %630 = vmax.xlane.f32.xlu0 %v554
        %v631 = vpop.xlane.xlu0 %630
        %632 = vmax.xlane.f32.xlu0 %v557
        %v633 = vpop.xlane.xlu0 %632
        %634 = vmax.xlane.f32.xlu0 %v560
        %v635 = vpop.xlane.xlu0 %634
        %636 = vmax.xlane.f32.xlu0 %v563
        %v637 = vpop.xlane.xlu0 %636
        %638 = vmax.xlane.f32.xlu0 %v566
        %v639 = vpop.xlane.xlu0 %638
        %640 = vmax.xlane.f32.xlu0 %v569
        %v641 = vpop.xlane.xlu0 %640
        %642 = vmax.xlane.f32.xlu0 %v572
        %v643 = vpop.xlane.xlu0 %642
        %644 = vmax.xlane.f32.xlu0 %v575
        %v645 = vpop.xlane.xlu0 %644
        %646 = vmax.xlane.f32.xlu0 %v578
        %v647 = vpop.xlane.xlu0 %646
        %648 = vmax.xlane.f32.xlu0 %v581
        %v649 = vpop.xlane.xlu0 %648
        %650 = vmax.xlane.f32.xlu0 %v584
        %v651 = vpop.xlane.xlu0 %650
        %vm652 = vcmp.eq.f32.partialorder %v491, %v589
        %vm653 = vcmp.eq.f32.partialorder %v494, %v591
        %vm654 = vcmp.eq.f32.partialorder %v497, %v593
        %vm655 = vcmp.eq.f32.partialorder %v500, %v595
        %vm656 = vcmp.eq.f32.partialorder %v503, %v597
        %vm657 = vcmp.eq.f32.partialorder %v506, %v599
        %vm658 = vcmp.eq.f32.partialorder %v509, %v601
        %vm659 = vcmp.eq.f32.partialorder %v512, %v603
        %vm660 = vcmp.eq.f32.partialorder %v515, %v605
        %vm661 = vcmp.eq.f32.partialorder %v518, %v607
        %vm662 = vcmp.eq.f32.partialorder %v521, %v609
        %vm663 = vcmp.eq.f32.partialorder %v524, %v611
        %vm664 = vcmp.eq.f32.partialorder %v527, %v613
        %vm665 = vcmp.eq.f32.partialorder %v530, %v615
        %vm666 = vcmp.eq.f32.partialorder %v533, %v617
        %vm667 = vcmp.eq.f32.partialorder %v536, %v619
        %vm668 = vcmp.eq.f32.partialorder %v539, %v621
        %vm669 = vcmp.eq.f32.partialorder %v542, %v623
        %vm670 = vcmp.eq.f32.partialorder %v545, %v625
        %vm671 = vcmp.eq.f32.partialorder %v548, %v627
        %vm672 = vcmp.eq.f32.partialorder %v551, %v629
        %vm673 = vcmp.eq.f32.partialorder %v554, %v631
        %vm674 = vcmp.eq.f32.partialorder %v557, %v633
        %vm675 = vcmp.eq.f32.partialorder %v560, %v635
        %vm676 = vcmp.eq.f32.partialorder %v563, %v637
        %vm677 = vcmp.eq.f32.partialorder %v566, %v639
        %vm678 = vcmp.eq.f32.partialorder %v569, %v641
        %vm679 = vcmp.eq.f32.partialorder %v572, %v643
        %vm680 = vcmp.eq.f32.partialorder %v575, %v645
        %vm681 = vcmp.eq.f32.partialorder %v578, %v647
        %vm682 = vcmp.eq.f32.partialorder %v581, %v649
        %vm683 = vcmp.eq.f32.partialorder %v584, %v651
        %v684 = vsel %vm652, %v587, 128
        %v685 = vsel %vm653, %v587, 128
        %v686 = vsel %vm654, %v587, 128
        %v687 = vsel %vm655, %v587, 128
        %v688 = vsel %vm656, %v587, 128
        %v689 = vsel %vm657, %v587, 128
        %v690 = vsel %vm658, %v587, 128
        %v691 = vsel %vm659, %v587, 128
        %v692 = vsel %vm660, %v587, 128
        %v693 = vsel %vm661, %v587, 128
        %v694 = vsel %vm662, %v587, 128
        %v695 = vsel %vm663, %v587, 128
        %v696 = vsel %vm664, %v587, 128
        %v697 = vsel %vm665, %v587, 128
        %v698 = vsel %vm666, %v587, 128
        %v699 = vsel %vm667, %v587, 128
        %v700 = vsel %vm668, %v587, 128
        %v701 = vsel %vm669, %v587, 128
        %v702 = vsel %vm670, %v587, 128
        %v703 = vsel %vm671, %v587, 128
        %v704 = vsel %vm672, %v587, 128
        %v705 = vsel %vm673, %v587, 128
        %v706 = vsel %vm674, %v587, 128
        %v707 = vsel %vm675, %v587, 128
        %v708 = vsel %vm676, %v587, 128
        %v709 = vsel %vm677, %v587, 128
        %v710 = vsel %vm678, %v587, 128
        %v711 = vsel %vm679, %v587, 128
        %v712 = vsel %vm680, %v587, 128
        %v713 = vsel %vm681, %v587, 128
        %v714 = vsel %vm682, %v587, 128
        %v715 = vsel %vm683, %v587, 128
        %v716 = vand.u32 %v684, 65535
        %v717 = vshra.s32 %v684, 16
        %v718 = vcvt.s32.f32 %v716
        %v719 = vcvt.s32.f32 %v717
        %720 = vmin.xlane.f32.xlu0 %v719
        %v721 = vpop.xlane.xlu0 %720
        %vm722 = vcmp.eq.f32.partialorder %v719, %v721
        %v723 = vsel %vm722, %v718, inf
        %724 = vmin.xlane.f32.xlu0 %v723
        %v725 = vpop.xlane.xlu0 %724
        %v726 = vcvt.f32.s32 %v725
        %v727 = vcvt.f32.s32 %v721
        %v728 = vshll.u32 %v727, 16
        %v729 = vadd.s32 %v728, %v726
        %v730 = vand.u32 %v685, 65535
        %v731 = vshra.s32 %v685, 16
        %v732 = vcvt.s32.f32 %v730
        %v733 = vcvt.s32.f32 %v731
        %734 = vmin.xlane.f32.xlu0 %v733
        %v735 = vpop.xlane.xlu0 %734
        %vm736 = vcmp.eq.f32.partialorder %v733, %v735
        %v737 = vsel %vm736, %v732, inf
        %738 = vmin.xlane.f32.xlu0 %v737
        %v739 = vpop.xlane.xlu0 %738
        %v740 = vcvt.f32.s32 %v739
        %v741 = vcvt.f32.s32 %v735
        %v742 = vshll.u32 %v741, 16
        %v743 = vadd.s32 %v742, %v740
        %v744 = vand.u32 %v686, 65535
        %v745 = vshra.s32 %v686, 16
        %v746 = vcvt.s32.f32 %v744
        %v747 = vcvt.s32.f32 %v745
        %748 = vmin.xlane.f32.xlu0 %v747
        %v749 = vpop.xlane.xlu0 %748
        %vm750 = vcmp.eq.f32.partialorder %v747, %v749
        %v751 = vsel %vm750, %v746, inf
        %752 = vmin.xlane.f32.xlu0 %v751
        %v753 = vpop.xlane.xlu0 %752
        %v754 = vcvt.f32.s32 %v753
        %v755 = vcvt.f32.s32 %v749
        %v756 = vshll.u32 %v755, 16
        %v757 = vadd.s32 %v756, %v754
        %v758 = vand.u32 %v687, 65535
        %v759 = vshra.s32 %v687, 16
        %v760 = vcvt.s32.f32 %v758
        %v761 = vcvt.s32.f32 %v759
        %762 = vmin.xlane.f32.xlu0 %v761
        %v763 = vpop.xlane.xlu0 %762
        %vm764 = vcmp.eq.f32.partialorder %v761, %v763
        %v765 = vsel %vm764, %v760, inf
        %766 = vmin.xlane.f32.xlu0 %v765
        %v767 = vpop.xlane.xlu0 %766
        %v768 = vcvt.f32.s32 %v767
        %v769 = vcvt.f32.s32 %v763
        %v770 = vshll.u32 %v769, 16
        %v771 = vadd.s32 %v770, %v768
        %v772 = vand.u32 %v688, 65535
        %v773 = vshra.s32 %v688, 16
        %v774 = vcvt.s32.f32 %v772
        %v775 = vcvt.s32.f32 %v773
        %776 = vmin.xlane.f32.xlu0 %v775
        %v777 = vpop.xlane.xlu0 %776
        %vm778 = vcmp.eq.f32.partialorder %v775, %v777
        %v779 = vsel %vm778, %v774, inf
        %780 = vmin.xlane.f32.xlu0 %v779
        %v781 = vpop.xlane.xlu0 %780
        %v782 = vcvt.f32.s32 %v781
        %v783 = vcvt.f32.s32 %v777
        %v784 = vshll.u32 %v783, 16
        %v785 = vadd.s32 %v784, %v782
        %v786 = vand.u32 %v689, 65535
        %v787 = vshra.s32 %v689, 16
        %v788 = vcvt.s32.f32 %v786
        %v789 = vcvt.s32.f32 %v787
        %790 = vmin.xlane.f32.xlu0 %v789
        %v791 = vpop.xlane.xlu0 %790
        %vm792 = vcmp.eq.f32.partialorder %v789, %v791
        %v793 = vsel %vm792, %v788, inf
        %794 = vmin.xlane.f32.xlu0 %v793
        %v795 = vpop.xlane.xlu0 %794
        %v796 = vcvt.f32.s32 %v795
        %v797 = vcvt.f32.s32 %v791
        %v798 = vshll.u32 %v797, 16
        %v799 = vadd.s32 %v798, %v796
        %v800 = vand.u32 %v690, 65535
        %v801 = vshra.s32 %v690, 16
        %v802 = vcvt.s32.f32 %v800
        %v803 = vcvt.s32.f32 %v801
        %804 = vmin.xlane.f32.xlu0 %v803
        %v805 = vpop.xlane.xlu0 %804
        %vm806 = vcmp.eq.f32.partialorder %v803, %v805
        %v807 = vsel %vm806, %v802, inf
        %808 = vmin.xlane.f32.xlu0 %v807
        %v809 = vpop.xlane.xlu0 %808
        %v810 = vcvt.f32.s32 %v809
        %v811 = vcvt.f32.s32 %v805
        %v812 = vshll.u32 %v811, 16
        %v813 = vadd.s32 %v812, %v810
        %v814 = vand.u32 %v691, 65535
        %v815 = vshra.s32 %v691, 16
        %v816 = vcvt.s32.f32 %v814
        %v817 = vcvt.s32.f32 %v815
        %818 = vmin.xlane.f32.xlu0 %v817
        %v819 = vpop.xlane.xlu0 %818
        %vm820 = vcmp.eq.f32.partialorder %v817, %v819
        %v821 = vsel %vm820, %v816, inf
        %822 = vmin.xlane.f32.xlu0 %v821
        %v823 = vpop.xlane.xlu0 %822
        %v824 = vcvt.f32.s32 %v823
        %v825 = vcvt.f32.s32 %v819
        %v826 = vshll.u32 %v825, 16
        %v827 = vadd.s32 %v826, %v824
        %v828 = vand.u32 %v692, 65535
        %v829 = vshra.s32 %v692, 16
        %v830 = vcvt.s32.f32 %v828
        %v831 = vcvt.s32.f32 %v829
        %832 = vmin.xlane.f32.xlu0 %v831
        %v833 = vpop.xlane.xlu0 %832
        %vm834 = vcmp.eq.f32.partialorder %v831, %v833
        %v835 = vsel %vm834, %v830, inf
        %836 = vmin.xlane.f32.xlu0 %v835
        %v837 = vpop.xlane.xlu0 %836
        %v838 = vcvt.f32.s32 %v837
        %v839 = vcvt.f32.s32 %v833
        %v840 = vshll.u32 %v839, 16
        %v841 = vadd.s32 %v840, %v838
        %v842 = vand.u32 %v693, 65535
        %v843 = vshra.s32 %v693, 16
        %v844 = vcvt.s32.f32 %v842
        %v845 = vcvt.s32.f32 %v843
        %846 = vmin.xlane.f32.xlu0 %v845
        %v847 = vpop.xlane.xlu0 %846
        %vm848 = vcmp.eq.f32.partialorder %v845, %v847
        %v849 = vsel %vm848, %v844, inf
        %850 = vmin.xlane.f32.xlu0 %v849
        %v851 = vpop.xlane.xlu0 %850
        %v852 = vcvt.f32.s32 %v851
        %v853 = vcvt.f32.s32 %v847
        %v854 = vshll.u32 %v853, 16
        %v855 = vadd.s32 %v854, %v852
        %v856 = vand.u32 %v694, 65535
        %v857 = vshra.s32 %v694, 16
        %v858 = vcvt.s32.f32 %v856
        %v859 = vcvt.s32.f32 %v857
        %860 = vmin.xlane.f32.xlu0 %v859
        %v861 = vpop.xlane.xlu0 %860
        %vm862 = vcmp.eq.f32.partialorder %v859, %v861
        %v863 = vsel %vm862, %v858, inf
        %864 = vmin.xlane.f32.xlu0 %v863
        %v865 = vpop.xlane.xlu0 %864
        %v866 = vcvt.f32.s32 %v865
        %v867 = vcvt.f32.s32 %v861
        %v868 = vshll.u32 %v867, 16
        %v869 = vadd.s32 %v868, %v866
        %v870 = vand.u32 %v695, 65535
        %v871 = vshra.s32 %v695, 16
        %v872 = vcvt.s32.f32 %v870
        %v873 = vcvt.s32.f32 %v871
        %874 = vmin.xlane.f32.xlu0 %v873
        %v875 = vpop.xlane.xlu0 %874
        %vm876 = vcmp.eq.f32.partialorder %v873, %v875
        %v877 = vsel %vm876, %v872, inf
        %878 = vmin.xlane.f32.xlu0 %v877
        %v879 = vpop.xlane.xlu0 %878
        %v880 = vcvt.f32.s32 %v879
        %v881 = vcvt.f32.s32 %v875
        %v882 = vshll.u32 %v881, 16
        %v883 = vadd.s32 %v882, %v880
        %v884 = vand.u32 %v696, 65535
        %v885 = vshra.s32 %v696, 16
        %v886 = vcvt.s32.f32 %v884
        %v887 = vcvt.s32.f32 %v885
        %888 = vmin.xlane.f32.xlu0 %v887
        %v889 = vpop.xlane.xlu0 %888
        %vm890 = vcmp.eq.f32.partialorder %v887, %v889
        %v891 = vsel %vm890, %v886, inf
        %892 = vmin.xlane.f32.xlu0 %v891
        %v893 = vpop.xlane.xlu0 %892
        %v894 = vcvt.f32.s32 %v893
        %v895 = vcvt.f32.s32 %v889
        %v896 = vshll.u32 %v895, 16
        %v897 = vadd.s32 %v896, %v894
        %v898 = vand.u32 %v697, 65535
        %v899 = vshra.s32 %v697, 16
        %v900 = vcvt.s32.f32 %v898
        %v901 = vcvt.s32.f32 %v899
        %902 = vmin.xlane.f32.xlu0 %v901
        %v903 = vpop.xlane.xlu0 %902
        %vm904 = vcmp.eq.f32.partialorder %v901, %v903
        %v905 = vsel %vm904, %v900, inf
        %906 = vmin.xlane.f32.xlu0 %v905
        %v907 = vpop.xlane.xlu0 %906
        %v908 = vcvt.f32.s32 %v907
        %v909 = vcvt.f32.s32 %v903
        %v910 = vshll.u32 %v909, 16
        %v911 = vadd.s32 %v910, %v908
        %v912 = vand.u32 %v698, 65535
        %v913 = vshra.s32 %v698, 16
        %v914 = vcvt.s32.f32 %v912
        %v915 = vcvt.s32.f32 %v913
        %916 = vmin.xlane.f32.xlu0 %v915
        %v917 = vpop.xlane.xlu0 %916
        %vm918 = vcmp.eq.f32.partialorder %v915, %v917
        %v919 = vsel %vm918, %v914, inf
        %920 = vmin.xlane.f32.xlu0 %v919
        %v921 = vpop.xlane.xlu0 %920
        %v922 = vcvt.f32.s32 %v921
        %v923 = vcvt.f32.s32 %v917
        %v924 = vshll.u32 %v923, 16
        %v925 = vadd.s32 %v924, %v922
        %v926 = vand.u32 %v699, 65535
        %v927 = vshra.s32 %v699, 16
        %v928 = vcvt.s32.f32 %v926
        %v929 = vcvt.s32.f32 %v927
        %930 = vmin.xlane.f32.xlu0 %v929
        %v931 = vpop.xlane.xlu0 %930
        %vm932 = vcmp.eq.f32.partialorder %v929, %v931
        %v933 = vsel %vm932, %v928, inf
        %934 = vmin.xlane.f32.xlu0 %v933
        %v935 = vpop.xlane.xlu0 %934
        %v936 = vcvt.f32.s32 %v935
        %v937 = vcvt.f32.s32 %v931
        %v938 = vshll.u32 %v937, 16
        %v939 = vadd.s32 %v938, %v936
        %v940 = vand.u32 %v700, 65535
        %v941 = vshra.s32 %v700, 16
        %v942 = vcvt.s32.f32 %v940
        %v943 = vcvt.s32.f32 %v941
        %944 = vmin.xlane.f32.xlu0 %v943
        %v945 = vpop.xlane.xlu0 %944
        %vm946 = vcmp.eq.f32.partialorder %v943, %v945
        %v947 = vsel %vm946, %v942, inf
        %948 = vmin.xlane.f32.xlu0 %v947
        %v949 = vpop.xlane.xlu0 %948
        %v950 = vcvt.f32.s32 %v949
        %v951 = vcvt.f32.s32 %v945
        %v952 = vshll.u32 %v951, 16
        %v953 = vadd.s32 %v952, %v950
        %v954 = vand.u32 %v701, 65535
        %v955 = vshra.s32 %v701, 16
        %v956 = vcvt.s32.f32 %v954
        %v957 = vcvt.s32.f32 %v955
        %958 = vmin.xlane.f32.xlu0 %v957
        %v959 = vpop.xlane.xlu0 %958
        %vm960 = vcmp.eq.f32.partialorder %v957, %v959
        %v961 = vsel %vm960, %v956, inf
        %962 = vmin.xlane.f32.xlu0 %v961
        %v963 = vpop.xlane.xlu0 %962
        %v964 = vcvt.f32.s32 %v963
        %v965 = vcvt.f32.s32 %v959
        %v966 = vshll.u32 %v965, 16
        %v967 = vadd.s32 %v966, %v964
        %v968 = vand.u32 %v702, 65535
        %v969 = vshra.s32 %v702, 16
        %v970 = vcvt.s32.f32 %v968
        %v971 = vcvt.s32.f32 %v969
        %972 = vmin.xlane.f32.xlu0 %v971
        %v973 = vpop.xlane.xlu0 %972
        %vm974 = vcmp.eq.f32.partialorder %v971, %v973
        %v975 = vsel %vm974, %v970, inf
        %976 = vmin.xlane.f32.xlu0 %v975
        %v977 = vpop.xlane.xlu0 %976
        %v978 = vcvt.f32.s32 %v977
        %v979 = vcvt.f32.s32 %v973
        %v980 = vshll.u32 %v979, 16
        %v981 = vadd.s32 %v980, %v978
        %v982 = vand.u32 %v703, 65535
        %v983 = vshra.s32 %v703, 16
        %v984 = vcvt.s32.f32 %v982
        %v985 = vcvt.s32.f32 %v983
        %986 = vmin.xlane.f32.xlu0 %v985
        %v987 = vpop.xlane.xlu0 %986
        %vm988 = vcmp.eq.f32.partialorder %v985, %v987
        %v989 = vsel %vm988, %v984, inf
        %990 = vmin.xlane.f32.xlu0 %v989
        %v991 = vpop.xlane.xlu0 %990
        %v992 = vcvt.f32.s32 %v991
        %v993 = vcvt.f32.s32 %v987
        %v994 = vshll.u32 %v993, 16
        %v995 = vadd.s32 %v994, %v992
        %v996 = vand.u32 %v704, 65535
        %v997 = vshra.s32 %v704, 16
        %v998 = vcvt.s32.f32 %v996
        %v999 = vcvt.s32.f32 %v997
        %1000 = vmin.xlane.f32.xlu0 %v999
        %v1001 = vpop.xlane.xlu0 %1000
        %vm1002 = vcmp.eq.f32.partialorder %v999, %v1001
        %v1003 = vsel %vm1002, %v998, inf
        %1004 = vmin.xlane.f32.xlu0 %v1003
        %v1005 = vpop.xlane.xlu0 %1004
        %v1006 = vcvt.f32.s32 %v1005
        %v1007 = vcvt.f32.s32 %v1001
        %v1008 = vshll.u32 %v1007, 16
        %v1009 = vadd.s32 %v1008, %v1006
        %v1010 = vand.u32 %v705, 65535
        %v1011 = vshra.s32 %v705, 16
        %v1012 = vcvt.s32.f32 %v1010
        %v1013 = vcvt.s32.f32 %v1011
        %1014 = vmin.xlane.f32.xlu0 %v1013
        %v1015 = vpop.xlane.xlu0 %1014
        %vm1016 = vcmp.eq.f32.partialorder %v1013, %v1015
        %v1017 = vsel %vm1016, %v1012, inf
        %1018 = vmin.xlane.f32.xlu0 %v1017
        %v1019 = vpop.xlane.xlu0 %1018
        %v1020 = vcvt.f32.s32 %v1019
        %v1021 = vcvt.f32.s32 %v1015
        %v1022 = vshll.u32 %v1021, 16
        %v1023 = vadd.s32 %v1022, %v1020
        %v1024 = vand.u32 %v706, 65535
        %v1025 = vshra.s32 %v706, 16
        %v1026 = vcvt.s32.f32 %v1024
        %v1027 = vcvt.s32.f32 %v1025
        %1028 = vmin.xlane.f32.xlu0 %v1027
        %v1029 = vpop.xlane.xlu0 %1028
        %vm1030 = vcmp.eq.f32.partialorder %v1027, %v1029
        %v1031 = vsel %vm1030, %v1026, inf
        %1032 = vmin.xlane.f32.xlu0 %v1031
        %v1033 = vpop.xlane.xlu0 %1032
        %v1034 = vcvt.f32.s32 %v1033
        %v1035 = vcvt.f32.s32 %v1029
        %v1036 = vshll.u32 %v1035, 16
        %v1037 = vadd.s32 %v1036, %v1034
        %v1038 = vand.u32 %v707, 65535
        %v1039 = vshra.s32 %v707, 16
        %v1040 = vcvt.s32.f32 %v1038
        %v1041 = vcvt.s32.f32 %v1039
        %1042 = vmin.xlane.f32.xlu0 %v1041
        %v1043 = vpop.xlane.xlu0 %1042
        %vm1044 = vcmp.eq.f32.partialorder %v1041, %v1043
        %v1045 = vsel %vm1044, %v1040, inf
        %1046 = vmin.xlane.f32.xlu0 %v1045
        %v1047 = vpop.xlane.xlu0 %1046
        %v1048 = vcvt.f32.s32 %v1047
        %v1049 = vcvt.f32.s32 %v1043
        %v1050 = vshll.u32 %v1049, 16
        %v1051 = vadd.s32 %v1050, %v1048
        %v1052 = vand.u32 %v708, 65535
        %v1053 = vshra.s32 %v708, 16
        %v1054 = vcvt.s32.f32 %v1052
        %v1055 = vcvt.s32.f32 %v1053
        %1056 = vmin.xlane.f32.xlu0 %v1055
        %v1057 = vpop.xlane.xlu0 %1056
        %vm1058 = vcmp.eq.f32.partialorder %v1055, %v1057
        %v1059 = vsel %vm1058, %v1054, inf
        %1060 = vmin.xlane.f32.xlu0 %v1059
        %v1061 = vpop.xlane.xlu0 %1060
        %v1062 = vcvt.f32.s32 %v1061
        %v1063 = vcvt.f32.s32 %v1057
        %v1064 = vshll.u32 %v1063, 16
        %v1065 = vadd.s32 %v1064, %v1062
        %v1066 = vand.u32 %v709, 65535
        %v1067 = vshra.s32 %v709, 16
        %v1068 = vcvt.s32.f32 %v1066
        %v1069 = vcvt.s32.f32 %v1067
        %1070 = vmin.xlane.f32.xlu0 %v1069
        %v1071 = vpop.xlane.xlu0 %1070
        %vm1072 = vcmp.eq.f32.partialorder %v1069, %v1071
        %v1073 = vsel %vm1072, %v1068, inf
        %1074 = vmin.xlane.f32.xlu0 %v1073
        %v1075 = vpop.xlane.xlu0 %1074
        %v1076 = vcvt.f32.s32 %v1075
        %v1077 = vcvt.f32.s32 %v1071
        %v1078 = vshll.u32 %v1077, 16
        %v1079 = vadd.s32 %v1078, %v1076
        %v1080 = vand.u32 %v710, 65535
        %v1081 = vshra.s32 %v710, 16
        %v1082 = vcvt.s32.f32 %v1080
        %v1083 = vcvt.s32.f32 %v1081
        %1084 = vmin.xlane.f32.xlu0 %v1083
        %v1085 = vpop.xlane.xlu0 %1084
        %vm1086 = vcmp.eq.f32.partialorder %v1083, %v1085
        %v1087 = vsel %vm1086, %v1082, inf
        %1088 = vmin.xlane.f32.xlu0 %v1087
        %v1089 = vpop.xlane.xlu0 %1088
        %v1090 = vcvt.f32.s32 %v1089
        %v1091 = vcvt.f32.s32 %v1085
        %v1092 = vshll.u32 %v1091, 16
        %v1093 = vadd.s32 %v1092, %v1090
        %v1094 = vand.u32 %v711, 65535
        %v1095 = vshra.s32 %v711, 16
        %v1096 = vcvt.s32.f32 %v1094
        %v1097 = vcvt.s32.f32 %v1095
        %1098 = vmin.xlane.f32.xlu0 %v1097
        %v1099 = vpop.xlane.xlu0 %1098
        %vm1100 = vcmp.eq.f32.partialorder %v1097, %v1099
        %v1101 = vsel %vm1100, %v1096, inf
        %1102 = vmin.xlane.f32.xlu0 %v1101
        %v1103 = vpop.xlane.xlu0 %1102
        %v1104 = vcvt.f32.s32 %v1103
        %v1105 = vcvt.f32.s32 %v1099
        %v1106 = vshll.u32 %v1105, 16
        %v1107 = vadd.s32 %v1106, %v1104
        %v1108 = vand.u32 %v712, 65535
        %v1109 = vshra.s32 %v712, 16
        %v1110 = vcvt.s32.f32 %v1108
        %v1111 = vcvt.s32.f32 %v1109
        %1112 = vmin.xlane.f32.xlu0 %v1111
        %v1113 = vpop.xlane.xlu0 %1112
        %vm1114 = vcmp.eq.f32.partialorder %v1111, %v1113
        %v1115 = vsel %vm1114, %v1110, inf
        %1116 = vmin.xlane.f32.xlu0 %v1115
        %v1117 = vpop.xlane.xlu0 %1116
        %v1118 = vcvt.f32.s32 %v1117
        %v1119 = vcvt.f32.s32 %v1113
        %v1120 = vshll.u32 %v1119, 16
        %v1121 = vadd.s32 %v1120, %v1118
        %v1122 = vand.u32 %v713, 65535
        %v1123 = vshra.s32 %v713, 16
        %v1124 = vcvt.s32.f32 %v1122
        %v1125 = vcvt.s32.f32 %v1123
        %1126 = vmin.xlane.f32.xlu0 %v1125
        %v1127 = vpop.xlane.xlu0 %1126
        %vm1128 = vcmp.eq.f32.partialorder %v1125, %v1127
        %v1129 = vsel %vm1128, %v1124, inf
        %1130 = vmin.xlane.f32.xlu0 %v1129
        %v1131 = vpop.xlane.xlu0 %1130
        %v1132 = vcvt.f32.s32 %v1131
        %v1133 = vcvt.f32.s32 %v1127
        %v1134 = vshll.u32 %v1133, 16
        %v1135 = vadd.s32 %v1134, %v1132
        %v1136 = vand.u32 %v714, 65535
        %v1137 = vshra.s32 %v714, 16
        %v1138 = vcvt.s32.f32 %v1136
        %v1139 = vcvt.s32.f32 %v1137
        %1140 = vmin.xlane.f32.xlu0 %v1139
        %v1141 = vpop.xlane.xlu0 %1140
        %vm1142 = vcmp.eq.f32.partialorder %v1139, %v1141
        %v1143 = vsel %vm1142, %v1138, inf
        %1144 = vmin.xlane.f32.xlu0 %v1143
        %v1145 = vpop.xlane.xlu0 %1144
        %v1146 = vcvt.f32.s32 %v1145
        %v1147 = vcvt.f32.s32 %v1141
        %v1148 = vshll.u32 %v1147, 16
        %v1149 = vadd.s32 %v1148, %v1146
        %v1150 = vand.u32 %v715, 65535
        %v1151 = vshra.s32 %v715, 16
        %v1152 = vcvt.s32.f32 %v1150
        %v1153 = vcvt.s32.f32 %v1151
        %1154 = vmin.xlane.f32.xlu0 %v1153
        %v1155 = vpop.xlane.xlu0 %1154
        %vm1156 = vcmp.eq.f32.partialorder %v1153, %v1155
        %v1157 = vsel %vm1156, %v1152, inf
        %1158 = vmin.xlane.f32.xlu0 %v1157
        %v1159 = vpop.xlane.xlu0 %1158
        %v1160 = vcvt.f32.s32 %v1159
        %v1161 = vcvt.f32.s32 %v1155
        %v1162 = vshll.u32 %v1161, 16
        %v1163 = vadd.s32 %v1162, %v1160
        %vm1164 = vcmp.eq.s32.totalorder %v587, %v729
        %vm1165 = vcmp.eq.s32.totalorder %v587, %v743
        %vm1166 = vcmp.eq.s32.totalorder %v587, %v757
        %vm1167 = vcmp.eq.s32.totalorder %v587, %v771
        %vm1168 = vcmp.eq.s32.totalorder %v587, %v785
        %vm1169 = vcmp.eq.s32.totalorder %v587, %v799
        %vm1170 = vcmp.eq.s32.totalorder %v587, %v813
        %vm1171 = vcmp.eq.s32.totalorder %v587, %v827
        %vm1172 = vcmp.eq.s32.totalorder %v587, %v841
        %vm1173 = vcmp.eq.s32.totalorder %v587, %v855
        %vm1174 = vcmp.eq.s32.totalorder %v587, %v869
        %vm1175 = vcmp.eq.s32.totalorder %v587, %v883
        %vm1176 = vcmp.eq.s32.totalorder %v587, %v897
        %vm1177 = vcmp.eq.s32.totalorder %v587, %v911
        %vm1178 = vcmp.eq.s32.totalorder %v587, %v925
        %vm1179 = vcmp.eq.s32.totalorder %v587, %v939
        %vm1180 = vcmp.eq.s32.totalorder %v587, %v953
        %vm1181 = vcmp.eq.s32.totalorder %v587, %v967
        %vm1182 = vcmp.eq.s32.totalorder %v587, %v981
        %vm1183 = vcmp.eq.s32.totalorder %v587, %v995
        %vm1184 = vcmp.eq.s32.totalorder %v587, %v1009
        %vm1185 = vcmp.eq.s32.totalorder %v587, %v1023
        %vm1186 = vcmp.eq.s32.totalorder %v587, %v1037
        %vm1187 = vcmp.eq.s32.totalorder %v587, %v1051
        %vm1188 = vcmp.eq.s32.totalorder %v587, %v1065
        %vm1189 = vcmp.eq.s32.totalorder %v587, %v1079
        %vm1190 = vcmp.eq.s32.totalorder %v587, %v1093
        %vm1191 = vcmp.eq.s32.totalorder %v587, %v1107
        %vm1192 = vcmp.eq.s32.totalorder %v587, %v1121
        %vm1193 = vcmp.eq.s32.totalorder %v587, %v1135
        %vm1194 = vcmp.eq.s32.totalorder %v587, %v1149
        %vm1195 = vcmp.eq.s32.totalorder %v587, %v1163
        %v1196 = vsel %vm1164, 1, 0
        %v1197 = vsel %vm1165, 1, 0
        %v1198 = vsel %vm1166, 1, 0
        %v1199 = vsel %vm1167, 1, 0
        %v1200 = vsel %vm1168, 1, 0
        %v1201 = vsel %vm1169, 1, 0
        %v1202 = vsel %vm1170, 1, 0
        %v1203 = vsel %vm1171, 1, 0
        %v1204 = vsel %vm1172, 1, 0
        %v1205 = vsel %vm1173, 1, 0
        %v1206 = vsel %vm1174, 1, 0
        %v1207 = vsel %vm1175, 1, 0
        %v1208 = vsel %vm1176, 1, 0
        %v1209 = vsel %vm1177, 1, 0
        %v1210 = vsel %vm1178, 1, 0
        %v1211 = vsel %vm1179, 1, 0
        %v1212 = vsel %vm1180, 1, 0
        %v1213 = vsel %vm1181, 1, 0
        %v1214 = vsel %vm1182, 1, 0
        %v1215 = vsel %vm1183, 1, 0
        %v1216 = vsel %vm1184, 1, 0
        %v1217 = vsel %vm1185, 1, 0
        %v1218 = vsel %vm1186, 1, 0
        %v1219 = vsel %vm1187, 1, 0
        %v1220 = vsel %vm1188, 1, 0
        %v1221 = vsel %vm1189, 1, 0
        %v1222 = vsel %vm1190, 1, 0
        %v1223 = vsel %vm1191, 1, 0
        %v1224 = vsel %vm1192, 1, 0
        %v1225 = vsel %vm1193, 1, 0
        %v1226 = vsel %vm1194, 1, 0
        %v1227 = vsel %vm1195, 1, 0
        %v1228 = vcvt.s32.f32 %v1196
        %v1229 = vcvt.s32.f32 %v1197
        %v1230 = vcvt.s32.f32 %v1198
        %v1231 = vcvt.s32.f32 %v1199
        %v1232 = vcvt.s32.f32 %v1200
        %v1233 = vcvt.s32.f32 %v1201
        %v1234 = vcvt.s32.f32 %v1202
        %v1235 = vcvt.s32.f32 %v1203
        %v1236 = vcvt.s32.f32 %v1204
        %v1237 = vcvt.s32.f32 %v1205
        %v1238 = vcvt.s32.f32 %v1206
        %v1239 = vcvt.s32.f32 %v1207
        %v1240 = vcvt.s32.f32 %v1208
        %v1241 = vcvt.s32.f32 %v1209
        %v1242 = vcvt.s32.f32 %v1210
        %v1243 = vcvt.s32.f32 %v1211
        %v1244 = vcvt.s32.f32 %v1212
        %v1245 = vcvt.s32.f32 %v1213
        %v1246 = vcvt.s32.f32 %v1214
        %v1247 = vcvt.s32.f32 %v1215
        %v1248 = vcvt.s32.f32 %v1216
        %v1249 = vcvt.s32.f32 %v1217
        %v1250 = vcvt.s32.f32 %v1218
        %v1251 = vcvt.s32.f32 %v1219
        %v1252 = vcvt.s32.f32 %v1220
        %v1253 = vcvt.s32.f32 %v1221
        %v1254 = vcvt.s32.f32 %v1222
        %v1255 = vcvt.s32.f32 %v1223
        %v1256 = vcvt.s32.f32 %v1224
        %v1257 = vcvt.s32.f32 %v1225
        %v1258 = vcvt.s32.f32 %v1226
        %v1259 = vcvt.s32.f32 %v1227
        %vm1260 = vcmp.gt.f32.partialorder %v1228, 0.0
        %vm1261 = vcmp.gt.f32.partialorder %v1229, 0.0
        %vm1262 = vcmp.gt.f32.partialorder %v1230, 0.0
        %vm1263 = vcmp.gt.f32.partialorder %v1231, 0.0
        %vm1264 = vcmp.gt.f32.partialorder %v1232, 0.0
        %vm1265 = vcmp.gt.f32.partialorder %v1233, 0.0
        %vm1266 = vcmp.gt.f32.partialorder %v1234, 0.0
        %vm1267 = vcmp.gt.f32.partialorder %v1235, 0.0
        %vm1268 = vcmp.gt.f32.partialorder %v1236, 0.0
        %vm1269 = vcmp.gt.f32.partialorder %v1237, 0.0
        %vm1270 = vcmp.gt.f32.partialorder %v1238, 0.0
        %vm1271 = vcmp.gt.f32.partialorder %v1239, 0.0
        %vm1272 = vcmp.gt.f32.partialorder %v1240, 0.0
        %vm1273 = vcmp.gt.f32.partialorder %v1241, 0.0
        %vm1274 = vcmp.gt.f32.partialorder %v1242, 0.0
        %vm1275 = vcmp.gt.f32.partialorder %v1243, 0.0
        %vm1276 = vcmp.gt.f32.partialorder %v1244, 0.0
        %vm1277 = vcmp.gt.f32.partialorder %v1245, 0.0
        %vm1278 = vcmp.gt.f32.partialorder %v1246, 0.0
        %vm1279 = vcmp.gt.f32.partialorder %v1247, 0.0
        %vm1280 = vcmp.gt.f32.partialorder %v1248, 0.0
        %vm1281 = vcmp.gt.f32.partialorder %v1249, 0.0
        %vm1282 = vcmp.gt.f32.partialorder %v1250, 0.0
        %vm1283 = vcmp.gt.f32.partialorder %v1251, 0.0
        %vm1284 = vcmp.gt.f32.partialorder %v1252, 0.0
        %vm1285 = vcmp.gt.f32.partialorder %v1253, 0.0
        %vm1286 = vcmp.gt.f32.partialorder %v1254, 0.0
        %vm1287 = vcmp.gt.f32.partialorder %v1255, 0.0
        %vm1288 = vcmp.gt.f32.partialorder %v1256, 0.0
        %vm1289 = vcmp.gt.f32.partialorder %v1257, 0.0
        %vm1290 = vcmp.gt.f32.partialorder %v1258, 0.0
        %vm1291 = vcmp.gt.f32.partialorder %v1259, 0.0
        %v1292 = vsel %vm1260, -inf, %v491
        %v1293 = vsel %vm1261, -inf, %v494
        %v1294 = vsel %vm1262, -inf, %v497
        %v1295 = vsel %vm1263, -inf, %v500
        %v1296 = vsel %vm1264, -inf, %v503
        %v1297 = vsel %vm1265, -inf, %v506
        %v1298 = vsel %vm1266, -inf, %v509
        %v1299 = vsel %vm1267, -inf, %v512
        %v1300 = vsel %vm1268, -inf, %v515
        %v1301 = vsel %vm1269, -inf, %v518
        %v1302 = vsel %vm1270, -inf, %v521
        %v1303 = vsel %vm1271, -inf, %v524
        %v1304 = vsel %vm1272, -inf, %v527
        %v1305 = vsel %vm1273, -inf, %v530
        %v1306 = vsel %vm1274, -inf, %v533
        %v1307 = vsel %vm1275, -inf, %v536
        %v1308 = vsel %vm1276, -inf, %v539
        %v1309 = vsel %vm1277, -inf, %v542
        %v1310 = vsel %vm1278, -inf, %v545
        %v1311 = vsel %vm1279, -inf, %v548
        %v1312 = vsel %vm1280, -inf, %v551
        %v1313 = vsel %vm1281, -inf, %v554
        %v1314 = vsel %vm1282, -inf, %v557
        %v1315 = vsel %vm1283, -inf, %v560
        %v1316 = vsel %vm1284, -inf, %v563
        %v1317 = vsel %vm1285, -inf, %v566
        %v1318 = vsel %vm1286, -inf, %v569
        %v1319 = vsel %vm1287, -inf, %v572
        %v1320 = vsel %vm1288, -inf, %v575
        %v1321 = vsel %vm1289, -inf, %v578
        %v1322 = vsel %vm1290, -inf, %v581
        %v1323 = vsel %vm1291, -inf, %v584
        %1324 = vmax.xlane.f32.xlu0 %v1292
        %v1325 = vpop.xlane.xlu0 %1324
        %1326 = vmax.xlane.f32.xlu0 %v1293
        %v1327 = vpop.xlane.xlu0 %1326
        %1328 = vmax.xlane.f32.xlu0 %v1294
        %v1329 = vpop.xlane.xlu0 %1328
        %1330 = vmax.xlane.f32.xlu0 %v1295
        %v1331 = vpop.xlane.xlu0 %1330
        %1332 = vmax.xlane.f32.xlu0 %v1296
        %v1333 = vpop.xlane.xlu0 %1332
        %1334 = vmax.xlane.f32.xlu0 %v1297
        %v1335 = vpop.xlane.xlu0 %1334
        %1336 = vmax.xlane.f32.xlu0 %v1298
        %v1337 = vpop.xlane.xlu0 %1336
        %1338 = vmax.xlane.f32.xlu0 %v1299
        %v1339 = vpop.xlane.xlu0 %1338
        %1340 = vmax.xlane.f32.xlu0 %v1300
        %v1341 = vpop.xlane.xlu0 %1340
        %1342 = vmax.xlane.f32.xlu0 %v1301
        %v1343 = vpop.xlane.xlu0 %1342
        %1344 = vmax.xlane.f32.xlu0 %v1302
        %v1345 = vpop.xlane.xlu0 %1344
        %1346 = vmax.xlane.f32.xlu0 %v1303
        %v1347 = vpop.xlane.xlu0 %1346
        %1348 = vmax.xlane.f32.xlu0 %v1304
        %v1349 = vpop.xlane.xlu0 %1348
        %1350 = vmax.xlane.f32.xlu0 %v1305
        %v1351 = vpop.xlane.xlu0 %1350
        %1352 = vmax.xlane.f32.xlu0 %v1306
        %v1353 = vpop.xlane.xlu0 %1352
        %1354 = vmax.xlane.f32.xlu0 %v1307
        %v1355 = vpop.xlane.xlu0 %1354
        %1356 = vmax.xlane.f32.xlu0 %v1308
        %v1357 = vpop.xlane.xlu0 %1356
        %1358 = vmax.xlane.f32.xlu0 %v1309
        %v1359 = vpop.xlane.xlu0 %1358
        %1360 = vmax.xlane.f32.xlu0 %v1310
        %v1361 = vpop.xlane.xlu0 %1360
        %1362 = vmax.xlane.f32.xlu0 %v1311
        %v1363 = vpop.xlane.xlu0 %1362
        %1364 = vmax.xlane.f32.xlu0 %v1312
        %v1365 = vpop.xlane.xlu0 %1364
        %1366 = vmax.xlane.f32.xlu0 %v1313
        %v1367 = vpop.xlane.xlu0 %1366
        %1368 = vmax.xlane.f32.xlu0 %v1314
        %v1369 = vpop.xlane.xlu0 %1368
        %1370 = vmax.xlane.f32.xlu0 %v1315
        %v1371 = vpop.xlane.xlu0 %1370
        %1372 = vmax.xlane.f32.xlu0 %v1316
        %v1373 = vpop.xlane.xlu0 %1372
        %1374 = vmax.xlane.f32.xlu0 %v1317
        %v1375 = vpop.xlane.xlu0 %1374
        %1376 = vmax.xlane.f32.xlu0 %v1318
        %v1377 = vpop.xlane.xlu0 %1376
        %1378 = vmax.xlane.f32.xlu0 %v1319
        %v1379 = vpop.xlane.xlu0 %1378
        %1380 = vmax.xlane.f32.xlu0 %v1320
        %v1381 = vpop.xlane.xlu0 %1380
        %1382 = vmax.xlane.f32.xlu0 %v1321
        %v1383 = vpop.xlane.xlu0 %1382
        %1384 = vmax.xlane.f32.xlu0 %v1322
        %v1385 = vpop.xlane.xlu0 %1384
        %1386 = vmax.xlane.f32.xlu0 %v1323
        %v1387 = vpop.xlane.xlu0 %1386
        %vm1388 = vcmp.eq.f32.partialorder %v1292, %v1325
        %vm1389 = vcmp.eq.f32.partialorder %v1293, %v1327
        %vm1390 = vcmp.eq.f32.partialorder %v1294, %v1329
        %vm1391 = vcmp.eq.f32.partialorder %v1295, %v1331
        %vm1392 = vcmp.eq.f32.partialorder %v1296, %v1333
        %vm1393 = vcmp.eq.f32.partialorder %v1297, %v1335
        %vm1394 = vcmp.eq.f32.partialorder %v1298, %v1337
        %vm1395 = vcmp.eq.f32.partialorder %v1299, %v1339
        %vm1396 = vcmp.eq.f32.partialorder %v1300, %v1341
        %vm1397 = vcmp.eq.f32.partialorder %v1301, %v1343
        %vm1398 = vcmp.eq.f32.partialorder %v1302, %v1345
        %vm1399 = vcmp.eq.f32.partialorder %v1303, %v1347
        %vm1400 = vcmp.eq.f32.partialorder %v1304, %v1349
        %vm1401 = vcmp.eq.f32.partialorder %v1305, %v1351
        %vm1402 = vcmp.eq.f32.partialorder %v1306, %v1353
        %vm1403 = vcmp.eq.f32.partialorder %v1307, %v1355
        %vm1404 = vcmp.eq.f32.partialorder %v1308, %v1357
        %vm1405 = vcmp.eq.f32.partialorder %v1309, %v1359
        %vm1406 = vcmp.eq.f32.partialorder %v1310, %v1361
        %vm1407 = vcmp.eq.f32.partialorder %v1311, %v1363
        %vm1408 = vcmp.eq.f32.partialorder %v1312, %v1365
        %vm1409 = vcmp.eq.f32.partialorder %v1313, %v1367
        %vm1410 = vcmp.eq.f32.partialorder %v1314, %v1369
        %vm1411 = vcmp.eq.f32.partialorder %v1315, %v1371
        %vm1412 = vcmp.eq.f32.partialorder %v1316, %v1373
        %vm1413 = vcmp.eq.f32.partialorder %v1317, %v1375
        %vm1414 = vcmp.eq.f32.partialorder %v1318, %v1377
        %vm1415 = vcmp.eq.f32.partialorder %v1319, %v1379
        %vm1416 = vcmp.eq.f32.partialorder %v1320, %v1381
        %vm1417 = vcmp.eq.f32.partialorder %v1321, %v1383
        %vm1418 = vcmp.eq.f32.partialorder %v1322, %v1385
        %vm1419 = vcmp.eq.f32.partialorder %v1323, %v1387
        %v1420 = vsel %vm1388, %v587, 128
        %v1421 = vsel %vm1389, %v587, 128
        %v1422 = vsel %vm1390, %v587, 128
        %v1423 = vsel %vm1391, %v587, 128
        %v1424 = vsel %vm1392, %v587, 128
        %v1425 = vsel %vm1393, %v587, 128
        %v1426 = vsel %vm1394, %v587, 128
        %v1427 = vsel %vm1395, %v587, 128
        %v1428 = vsel %vm1396, %v587, 128
        %v1429 = vsel %vm1397, %v587, 128
        %v1430 = vsel %vm1398, %v587, 128
        %v1431 = vsel %vm1399, %v587, 128
        %v1432 = vsel %vm1400, %v587, 128
        %v1433 = vsel %vm1401, %v587, 128
        %v1434 = vsel %vm1402, %v587, 128
        %v1435 = vsel %vm1403, %v587, 128
        %v1436 = vsel %vm1404, %v587, 128
        %v1437 = vsel %vm1405, %v587, 128
        %v1438 = vsel %vm1406, %v587, 128
        %v1439 = vsel %vm1407, %v587, 128
        %v1440 = vsel %vm1408, %v587, 128
        %v1441 = vsel %vm1409, %v587, 128
        %v1442 = vsel %vm1410, %v587, 128
        %v1443 = vsel %vm1411, %v587, 128
        %v1444 = vsel %vm1412, %v587, 128
        %v1445 = vsel %vm1413, %v587, 128
        %v1446 = vsel %vm1414, %v587, 128
        %v1447 = vsel %vm1415, %v587, 128
        %v1448 = vsel %vm1416, %v587, 128
        %v1449 = vsel %vm1417, %v587, 128
        %v1450 = vsel %vm1418, %v587, 128
        %v1451 = vsel %vm1419, %v587, 128
        %v1452 = vand.u32 %v1420, 65535
        %v1453 = vshra.s32 %v1420, 16
        %v1454 = vcvt.s32.f32 %v1452
        %v1455 = vcvt.s32.f32 %v1453
        %1456 = vmin.xlane.f32.xlu0 %v1455
        %v1457 = vpop.xlane.xlu0 %1456
        %vm1458 = vcmp.eq.f32.partialorder %v1455, %v1457
        %v1459 = vsel %vm1458, %v1454, inf
        %1460 = vmin.xlane.f32.xlu0 %v1459
        %v1461 = vpop.xlane.xlu0 %1460
        %v1462 = vcvt.f32.s32 %v1461
        %v1463 = vcvt.f32.s32 %v1457
        %v1464 = vshll.u32 %v1463, 16
        %v1465 = vadd.s32 %v1464, %v1462
        %v1466 = vand.u32 %v1421, 65535
        %v1467 = vshra.s32 %v1421, 16
        %v1468 = vcvt.s32.f32 %v1466
        %v1469 = vcvt.s32.f32 %v1467
        %1470 = vmin.xlane.f32.xlu0 %v1469
        %v1471 = vpop.xlane.xlu0 %1470
        %vm1472 = vcmp.eq.f32.partialorder %v1469, %v1471
        %v1473 = vsel %vm1472, %v1468, inf
        %1474 = vmin.xlane.f32.xlu0 %v1473
        %v1475 = vpop.xlane.xlu0 %1474
        %v1476 = vcvt.f32.s32 %v1475
        %v1477 = vcvt.f32.s32 %v1471
        %v1478 = vshll.u32 %v1477, 16
        %v1479 = vadd.s32 %v1478, %v1476
        %v1480 = vand.u32 %v1422, 65535
        %v1481 = vshra.s32 %v1422, 16
        %v1482 = vcvt.s32.f32 %v1480
        %v1483 = vcvt.s32.f32 %v1481
        %1484 = vmin.xlane.f32.xlu0 %v1483
        %v1485 = vpop.xlane.xlu0 %1484
        %vm1486 = vcmp.eq.f32.partialorder %v1483, %v1485
        %v1487 = vsel %vm1486, %v1482, inf
        %1488 = vmin.xlane.f32.xlu0 %v1487
        %v1489 = vpop.xlane.xlu0 %1488
        %v1490 = vcvt.f32.s32 %v1489
        %v1491 = vcvt.f32.s32 %v1485
        %v1492 = vshll.u32 %v1491, 16
        %v1493 = vadd.s32 %v1492, %v1490
        %v1494 = vand.u32 %v1423, 65535
        %v1495 = vshra.s32 %v1423, 16
        %v1496 = vcvt.s32.f32 %v1494
        %v1497 = vcvt.s32.f32 %v1495
        %1498 = vmin.xlane.f32.xlu0 %v1497
        %v1499 = vpop.xlane.xlu0 %1498
        %vm1500 = vcmp.eq.f32.partialorder %v1497, %v1499
        %v1501 = vsel %vm1500, %v1496, inf
        %1502 = vmin.xlane.f32.xlu0 %v1501
        %v1503 = vpop.xlane.xlu0 %1502
        %v1504 = vcvt.f32.s32 %v1503
        %v1505 = vcvt.f32.s32 %v1499
        %v1506 = vshll.u32 %v1505, 16
        %v1507 = vadd.s32 %v1506, %v1504
        %v1508 = vand.u32 %v1424, 65535
        %v1509 = vshra.s32 %v1424, 16
        %v1510 = vcvt.s32.f32 %v1508
        %v1511 = vcvt.s32.f32 %v1509
        %1512 = vmin.xlane.f32.xlu0 %v1511
        %v1513 = vpop.xlane.xlu0 %1512
        %vm1514 = vcmp.eq.f32.partialorder %v1511, %v1513
        %v1515 = vsel %vm1514, %v1510, inf
        %1516 = vmin.xlane.f32.xlu0 %v1515
        %v1517 = vpop.xlane.xlu0 %1516
        %v1518 = vcvt.f32.s32 %v1517
        %v1519 = vcvt.f32.s32 %v1513
        %v1520 = vshll.u32 %v1519, 16
        %v1521 = vadd.s32 %v1520, %v1518
        %v1522 = vand.u32 %v1425, 65535
        %v1523 = vshra.s32 %v1425, 16
        %v1524 = vcvt.s32.f32 %v1522
        %v1525 = vcvt.s32.f32 %v1523
        %1526 = vmin.xlane.f32.xlu0 %v1525
        %v1527 = vpop.xlane.xlu0 %1526
        %vm1528 = vcmp.eq.f32.partialorder %v1525, %v1527
        %v1529 = vsel %vm1528, %v1524, inf
        %1530 = vmin.xlane.f32.xlu0 %v1529
        %v1531 = vpop.xlane.xlu0 %1530
        %v1532 = vcvt.f32.s32 %v1531
        %v1533 = vcvt.f32.s32 %v1527
        %v1534 = vshll.u32 %v1533, 16
        %v1535 = vadd.s32 %v1534, %v1532
        %v1536 = vand.u32 %v1426, 65535
        %v1537 = vshra.s32 %v1426, 16
        %v1538 = vcvt.s32.f32 %v1536
        %v1539 = vcvt.s32.f32 %v1537
        %1540 = vmin.xlane.f32.xlu0 %v1539
        %v1541 = vpop.xlane.xlu0 %1540
        %vm1542 = vcmp.eq.f32.partialorder %v1539, %v1541
        %v1543 = vsel %vm1542, %v1538, inf
        %1544 = vmin.xlane.f32.xlu0 %v1543
        %v1545 = vpop.xlane.xlu0 %1544
        %v1546 = vcvt.f32.s32 %v1545
        %v1547 = vcvt.f32.s32 %v1541
        %v1548 = vshll.u32 %v1547, 16
        %v1549 = vadd.s32 %v1548, %v1546
        %v1550 = vand.u32 %v1427, 65535
        %v1551 = vshra.s32 %v1427, 16
        %v1552 = vcvt.s32.f32 %v1550
        %v1553 = vcvt.s32.f32 %v1551
        %1554 = vmin.xlane.f32.xlu0 %v1553
        %v1555 = vpop.xlane.xlu0 %1554
        %vm1556 = vcmp.eq.f32.partialorder %v1553, %v1555
        %v1557 = vsel %vm1556, %v1552, inf
        %1558 = vmin.xlane.f32.xlu0 %v1557
        %v1559 = vpop.xlane.xlu0 %1558
        %v1560 = vcvt.f32.s32 %v1559
        %v1561 = vcvt.f32.s32 %v1555
        %v1562 = vshll.u32 %v1561, 16
        %v1563 = vadd.s32 %v1562, %v1560
        %v1564 = vand.u32 %v1428, 65535
        %v1565 = vshra.s32 %v1428, 16
        %v1566 = vcvt.s32.f32 %v1564
        %v1567 = vcvt.s32.f32 %v1565
        %1568 = vmin.xlane.f32.xlu0 %v1567
        %v1569 = vpop.xlane.xlu0 %1568
        %vm1570 = vcmp.eq.f32.partialorder %v1567, %v1569
        %v1571 = vsel %vm1570, %v1566, inf
        %1572 = vmin.xlane.f32.xlu0 %v1571
        %v1573 = vpop.xlane.xlu0 %1572
        %v1574 = vcvt.f32.s32 %v1573
        %v1575 = vcvt.f32.s32 %v1569
        %v1576 = vshll.u32 %v1575, 16
        %v1577 = vadd.s32 %v1576, %v1574
        %v1578 = vand.u32 %v1429, 65535
        %v1579 = vshra.s32 %v1429, 16
        %v1580 = vcvt.s32.f32 %v1578
        %v1581 = vcvt.s32.f32 %v1579
        %1582 = vmin.xlane.f32.xlu0 %v1581
        %v1583 = vpop.xlane.xlu0 %1582
        %vm1584 = vcmp.eq.f32.partialorder %v1581, %v1583
        %v1585 = vsel %vm1584, %v1580, inf
        %1586 = vmin.xlane.f32.xlu0 %v1585
        %v1587 = vpop.xlane.xlu0 %1586
        %v1588 = vcvt.f32.s32 %v1587
        %v1589 = vcvt.f32.s32 %v1583
        %v1590 = vshll.u32 %v1589, 16
        %v1591 = vadd.s32 %v1590, %v1588
        %v1592 = vand.u32 %v1430, 65535
        %v1593 = vshra.s32 %v1430, 16
        %v1594 = vcvt.s32.f32 %v1592
        %v1595 = vcvt.s32.f32 %v1593
        %1596 = vmin.xlane.f32.xlu0 %v1595
        %v1597 = vpop.xlane.xlu0 %1596
        %vm1598 = vcmp.eq.f32.partialorder %v1595, %v1597
        %v1599 = vsel %vm1598, %v1594, inf
        %1600 = vmin.xlane.f32.xlu0 %v1599
        %v1601 = vpop.xlane.xlu0 %1600
        %v1602 = vcvt.f32.s32 %v1601
        %v1603 = vcvt.f32.s32 %v1597
        %v1604 = vshll.u32 %v1603, 16
        %v1605 = vadd.s32 %v1604, %v1602
        %v1606 = vand.u32 %v1431, 65535
        %v1607 = vshra.s32 %v1431, 16
        %v1608 = vcvt.s32.f32 %v1606
        %v1609 = vcvt.s32.f32 %v1607
        %1610 = vmin.xlane.f32.xlu0 %v1609
        %v1611 = vpop.xlane.xlu0 %1610
        %vm1612 = vcmp.eq.f32.partialorder %v1609, %v1611
        %v1613 = vsel %vm1612, %v1608, inf
        %1614 = vmin.xlane.f32.xlu0 %v1613
        %v1615 = vpop.xlane.xlu0 %1614
        %v1616 = vcvt.f32.s32 %v1615
        %v1617 = vcvt.f32.s32 %v1611
        %v1618 = vshll.u32 %v1617, 16
        %v1619 = vadd.s32 %v1618, %v1616
        %v1620 = vand.u32 %v1432, 65535
        %v1621 = vshra.s32 %v1432, 16
        %v1622 = vcvt.s32.f32 %v1620
        %v1623 = vcvt.s32.f32 %v1621
        %1624 = vmin.xlane.f32.xlu0 %v1623
        %v1625 = vpop.xlane.xlu0 %1624
        %vm1626 = vcmp.eq.f32.partialorder %v1623, %v1625
        %v1627 = vsel %vm1626, %v1622, inf
        %1628 = vmin.xlane.f32.xlu0 %v1627
        %v1629 = vpop.xlane.xlu0 %1628
        %v1630 = vcvt.f32.s32 %v1629
        %v1631 = vcvt.f32.s32 %v1625
        %v1632 = vshll.u32 %v1631, 16
        %v1633 = vadd.s32 %v1632, %v1630
        %v1634 = vand.u32 %v1433, 65535
        %v1635 = vshra.s32 %v1433, 16
        %v1636 = vcvt.s32.f32 %v1634
        %v1637 = vcvt.s32.f32 %v1635
        %1638 = vmin.xlane.f32.xlu0 %v1637
        %v1639 = vpop.xlane.xlu0 %1638
        %vm1640 = vcmp.eq.f32.partialorder %v1637, %v1639
        %v1641 = vsel %vm1640, %v1636, inf
        %1642 = vmin.xlane.f32.xlu0 %v1641
        %v1643 = vpop.xlane.xlu0 %1642
        %v1644 = vcvt.f32.s32 %v1643
        %v1645 = vcvt.f32.s32 %v1639
        %v1646 = vshll.u32 %v1645, 16
        %v1647 = vadd.s32 %v1646, %v1644
        %v1648 = vand.u32 %v1434, 65535
        %v1649 = vshra.s32 %v1434, 16
        %v1650 = vcvt.s32.f32 %v1648
        %v1651 = vcvt.s32.f32 %v1649
        %1652 = vmin.xlane.f32.xlu0 %v1651
        %v1653 = vpop.xlane.xlu0 %1652
        %vm1654 = vcmp.eq.f32.partialorder %v1651, %v1653
        %v1655 = vsel %vm1654, %v1650, inf
        %1656 = vmin.xlane.f32.xlu0 %v1655
        %v1657 = vpop.xlane.xlu0 %1656
        %v1658 = vcvt.f32.s32 %v1657
        %v1659 = vcvt.f32.s32 %v1653
        %v1660 = vshll.u32 %v1659, 16
        %v1661 = vadd.s32 %v1660, %v1658
        %v1662 = vand.u32 %v1435, 65535
        %v1663 = vshra.s32 %v1435, 16
        %v1664 = vcvt.s32.f32 %v1662
        %v1665 = vcvt.s32.f32 %v1663
        %1666 = vmin.xlane.f32.xlu0 %v1665
        %v1667 = vpop.xlane.xlu0 %1666
        %vm1668 = vcmp.eq.f32.partialorder %v1665, %v1667
        %v1669 = vsel %vm1668, %v1664, inf
        %1670 = vmin.xlane.f32.xlu0 %v1669
        %v1671 = vpop.xlane.xlu0 %1670
        %v1672 = vcvt.f32.s32 %v1671
        %v1673 = vcvt.f32.s32 %v1667
        %v1674 = vshll.u32 %v1673, 16
        %v1675 = vadd.s32 %v1674, %v1672
        %v1676 = vand.u32 %v1436, 65535
        %v1677 = vshra.s32 %v1436, 16
        %v1678 = vcvt.s32.f32 %v1676
        %v1679 = vcvt.s32.f32 %v1677
        %1680 = vmin.xlane.f32.xlu0 %v1679
        %v1681 = vpop.xlane.xlu0 %1680
        %vm1682 = vcmp.eq.f32.partialorder %v1679, %v1681
        %v1683 = vsel %vm1682, %v1678, inf
        %1684 = vmin.xlane.f32.xlu0 %v1683
        %v1685 = vpop.xlane.xlu0 %1684
        %v1686 = vcvt.f32.s32 %v1685
        %v1687 = vcvt.f32.s32 %v1681
        %v1688 = vshll.u32 %v1687, 16
        %v1689 = vadd.s32 %v1688, %v1686
        %v1690 = vand.u32 %v1437, 65535
        %v1691 = vshra.s32 %v1437, 16
        %v1692 = vcvt.s32.f32 %v1690
        %v1693 = vcvt.s32.f32 %v1691
        %1694 = vmin.xlane.f32.xlu0 %v1693
        %v1695 = vpop.xlane.xlu0 %1694
        %vm1696 = vcmp.eq.f32.partialorder %v1693, %v1695
        %v1697 = vsel %vm1696, %v1692, inf
        %1698 = vmin.xlane.f32.xlu0 %v1697
        %v1699 = vpop.xlane.xlu0 %1698
        %v1700 = vcvt.f32.s32 %v1699
        %v1701 = vcvt.f32.s32 %v1695
        %v1702 = vshll.u32 %v1701, 16
        %v1703 = vadd.s32 %v1702, %v1700
        %v1704 = vand.u32 %v1438, 65535
        %v1705 = vshra.s32 %v1438, 16
        %v1706 = vcvt.s32.f32 %v1704
        %v1707 = vcvt.s32.f32 %v1705
        %1708 = vmin.xlane.f32.xlu0 %v1707
        %v1709 = vpop.xlane.xlu0 %1708
        %vm1710 = vcmp.eq.f32.partialorder %v1707, %v1709
        %v1711 = vsel %vm1710, %v1706, inf
        %1712 = vmin.xlane.f32.xlu0 %v1711
        %v1713 = vpop.xlane.xlu0 %1712
        %v1714 = vcvt.f32.s32 %v1713
        %v1715 = vcvt.f32.s32 %v1709
        %v1716 = vshll.u32 %v1715, 16
        %v1717 = vadd.s32 %v1716, %v1714
        %v1718 = vand.u32 %v1439, 65535
        %v1719 = vshra.s32 %v1439, 16
        %v1720 = vcvt.s32.f32 %v1718
        %v1721 = vcvt.s32.f32 %v1719
        %1722 = vmin.xlane.f32.xlu0 %v1721
        %v1723 = vpop.xlane.xlu0 %1722
        %vm1724 = vcmp.eq.f32.partialorder %v1721, %v1723
        %v1725 = vsel %vm1724, %v1720, inf
        %1726 = vmin.xlane.f32.xlu0 %v1725
        %v1727 = vpop.xlane.xlu0 %1726
        %v1728 = vcvt.f32.s32 %v1727
        %v1729 = vcvt.f32.s32 %v1723
        %v1730 = vshll.u32 %v1729, 16
        %v1731 = vadd.s32 %v1730, %v1728
        %v1732 = vand.u32 %v1440, 65535
        %v1733 = vshra.s32 %v1440, 16
        %v1734 = vcvt.s32.f32 %v1732
        %v1735 = vcvt.s32.f32 %v1733
        %1736 = vmin.xlane.f32.xlu0 %v1735
        %v1737 = vpop.xlane.xlu0 %1736
        %vm1738 = vcmp.eq.f32.partialorder %v1735, %v1737
        %v1739 = vsel %vm1738, %v1734, inf
        %1740 = vmin.xlane.f32.xlu0 %v1739
        %v1741 = vpop.xlane.xlu0 %1740
        %v1742 = vcvt.f32.s32 %v1741
        %v1743 = vcvt.f32.s32 %v1737
        %v1744 = vshll.u32 %v1743, 16
        %v1745 = vadd.s32 %v1744, %v1742
        %v1746 = vand.u32 %v1441, 65535
        %v1747 = vshra.s32 %v1441, 16
        %v1748 = vcvt.s32.f32 %v1746
        %v1749 = vcvt.s32.f32 %v1747
        %1750 = vmin.xlane.f32.xlu0 %v1749
        %v1751 = vpop.xlane.xlu0 %1750
        %vm1752 = vcmp.eq.f32.partialorder %v1749, %v1751
        %v1753 = vsel %vm1752, %v1748, inf
        %1754 = vmin.xlane.f32.xlu0 %v1753
        %v1755 = vpop.xlane.xlu0 %1754
        %v1756 = vcvt.f32.s32 %v1755
        %v1757 = vcvt.f32.s32 %v1751
        %v1758 = vshll.u32 %v1757, 16
        %v1759 = vadd.s32 %v1758, %v1756
        %v1760 = vand.u32 %v1442, 65535
        %v1761 = vshra.s32 %v1442, 16
        %v1762 = vcvt.s32.f32 %v1760
        %v1763 = vcvt.s32.f32 %v1761
        %1764 = vmin.xlane.f32.xlu0 %v1763
        %v1765 = vpop.xlane.xlu0 %1764
        %vm1766 = vcmp.eq.f32.partialorder %v1763, %v1765
        %v1767 = vsel %vm1766, %v1762, inf
        %1768 = vmin.xlane.f32.xlu0 %v1767
        %v1769 = vpop.xlane.xlu0 %1768
        %v1770 = vcvt.f32.s32 %v1769
        %v1771 = vcvt.f32.s32 %v1765
        %v1772 = vshll.u32 %v1771, 16
        %v1773 = vadd.s32 %v1772, %v1770
        %v1774 = vand.u32 %v1443, 65535
        %v1775 = vshra.s32 %v1443, 16
        %v1776 = vcvt.s32.f32 %v1774
        %v1777 = vcvt.s32.f32 %v1775
        %1778 = vmin.xlane.f32.xlu0 %v1777
        %v1779 = vpop.xlane.xlu0 %1778
        %vm1780 = vcmp.eq.f32.partialorder %v1777, %v1779
        %v1781 = vsel %vm1780, %v1776, inf
        %1782 = vmin.xlane.f32.xlu0 %v1781
        %v1783 = vpop.xlane.xlu0 %1782
        %v1784 = vcvt.f32.s32 %v1783
        %v1785 = vcvt.f32.s32 %v1779
        %v1786 = vshll.u32 %v1785, 16
        %v1787 = vadd.s32 %v1786, %v1784
        %v1788 = vand.u32 %v1444, 65535
        %v1789 = vshra.s32 %v1444, 16
        %v1790 = vcvt.s32.f32 %v1788
        %v1791 = vcvt.s32.f32 %v1789
        %1792 = vmin.xlane.f32.xlu0 %v1791
        %v1793 = vpop.xlane.xlu0 %1792
        %vm1794 = vcmp.eq.f32.partialorder %v1791, %v1793
        %v1795 = vsel %vm1794, %v1790, inf
        %1796 = vmin.xlane.f32.xlu0 %v1795
        %v1797 = vpop.xlane.xlu0 %1796
        %v1798 = vcvt.f32.s32 %v1797
        %v1799 = vcvt.f32.s32 %v1793
        %v1800 = vshll.u32 %v1799, 16
        %v1801 = vadd.s32 %v1800, %v1798
        %v1802 = vand.u32 %v1445, 65535
        %v1803 = vshra.s32 %v1445, 16
        %v1804 = vcvt.s32.f32 %v1802
        %v1805 = vcvt.s32.f32 %v1803
        %1806 = vmin.xlane.f32.xlu0 %v1805
        %v1807 = vpop.xlane.xlu0 %1806
        %vm1808 = vcmp.eq.f32.partialorder %v1805, %v1807
        %v1809 = vsel %vm1808, %v1804, inf
        %1810 = vmin.xlane.f32.xlu0 %v1809
        %v1811 = vpop.xlane.xlu0 %1810
        %v1812 = vcvt.f32.s32 %v1811
        %v1813 = vcvt.f32.s32 %v1807
        %v1814 = vshll.u32 %v1813, 16
        %v1815 = vadd.s32 %v1814, %v1812
        %v1816 = vand.u32 %v1446, 65535
        %v1817 = vshra.s32 %v1446, 16
        %v1818 = vcvt.s32.f32 %v1816
        %v1819 = vcvt.s32.f32 %v1817
        %1820 = vmin.xlane.f32.xlu0 %v1819
        %v1821 = vpop.xlane.xlu0 %1820
        %vm1822 = vcmp.eq.f32.partialorder %v1819, %v1821
        %v1823 = vsel %vm1822, %v1818, inf
        %1824 = vmin.xlane.f32.xlu0 %v1823
        %v1825 = vpop.xlane.xlu0 %1824
        %v1826 = vcvt.f32.s32 %v1825
        %v1827 = vcvt.f32.s32 %v1821
        %v1828 = vshll.u32 %v1827, 16
        %v1829 = vadd.s32 %v1828, %v1826
        %v1830 = vand.u32 %v1447, 65535
        %v1831 = vshra.s32 %v1447, 16
        %v1832 = vcvt.s32.f32 %v1830
        %v1833 = vcvt.s32.f32 %v1831
        %1834 = vmin.xlane.f32.xlu0 %v1833
        %v1835 = vpop.xlane.xlu0 %1834
        %vm1836 = vcmp.eq.f32.partialorder %v1833, %v1835
        %v1837 = vsel %vm1836, %v1832, inf
        %1838 = vmin.xlane.f32.xlu0 %v1837
        %v1839 = vpop.xlane.xlu0 %1838
        %v1840 = vcvt.f32.s32 %v1839
        %v1841 = vcvt.f32.s32 %v1835
        %v1842 = vshll.u32 %v1841, 16
        %v1843 = vadd.s32 %v1842, %v1840
        %v1844 = vand.u32 %v1448, 65535
        %v1845 = vshra.s32 %v1448, 16
        %v1846 = vcvt.s32.f32 %v1844
        %v1847 = vcvt.s32.f32 %v1845
        %1848 = vmin.xlane.f32.xlu0 %v1847
        %v1849 = vpop.xlane.xlu0 %1848
        %vm1850 = vcmp.eq.f32.partialorder %v1847, %v1849
        %v1851 = vsel %vm1850, %v1846, inf
        %1852 = vmin.xlane.f32.xlu0 %v1851
        %v1853 = vpop.xlane.xlu0 %1852
        %v1854 = vcvt.f32.s32 %v1853
        %v1855 = vcvt.f32.s32 %v1849
        %v1856 = vshll.u32 %v1855, 16
        %v1857 = vadd.s32 %v1856, %v1854
        %v1858 = vand.u32 %v1449, 65535
        %v1859 = vshra.s32 %v1449, 16
        %v1860 = vcvt.s32.f32 %v1858
        %v1861 = vcvt.s32.f32 %v1859
        %1862 = vmin.xlane.f32.xlu0 %v1861
        %v1863 = vpop.xlane.xlu0 %1862
        %vm1864 = vcmp.eq.f32.partialorder %v1861, %v1863
        %v1865 = vsel %vm1864, %v1860, inf
        %1866 = vmin.xlane.f32.xlu0 %v1865
        %v1867 = vpop.xlane.xlu0 %1866
        %v1868 = vcvt.f32.s32 %v1867
        %v1869 = vcvt.f32.s32 %v1863
        %v1870 = vshll.u32 %v1869, 16
        %v1871 = vadd.s32 %v1870, %v1868
        %v1872 = vand.u32 %v1450, 65535
        %v1873 = vshra.s32 %v1450, 16
        %v1874 = vcvt.s32.f32 %v1872
        %v1875 = vcvt.s32.f32 %v1873
        %1876 = vmin.xlane.f32.xlu0 %v1875
        %v1877 = vpop.xlane.xlu0 %1876
        %vm1878 = vcmp.eq.f32.partialorder %v1875, %v1877
        %v1879 = vsel %vm1878, %v1874, inf
        %1880 = vmin.xlane.f32.xlu0 %v1879
        %v1881 = vpop.xlane.xlu0 %1880
        %v1882 = vcvt.f32.s32 %v1881
        %v1883 = vcvt.f32.s32 %v1877
        %v1884 = vshll.u32 %v1883, 16
        %v1885 = vadd.s32 %v1884, %v1882
        %v1886 = vand.u32 %v1451, 65535
        %v1887 = vshra.s32 %v1451, 16
        %v1888 = vcvt.s32.f32 %v1886
        %v1889 = vcvt.s32.f32 %v1887
        %1890 = vmin.xlane.f32.xlu0 %v1889
        %v1891 = vpop.xlane.xlu0 %1890
        %vm1892 = vcmp.eq.f32.partialorder %v1889, %v1891
        %v1893 = vsel %vm1892, %v1888, inf
        %1894 = vmin.xlane.f32.xlu0 %v1893
        %v1895 = vpop.xlane.xlu0 %1894
        %v1896 = vcvt.f32.s32 %v1895
        %v1897 = vcvt.f32.s32 %v1891
        %v1898 = vshll.u32 %v1897, 16
        %v1899 = vadd.s32 %v1898, %v1896
        %vm1900 = vcmp.eq.s32.totalorder %v587, %v1465
        %vm1901 = vcmp.eq.s32.totalorder %v587, %v1479
        %vm1902 = vcmp.eq.s32.totalorder %v587, %v1493
        %vm1903 = vcmp.eq.s32.totalorder %v587, %v1507
        %vm1904 = vcmp.eq.s32.totalorder %v587, %v1521
        %vm1905 = vcmp.eq.s32.totalorder %v587, %v1535
        %vm1906 = vcmp.eq.s32.totalorder %v587, %v1549
        %vm1907 = vcmp.eq.s32.totalorder %v587, %v1563
        %vm1908 = vcmp.eq.s32.totalorder %v587, %v1577
        %vm1909 = vcmp.eq.s32.totalorder %v587, %v1591
        %vm1910 = vcmp.eq.s32.totalorder %v587, %v1605
        %vm1911 = vcmp.eq.s32.totalorder %v587, %v1619
        %vm1912 = vcmp.eq.s32.totalorder %v587, %v1633
        %vm1913 = vcmp.eq.s32.totalorder %v587, %v1647
        %vm1914 = vcmp.eq.s32.totalorder %v587, %v1661
        %vm1915 = vcmp.eq.s32.totalorder %v587, %v1675
        %vm1916 = vcmp.eq.s32.totalorder %v587, %v1689
        %vm1917 = vcmp.eq.s32.totalorder %v587, %v1703
        %vm1918 = vcmp.eq.s32.totalorder %v587, %v1717
        %vm1919 = vcmp.eq.s32.totalorder %v587, %v1731
        %vm1920 = vcmp.eq.s32.totalorder %v587, %v1745
        %vm1921 = vcmp.eq.s32.totalorder %v587, %v1759
        %vm1922 = vcmp.eq.s32.totalorder %v587, %v1773
        %vm1923 = vcmp.eq.s32.totalorder %v587, %v1787
        %vm1924 = vcmp.eq.s32.totalorder %v587, %v1801
        %vm1925 = vcmp.eq.s32.totalorder %v587, %v1815
        %vm1926 = vcmp.eq.s32.totalorder %v587, %v1829
        %vm1927 = vcmp.eq.s32.totalorder %v587, %v1843
        %vm1928 = vcmp.eq.s32.totalorder %v587, %v1857
        %vm1929 = vcmp.eq.s32.totalorder %v587, %v1871
        %vm1930 = vcmp.eq.s32.totalorder %v587, %v1885
        %vm1931 = vcmp.eq.s32.totalorder %v587, %v1899
        %v1932 = vsel %vm1900, 1, 0
        %v1933 = vsel %vm1901, 1, 0
        %v1934 = vsel %vm1902, 1, 0
        %v1935 = vsel %vm1903, 1, 0
        %v1936 = vsel %vm1904, 1, 0
        %v1937 = vsel %vm1905, 1, 0
        %v1938 = vsel %vm1906, 1, 0
        %v1939 = vsel %vm1907, 1, 0
        %v1940 = vsel %vm1908, 1, 0
        %v1941 = vsel %vm1909, 1, 0
        %v1942 = vsel %vm1910, 1, 0
        %v1943 = vsel %vm1911, 1, 0
        %v1944 = vsel %vm1912, 1, 0
        %v1945 = vsel %vm1913, 1, 0
        %v1946 = vsel %vm1914, 1, 0
        %v1947 = vsel %vm1915, 1, 0
        %v1948 = vsel %vm1916, 1, 0
        %v1949 = vsel %vm1917, 1, 0
        %v1950 = vsel %vm1918, 1, 0
        %v1951 = vsel %vm1919, 1, 0
        %v1952 = vsel %vm1920, 1, 0
        %v1953 = vsel %vm1921, 1, 0
        %v1954 = vsel %vm1922, 1, 0
        %v1955 = vsel %vm1923, 1, 0
        %v1956 = vsel %vm1924, 1, 0
        %v1957 = vsel %vm1925, 1, 0
        %v1958 = vsel %vm1926, 1, 0
        %v1959 = vsel %vm1927, 1, 0
        %v1960 = vsel %vm1928, 1, 0
        %v1961 = vsel %vm1929, 1, 0
        %v1962 = vsel %vm1930, 1, 0
        %v1963 = vsel %vm1931, 1, 0
        %v1964 = vcvt.s32.f32 %v1932
        %v1965 = vcvt.s32.f32 %v1933
        %v1966 = vcvt.s32.f32 %v1934
        %v1967 = vcvt.s32.f32 %v1935
        %v1968 = vcvt.s32.f32 %v1936
        %v1969 = vcvt.s32.f32 %v1937
        %v1970 = vcvt.s32.f32 %v1938
        %v1971 = vcvt.s32.f32 %v1939
        %v1972 = vcvt.s32.f32 %v1940
        %v1973 = vcvt.s32.f32 %v1941
        %v1974 = vcvt.s32.f32 %v1942
        %v1975 = vcvt.s32.f32 %v1943
        %v1976 = vcvt.s32.f32 %v1944
        %v1977 = vcvt.s32.f32 %v1945
        %v1978 = vcvt.s32.f32 %v1946
        %v1979 = vcvt.s32.f32 %v1947
        %v1980 = vcvt.s32.f32 %v1948
        %v1981 = vcvt.s32.f32 %v1949
        %v1982 = vcvt.s32.f32 %v1950
        %v1983 = vcvt.s32.f32 %v1951
        %v1984 = vcvt.s32.f32 %v1952
        %v1985 = vcvt.s32.f32 %v1953
        %v1986 = vcvt.s32.f32 %v1954
        %v1987 = vcvt.s32.f32 %v1955
        %v1988 = vcvt.s32.f32 %v1956
        %v1989 = vcvt.s32.f32 %v1957
        %v1990 = vcvt.s32.f32 %v1958
        %v1991 = vcvt.s32.f32 %v1959
        %v1992 = vcvt.s32.f32 %v1960
        %v1993 = vcvt.s32.f32 %v1961
        %v1994 = vcvt.s32.f32 %v1962
        %v1995 = vcvt.s32.f32 %v1963
        %v1996 = vsub.f32 %v589, %v589
        %v1997 = vsub.f32 %v591, %v591
        %v1998 = vsub.f32 %v593, %v593
        %v1999 = vsub.f32 %v595, %v595
        %v2000 = vsub.f32 %v597, %v597
        %v2001 = vsub.f32 %v599, %v599
        %v2002 = vsub.f32 %v601, %v601
        %v2003 = vsub.f32 %v603, %v603
        %v2004 = vsub.f32 %v605, %v605
        %v2005 = vsub.f32 %v607, %v607
        %v2006 = vsub.f32 %v609, %v609
        %v2007 = vsub.f32 %v611, %v611
        %v2008 = vsub.f32 %v613, %v613
        %v2009 = vsub.f32 %v615, %v615
        %v2010 = vsub.f32 %v617, %v617
        %v2011 = vsub.f32 %v619, %v619
        %v2012 = vsub.f32 %v621, %v621
        %v2013 = vsub.f32 %v623, %v623
        %v2014 = vsub.f32 %v625, %v625
        %v2015 = vsub.f32 %v627, %v627
        %v2016 = vsub.f32 %v629, %v629
        %v2017 = vsub.f32 %v631, %v631
        %v2018 = vsub.f32 %v633, %v633
        %v2019 = vsub.f32 %v635, %v635
        %v2020 = vsub.f32 %v637, %v637
        %v2021 = vsub.f32 %v639, %v639
        %v2022 = vsub.f32 %v641, %v641
        %v2023 = vsub.f32 %v643, %v643
        %v2024 = vsub.f32 %v645, %v645
        %v2025 = vsub.f32 %v647, %v647
        %v2026 = vsub.f32 %v649, %v649
        %v2027 = vsub.f32 %v651, %v651
        %v2028 = vmul.f32 %v1996, 1.442695
        %v2029 = vpow.pop %v2028
        %v2030 = vmul.f32 %v1997, 1.442695
        %v2031 = vpow.pop %v2030
        %v2032 = vmul.f32 %v1998, 1.442695
        %v2033 = vpow.pop %v2032
        %v2034 = vmul.f32 %v1999, 1.442695
        %v2035 = vpow.pop %v2034
        %v2036 = vmul.f32 %v2000, 1.442695
        %v2037 = vpow.pop %v2036
        %v2038 = vmul.f32 %v2001, 1.442695
        %v2039 = vpow.pop %v2038
        %v2040 = vmul.f32 %v2002, 1.442695
        %v2041 = vpow.pop %v2040
        %v2042 = vmul.f32 %v2003, 1.442695
        %v2043 = vpow.pop %v2042
        %v2044 = vmul.f32 %v2004, 1.442695
        %v2045 = vpow.pop %v2044
        %v2046 = vmul.f32 %v2005, 1.442695
        %v2047 = vpow.pop %v2046
        %v2048 = vmul.f32 %v2006, 1.442695
        %v2049 = vpow.pop %v2048
        %v2050 = vmul.f32 %v2007, 1.442695
        %v2051 = vpow.pop %v2050
        %v2052 = vmul.f32 %v2008, 1.442695
        %v2053 = vpow.pop %v2052
        %v2054 = vmul.f32 %v2009, 1.442695
        %v2055 = vpow.pop %v2054
        %v2056 = vmul.f32 %v2010, 1.442695
        %v2057 = vpow.pop %v2056
        %v2058 = vmul.f32 %v2011, 1.442695
        %v2059 = vpow.pop %v2058
        %v2060 = vmul.f32 %v2012, 1.442695
        %v2061 = vpow.pop %v2060
        %v2062 = vmul.f32 %v2013, 1.442695
        %v2063 = vpow.pop %v2062
        %v2064 = vmul.f32 %v2014, 1.442695
        %v2065 = vpow.pop %v2064
        %v2066 = vmul.f32 %v2015, 1.442695
        %v2067 = vpow.pop %v2066
        %v2068 = vmul.f32 %v2016, 1.442695
        %v2069 = vpow.pop %v2068
        %v2070 = vmul.f32 %v2017, 1.442695
        %v2071 = vpow.pop %v2070
        %v2072 = vmul.f32 %v2018, 1.442695
        %v2073 = vpow.pop %v2072
        %v2074 = vmul.f32 %v2019, 1.442695
        %v2075 = vpow.pop %v2074
        %v2076 = vmul.f32 %v2020, 1.442695
        %v2077 = vpow.pop %v2076
        %v2078 = vmul.f32 %v2021, 1.442695
        %v2079 = vpow.pop %v2078
        %v2080 = vmul.f32 %v2022, 1.442695
        %v2081 = vpow.pop %v2080
        %v2082 = vmul.f32 %v2023, 1.442695
        %v2083 = vpow.pop %v2082
        %v2084 = vmul.f32 %v2024, 1.442695
        %v2085 = vpow.pop %v2084
        %v2086 = vmul.f32 %v2025, 1.442695
        %v2087 = vpow.pop %v2086
        %v2088 = vmul.f32 %v2026, 1.442695
        %v2089 = vpow.pop %v2088
        %v2090 = vmul.f32 %v2027, 1.442695
        %v2091 = vpow.pop %v2090
        %v2092 = vadd.f32 %v2029, 0.0
        %v2093 = vadd.f32 %v2031, 0.0
        %v2094 = vadd.f32 %v2033, 0.0
        %v2095 = vadd.f32 %v2035, 0.0
        %v2096 = vadd.f32 %v2037, 0.0
        %v2097 = vadd.f32 %v2039, 0.0
        %v2098 = vadd.f32 %v2041, 0.0
        %v2099 = vadd.f32 %v2043, 0.0
        %v2100 = vadd.f32 %v2045, 0.0
        %v2101 = vadd.f32 %v2047, 0.0
        %v2102 = vadd.f32 %v2049, 0.0
        %v2103 = vadd.f32 %v2051, 0.0
        %v2104 = vadd.f32 %v2053, 0.0
        %v2105 = vadd.f32 %v2055, 0.0
        %v2106 = vadd.f32 %v2057, 0.0
        %v2107 = vadd.f32 %v2059, 0.0
        %v2108 = vadd.f32 %v2061, 0.0
        %v2109 = vadd.f32 %v2063, 0.0
        %v2110 = vadd.f32 %v2065, 0.0
        %v2111 = vadd.f32 %v2067, 0.0
        %v2112 = vadd.f32 %v2069, 0.0
        %v2113 = vadd.f32 %v2071, 0.0
        %v2114 = vadd.f32 %v2073, 0.0
        %v2115 = vadd.f32 %v2075, 0.0
        %v2116 = vadd.f32 %v2077, 0.0
        %v2117 = vadd.f32 %v2079, 0.0
        %v2118 = vadd.f32 %v2081, 0.0
        %v2119 = vadd.f32 %v2083, 0.0
        %v2120 = vadd.f32 %v2085, 0.0
        %v2121 = vadd.f32 %v2087, 0.0
        %v2122 = vadd.f32 %v2089, 0.0
        %v2123 = vadd.f32 %v2091, 0.0
        %v2124 = vsub.f32 %v1325, %v589
        %v2125 = vsub.f32 %v1327, %v591
        %v2126 = vsub.f32 %v1329, %v593
        %v2127 = vsub.f32 %v1331, %v595
        %v2128 = vsub.f32 %v1333, %v597
        %v2129 = vsub.f32 %v1335, %v599
        %v2130 = vsub.f32 %v1337, %v601
        %v2131 = vsub.f32 %v1339, %v603
        %v2132 = vsub.f32 %v1341, %v605
        %v2133 = vsub.f32 %v1343, %v607
        %v2134 = vsub.f32 %v1345, %v609
        %v2135 = vsub.f32 %v1347, %v611
        %v2136 = vsub.f32 %v1349, %v613
        %v2137 = vsub.f32 %v1351, %v615
        %v2138 = vsub.f32 %v1353, %v617
        %v2139 = vsub.f32 %v1355, %v619
        %v2140 = vsub.f32 %v1357, %v621
        %v2141 = vsub.f32 %v1359, %v623
        %v2142 = vsub.f32 %v1361, %v625
        %v2143 = vsub.f32 %v1363, %v627
        %v2144 = vsub.f32 %v1365, %v629
        %v2145 = vsub.f32 %v1367, %v631
        %v2146 = vsub.f32 %v1369, %v633
        %v2147 = vsub.f32 %v1371, %v635
        %v2148 = vsub.f32 %v1373, %v637
        %v2149 = vsub.f32 %v1375, %v639
        %v2150 = vsub.f32 %v1377, %v641
        %v2151 = vsub.f32 %v1379, %v643
        %v2152 = vsub.f32 %v1381, %v645
        %v2153 = vsub.f32 %v1383, %v647
        %v2154 = vsub.f32 %v1385, %v649
        %v2155 = vsub.f32 %v1387, %v651
        %v2156 = vmul.f32 %v2124, 1.442695
        %v2157 = vpow.pop %v2156
        %v2158 = vmul.f32 %v2125, 1.442695
        %v2159 = vpow.pop %v2158
        %v2160 = vmul.f32 %v2126, 1.442695
        %v2161 = vpow.pop %v2160
        %v2162 = vmul.f32 %v2127, 1.442695
        %v2163 = vpow.pop %v2162
        %v2164 = vmul.f32 %v2128, 1.442695
        %v2165 = vpow.pop %v2164
        %v2166 = vmul.f32 %v2129, 1.442695
        %v2167 = vpow.pop %v2166
        %v2168 = vmul.f32 %v2130, 1.442695
        %v2169 = vpow.pop %v2168
        %v2170 = vmul.f32 %v2131, 1.442695
        %v2171 = vpow.pop %v2170
        %v2172 = vmul.f32 %v2132, 1.442695
        %v2173 = vpow.pop %v2172
        %v2174 = vmul.f32 %v2133, 1.442695
        %v2175 = vpow.pop %v2174
        %v2176 = vmul.f32 %v2134, 1.442695
        %v2177 = vpow.pop %v2176
        %v2178 = vmul.f32 %v2135, 1.442695
        %v2179 = vpow.pop %v2178
        %v2180 = vmul.f32 %v2136, 1.442695
        %v2181 = vpow.pop %v2180
        %v2182 = vmul.f32 %v2137, 1.442695
        %v2183 = vpow.pop %v2182
        %v2184 = vmul.f32 %v2138, 1.442695
        %v2185 = vpow.pop %v2184
        %v2186 = vmul.f32 %v2139, 1.442695
        %v2187 = vpow.pop %v2186
        %v2188 = vmul.f32 %v2140, 1.442695
        %v2189 = vpow.pop %v2188
        %v2190 = vmul.f32 %v2141, 1.442695
        %v2191 = vpow.pop %v2190
        %v2192 = vmul.f32 %v2142, 1.442695
        %v2193 = vpow.pop %v2192
        %v2194 = vmul.f32 %v2143, 1.442695
        %v2195 = vpow.pop %v2194
        %v2196 = vmul.f32 %v2144, 1.442695
        %v2197 = vpow.pop %v2196
        %v2198 = vmul.f32 %v2145, 1.442695
        %v2199 = vpow.pop %v2198
        %v2200 = vmul.f32 %v2146, 1.442695
        %v2201 = vpow.pop %v2200
        %v2202 = vmul.f32 %v2147, 1.442695
        %v2203 = vpow.pop %v2202
        %v2204 = vmul.f32 %v2148, 1.442695
        %v2205 = vpow.pop %v2204
        %v2206 = vmul.f32 %v2149, 1.442695
        %v2207 = vpow.pop %v2206
        %v2208 = vmul.f32 %v2150, 1.442695
        %v2209 = vpow.pop %v2208
        %v2210 = vmul.f32 %v2151, 1.442695
        %v2211 = vpow.pop %v2210
        %v2212 = vmul.f32 %v2152, 1.442695
        %v2213 = vpow.pop %v2212
        %v2214 = vmul.f32 %v2153, 1.442695
        %v2215 = vpow.pop %v2214
        %v2216 = vmul.f32 %v2154, 1.442695
        %v2217 = vpow.pop %v2216
        %v2218 = vmul.f32 %v2155, 1.442695
        %v2219 = vpow.pop %v2218
        %v2220 = vadd.f32 %v2092, %v2157
        %v2221 = vadd.f32 %v2093, %v2159
        %v2222 = vadd.f32 %v2094, %v2161
        %v2223 = vadd.f32 %v2095, %v2163
        %v2224 = vadd.f32 %v2096, %v2165
        %v2225 = vadd.f32 %v2097, %v2167
        %v2226 = vadd.f32 %v2098, %v2169
        %v2227 = vadd.f32 %v2099, %v2171
        %v2228 = vadd.f32 %v2100, %v2173
        %v2229 = vadd.f32 %v2101, %v2175
        %v2230 = vadd.f32 %v2102, %v2177
        %v2231 = vadd.f32 %v2103, %v2179
        %v2232 = vadd.f32 %v2104, %v2181
        %v2233 = vadd.f32 %v2105, %v2183
        %v2234 = vadd.f32 %v2106, %v2185
        %v2235 = vadd.f32 %v2107, %v2187
        %v2236 = vadd.f32 %v2108, %v2189
        %v2237 = vadd.f32 %v2109, %v2191
        %v2238 = vadd.f32 %v2110, %v2193
        %v2239 = vadd.f32 %v2111, %v2195
        %v2240 = vadd.f32 %v2112, %v2197
        %v2241 = vadd.f32 %v2113, %v2199
        %v2242 = vadd.f32 %v2114, %v2201
        %v2243 = vadd.f32 %v2115, %v2203
        %v2244 = vadd.f32 %v2116, %v2205
        %v2245 = vadd.f32 %v2117, %v2207
        %v2246 = vadd.f32 %v2118, %v2209
        %v2247 = vadd.f32 %v2119, %v2211
        %v2248 = vadd.f32 %v2120, %v2213
        %v2249 = vadd.f32 %v2121, %v2215
        %v2250 = vadd.f32 %v2122, %v2217
        %v2251 = vadd.f32 %v2123, %v2219
        %v2252 = vrcp.pop %v2220
        %v2253 = vmul.f32 %v2220, %v2252
        %v2254 = vsub.f32 1.0, %v2253
        %v2255 = vmul.f32 %v2252, %v2254
        %v2256 = vadd.f32 %v2252, %v2255
        %vm2257 = vweird.f32 %v2220
        %vm2258 = vweird.f32 %v2252
        %vm2259 = vmor %vm2257, %vm2258
        %v2260 = vsel %vm2259, %v2252, %v2256
        %v2261 = vand.u32 2147483647, %v2220
        %vm2262 = vcmp.eq.f32.partialorder %v2261, 8.507059e+37
        %v2263 = vand.u32 %v2220, 2147483648
        %v2264 = vor.u32 1.1754944e-38, %v2263
        %v2265 = vsel %vm2262, %v2264, %v2260
        %v2266 = vrcp.pop %v2221
        %v2267 = vmul.f32 %v2221, %v2266
        %v2268 = vsub.f32 1.0, %v2267
        %v2269 = vmul.f32 %v2266, %v2268
        %v2270 = vadd.f32 %v2266, %v2269
        %vm2271 = vweird.f32 %v2221
        %vm2272 = vweird.f32 %v2266
        %vm2273 = vmor %vm2271, %vm2272
        %v2274 = vsel %vm2273, %v2266, %v2270
        %v2275 = vand.u32 2147483647, %v2221
        %vm2276 = vcmp.eq.f32.partialorder %v2275, 8.507059e+37
        %v2277 = vand.u32 %v2221, 2147483648
        %v2278 = vor.u32 1.1754944e-38, %v2277
        %v2279 = vsel %vm2276, %v2278, %v2274
        %v2280 = vrcp.pop %v2222
        %v2281 = vmul.f32 %v2222, %v2280
        %v2282 = vsub.f32 1.0, %v2281
        %v2283 = vmul.f32 %v2280, %v2282
        %v2284 = vadd.f32 %v2280, %v2283
        %vm2285 = vweird.f32 %v2222
        %vm2286 = vweird.f32 %v2280
        %vm2287 = vmor %vm2285, %vm2286
        %v2288 = vsel %vm2287, %v2280, %v2284
        %v2289 = vand.u32 2147483647, %v2222
        %vm2290 = vcmp.eq.f32.partialorder %v2289, 8.507059e+37
        %v2291 = vand.u32 %v2222, 2147483648
        %v2292 = vor.u32 1.1754944e-38, %v2291
        %v2293 = vsel %vm2290, %v2292, %v2288
        %v2294 = vrcp.pop %v2223
        %v2295 = vmul.f32 %v2223, %v2294
        %v2296 = vsub.f32 1.0, %v2295
        %v2297 = vmul.f32 %v2294, %v2296
        %v2298 = vadd.f32 %v2294, %v2297
        %vm2299 = vweird.f32 %v2223
        %vm2300 = vweird.f32 %v2294
        %vm2301 = vmor %vm2299, %vm2300
        %v2302 = vsel %vm2301, %v2294, %v2298
        %v2303 = vand.u32 2147483647, %v2223
        %vm2304 = vcmp.eq.f32.partialorder %v2303, 8.507059e+37
        %v2305 = vand.u32 %v2223, 2147483648
        %v2306 = vor.u32 1.1754944e-38, %v2305
        %v2307 = vsel %vm2304, %v2306, %v2302
        %v2308 = vrcp.pop %v2224
        %v2309 = vmul.f32 %v2224, %v2308
        %v2310 = vsub.f32 1.0, %v2309
        %v2311 = vmul.f32 %v2308, %v2310
        %v2312 = vadd.f32 %v2308, %v2311
        %vm2313 = vweird.f32 %v2224
        %vm2314 = vweird.f32 %v2308
        %vm2315 = vmor %vm2313, %vm2314
        %v2316 = vsel %vm2315, %v2308, %v2312
        %v2317 = vand.u32 2147483647, %v2224
        %vm2318 = vcmp.eq.f32.partialorder %v2317, 8.507059e+37
        %v2319 = vand.u32 %v2224, 2147483648
        %v2320 = vor.u32 1.1754944e-38, %v2319
        %v2321 = vsel %vm2318, %v2320, %v2316
        %v2322 = vrcp.pop %v2225
        %v2323 = vmul.f32 %v2225, %v2322
        %v2324 = vsub.f32 1.0, %v2323
        %v2325 = vmul.f32 %v2322, %v2324
        %v2326 = vadd.f32 %v2322, %v2325
        %vm2327 = vweird.f32 %v2225
        %vm2328 = vweird.f32 %v2322
        %vm2329 = vmor %vm2327, %vm2328
        %v2330 = vsel %vm2329, %v2322, %v2326
        %v2331 = vand.u32 2147483647, %v2225
        %vm2332 = vcmp.eq.f32.partialorder %v2331, 8.507059e+37
        %v2333 = vand.u32 %v2225, 2147483648
        %v2334 = vor.u32 1.1754944e-38, %v2333
        %v2335 = vsel %vm2332, %v2334, %v2330
        %v2336 = vrcp.pop %v2226
        %v2337 = vmul.f32 %v2226, %v2336
        %v2338 = vsub.f32 1.0, %v2337
        %v2339 = vmul.f32 %v2336, %v2338
        %v2340 = vadd.f32 %v2336, %v2339
        %vm2341 = vweird.f32 %v2226
        %vm2342 = vweird.f32 %v2336
        %vm2343 = vmor %vm2341, %vm2342
        %v2344 = vsel %vm2343, %v2336, %v2340
        %v2345 = vand.u32 2147483647, %v2226
        %vm2346 = vcmp.eq.f32.partialorder %v2345, 8.507059e+37
        %v2347 = vand.u32 %v2226, 2147483648
        %v2348 = vor.u32 1.1754944e-38, %v2347
        %v2349 = vsel %vm2346, %v2348, %v2344
        %v2350 = vrcp.pop %v2227
        %v2351 = vmul.f32 %v2227, %v2350
        %v2352 = vsub.f32 1.0, %v2351
        %v2353 = vmul.f32 %v2350, %v2352
        %v2354 = vadd.f32 %v2350, %v2353
        %vm2355 = vweird.f32 %v2227
        %vm2356 = vweird.f32 %v2350
        %vm2357 = vmor %vm2355, %vm2356
        %v2358 = vsel %vm2357, %v2350, %v2354
        %v2359 = vand.u32 2147483647, %v2227
        %vm2360 = vcmp.eq.f32.partialorder %v2359, 8.507059e+37
        %v2361 = vand.u32 %v2227, 2147483648
        %v2362 = vor.u32 1.1754944e-38, %v2361
        %v2363 = vsel %vm2360, %v2362, %v2358
        %v2364 = vrcp.pop %v2228
        %v2365 = vmul.f32 %v2228, %v2364
        %v2366 = vsub.f32 1.0, %v2365
        %v2367 = vmul.f32 %v2364, %v2366
        %v2368 = vadd.f32 %v2364, %v2367
        %vm2369 = vweird.f32 %v2228
        %vm2370 = vweird.f32 %v2364
        %vm2371 = vmor %vm2369, %vm2370
        %v2372 = vsel %vm2371, %v2364, %v2368
        %v2373 = vand.u32 2147483647, %v2228
        %vm2374 = vcmp.eq.f32.partialorder %v2373, 8.507059e+37
        %v2375 = vand.u32 %v2228, 2147483648
        %v2376 = vor.u32 1.1754944e-38, %v2375
        %v2377 = vsel %vm2374, %v2376, %v2372
        %v2378 = vrcp.pop %v2229
        %v2379 = vmul.f32 %v2229, %v2378
        %v2380 = vsub.f32 1.0, %v2379
        %v2381 = vmul.f32 %v2378, %v2380
        %v2382 = vadd.f32 %v2378, %v2381
        %vm2383 = vweird.f32 %v2229
        %vm2384 = vweird.f32 %v2378
        %vm2385 = vmor %vm2383, %vm2384
        %v2386 = vsel %vm2385, %v2378, %v2382
        %v2387 = vand.u32 2147483647, %v2229
        %vm2388 = vcmp.eq.f32.partialorder %v2387, 8.507059e+37
        %v2389 = vand.u32 %v2229, 2147483648
        %v2390 = vor.u32 1.1754944e-38, %v2389
        %v2391 = vsel %vm2388, %v2390, %v2386
        %v2392 = vrcp.pop %v2230
        %v2393 = vmul.f32 %v2230, %v2392
        %v2394 = vsub.f32 1.0, %v2393
        %v2395 = vmul.f32 %v2392, %v2394
        %v2396 = vadd.f32 %v2392, %v2395
        %vm2397 = vweird.f32 %v2230
        %vm2398 = vweird.f32 %v2392
        %vm2399 = vmor %vm2397, %vm2398
        %v2400 = vsel %vm2399, %v2392, %v2396
        %v2401 = vand.u32 2147483647, %v2230
        %vm2402 = vcmp.eq.f32.partialorder %v2401, 8.507059e+37
        %v2403 = vand.u32 %v2230, 2147483648
        %v2404 = vor.u32 1.1754944e-38, %v2403
        %v2405 = vsel %vm2402, %v2404, %v2400
        %v2406 = vrcp.pop %v2231
        %v2407 = vmul.f32 %v2231, %v2406
        %v2408 = vsub.f32 1.0, %v2407
        %v2409 = vmul.f32 %v2406, %v2408
        %v2410 = vadd.f32 %v2406, %v2409
        %vm2411 = vweird.f32 %v2231
        %vm2412 = vweird.f32 %v2406
        %vm2413 = vmor %vm2411, %vm2412
        %v2414 = vsel %vm2413, %v2406, %v2410
        %v2415 = vand.u32 2147483647, %v2231
        %vm2416 = vcmp.eq.f32.partialorder %v2415, 8.507059e+37
        %v2417 = vand.u32 %v2231, 2147483648
        %v2418 = vor.u32 1.1754944e-38, %v2417
        %v2419 = vsel %vm2416, %v2418, %v2414
        %v2420 = vrcp.pop %v2232
        %v2421 = vmul.f32 %v2232, %v2420
        %v2422 = vsub.f32 1.0, %v2421
        %v2423 = vmul.f32 %v2420, %v2422
        %v2424 = vadd.f32 %v2420, %v2423
        %vm2425 = vweird.f32 %v2232
        %vm2426 = vweird.f32 %v2420
        %vm2427 = vmor %vm2425, %vm2426
        %v2428 = vsel %vm2427, %v2420, %v2424
        %v2429 = vand.u32 2147483647, %v2232
        %vm2430 = vcmp.eq.f32.partialorder %v2429, 8.507059e+37
        %v2431 = vand.u32 %v2232, 2147483648
        %v2432 = vor.u32 1.1754944e-38, %v2431
        %v2433 = vsel %vm2430, %v2432, %v2428
        %v2434 = vrcp.pop %v2233
        %v2435 = vmul.f32 %v2233, %v2434
        %v2436 = vsub.f32 1.0, %v2435
        %v2437 = vmul.f32 %v2434, %v2436
        %v2438 = vadd.f32 %v2434, %v2437
        %vm2439 = vweird.f32 %v2233
        %vm2440 = vweird.f32 %v2434
        %vm2441 = vmor %vm2439, %vm2440
        %v2442 = vsel %vm2441, %v2434, %v2438
        %v2443 = vand.u32 2147483647, %v2233
        %vm2444 = vcmp.eq.f32.partialorder %v2443, 8.507059e+37
        %v2445 = vand.u32 %v2233, 2147483648
        %v2446 = vor.u32 1.1754944e-38, %v2445
        %v2447 = vsel %vm2444, %v2446, %v2442
        %v2448 = vrcp.pop %v2234
        %v2449 = vmul.f32 %v2234, %v2448
        %v2450 = vsub.f32 1.0, %v2449
        %v2451 = vmul.f32 %v2448, %v2450
        %v2452 = vadd.f32 %v2448, %v2451
        %vm2453 = vweird.f32 %v2234
        %vm2454 = vweird.f32 %v2448
        %vm2455 = vmor %vm2453, %vm2454
        %v2456 = vsel %vm2455, %v2448, %v2452
        %v2457 = vand.u32 2147483647, %v2234
        %vm2458 = vcmp.eq.f32.partialorder %v2457, 8.507059e+37
        %v2459 = vand.u32 %v2234, 2147483648
        %v2460 = vor.u32 1.1754944e-38, %v2459
        %v2461 = vsel %vm2458, %v2460, %v2456
        %v2462 = vrcp.pop %v2235
        %v2463 = vmul.f32 %v2235, %v2462
        %v2464 = vsub.f32 1.0, %v2463
        %v2465 = vmul.f32 %v2462, %v2464
        %v2466 = vadd.f32 %v2462, %v2465
        %vm2467 = vweird.f32 %v2235
        %vm2468 = vweird.f32 %v2462
        %vm2469 = vmor %vm2467, %vm2468
        %v2470 = vsel %vm2469, %v2462, %v2466
        %v2471 = vand.u32 2147483647, %v2235
        %vm2472 = vcmp.eq.f32.partialorder %v2471, 8.507059e+37
        %v2473 = vand.u32 %v2235, 2147483648
        %v2474 = vor.u32 1.1754944e-38, %v2473
        %v2475 = vsel %vm2472, %v2474, %v2470
        %v2476 = vrcp.pop %v2236
        %v2477 = vmul.f32 %v2236, %v2476
        %v2478 = vsub.f32 1.0, %v2477
        %v2479 = vmul.f32 %v2476, %v2478
        %v2480 = vadd.f32 %v2476, %v2479
        %vm2481 = vweird.f32 %v2236
        %vm2482 = vweird.f32 %v2476
        %vm2483 = vmor %vm2481, %vm2482
        %v2484 = vsel %vm2483, %v2476, %v2480
        %v2485 = vand.u32 2147483647, %v2236
        %vm2486 = vcmp.eq.f32.partialorder %v2485, 8.507059e+37
        %v2487 = vand.u32 %v2236, 2147483648
        %v2488 = vor.u32 1.1754944e-38, %v2487
        %v2489 = vsel %vm2486, %v2488, %v2484
        %v2490 = vrcp.pop %v2237
        %v2491 = vmul.f32 %v2237, %v2490
        %v2492 = vsub.f32 1.0, %v2491
        %v2493 = vmul.f32 %v2490, %v2492
        %v2494 = vadd.f32 %v2490, %v2493
        %vm2495 = vweird.f32 %v2237
        %vm2496 = vweird.f32 %v2490
        %vm2497 = vmor %vm2495, %vm2496
        %v2498 = vsel %vm2497, %v2490, %v2494
        %v2499 = vand.u32 2147483647, %v2237
        %vm2500 = vcmp.eq.f32.partialorder %v2499, 8.507059e+37
        %v2501 = vand.u32 %v2237, 2147483648
        %v2502 = vor.u32 1.1754944e-38, %v2501
        %v2503 = vsel %vm2500, %v2502, %v2498
        %v2504 = vrcp.pop %v2238
        %v2505 = vmul.f32 %v2238, %v2504
        %v2506 = vsub.f32 1.0, %v2505
        %v2507 = vmul.f32 %v2504, %v2506
        %v2508 = vadd.f32 %v2504, %v2507
        %vm2509 = vweird.f32 %v2238
        %vm2510 = vweird.f32 %v2504
        %vm2511 = vmor %vm2509, %vm2510
        %v2512 = vsel %vm2511, %v2504, %v2508
        %v2513 = vand.u32 2147483647, %v2238
        %vm2514 = vcmp.eq.f32.partialorder %v2513, 8.507059e+37
        %v2515 = vand.u32 %v2238, 2147483648
        %v2516 = vor.u32 1.1754944e-38, %v2515
        %v2517 = vsel %vm2514, %v2516, %v2512
        %v2518 = vrcp.pop %v2239
        %v2519 = vmul.f32 %v2239, %v2518
        %v2520 = vsub.f32 1.0, %v2519
        %v2521 = vmul.f32 %v2518, %v2520
        %v2522 = vadd.f32 %v2518, %v2521
        %vm2523 = vweird.f32 %v2239
        %vm2524 = vweird.f32 %v2518
        %vm2525 = vmor %vm2523, %vm2524
        %v2526 = vsel %vm2525, %v2518, %v2522
        %v2527 = vand.u32 2147483647, %v2239
        %vm2528 = vcmp.eq.f32.partialorder %v2527, 8.507059e+37
        %v2529 = vand.u32 %v2239, 2147483648
        %v2530 = vor.u32 1.1754944e-38, %v2529
        %v2531 = vsel %vm2528, %v2530, %v2526
        %v2532 = vrcp.pop %v2240
        %v2533 = vmul.f32 %v2240, %v2532
        %v2534 = vsub.f32 1.0, %v2533
        %v2535 = vmul.f32 %v2532, %v2534
        %v2536 = vadd.f32 %v2532, %v2535
        %vm2537 = vweird.f32 %v2240
        %vm2538 = vweird.f32 %v2532
        %vm2539 = vmor %vm2537, %vm2538
        %v2540 = vsel %vm2539, %v2532, %v2536
        %v2541 = vand.u32 2147483647, %v2240
        %vm2542 = vcmp.eq.f32.partialorder %v2541, 8.507059e+37
        %v2543 = vand.u32 %v2240, 2147483648
        %v2544 = vor.u32 1.1754944e-38, %v2543
        %v2545 = vsel %vm2542, %v2544, %v2540
        %v2546 = vrcp.pop %v2241
        %v2547 = vmul.f32 %v2241, %v2546
        %v2548 = vsub.f32 1.0, %v2547
        %v2549 = vmul.f32 %v2546, %v2548
        %v2550 = vadd.f32 %v2546, %v2549
        %vm2551 = vweird.f32 %v2241
        %vm2552 = vweird.f32 %v2546
        %vm2553 = vmor %vm2551, %vm2552
        %v2554 = vsel %vm2553, %v2546, %v2550
        %v2555 = vand.u32 2147483647, %v2241
        %vm2556 = vcmp.eq.f32.partialorder %v2555, 8.507059e+37
        %v2557 = vand.u32 %v2241, 2147483648
        %v2558 = vor.u32 1.1754944e-38, %v2557
        %v2559 = vsel %vm2556, %v2558, %v2554
        %v2560 = vrcp.pop %v2242
        %v2561 = vmul.f32 %v2242, %v2560
        %v2562 = vsub.f32 1.0, %v2561
        %v2563 = vmul.f32 %v2560, %v2562
        %v2564 = vadd.f32 %v2560, %v2563
        %vm2565 = vweird.f32 %v2242
        %vm2566 = vweird.f32 %v2560
        %vm2567 = vmor %vm2565, %vm2566
        %v2568 = vsel %vm2567, %v2560, %v2564
        %v2569 = vand.u32 2147483647, %v2242
        %vm2570 = vcmp.eq.f32.partialorder %v2569, 8.507059e+37
        %v2571 = vand.u32 %v2242, 2147483648
        %v2572 = vor.u32 1.1754944e-38, %v2571
        %v2573 = vsel %vm2570, %v2572, %v2568
        %v2574 = vrcp.pop %v2243
        %v2575 = vmul.f32 %v2243, %v2574
        %v2576 = vsub.f32 1.0, %v2575
        %v2577 = vmul.f32 %v2574, %v2576
        %v2578 = vadd.f32 %v2574, %v2577
        %vm2579 = vweird.f32 %v2243
        %vm2580 = vweird.f32 %v2574
        %vm2581 = vmor %vm2579, %vm2580
        %v2582 = vsel %vm2581, %v2574, %v2578
        %v2583 = vand.u32 2147483647, %v2243
        %vm2584 = vcmp.eq.f32.partialorder %v2583, 8.507059e+37
        %v2585 = vand.u32 %v2243, 2147483648
        %v2586 = vor.u32 1.1754944e-38, %v2585
        %v2587 = vsel %vm2584, %v2586, %v2582
        %v2588 = vrcp.pop %v2244
        %v2589 = vmul.f32 %v2244, %v2588
        %v2590 = vsub.f32 1.0, %v2589
        %v2591 = vmul.f32 %v2588, %v2590
        %v2592 = vadd.f32 %v2588, %v2591
        %vm2593 = vweird.f32 %v2244
        %vm2594 = vweird.f32 %v2588
        %vm2595 = vmor %vm2593, %vm2594
        %v2596 = vsel %vm2595, %v2588, %v2592
        %v2597 = vand.u32 2147483647, %v2244
        %vm2598 = vcmp.eq.f32.partialorder %v2597, 8.507059e+37
        %v2599 = vand.u32 %v2244, 2147483648
        %v2600 = vor.u32 1.1754944e-38, %v2599
        %v2601 = vsel %vm2598, %v2600, %v2596
        %v2602 = vrcp.pop %v2245
        %v2603 = vmul.f32 %v2245, %v2602
        %v2604 = vsub.f32 1.0, %v2603
        %v2605 = vmul.f32 %v2602, %v2604
        %v2606 = vadd.f32 %v2602, %v2605
        %vm2607 = vweird.f32 %v2245
        %vm2608 = vweird.f32 %v2602
        %vm2609 = vmor %vm2607, %vm2608
        %v2610 = vsel %vm2609, %v2602, %v2606
        %v2611 = vand.u32 2147483647, %v2245
        %vm2612 = vcmp.eq.f32.partialorder %v2611, 8.507059e+37
        %v2613 = vand.u32 %v2245, 2147483648
        %v2614 = vor.u32 1.1754944e-38, %v2613
        %v2615 = vsel %vm2612, %v2614, %v2610
        %v2616 = vrcp.pop %v2246
        %v2617 = vmul.f32 %v2246, %v2616
        %v2618 = vsub.f32 1.0, %v2617
        %v2619 = vmul.f32 %v2616, %v2618
        %v2620 = vadd.f32 %v2616, %v2619
        %vm2621 = vweird.f32 %v2246
        %vm2622 = vweird.f32 %v2616
        %vm2623 = vmor %vm2621, %vm2622
        %v2624 = vsel %vm2623, %v2616, %v2620
        %v2625 = vand.u32 2147483647, %v2246
        %vm2626 = vcmp.eq.f32.partialorder %v2625, 8.507059e+37
        %v2627 = vand.u32 %v2246, 2147483648
        %v2628 = vor.u32 1.1754944e-38, %v2627
        %v2629 = vsel %vm2626, %v2628, %v2624
        %v2630 = vrcp.pop %v2247
        %v2631 = vmul.f32 %v2247, %v2630
        %v2632 = vsub.f32 1.0, %v2631
        %v2633 = vmul.f32 %v2630, %v2632
        %v2634 = vadd.f32 %v2630, %v2633
        %vm2635 = vweird.f32 %v2247
        %vm2636 = vweird.f32 %v2630
        %vm2637 = vmor %vm2635, %vm2636
        %v2638 = vsel %vm2637, %v2630, %v2634
        %v2639 = vand.u32 2147483647, %v2247
        %vm2640 = vcmp.eq.f32.partialorder %v2639, 8.507059e+37
        %v2641 = vand.u32 %v2247, 2147483648
        %v2642 = vor.u32 1.1754944e-38, %v2641
        %v2643 = vsel %vm2640, %v2642, %v2638
        %v2644 = vrcp.pop %v2248
        %v2645 = vmul.f32 %v2248, %v2644
        %v2646 = vsub.f32 1.0, %v2645
        %v2647 = vmul.f32 %v2644, %v2646
        %v2648 = vadd.f32 %v2644, %v2647
        %vm2649 = vweird.f32 %v2248
        %vm2650 = vweird.f32 %v2644
        %vm2651 = vmor %vm2649, %vm2650
        %v2652 = vsel %vm2651, %v2644, %v2648
        %v2653 = vand.u32 2147483647, %v2248
        %vm2654 = vcmp.eq.f32.partialorder %v2653, 8.507059e+37
        %v2655 = vand.u32 %v2248, 2147483648
        %v2656 = vor.u32 1.1754944e-38, %v2655
        %v2657 = vsel %vm2654, %v2656, %v2652
        %v2658 = vrcp.pop %v2249
        %v2659 = vmul.f32 %v2249, %v2658
        %v2660 = vsub.f32 1.0, %v2659
        %v2661 = vmul.f32 %v2658, %v2660
        %v2662 = vadd.f32 %v2658, %v2661
        %vm2663 = vweird.f32 %v2249
        %vm2664 = vweird.f32 %v2658
        %vm2665 = vmor %vm2663, %vm2664
        %v2666 = vsel %vm2665, %v2658, %v2662
        %v2667 = vand.u32 2147483647, %v2249
        %vm2668 = vcmp.eq.f32.partialorder %v2667, 8.507059e+37
        %v2669 = vand.u32 %v2249, 2147483648
        %v2670 = vor.u32 1.1754944e-38, %v2669
        %v2671 = vsel %vm2668, %v2670, %v2666
        %v2672 = vrcp.pop %v2250
        %v2673 = vmul.f32 %v2250, %v2672
        %v2674 = vsub.f32 1.0, %v2673
        %v2675 = vmul.f32 %v2672, %v2674
        %v2676 = vadd.f32 %v2672, %v2675
        %vm2677 = vweird.f32 %v2250
        %vm2678 = vweird.f32 %v2672
        %vm2679 = vmor %vm2677, %vm2678
        %v2680 = vsel %vm2679, %v2672, %v2676
        %v2681 = vand.u32 2147483647, %v2250
        %vm2682 = vcmp.eq.f32.partialorder %v2681, 8.507059e+37
        %v2683 = vand.u32 %v2250, 2147483648
        %v2684 = vor.u32 1.1754944e-38, %v2683
        %v2685 = vsel %vm2682, %v2684, %v2680
        %v2686 = vrcp.pop %v2251
        %v2687 = vmul.f32 %v2251, %v2686
        %v2688 = vsub.f32 1.0, %v2687
        %v2689 = vmul.f32 %v2686, %v2688
        %v2690 = vadd.f32 %v2686, %v2689
        %vm2691 = vweird.f32 %v2251
        %vm2692 = vweird.f32 %v2686
        %vm2693 = vmor %vm2691, %vm2692
        %v2694 = vsel %vm2693, %v2686, %v2690
        %v2695 = vand.u32 2147483647, %v2251
        %vm2696 = vcmp.eq.f32.partialorder %v2695, 8.507059e+37
        %v2697 = vand.u32 %v2251, 2147483648
        %v2698 = vor.u32 1.1754944e-38, %v2697
        %v2699 = vsel %vm2696, %v2698, %v2694
        %v2700 = vmul.f32 %v2029, %v2265
        %v2701 = vmul.f32 %v2031, %v2279
        %v2702 = vmul.f32 %v2033, %v2293
        %v2703 = vmul.f32 %v2035, %v2307
        %v2704 = vmul.f32 %v2037, %v2321
        %v2705 = vmul.f32 %v2039, %v2335
        %v2706 = vmul.f32 %v2041, %v2349
        %v2707 = vmul.f32 %v2043, %v2363
        %v2708 = vmul.f32 %v2045, %v2377
        %v2709 = vmul.f32 %v2047, %v2391
        %v2710 = vmul.f32 %v2049, %v2405
        %v2711 = vmul.f32 %v2051, %v2419
        %v2712 = vmul.f32 %v2053, %v2433
        %v2713 = vmul.f32 %v2055, %v2447
        %v2714 = vmul.f32 %v2057, %v2461
        %v2715 = vmul.f32 %v2059, %v2475
        %v2716 = vmul.f32 %v2061, %v2489
        %v2717 = vmul.f32 %v2063, %v2503
        %v2718 = vmul.f32 %v2065, %v2517
        %v2719 = vmul.f32 %v2067, %v2531
        %v2720 = vmul.f32 %v2069, %v2545
        %v2721 = vmul.f32 %v2071, %v2559
        %v2722 = vmul.f32 %v2073, %v2573
        %v2723 = vmul.f32 %v2075, %v2587
        %v2724 = vmul.f32 %v2077, %v2601
        %v2725 = vmul.f32 %v2079, %v2615
        %v2726 = vmul.f32 %v2081, %v2629
        %v2727 = vmul.f32 %v2083, %v2643
        %v2728 = vmul.f32 %v2085, %v2657
        %v2729 = vmul.f32 %v2087, %v2671
        %v2730 = vmul.f32 %v2089, %v2685
        %v2731 = vmul.f32 %v2091, %v2699
        %v2732 = vmul.f32 %v2700, %v1228
        %v2733 = vmul.f32 %v2701, %v1229
        %v2734 = vmul.f32 %v2702, %v1230
        %v2735 = vmul.f32 %v2703, %v1231
        %v2736 = vmul.f32 %v2704, %v1232
        %v2737 = vmul.f32 %v2705, %v1233
        %v2738 = vmul.f32 %v2706, %v1234
        %v2739 = vmul.f32 %v2707, %v1235
        %v2740 = vmul.f32 %v2708, %v1236
        %v2741 = vmul.f32 %v2709, %v1237
        %v2742 = vmul.f32 %v2710, %v1238
        %v2743 = vmul.f32 %v2711, %v1239
        %v2744 = vmul.f32 %v2712, %v1240
        %v2745 = vmul.f32 %v2713, %v1241
        %v2746 = vmul.f32 %v2714, %v1242
        %v2747 = vmul.f32 %v2715, %v1243
        %v2748 = vmul.f32 %v2716, %v1244
        %v2749 = vmul.f32 %v2717, %v1245
        %v2750 = vmul.f32 %v2718, %v1246
        %v2751 = vmul.f32 %v2719, %v1247
        %v2752 = vmul.f32 %v2720, %v1248
        %v2753 = vmul.f32 %v2721, %v1249
        %v2754 = vmul.f32 %v2722, %v1250
        %v2755 = vmul.f32 %v2723, %v1251
        %v2756 = vmul.f32 %v2724, %v1252
        %v2757 = vmul.f32 %v2725, %v1253
        %v2758 = vmul.f32 %v2726, %v1254
        %v2759 = vmul.f32 %v2727, %v1255
        %v2760 = vmul.f32 %v2728, %v1256
        %v2761 = vmul.f32 %v2729, %v1257
        %v2762 = vmul.f32 %v2730, %v1258
        %v2763 = vmul.f32 %v2731, %v1259
        %v2764 = vadd.f32 %v2732, 0.0
        %v2765 = vadd.f32 %v2733, 0.0
        %v2766 = vadd.f32 %v2734, 0.0
        %v2767 = vadd.f32 %v2735, 0.0
        %v2768 = vadd.f32 %v2736, 0.0
        %v2769 = vadd.f32 %v2737, 0.0
        %v2770 = vadd.f32 %v2738, 0.0
        %v2771 = vadd.f32 %v2739, 0.0
        %v2772 = vadd.f32 %v2740, 0.0
        %v2773 = vadd.f32 %v2741, 0.0
        %v2774 = vadd.f32 %v2742, 0.0
        %v2775 = vadd.f32 %v2743, 0.0
        %v2776 = vadd.f32 %v2744, 0.0
        %v2777 = vadd.f32 %v2745, 0.0
        %v2778 = vadd.f32 %v2746, 0.0
        %v2779 = vadd.f32 %v2747, 0.0
        %v2780 = vadd.f32 %v2748, 0.0
        %v2781 = vadd.f32 %v2749, 0.0
        %v2782 = vadd.f32 %v2750, 0.0
        %v2783 = vadd.f32 %v2751, 0.0
        %v2784 = vadd.f32 %v2752, 0.0
        %v2785 = vadd.f32 %v2753, 0.0
        %v2786 = vadd.f32 %v2754, 0.0
        %v2787 = vadd.f32 %v2755, 0.0
        %v2788 = vadd.f32 %v2756, 0.0
        %v2789 = vadd.f32 %v2757, 0.0
        %v2790 = vadd.f32 %v2758, 0.0
        %v2791 = vadd.f32 %v2759, 0.0
        %v2792 = vadd.f32 %v2760, 0.0
        %v2793 = vadd.f32 %v2761, 0.0
        %v2794 = vadd.f32 %v2762, 0.0
        %v2795 = vadd.f32 %v2763, 0.0
        %v2796 = vmul.f32 %v2157, %v2265
        %v2797 = vmul.f32 %v2159, %v2279
        %v2798 = vmul.f32 %v2161, %v2293
        %v2799 = vmul.f32 %v2163, %v2307
        %v2800 = vmul.f32 %v2165, %v2321
        %v2801 = vmul.f32 %v2167, %v2335
        %v2802 = vmul.f32 %v2169, %v2349
        %v2803 = vmul.f32 %v2171, %v2363
        %v2804 = vmul.f32 %v2173, %v2377
        %v2805 = vmul.f32 %v2175, %v2391
        %v2806 = vmul.f32 %v2177, %v2405
        %v2807 = vmul.f32 %v2179, %v2419
        %v2808 = vmul.f32 %v2181, %v2433
        %v2809 = vmul.f32 %v2183, %v2447
        %v2810 = vmul.f32 %v2185, %v2461
        %v2811 = vmul.f32 %v2187, %v2475
        %v2812 = vmul.f32 %v2189, %v2489
        %v2813 = vmul.f32 %v2191, %v2503
        %v2814 = vmul.f32 %v2193, %v2517
        %v2815 = vmul.f32 %v2195, %v2531
        %v2816 = vmul.f32 %v2197, %v2545
        %v2817 = vmul.f32 %v2199, %v2559
        %v2818 = vmul.f32 %v2201, %v2573
        %v2819 = vmul.f32 %v2203, %v2587
        %v2820 = vmul.f32 %v2205, %v2601
        %v2821 = vmul.f32 %v2207, %v2615
        %v2822 = vmul.f32 %v2209, %v2629
        %v2823 = vmul.f32 %v2211, %v2643
        %v2824 = vmul.f32 %v2213, %v2657
        %v2825 = vmul.f32 %v2215, %v2671
        %v2826 = vmul.f32 %v2217, %v2685
        %v2827 = vmul.f32 %v2219, %v2699
        %v2828 = vmul.f32 %v2796, %v1964
        %v2829 = vmul.f32 %v2797, %v1965
        %v2830 = vmul.f32 %v2798, %v1966
        %v2831 = vmul.f32 %v2799, %v1967
        %v2832 = vmul.f32 %v2800, %v1968
        %v2833 = vmul.f32 %v2801, %v1969
        %v2834 = vmul.f32 %v2802, %v1970
        %v2835 = vmul.f32 %v2803, %v1971
        %v2836 = vmul.f32 %v2804, %v1972
        %v2837 = vmul.f32 %v2805, %v1973
        %v2838 = vmul.f32 %v2806, %v1974
        %v2839 = vmul.f32 %v2807, %v1975
        %v2840 = vmul.f32 %v2808, %v1976
        %v2841 = vmul.f32 %v2809, %v1977
        %v2842 = vmul.f32 %v2810, %v1978
        %v2843 = vmul.f32 %v2811, %v1979
        %v2844 = vmul.f32 %v2812, %v1980
        %v2845 = vmul.f32 %v2813, %v1981
        %v2846 = vmul.f32 %v2814, %v1982
        %v2847 = vmul.f32 %v2815, %v1983
        %v2848 = vmul.f32 %v2816, %v1984
        %v2849 = vmul.f32 %v2817, %v1985
        %v2850 = vmul.f32 %v2818, %v1986
        %v2851 = vmul.f32 %v2819, %v1987
        %v2852 = vmul.f32 %v2820, %v1988
        %v2853 = vmul.f32 %v2821, %v1989
        %v2854 = vmul.f32 %v2822, %v1990
        %v2855 = vmul.f32 %v2823, %v1991
        %v2856 = vmul.f32 %v2824, %v1992
        %v2857 = vmul.f32 %v2825, %v1993
        %v2858 = vmul.f32 %v2826, %v1994
        %v2859 = vmul.f32 %v2827, %v1995
        %v2860 = vadd.f32 %v2764, %v2828
        %v2861 = vadd.f32 %v2765, %v2829
        %v2862 = vadd.f32 %v2766, %v2830
        %v2863 = vadd.f32 %v2767, %v2831
        %v2864 = vadd.f32 %v2768, %v2832
        %v2865 = vadd.f32 %v2769, %v2833
        %v2866 = vadd.f32 %v2770, %v2834
        %v2867 = vadd.f32 %v2771, %v2835
        %v2868 = vadd.f32 %v2772, %v2836
        %v2869 = vadd.f32 %v2773, %v2837
        %v2870 = vadd.f32 %v2774, %v2838
        %v2871 = vadd.f32 %v2775, %v2839
        %v2872 = vadd.f32 %v2776, %v2840
        %v2873 = vadd.f32 %v2777, %v2841
        %v2874 = vadd.f32 %v2778, %v2842
        %v2875 = vadd.f32 %v2779, %v2843
        %v2876 = vadd.f32 %v2780, %v2844
        %v2877 = vadd.f32 %v2781, %v2845
        %v2878 = vadd.f32 %v2782, %v2846
        %v2879 = vadd.f32 %v2783, %v2847
        %v2880 = vadd.f32 %v2784, %v2848
        %v2881 = vadd.f32 %v2785, %v2849
        %v2882 = vadd.f32 %v2786, %v2850
        %v2883 = vadd.f32 %v2787, %v2851
        %v2884 = vadd.f32 %v2788, %v2852
        %v2885 = vadd.f32 %v2789, %v2853
        %v2886 = vadd.f32 %v2790, %v2854
        %v2887 = vadd.f32 %v2791, %v2855
        %v2888 = vadd.f32 %v2792, %v2856
        %v2889 = vadd.f32 %v2793, %v2857
        %v2890 = vadd.f32 %v2794, %v2858
        %v2891 = vadd.f32 %v2795, %v2859
        %2892 = vst [vmem:[%s419] sm:$0xff] %v2860
        %2893 = vst [vmem:[%s419 + $0x8] sm:$0xff] %v2861
        %2894 = vst [vmem:[%s419 + $0x10] sm:$0xff] %v2862
        %2895 = vst [vmem:[%s419 + $0x18] sm:$0xff] %v2863
        %2896 = vst [vmem:[%s419 + $0x20] sm:$0xff] %v2864
        %2897 = vst [vmem:[%s419 + $0x28] sm:$0xff] %v2865
        %2898 = vst [vmem:[%s419 + $0x30] sm:$0xff] %v2866
        %2899 = vst [vmem:[%s419 + $0x38] sm:$0xff] %v2867
        %2900 = vst [vmem:[%s419 + $0x40] sm:$0xff] %v2868
        %2901 = vst [vmem:[%s419 + $0x48] sm:$0xff] %v2869
        %2902 = vst [vmem:[%s419 + $0x50] sm:$0xff] %v2870
        %2903 = vst [vmem:[%s419 + $0x58] sm:$0xff] %v2871
        %2904 = vst [vmem:[%s419 + $0x60] sm:$0xff] %v2872
        %2905 = vst [vmem:[%s419 + $0x68] sm:$0xff] %v2873
        %2906 = vst [vmem:[%s419 + $0x70] sm:$0xff] %v2874
        %2907 = vst [vmem:[%s419 + $0x78] sm:$0xff] %v2875
        %2908 = vst [vmem:[%s419 + $0x80] sm:$0xff] %v2876
        %2909 = vst [vmem:[%s419 + $0x88] sm:$0xff] %v2877
        %2910 = vst [vmem:[%s419 + $0x90] sm:$0xff] %v2878
        %2911 = vst [vmem:[%s419 + $0x98] sm:$0xff] %v2879
        %2912 = vst [vmem:[%s419 + $0xa0] sm:$0xff] %v2880
        %2913 = vst [vmem:[%s419 + $0xa8] sm:$0xff] %v2881
        %2914 = vst [vmem:[%s419 + $0xb0] sm:$0xff] %v2882
        %2915 = vst [vmem:[%s419 + $0xb8] sm:$0xff] %v2883
        %2916 = vst [vmem:[%s419 + $0xc0] sm:$0xff] %v2884
        %2917 = vst [vmem:[%s419 + $0xc8] sm:$0xff] %v2885
        %2918 = vst [vmem:[%s419 + $0xd0] sm:$0xff] %v2886
        %2919 = vst [vmem:[%s419 + $0xd8] sm:$0xff] %v2887
        %2920 = vst [vmem:[%s419 + $0xe0] sm:$0xff] %v2888
        %2921 = vst [vmem:[%s419 + $0xe8] sm:$0xff] %v2889
        %2922 = vst [vmem:[%s419 + $0xf0] sm:$0xff] %v2890
        %2923 = vst [vmem:[%s419 + $0xf8] sm:$0xff] %v2891
        %v2924 = vpack.c.bf16 %v422, %v421
        %v2925 = vpack.c.bf16 %v424, %v423
        %v2926 = vpack.c.bf16 %v426, %v425
        %v2927 = vpack.c.bf16 %v428, %v427
        %v2928 = vpack.c.bf16 %v430, %v429
        %v2929 = vpack.c.bf16 %v432, %v431
        %v2930 = vpack.c.bf16 %v434, %v433
        %v2931 = vpack.c.bf16 %v436, %v435
        %v2932 = vpack.c.bf16 %v438, %v437
        %v2933 = vpack.c.bf16 %v440, %v439
        %v2934 = vpack.c.bf16 %v442, %v441
        %v2935 = vpack.c.bf16 %v444, %v443
        %v2936 = vpack.c.bf16 %v446, %v445
        %v2937 = vpack.c.bf16 %v448, %v447
        %v2938 = vpack.c.bf16 %v450, %v449
        %v2939 = vpack.c.bf16 %v452, %v451
        %v2940 = vld [vmem:[#allocation7] sm:$0xff]
        %v2941 = vld [vmem:[#allocation7 + $0x8] sm:$0xff]
        %v2942 = vld [vmem:[#allocation7 + $0x10] sm:$0xff]
        %v2943 = vld [vmem:[#allocation7 + $0x18] sm:$0xff]
        %v2944 = vld [vmem:[#allocation7 + $0x20] sm:$0xff]
        %v2945 = vld [vmem:[#allocation7 + $0x28] sm:$0xff]
        %v2946 = vld [vmem:[#allocation7 + $0x30] sm:$0xff]
        %v2947 = vld [vmem:[#allocation7 + $0x38] sm:$0xff]
        %v2948 = vld [vmem:[#allocation7 + $0x40] sm:$0xff]
        %v2949 = vld [vmem:[#allocation7 + $0x48] sm:$0xff]
        %v2950 = vld [vmem:[#allocation7 + $0x50] sm:$0xff]
        %v2951 = vld [vmem:[#allocation7 + $0x58] sm:$0xff]
        %v2952 = vld [vmem:[#allocation7 + $0x60] sm:$0xff]
        %v2953 = vld [vmem:[#allocation7 + $0x68] sm:$0xff]
        %v2954 = vld [vmem:[#allocation7 + $0x70] sm:$0xff]
        %v2955 = vld [vmem:[#allocation7 + $0x78] sm:$0xff]
        %v2956 = vld [vmem:[#allocation7 + $0x80] sm:$0xff]
        %v2957 = vld [vmem:[#allocation7 + $0x88] sm:$0xff]
        %v2958 = vld [vmem:[#allocation7 + $0x90] sm:$0xff]
        %v2959 = vld [vmem:[#allocation7 + $0x98] sm:$0xff]
        %v2960 = vld [vmem:[#allocation7 + $0xa0] sm:$0xff]
        %v2961 = vld [vmem:[#allocation7 + $0xa8] sm:$0xff]
        %v2962 = vld [vmem:[#allocation7 + $0xb0] sm:$0xff]
        %v2963 = vld [vmem:[#allocation7 + $0xb8] sm:$0xff]
        %v2964 = vld [vmem:[#allocation7 + $0xc0] sm:$0xff]
        %v2965 = vld [vmem:[#allocation7 + $0xc8] sm:$0xff]
        %v2966 = vld [vmem:[#allocation7 + $0xd0] sm:$0xff]
        %v2967 = vld [vmem:[#allocation7 + $0xd8] sm:$0xff]
        %v2968 = vld [vmem:[#allocation7 + $0xe0] sm:$0xff]
        %v2969 = vld [vmem:[#allocation7 + $0xe8] sm:$0xff]
        %v2970 = vld [vmem:[#allocation7 + $0xf0] sm:$0xff]
        %v2971 = vld [vmem:[#allocation7 + $0xf8] sm:$0xff]
        %v2972 = vld [vmem:[#allocation8] sm:$0xf]
        %v2974 = vperm.slane %v2972, 0
        %v2975 = vperm.slane %v2972, 1
        %v2976 = vperm.slane %v2972, 2
        %v2977 = vperm.slane %v2972, 3
        %v3014 = vunpack.c.l.b16 %v2940
        %v3015 = vunpack.c.h.b16 %v2940
        %v3016 = vunpack.c.l.b16 %v2941
        %v3017 = vunpack.c.h.b16 %v2941
        %v3018 = vunpack.c.l.b16 %v2942
        %v3019 = vunpack.c.h.b16 %v2942
        %v3020 = vunpack.c.l.b16 %v2943
        %v3021 = vunpack.c.h.b16 %v2943
        %v3022 = vunpack.c.l.b16 %v2944
        %v3023 = vunpack.c.h.b16 %v2944
        %v3024 = vunpack.c.l.b16 %v2945
        %v3025 = vunpack.c.h.b16 %v2945
        %v3026 = vunpack.c.l.b16 %v2946
        %v3027 = vunpack.c.h.b16 %v2946
        %v3028 = vunpack.c.l.b16 %v2947
        %v3029 = vunpack.c.h.b16 %v2947
        %v3030 = vunpack.c.l.b16 %v2948
        %v3031 = vunpack.c.h.b16 %v2948
        %v3032 = vunpack.c.l.b16 %v2949
        %v3033 = vunpack.c.h.b16 %v2949
        %v3034 = vunpack.c.l.b16 %v2950
        %v3035 = vunpack.c.h.b16 %v2950
        %v3036 = vunpack.c.l.b16 %v2951
        %v3037 = vunpack.c.h.b16 %v2951
        %v3038 = vunpack.c.l.b16 %v2952
        %v3039 = vunpack.c.h.b16 %v2952
        %v3040 = vunpack.c.l.b16 %v2953
        %v3041 = vunpack.c.h.b16 %v2953
        %v3042 = vunpack.c.l.b16 %v2954
        %v3043 = vunpack.c.h.b16 %v2954
        %v3044 = vunpack.c.l.b16 %v2955
        %v3045 = vunpack.c.h.b16 %v2955
        %v3046 = vunpack.c.l.b16 %v2956
        %v3047 = vunpack.c.h.b16 %v2956
        %v3048 = vunpack.c.l.b16 %v2957
        %v3049 = vunpack.c.h.b16 %v2957
        %v3050 = vunpack.c.l.b16 %v2958
        %v3051 = vunpack.c.h.b16 %v2958
        %v3052 = vunpack.c.l.b16 %v2959
        %v3053 = vunpack.c.h.b16 %v2959
        %v3054 = vunpack.c.l.b16 %v2960
        %v3055 = vunpack.c.h.b16 %v2960
        %v3056 = vunpack.c.l.b16 %v2961
        %v3057 = vunpack.c.h.b16 %v2961
        %v3058 = vunpack.c.l.b16 %v2962
        %v3059 = vunpack.c.h.b16 %v2962
        %v3060 = vunpack.c.l.b16 %v2963
        %v3061 = vunpack.c.h.b16 %v2963
        %v3062 = vunpack.c.l.b16 %v2964
        %v3063 = vunpack.c.h.b16 %v2964
        %v3064 = vunpack.c.l.b16 %v2965
        %v3065 = vunpack.c.h.b16 %v2965
        %v3066 = vunpack.c.l.b16 %v2966
        %v3067 = vunpack.c.h.b16 %v2966
        %v3068 = vunpack.c.l.b16 %v2967
        %v3069 = vunpack.c.h.b16 %v2967
        %v3070 = vunpack.c.l.b16 %v2968
        %v3071 = vunpack.c.h.b16 %v2968
        %v3072 = vunpack.c.l.b16 %v2969
        %v3073 = vunpack.c.h.b16 %v2969
        %v3074 = vunpack.c.l.b16 %v2970
        %v3075 = vunpack.c.h.b16 %v2970
        %v3076 = vunpack.c.l.b16 %v2971
        %v3077 = vunpack.c.h.b16 %v2971
        %v3078 = vpack.c.b16 %v3018, %v3014
        %v3079 = vpack.c.b16 %v3019, %v3015
        %v3080 = vpack.c.b16 %v3020, %v3016
        %v3081 = vpack.c.b16 %v3021, %v3017
        %v3082 = vpack.c.b16 %v3026, %v3022
        %v3083 = vpack.c.b16 %v3027, %v3023
        %v3084 = vpack.c.b16 %v3028, %v3024
        %v3085 = vpack.c.b16 %v3029, %v3025
        %v3086 = vpack.c.b16 %v3034, %v3030
        %v3087 = vpack.c.b16 %v3035, %v3031
        %v3088 = vpack.c.b16 %v3036, %v3032
        %v3089 = vpack.c.b16 %v3037, %v3033
        %v3090 = vpack.c.b16 %v3042, %v3038
        %v3091 = vpack.c.b16 %v3043, %v3039
        %v3092 = vpack.c.b16 %v3044, %v3040
        %v3093 = vpack.c.b16 %v3045, %v3041
        %v3094 = vpack.c.b16 %v3050, %v3046
        %v3095 = vpack.c.b16 %v3051, %v3047
        %v3096 = vpack.c.b16 %v3052, %v3048
        %v3097 = vpack.c.b16 %v3053, %v3049
        %v3098 = vpack.c.b16 %v3058, %v3054
        %v3099 = vpack.c.b16 %v3059, %v3055
        %v3100 = vpack.c.b16 %v3060, %v3056
        %v3101 = vpack.c.b16 %v3061, %v3057
        %v3102 = vpack.c.b16 %v3066, %v3062
        %v3103 = vpack.c.b16 %v3067, %v3063
        %v3104 = vpack.c.b16 %v3068, %v3064
        %v3105 = vpack.c.b16 %v3069, %v3065
        %v3106 = vpack.c.b16 %v3074, %v3070
        %v3107 = vpack.c.b16 %v3075, %v3071
        %v3108 = vpack.c.b16 %v3076, %v3072
        %v3109 = vpack.c.b16 %v3077, %v3073
        %3142 = vmatpush.bf16.msra.mxu0 %v3106
        %3143 = vmatpush.bf16.msra.mxu0 %v3102
        %3144 = vmatpush.bf16.msra.mxu0 %v3098
        %3145 = vmatpush.bf16.msra.mxu0 %v3094
        %3146 = vmatpush.bf16.msra.mxu0 %v3090
        %3147 = vmatpush.bf16.msra.mxu0 %v3086
        %3148 = vmatpush.bf16.msra.mxu0 %v3082
        %3149 = vmatpush.bf16.msra.mxu0 %v3078
        %3150 = vmatmul.bf16.gmra.mxu0 %v2924
        %v3151 = vpop.f32.mrf.mxu0
        %v3152 = vadd.f32 %v2974, %v3151
        %v3153 = vpop.f32.mrf.mxu0
        %v3154 = vadd.f32 %v2974, %v3153
        %3155 = vmatmul.bf16.gmra.mxu0 %v2925
        %v3156 = vpop.f32.mrf.mxu0
        %v3157 = vadd.f32 %v2974, %v3156
        %v3158 = vpop.f32.mrf.mxu0
        %v3159 = vadd.f32 %v2974, %v3158
        %3160 = vmatmul.bf16.gmra.mxu0 %v2926
        %v3161 = vpop.f32.mrf.mxu0
        %v3162 = vadd.f32 %v2974, %v3161
        %v3163 = vpop.f32.mrf.mxu0
        %v3164 = vadd.f32 %v2974, %v3163
        %3165 = vmatmul.bf16.gmra.mxu0 %v2927
        %v3166 = vpop.f32.mrf.mxu0
        %v3167 = vadd.f32 %v2974, %v3166
        %v3168 = vpop.f32.mrf.mxu0
        %v3169 = vadd.f32 %v2974, %v3168
        %3170 = vmatmul.bf16.gmra.mxu0 %v2928
        %v3171 = vpop.f32.mrf.mxu0
        %v3172 = vadd.f32 %v2974, %v3171
        %v3173 = vpop.f32.mrf.mxu0
        %v3174 = vadd.f32 %v2974, %v3173
        %3175 = vmatmul.bf16.gmra.mxu0 %v2929
        %v3176 = vpop.f32.mrf.mxu0
        %v3177 = vadd.f32 %v2974, %v3176
        %v3178 = vpop.f32.mrf.mxu0
        %v3179 = vadd.f32 %v2974, %v3178
        %3180 = vmatmul.bf16.gmra.mxu0 %v2930
        %v3181 = vpop.f32.mrf.mxu0
        %v3182 = vadd.f32 %v2974, %v3181
        %v3183 = vpop.f32.mrf.mxu0
        %v3184 = vadd.f32 %v2974, %v3183
        %3185 = vmatmul.bf16.gmra.mxu0 %v2931
        %v3186 = vpop.f32.mrf.mxu0
        %v3187 = vadd.f32 %v2974, %v3186
        %v3188 = vpop.f32.mrf.mxu0
        %v3189 = vadd.f32 %v2974, %v3188
        %3190 = vmatmul.bf16.gmra.mxu0 %v2932
        %v3191 = vpop.f32.mrf.mxu0
        %v3192 = vadd.f32 %v2974, %v3191
        %v3193 = vpop.f32.mrf.mxu0
        %v3194 = vadd.f32 %v2974, %v3193
        %3195 = vmatmul.bf16.gmra.mxu0 %v2933
        %v3196 = vpop.f32.mrf.mxu0
        %v3197 = vadd.f32 %v2974, %v3196
        %v3198 = vpop.f32.mrf.mxu0
        %v3199 = vadd.f32 %v2974, %v3198
        %3200 = vmatmul.bf16.gmra.mxu0 %v2934
        %v3201 = vpop.f32.mrf.mxu0
        %v3202 = vadd.f32 %v2974, %v3201
        %v3203 = vpop.f32.mrf.mxu0
        %v3204 = vadd.f32 %v2974, %v3203
        %3205 = vmatmul.bf16.gmra.mxu0 %v2935
        %v3206 = vpop.f32.mrf.mxu0
        %v3207 = vadd.f32 %v2974, %v3206
        %v3208 = vpop.f32.mrf.mxu0
        %v3209 = vadd.f32 %v2974, %v3208
        %3210 = vmatmul.bf16.gmra.mxu0 %v2936
        %v3211 = vpop.f32.mrf.mxu0
        %v3212 = vadd.f32 %v2974, %v3211
        %v3213 = vpop.f32.mrf.mxu0
        %v3214 = vadd.f32 %v2974, %v3213
        %3215 = vmatmul.bf16.gmra.mxu0 %v2937
        %v3216 = vpop.f32.mrf.mxu0
        %v3217 = vadd.f32 %v2974, %v3216
        %v3218 = vpop.f32.mrf.mxu0
        %v3219 = vadd.f32 %v2974, %v3218
        %3220 = vmatmul.bf16.gmra.mxu0 %v2938
        %v3221 = vpop.f32.mrf.mxu0
        %v3222 = vadd.f32 %v2974, %v3221
        %v3223 = vpop.f32.mrf.mxu0
        %v3224 = vadd.f32 %v2974, %v3223
        %3225 = vmatmul.bf16.gmra.mxu0 %v2939
        %v3226 = vpop.f32.mrf.mxu0
        %v3227 = vadd.f32 %v2974, %v3226
        %v3228 = vpop.f32.mrf.mxu0
        %v3229 = vadd.f32 %v2974, %v3228
        %3230 = vdwg.mxu0
        %3231 = vmatpush.bf16.msra.mxu0 %v3107
        %3232 = vmatpush.bf16.msra.mxu0 %v3103
        %3233 = vmatpush.bf16.msra.mxu0 %v3099
        %3234 = vmatpush.bf16.msra.mxu0 %v3095
        %3235 = vmatpush.bf16.msra.mxu0 %v3091
        %3236 = vmatpush.bf16.msra.mxu0 %v3087
        %3237 = vmatpush.bf16.msra.mxu0 %v3083
        %3238 = vmatpush.bf16.msra.mxu0 %v3079
        %3239 = vmatmul.bf16.gmra.mxu0 %v2924
        %v3240 = vpop.f32.mrf.mxu0
        %v3241 = vadd.f32 %v2975, %v3240
        %v3242 = vpop.f32.mrf.mxu0
        %v3243 = vadd.f32 %v2975, %v3242
        %3244 = vmatmul.bf16.gmra.mxu0 %v2925
        %v3245 = vpop.f32.mrf.mxu0
        %v3246 = vadd.f32 %v2975, %v3245
        %v3247 = vpop.f32.mrf.mxu0
        %v3248 = vadd.f32 %v2975, %v3247
        %3249 = vmatmul.bf16.gmra.mxu0 %v2926
        %v3250 = vpop.f32.mrf.mxu0
        %v3251 = vadd.f32 %v2975, %v3250
        %v3252 = vpop.f32.mrf.mxu0
        %v3253 = vadd.f32 %v2975, %v3252
        %3254 = vmatmul.bf16.gmra.mxu0 %v2927
        %v3255 = vpop.f32.mrf.mxu0
        %v3256 = vadd.f32 %v2975, %v3255
        %v3257 = vpop.f32.mrf.mxu0
        %v3258 = vadd.f32 %v2975, %v3257
        %3259 = vmatmul.bf16.gmra.mxu0 %v2928
        %v3260 = vpop.f32.mrf.mxu0
        %v3261 = vadd.f32 %v2975, %v3260
        %v3262 = vpop.f32.mrf.mxu0
        %v3263 = vadd.f32 %v2975, %v3262
        %3264 = vmatmul.bf16.gmra.mxu0 %v2929
        %v3265 = vpop.f32.mrf.mxu0
        %v3266 = vadd.f32 %v2975, %v3265
        %v3267 = vpop.f32.mrf.mxu0
        %v3268 = vadd.f32 %v2975, %v3267
        %3269 = vmatmul.bf16.gmra.mxu0 %v2930
        %v3270 = vpop.f32.mrf.mxu0
        %v3271 = vadd.f32 %v2975, %v3270
        %v3272 = vpop.f32.mrf.mxu0
        %v3273 = vadd.f32 %v2975, %v3272
        %3274 = vmatmul.bf16.gmra.mxu0 %v2931
        %v3275 = vpop.f32.mrf.mxu0
        %v3276 = vadd.f32 %v2975, %v3275
        %v3277 = vpop.f32.mrf.mxu0
        %v3278 = vadd.f32 %v2975, %v3277
        %3279 = vmatmul.bf16.gmra.mxu0 %v2932
        %v3280 = vpop.f32.mrf.mxu0
        %v3281 = vadd.f32 %v2975, %v3280
        %v3282 = vpop.f32.mrf.mxu0
        %v3283 = vadd.f32 %v2975, %v3282
        %3284 = vmatmul.bf16.gmra.mxu0 %v2933
        %v3285 = vpop.f32.mrf.mxu0
        %v3286 = vadd.f32 %v2975, %v3285
        %v3287 = vpop.f32.mrf.mxu0
        %v3288 = vadd.f32 %v2975, %v3287
        %3289 = vmatmul.bf16.gmra.mxu0 %v2934
        %v3290 = vpop.f32.mrf.mxu0
        %v3291 = vadd.f32 %v2975, %v3290
        %v3292 = vpop.f32.mrf.mxu0
        %v3293 = vadd.f32 %v2975, %v3292
        %3294 = vmatmul.bf16.gmra.mxu0 %v2935
        %v3295 = vpop.f32.mrf.mxu0
        %v3296 = vadd.f32 %v2975, %v3295
        %v3297 = vpop.f32.mrf.mxu0
        %v3298 = vadd.f32 %v2975, %v3297
        %3299 = vmatmul.bf16.gmra.mxu0 %v2936
        %v3300 = vpop.f32.mrf.mxu0
        %v3301 = vadd.f32 %v2975, %v3300
        %v3302 = vpop.f32.mrf.mxu0
        %v3303 = vadd.f32 %v2975, %v3302
        %3304 = vmatmul.bf16.gmra.mxu0 %v2937
        %v3305 = vpop.f32.mrf.mxu0
        %v3306 = vadd.f32 %v2975, %v3305
        %v3307 = vpop.f32.mrf.mxu0
        %v3308 = vadd.f32 %v2975, %v3307
        %3309 = vmatmul.bf16.gmra.mxu0 %v2938
        %v3310 = vpop.f32.mrf.mxu0
        %v3311 = vadd.f32 %v2975, %v3310
        %v3312 = vpop.f32.mrf.mxu0
        %v3313 = vadd.f32 %v2975, %v3312
        %3314 = vmatmul.bf16.gmra.mxu0 %v2939
        %v3315 = vpop.f32.mrf.mxu0
        %v3316 = vadd.f32 %v2975, %v3315
        %v3317 = vpop.f32.mrf.mxu0
        %v3318 = vadd.f32 %v2975, %v3317
        %3319 = vdwg.mxu0
        %3320 = vmatpush.bf16.msra.mxu0 %v3108
        %3321 = vmatpush.bf16.msra.mxu0 %v3104
        %3322 = vmatpush.bf16.msra.mxu0 %v3100
        %3323 = vmatpush.bf16.msra.mxu0 %v3096
        %3324 = vmatpush.bf16.msra.mxu0 %v3092
        %3325 = vmatpush.bf16.msra.mxu0 %v3088
        %3326 = vmatpush.bf16.msra.mxu0 %v3084
        %3327 = vmatpush.bf16.msra.mxu0 %v3080
        %3328 = vmatmul.bf16.gmra.mxu0 %v2924
        %v3329 = vpop.f32.mrf.mxu0
        %v3330 = vadd.f32 %v2976, %v3329
        %v3331 = vpop.f32.mrf.mxu0
        %v3332 = vadd.f32 %v2976, %v3331
        %3333 = vmatmul.bf16.gmra.mxu0 %v2925
        %v3334 = vpop.f32.mrf.mxu0
        %v3335 = vadd.f32 %v2976, %v3334
        %v3336 = vpop.f32.mrf.mxu0
        %v3337 = vadd.f32 %v2976, %v3336
        %3338 = vmatmul.bf16.gmra.mxu0 %v2926
        %v3339 = vpop.f32.mrf.mxu0
        %v3340 = vadd.f32 %v2976, %v3339
        %v3341 = vpop.f32.mrf.mxu0
        %v3342 = vadd.f32 %v2976, %v3341
        %3343 = vmatmul.bf16.gmra.mxu0 %v2927
        %v3344 = vpop.f32.mrf.mxu0
        %v3345 = vadd.f32 %v2976, %v3344
        %v3346 = vpop.f32.mrf.mxu0
        %v3347 = vadd.f32 %v2976, %v3346
        %3348 = vmatmul.bf16.gmra.mxu0 %v2928
        %v3349 = vpop.f32.mrf.mxu0
        %v3350 = vadd.f32 %v2976, %v3349
        %v3351 = vpop.f32.mrf.mxu0
        %v3352 = vadd.f32 %v2976, %v3351
        %3353 = vmatmul.bf16.gmra.mxu0 %v2929
        %v3354 = vpop.f32.mrf.mxu0
        %v3355 = vadd.f32 %v2976, %v3354
        %v3356 = vpop.f32.mrf.mxu0
        %v3357 = vadd.f32 %v2976, %v3356
        %3358 = vmatmul.bf16.gmra.mxu0 %v2930
        %v3359 = vpop.f32.mrf.mxu0
        %v3360 = vadd.f32 %v2976, %v3359
        %v3361 = vpop.f32.mrf.mxu0
        %v3362 = vadd.f32 %v2976, %v3361
        %3363 = vmatmul.bf16.gmra.mxu0 %v2931
        %v3364 = vpop.f32.mrf.mxu0
        %v3365 = vadd.f32 %v2976, %v3364
        %v3366 = vpop.f32.mrf.mxu0
        %v3367 = vadd.f32 %v2976, %v3366
        %3368 = vmatmul.bf16.gmra.mxu0 %v2932
        %v3369 = vpop.f32.mrf.mxu0
        %v3370 = vadd.f32 %v2976, %v3369
        %v3371 = vpop.f32.mrf.mxu0
        %v3372 = vadd.f32 %v2976, %v3371
        %3373 = vmatmul.bf16.gmra.mxu0 %v2933
        %v3374 = vpop.f32.mrf.mxu0
        %v3375 = vadd.f32 %v2976, %v3374
        %v3376 = vpop.f32.mrf.mxu0
        %v3377 = vadd.f32 %v2976, %v3376
        %3378 = vmatmul.bf16.gmra.mxu0 %v2934
        %v3379 = vpop.f32.mrf.mxu0
        %v3380 = vadd.f32 %v2976, %v3379
        %v3381 = vpop.f32.mrf.mxu0
        %v3382 = vadd.f32 %v2976, %v3381
        %3383 = vmatmul.bf16.gmra.mxu0 %v2935
        %v3384 = vpop.f32.mrf.mxu0
        %v3385 = vadd.f32 %v2976, %v3384
        %v3386 = vpop.f32.mrf.mxu0
        %v3387 = vadd.f32 %v2976, %v3386
        %3388 = vmatmul.bf16.gmra.mxu0 %v2936
        %v3389 = vpop.f32.mrf.mxu0
        %v3390 = vadd.f32 %v2976, %v3389
        %v3391 = vpop.f32.mrf.mxu0
        %v3392 = vadd.f32 %v2976, %v3391
        %3393 = vmatmul.bf16.gmra.mxu0 %v2937
        %v3394 = vpop.f32.mrf.mxu0
        %v3395 = vadd.f32 %v2976, %v3394
        %v3396 = vpop.f32.mrf.mxu0
        %v3397 = vadd.f32 %v2976, %v3396
        %3398 = vmatmul.bf16.gmra.mxu0 %v2938
        %v3399 = vpop.f32.mrf.mxu0
        %v3400 = vadd.f32 %v2976, %v3399
        %v3401 = vpop.f32.mrf.mxu0
        %v3402 = vadd.f32 %v2976, %v3401
        %3403 = vmatmul.bf16.gmra.mxu0 %v2939
        %v3404 = vpop.f32.mrf.mxu0
        %v3405 = vadd.f32 %v2976, %v3404
        %v3406 = vpop.f32.mrf.mxu0
        %v3407 = vadd.f32 %v2976, %v3406
        %3408 = vdwg.mxu0
        %3409 = vmatpush.bf16.msra.mxu0 %v3109
        %3410 = vmatpush.bf16.msra.mxu0 %v3105
        %3411 = vmatpush.bf16.msra.mxu0 %v3101
        %3412 = vmatpush.bf16.msra.mxu0 %v3097
        %3413 = vmatpush.bf16.msra.mxu0 %v3093
        %3414 = vmatpush.bf16.msra.mxu0 %v3089
        %3415 = vmatpush.bf16.msra.mxu0 %v3085
        %3416 = vmatpush.bf16.msra.mxu0 %v3081
        %3417 = vmatmul.bf16.gmra.mxu0 %v2924
        %v3418 = vpop.f32.mrf.mxu0
        %v3419 = vadd.f32 %v2977, %v3418
        %v3420 = vpop.f32.mrf.mxu0
        %v3421 = vadd.f32 %v2977, %v3420
        %3422 = vmatmul.bf16.gmra.mxu0 %v2925
        %v3423 = vpop.f32.mrf.mxu0
        %v3424 = vadd.f32 %v2977, %v3423
        %v3425 = vpop.f32.mrf.mxu0
        %v3426 = vadd.f32 %v2977, %v3425
        %3427 = vmatmul.bf16.gmra.mxu0 %v2926
        %v3428 = vpop.f32.mrf.mxu0
        %v3429 = vadd.f32 %v2977, %v3428
        %v3430 = vpop.f32.mrf.mxu0
        %v3431 = vadd.f32 %v2977, %v3430
        %3432 = vmatmul.bf16.gmra.mxu0 %v2927
        %v3433 = vpop.f32.mrf.mxu0
        %v3434 = vadd.f32 %v2977, %v3433
        %v3435 = vpop.f32.mrf.mxu0
        %v3436 = vadd.f32 %v2977, %v3435
        %3437 = vmatmul.bf16.gmra.mxu0 %v2928
        %v3438 = vpop.f32.mrf.mxu0
        %v3439 = vadd.f32 %v2977, %v3438
        %v3440 = vpop.f32.mrf.mxu0
        %v3441 = vadd.f32 %v2977, %v3440
        %3442 = vmatmul.bf16.gmra.mxu0 %v2929
        %v3443 = vpop.f32.mrf.mxu0
        %v3444 = vadd.f32 %v2977, %v3443
        %v3445 = vpop.f32.mrf.mxu0
        %v3446 = vadd.f32 %v2977, %v3445
        %3447 = vmatmul.bf16.gmra.mxu0 %v2930
        %v3448 = vpop.f32.mrf.mxu0
        %v3449 = vadd.f32 %v2977, %v3448
        %v3450 = vpop.f32.mrf.mxu0
        %v3451 = vadd.f32 %v2977, %v3450
        %3452 = vmatmul.bf16.gmra.mxu0 %v2931
        %v3453 = vpop.f32.mrf.mxu0
        %v3454 = vadd.f32 %v2977, %v3453
        %v3455 = vpop.f32.mrf.mxu0
        %v3456 = vadd.f32 %v2977, %v3455
        %3457 = vmatmul.bf16.gmra.mxu0 %v2932
        %v3458 = vpop.f32.mrf.mxu0
        %v3459 = vadd.f32 %v2977, %v3458
        %v3460 = vpop.f32.mrf.mxu0
        %v3461 = vadd.f32 %v2977, %v3460
        %3462 = vmatmul.bf16.gmra.mxu0 %v2933
        %v3463 = vpop.f32.mrf.mxu0
        %v3464 = vadd.f32 %v2977, %v3463
        %v3465 = vpop.f32.mrf.mxu0
        %v3466 = vadd.f32 %v2977, %v3465
        %3467 = vmatmul.bf16.gmra.mxu0 %v2934
        %v3468 = vpop.f32.mrf.mxu0
        %v3469 = vadd.f32 %v2977, %v3468
        %v3470 = vpop.f32.mrf.mxu0
        %v3471 = vadd.f32 %v2977, %v3470
        %3472 = vmatmul.bf16.gmra.mxu0 %v2935
        %v3473 = vpop.f32.mrf.mxu0
        %v3474 = vadd.f32 %v2977, %v3473
        %v3475 = vpop.f32.mrf.mxu0
        %v3476 = vadd.f32 %v2977, %v3475
        %3477 = vmatmul.bf16.gmra.mxu0 %v2936
        %v3478 = vpop.f32.mrf.mxu0
        %v3479 = vadd.f32 %v2977, %v3478
        %v3480 = vpop.f32.mrf.mxu0
        %v3481 = vadd.f32 %v2977, %v3480
        %3482 = vmatmul.bf16.gmra.mxu0 %v2937
        %v3483 = vpop.f32.mrf.mxu0
        %v3484 = vadd.f32 %v2977, %v3483
        %v3485 = vpop.f32.mrf.mxu0
        %v3486 = vadd.f32 %v2977, %v3485
        %3487 = vmatmul.bf16.gmra.mxu0 %v2938
        %v3488 = vpop.f32.mrf.mxu0
        %v3489 = vadd.f32 %v2977, %v3488
        %v3490 = vpop.f32.mrf.mxu0
        %v3491 = vadd.f32 %v2977, %v3490
        %3492 = vmatmul.bf16.gmra.mxu0 %v2939
        %v3493 = vpop.f32.mrf.mxu0
        %v3494 = vadd.f32 %v2977, %v3493
        %v3495 = vpop.f32.mrf.mxu0
        %v3496 = vadd.f32 %v2977, %v3495
        %3497 = vdwg.mxu0
        %v3498 = vmax.f32 %v3152, 0.0
        %v3499 = vmax.f32 %v3241, 0.0
        %v3500 = vmax.f32 %v3330, 0.0
        %v3501 = vmax.f32 %v3419, 0.0
        %v3502 = vmax.f32 %v3154, 0.0
        %v3503 = vmax.f32 %v3243, 0.0
        %v3504 = vmax.f32 %v3332, 0.0
        %v3505 = vmax.f32 %v3421, 0.0
        %v3506 = vmax.f32 %v3157, 0.0
        %v3507 = vmax.f32 %v3246, 0.0
        %v3508 = vmax.f32 %v3335, 0.0
        %v3509 = vmax.f32 %v3424, 0.0
        %v3510 = vmax.f32 %v3159, 0.0
        %v3511 = vmax.f32 %v3248, 0.0
        %v3512 = vmax.f32 %v3337, 0.0
        %v3513 = vmax.f32 %v3426, 0.0
        %v3514 = vmax.f32 %v3162, 0.0
        %v3515 = vmax.f32 %v3251, 0.0
        %v3516 = vmax.f32 %v3340, 0.0
        %v3517 = vmax.f32 %v3429, 0.0
        %v3518 = vmax.f32 %v3164, 0.0
        %v3519 = vmax.f32 %v3253, 0.0
        %v3520 = vmax.f32 %v3342, 0.0
        %v3521 = vmax.f32 %v3431, 0.0
        %v3522 = vmax.f32 %v3167, 0.0
        %v3523 = vmax.f32 %v3256, 0.0
        %v3524 = vmax.f32 %v3345, 0.0
        %v3525 = vmax.f32 %v3434, 0.0
        %v3526 = vmax.f32 %v3169, 0.0
        %v3527 = vmax.f32 %v3258, 0.0
        %v3528 = vmax.f32 %v3347, 0.0
        %v3529 = vmax.f32 %v3436, 0.0
        %v3530 = vmax.f32 %v3172, 0.0
        %v3531 = vmax.f32 %v3261, 0.0
        %v3532 = vmax.f32 %v3350, 0.0
        %v3533 = vmax.f32 %v3439, 0.0
        %v3534 = vmax.f32 %v3174, 0.0
        %v3535 = vmax.f32 %v3263, 0.0
        %v3536 = vmax.f32 %v3352, 0.0
        %v3537 = vmax.f32 %v3441, 0.0
        %v3538 = vmax.f32 %v3177, 0.0
        %v3539 = vmax.f32 %v3266, 0.0
        %v3540 = vmax.f32 %v3355, 0.0
        %v3541 = vmax.f32 %v3444, 0.0
        %v3542 = vmax.f32 %v3179, 0.0
        %v3543 = vmax.f32 %v3268, 0.0
        %v3544 = vmax.f32 %v3357, 0.0
        %v3545 = vmax.f32 %v3446, 0.0
        %v3546 = vmax.f32 %v3182, 0.0
        %v3547 = vmax.f32 %v3271, 0.0
        %v3548 = vmax.f32 %v3360, 0.0
        %v3549 = vmax.f32 %v3449, 0.0
        %v3550 = vmax.f32 %v3184, 0.0
        %v3551 = vmax.f32 %v3273, 0.0
        %v3552 = vmax.f32 %v3362, 0.0
        %v3553 = vmax.f32 %v3451, 0.0
        %v3554 = vmax.f32 %v3187, 0.0
        %v3555 = vmax.f32 %v3276, 0.0
        %v3556 = vmax.f32 %v3365, 0.0
        %v3557 = vmax.f32 %v3454, 0.0
        %v3558 = vmax.f32 %v3189, 0.0
        %v3559 = vmax.f32 %v3278, 0.0
        %v3560 = vmax.f32 %v3367, 0.0
        %v3561 = vmax.f32 %v3456, 0.0
        %v3562 = vmax.f32 %v3192, 0.0
        %v3563 = vmax.f32 %v3281, 0.0
        %v3564 = vmax.f32 %v3370, 0.0
        %v3565 = vmax.f32 %v3459, 0.0
        %v3566 = vmax.f32 %v3194, 0.0
        %v3567 = vmax.f32 %v3283, 0.0
        %v3568 = vmax.f32 %v3372, 0.0
        %v3569 = vmax.f32 %v3461, 0.0
        %v3570 = vmax.f32 %v3197, 0.0
        %v3571 = vmax.f32 %v3286, 0.0
        %v3572 = vmax.f32 %v3375, 0.0
        %v3573 = vmax.f32 %v3464, 0.0
        %v3574 = vmax.f32 %v3199, 0.0
        %v3575 = vmax.f32 %v3288, 0.0
        %v3576 = vmax.f32 %v3377, 0.0
        %v3577 = vmax.f32 %v3466, 0.0
        %v3578 = vmax.f32 %v3202, 0.0
        %v3579 = vmax.f32 %v3291, 0.0
        %v3580 = vmax.f32 %v3380, 0.0
        %v3581 = vmax.f32 %v3469, 0.0
        %v3582 = vmax.f32 %v3204, 0.0
        %v3583 = vmax.f32 %v3293, 0.0
        %v3584 = vmax.f32 %v3382, 0.0
        %v3585 = vmax.f32 %v3471, 0.0
        %v3586 = vmax.f32 %v3207, 0.0
        %v3587 = vmax.f32 %v3296, 0.0
        %v3588 = vmax.f32 %v3385, 0.0
        %v3589 = vmax.f32 %v3474, 0.0
        %v3590 = vmax.f32 %v3209, 0.0
        %v3591 = vmax.f32 %v3298, 0.0
        %v3592 = vmax.f32 %v3387, 0.0
        %v3593 = vmax.f32 %v3476, 0.0
        %v3594 = vmax.f32 %v3212, 0.0
        %v3595 = vmax.f32 %v3301, 0.0
        %v3596 = vmax.f32 %v3390, 0.0
        %v3597 = vmax.f32 %v3479, 0.0
        %v3598 = vmax.f32 %v3214, 0.0
        %v3599 = vmax.f32 %v3303, 0.0
        %v3600 = vmax.f32 %v3392, 0.0
        %v3601 = vmax.f32 %v3481, 0.0
        %v3602 = vmax.f32 %v3217, 0.0
        %v3603 = vmax.f32 %v3306, 0.0
        %v3604 = vmax.f32 %v3395, 0.0
        %v3605 = vmax.f32 %v3484, 0.0
        %v3606 = vmax.f32 %v3219, 0.0
        %v3607 = vmax.f32 %v3308, 0.0
        %v3608 = vmax.f32 %v3397, 0.0
        %v3609 = vmax.f32 %v3486, 0.0
        %v3610 = vmax.f32 %v3222, 0.0
        %v3611 = vmax.f32 %v3311, 0.0
        %v3612 = vmax.f32 %v3400, 0.0
        %v3613 = vmax.f32 %v3489, 0.0
        %v3614 = vmax.f32 %v3224, 0.0
        %v3615 = vmax.f32 %v3313, 0.0
        %v3616 = vmax.f32 %v3402, 0.0
        %v3617 = vmax.f32 %v3491, 0.0
        %v3618 = vmax.f32 %v3227, 0.0
        %v3619 = vmax.f32 %v3316, 0.0
        %v3620 = vmax.f32 %v3405, 0.0
        %v3621 = vmax.f32 %v3494, 0.0
        %v3622 = vmax.f32 %v3229, 0.0
        %v3623 = vmax.f32 %v3318, 0.0
        %v3624 = vmax.f32 %v3407, 0.0
        %v3625 = vmax.f32 %v3496, 0.0
        %3627 = vset.pattern.permute.xlu0 0
        %3628 = vperm.xlu0 %3627, %v2860
        %v3629 = vpop.permute.xlu0 %3628
        %3632 = vset.pattern.permute.xlu0 0
        %3633 = vperm.xlu0 %3632, %v2861
        %v3634 = vpop.permute.xlu0 %3633
        %3637 = vset.pattern.permute.xlu0 0
        %3638 = vperm.xlu0 %3637, %v2862
        %v3639 = vpop.permute.xlu0 %3638
        %3642 = vset.pattern.permute.xlu0 0
        %3643 = vperm.xlu0 %3642, %v2863
        %v3644 = vpop.permute.xlu0 %3643
        %3647 = vset.pattern.permute.xlu0 0
        %3648 = vperm.xlu0 %3647, %v2864
        %v3649 = vpop.permute.xlu0 %3648
        %3652 = vset.pattern.permute.xlu0 0
        %3653 = vperm.xlu0 %3652, %v2865
        %v3654 = vpop.permute.xlu0 %3653
        %3657 = vset.pattern.permute.xlu0 0
        %3658 = vperm.xlu0 %3657, %v2866
        %v3659 = vpop.permute.xlu0 %3658
        %3662 = vset.pattern.permute.xlu0 0
        %3663 = vperm.xlu0 %3662, %v2867
        %v3664 = vpop.permute.xlu0 %3663
        %3667 = vset.pattern.permute.xlu0 0
        %3668 = vperm.xlu0 %3667, %v2868
        %v3669 = vpop.permute.xlu0 %3668
        %3672 = vset.pattern.permute.xlu0 0
        %3673 = vperm.xlu0 %3672, %v2869
        %v3674 = vpop.permute.xlu0 %3673
        %3677 = vset.pattern.permute.xlu0 0
        %3678 = vperm.xlu0 %3677, %v2870
        %v3679 = vpop.permute.xlu0 %3678
        %3682 = vset.pattern.permute.xlu0 0
        %3683 = vperm.xlu0 %3682, %v2871
        %v3684 = vpop.permute.xlu0 %3683
        %3687 = vset.pattern.permute.xlu0 0
        %3688 = vperm.xlu0 %3687, %v2872
        %v3689 = vpop.permute.xlu0 %3688
        %3692 = vset.pattern.permute.xlu0 0
        %3693 = vperm.xlu0 %3692, %v2873
        %v3694 = vpop.permute.xlu0 %3693
        %3697 = vset.pattern.permute.xlu0 0
        %3698 = vperm.xlu0 %3697, %v2874
        %v3699 = vpop.permute.xlu0 %3698
        %3702 = vset.pattern.permute.xlu0 0
        %3703 = vperm.xlu0 %3702, %v2875
        %v3704 = vpop.permute.xlu0 %3703
        %3707 = vset.pattern.permute.xlu0 0
        %3708 = vperm.xlu0 %3707, %v2876
        %v3709 = vpop.permute.xlu0 %3708
        %3712 = vset.pattern.permute.xlu0 0
        %3713 = vperm.xlu0 %3712, %v2877
        %v3714 = vpop.permute.xlu0 %3713
        %3717 = vset.pattern.permute.xlu0 0
        %3718 = vperm.xlu0 %3717, %v2878
        %v3719 = vpop.permute.xlu0 %3718
        %3722 = vset.pattern.permute.xlu0 0
        %3723 = vperm.xlu0 %3722, %v2879
        %v3724 = vpop.permute.xlu0 %3723
        %3727 = vset.pattern.permute.xlu0 0
        %3728 = vperm.xlu0 %3727, %v2880
        %v3729 = vpop.permute.xlu0 %3728
        %3732 = vset.pattern.permute.xlu0 0
        %3733 = vperm.xlu0 %3732, %v2881
        %v3734 = vpop.permute.xlu0 %3733
        %3737 = vset.pattern.permute.xlu0 0
        %3738 = vperm.xlu0 %3737, %v2882
        %v3739 = vpop.permute.xlu0 %3738
        %3742 = vset.pattern.permute.xlu0 0
        %3743 = vperm.xlu0 %3742, %v2883
        %v3744 = vpop.permute.xlu0 %3743
        %3747 = vset.pattern.permute.xlu0 0
        %3748 = vperm.xlu0 %3747, %v2884
        %v3749 = vpop.permute.xlu0 %3748
        %3752 = vset.pattern.permute.xlu0 0
        %3753 = vperm.xlu0 %3752, %v2885
        %v3754 = vpop.permute.xlu0 %3753
        %3757 = vset.pattern.permute.xlu0 0
        %3758 = vperm.xlu0 %3757, %v2886
        %v3759 = vpop.permute.xlu0 %3758
        %3762 = vset.pattern.permute.xlu0 0
        %3763 = vperm.xlu0 %3762, %v2887
        %v3764 = vpop.permute.xlu0 %3763
        %3767 = vset.pattern.permute.xlu0 0
        %3768 = vperm.xlu0 %3767, %v2888
        %v3769 = vpop.permute.xlu0 %3768
        %3772 = vset.pattern.permute.xlu0 0
        %3773 = vperm.xlu0 %3772, %v2889
        %v3774 = vpop.permute.xlu0 %3773
        %3777 = vset.pattern.permute.xlu0 0
        %3778 = vperm.xlu0 %3777, %v2890
        %v3779 = vpop.permute.xlu0 %3778
        %3782 = vset.pattern.permute.xlu0 0
        %3783 = vperm.xlu0 %3782, %v2891
        %v3784 = vpop.permute.xlu0 %3783
        %3786 = vset.pattern.permute.xlu0 1
        %3787 = vperm.xlu0 %3786, %v2860
        %v3788 = vpop.permute.xlu0 %3787
        %3790 = vset.pattern.permute.xlu0 1
        %3791 = vperm.xlu0 %3790, %v2861
        %v3792 = vpop.permute.xlu0 %3791
        %3794 = vset.pattern.permute.xlu0 1
        %3795 = vperm.xlu0 %3794, %v2862
        %v3796 = vpop.permute.xlu0 %3795
        %3798 = vset.pattern.permute.xlu0 1
        %3799 = vperm.xlu0 %3798, %v2863
        %v3800 = vpop.permute.xlu0 %3799
        %3802 = vset.pattern.permute.xlu0 1
        %3803 = vperm.xlu0 %3802, %v2864
        %v3804 = vpop.permute.xlu0 %3803
        %3806 = vset.pattern.permute.xlu0 1
        %3807 = vperm.xlu0 %3806, %v2865
        %v3808 = vpop.permute.xlu0 %3807
        %3810 = vset.pattern.permute.xlu0 1
        %3811 = vperm.xlu0 %3810, %v2866
        %v3812 = vpop.permute.xlu0 %3811
        %3814 = vset.pattern.permute.xlu0 1
        %3815 = vperm.xlu0 %3814, %v2867
        %v3816 = vpop.permute.xlu0 %3815
        %3818 = vset.pattern.permute.xlu0 1
        %3819 = vperm.xlu0 %3818, %v2868
        %v3820 = vpop.permute.xlu0 %3819
        %3822 = vset.pattern.permute.xlu0 1
        %3823 = vperm.xlu0 %3822, %v2869
        %v3824 = vpop.permute.xlu0 %3823
        %3826 = vset.pattern.permute.xlu0 1
        %3827 = vperm.xlu0 %3826, %v2870
        %v3828 = vpop.permute.xlu0 %3827
        %3830 = vset.pattern.permute.xlu0 1
        %3831 = vperm.xlu0 %3830, %v2871
        %v3832 = vpop.permute.xlu0 %3831
        %3834 = vset.pattern.permute.xlu0 1
        %3835 = vperm.xlu0 %3834, %v2872
        %v3836 = vpop.permute.xlu0 %3835
        %3838 = vset.pattern.permute.xlu0 1
        %3839 = vperm.xlu0 %3838, %v2873
        %v3840 = vpop.permute.xlu0 %3839
        %3842 = vset.pattern.permute.xlu0 1
        %3843 = vperm.xlu0 %3842, %v2874
        %v3844 = vpop.permute.xlu0 %3843
        %3846 = vset.pattern.permute.xlu0 1
        %3847 = vperm.xlu0 %3846, %v2875
        %v3848 = vpop.permute.xlu0 %3847
        %3850 = vset.pattern.permute.xlu0 1
        %3851 = vperm.xlu0 %3850, %v2876
        %v3852 = vpop.permute.xlu0 %3851
        %3854 = vset.pattern.permute.xlu0 1
        %3855 = vperm.xlu0 %3854, %v2877
        %v3856 = vpop.permute.xlu0 %3855
        %3858 = vset.pattern.permute.xlu0 1
        %3859 = vperm.xlu0 %3858, %v2878
        %v3860 = vpop.permute.xlu0 %3859
        %3862 = vset.pattern.permute.xlu0 1
        %3863 = vperm.xlu0 %3862, %v2879
        %v3864 = vpop.permute.xlu0 %3863
        %3866 = vset.pattern.permute.xlu0 1
        %3867 = vperm.xlu0 %3866, %v2880
        %v3868 = vpop.permute.xlu0 %3867
        %3870 = vset.pattern.permute.xlu0 1
        %3871 = vperm.xlu0 %3870, %v2881
        %v3872 = vpop.permute.xlu0 %3871
        %3874 = vset.pattern.permute.xlu0 1
        %3875 = vperm.xlu0 %3874, %v2882
        %v3876 = vpop.permute.xlu0 %3875
        %3878 = vset.pattern.permute.xlu0 1
        %3879 = vperm.xlu0 %3878, %v2883
        %v3880 = vpop.permute.xlu0 %3879
        %3882 = vset.pattern.permute.xlu0 1
        %3883 = vperm.xlu0 %3882, %v2884
        %v3884 = vpop.permute.xlu0 %3883
        %3886 = vset.pattern.permute.xlu0 1
        %3887 = vperm.xlu0 %3886, %v2885
        %v3888 = vpop.permute.xlu0 %3887
        %3890 = vset.pattern.permute.xlu0 1
        %3891 = vperm.xlu0 %3890, %v2886
        %v3892 = vpop.permute.xlu0 %3891
        %3894 = vset.pattern.permute.xlu0 1
        %3895 = vperm.xlu0 %3894, %v2887
        %v3896 = vpop.permute.xlu0 %3895
        %3898 = vset.pattern.permute.xlu0 1
        %3899 = vperm.xlu0 %3898, %v2888
        %v3900 = vpop.permute.xlu0 %3899
        %3902 = vset.pattern.permute.xlu0 1
        %3903 = vperm.xlu0 %3902, %v2889
        %v3904 = vpop.permute.xlu0 %3903
        %3906 = vset.pattern.permute.xlu0 1
        %3907 = vperm.xlu0 %3906, %v2890
        %v3908 = vpop.permute.xlu0 %3907
        %3910 = vset.pattern.permute.xlu0 1
        %3911 = vperm.xlu0 %3910, %v2891
        %v3912 = vpop.permute.xlu0 %3911
        %3914 = vset.pattern.permute.xlu0 2
        %3915 = vperm.xlu0 %3914, %v2860
        %v3916 = vpop.permute.xlu0 %3915
        %3918 = vset.pattern.permute.xlu0 2
        %3919 = vperm.xlu0 %3918, %v2861
        %v3920 = vpop.permute.xlu0 %3919
        %3922 = vset.pattern.permute.xlu0 2
        %3923 = vperm.xlu0 %3922, %v2862
        %v3924 = vpop.permute.xlu0 %3923
        %3926 = vset.pattern.permute.xlu0 2
        %3927 = vperm.xlu0 %3926, %v2863
        %v3928 = vpop.permute.xlu0 %3927
        %3930 = vset.pattern.permute.xlu0 2
        %3931 = vperm.xlu0 %3930, %v2864
        %v3932 = vpop.permute.xlu0 %3931
        %3934 = vset.pattern.permute.xlu0 2
        %3935 = vperm.xlu0 %3934, %v2865
        %v3936 = vpop.permute.xlu0 %3935
        %3938 = vset.pattern.permute.xlu0 2
        %3939 = vperm.xlu0 %3938, %v2866
        %v3940 = vpop.permute.xlu0 %3939
        %3942 = vset.pattern.permute.xlu0 2
        %3943 = vperm.xlu0 %3942, %v2867
        %v3944 = vpop.permute.xlu0 %3943
        %3946 = vset.pattern.permute.xlu0 2
        %3947 = vperm.xlu0 %3946, %v2868
        %v3948 = vpop.permute.xlu0 %3947
        %3950 = vset.pattern.permute.xlu0 2
        %3951 = vperm.xlu0 %3950, %v2869
        %v3952 = vpop.permute.xlu0 %3951
        %3954 = vset.pattern.permute.xlu0 2
        %3955 = vperm.xlu0 %3954, %v2870
        %v3956 = vpop.permute.xlu0 %3955
        %3958 = vset.pattern.permute.xlu0 2
        %3959 = vperm.xlu0 %3958, %v2871
        %v3960 = vpop.permute.xlu0 %3959
        %3962 = vset.pattern.permute.xlu0 2
        %3963 = vperm.xlu0 %3962, %v2872
        %v3964 = vpop.permute.xlu0 %3963
        %3966 = vset.pattern.permute.xlu0 2
        %3967 = vperm.xlu0 %3966, %v2873
        %v3968 = vpop.permute.xlu0 %3967
        %3970 = vset.pattern.permute.xlu0 2
        %3971 = vperm.xlu0 %3970, %v2874
        %v3972 = vpop.permute.xlu0 %3971
        %3974 = vset.pattern.permute.xlu0 2
        %3975 = vperm.xlu0 %3974, %v2875
        %v3976 = vpop.permute.xlu0 %3975
        %3978 = vset.pattern.permute.xlu0 2
        %3979 = vperm.xlu0 %3978, %v2876
        %v3980 = vpop.permute.xlu0 %3979
        %3982 = vset.pattern.permute.xlu0 2
        %3983 = vperm.xlu0 %3982, %v2877
        %v3984 = vpop.permute.xlu0 %3983
        %3986 = vset.pattern.permute.xlu0 2
        %3987 = vperm.xlu0 %3986, %v2878
        %v3988 = vpop.permute.xlu0 %3987
        %3990 = vset.pattern.permute.xlu0 2
        %3991 = vperm.xlu0 %3990, %v2879
        %v3992 = vpop.permute.xlu0 %3991
        %3994 = vset.pattern.permute.xlu0 2
        %3995 = vperm.xlu0 %3994, %v2880
        %v3996 = vpop.permute.xlu0 %3995
        %3998 = vset.pattern.permute.xlu0 2
        %3999 = vperm.xlu0 %3998, %v2881
        %v4000 = vpop.permute.xlu0 %3999
        %4002 = vset.pattern.permute.xlu0 2
        %4003 = vperm.xlu0 %4002, %v2882
        %v4004 = vpop.permute.xlu0 %4003
        %4006 = vset.pattern.permute.xlu0 2
        %4007 = vperm.xlu0 %4006, %v2883
        %v4008 = vpop.permute.xlu0 %4007
        %4010 = vset.pattern.permute.xlu0 2
        %4011 = vperm.xlu0 %4010, %v2884
        %v4012 = vpop.permute.xlu0 %4011
        %4014 = vset.pattern.permute.xlu0 2
        %4015 = vperm.xlu0 %4014, %v2885
        %v4016 = vpop.permute.xlu0 %4015
        %4018 = vset.pattern.permute.xlu0 2
        %4019 = vperm.xlu0 %4018, %v2886
        %v4020 = vpop.permute.xlu0 %4019
        %4022 = vset.pattern.permute.xlu0 2
        %4023 = vperm.xlu0 %4022, %v2887
        %v4024 = vpop.permute.xlu0 %4023
        %4026 = vset.pattern.permute.xlu0 2
        %4027 = vperm.xlu0 %4026, %v2888
        %v4028 = vpop.permute.xlu0 %4027
        %4030 = vset.pattern.permute.xlu0 2
        %4031 = vperm.xlu0 %4030, %v2889
        %v4032 = vpop.permute.xlu0 %4031
        %4034 = vset.pattern.permute.xlu0 2
        %4035 = vperm.xlu0 %4034, %v2890
        %v4036 = vpop.permute.xlu0 %4035
        %4038 = vset.pattern.permute.xlu0 2
        %4039 = vperm.xlu0 %4038, %v2891
        %v4040 = vpop.permute.xlu0 %4039
        %4042 = vset.pattern.permute.xlu0 3
        %4043 = vperm.xlu0 %4042, %v2860
        %v4044 = vpop.permute.xlu0 %4043
        %4046 = vset.pattern.permute.xlu0 3
        %4047 = vperm.xlu0 %4046, %v2861
        %v4048 = vpop.permute.xlu0 %4047
        %4050 = vset.pattern.permute.xlu0 3
        %4051 = vperm.xlu0 %4050, %v2862
        %v4052 = vpop.permute.xlu0 %4051
        %4054 = vset.pattern.permute.xlu0 3
        %4055 = vperm.xlu0 %4054, %v2863
        %v4056 = vpop.permute.xlu0 %4055
        %4058 = vset.pattern.permute.xlu0 3
        %4059 = vperm.xlu0 %4058, %v2864
        %v4060 = vpop.permute.xlu0 %4059
        %4062 = vset.pattern.permute.xlu0 3
        %4063 = vperm.xlu0 %4062, %v2865
        %v4064 = vpop.permute.xlu0 %4063
        %4066 = vset.pattern.permute.xlu0 3
        %4067 = vperm.xlu0 %4066, %v2866
        %v4068 = vpop.permute.xlu0 %4067
        %4070 = vset.pattern.permute.xlu0 3
        %4071 = vperm.xlu0 %4070, %v2867
        %v4072 = vpop.permute.xlu0 %4071
        %4074 = vset.pattern.permute.xlu0 3
        %4075 = vperm.xlu0 %4074, %v2868
        %v4076 = vpop.permute.xlu0 %4075
        %4078 = vset.pattern.permute.xlu0 3
        %4079 = vperm.xlu0 %4078, %v2869
        %v4080 = vpop.permute.xlu0 %4079
        %4082 = vset.pattern.permute.xlu0 3
        %4083 = vperm.xlu0 %4082, %v2870
        %v4084 = vpop.permute.xlu0 %4083
        %4086 = vset.pattern.permute.xlu0 3
        %4087 = vperm.xlu0 %4086, %v2871
        %v4088 = vpop.permute.xlu0 %4087
        %4090 = vset.pattern.permute.xlu0 3
        %4091 = vperm.xlu0 %4090, %v2872
        %v4092 = vpop.permute.xlu0 %4091
        %4094 = vset.pattern.permute.xlu0 3
        %4095 = vperm.xlu0 %4094, %v2873
        %v4096 = vpop.permute.xlu0 %4095
        %4098 = vset.pattern.permute.xlu0 3
        %4099 = vperm.xlu0 %4098, %v2874
        %v4100 = vpop.permute.xlu0 %4099
        %4102 = vset.pattern.permute.xlu0 3
        %4103 = vperm.xlu0 %4102, %v2875
        %v4104 = vpop.permute.xlu0 %4103
        %4106 = vset.pattern.permute.xlu0 3
        %4107 = vperm.xlu0 %4106, %v2876
        %v4108 = vpop.permute.xlu0 %4107
        %4110 = vset.pattern.permute.xlu0 3
        %4111 = vperm.xlu0 %4110, %v2877
        %v4112 = vpop.permute.xlu0 %4111
        %4114 = vset.pattern.permute.xlu0 3
        %4115 = vperm.xlu0 %4114, %v2878
        %v4116 = vpop.permute.xlu0 %4115
        %4118 = vset.pattern.permute.xlu0 3
        %4119 = vperm.xlu0 %4118, %v2879
        %v4120 = vpop.permute.xlu0 %4119
        %4122 = vset.pattern.permute.xlu0 3
        %4123 = vperm.xlu0 %4122, %v2880
        %v4124 = vpop.permute.xlu0 %4123
        %4126 = vset.pattern.permute.xlu0 3
        %4127 = vperm.xlu0 %4126, %v2881
        %v4128 = vpop.permute.xlu0 %4127
        %4130 = vset.pattern.permute.xlu0 3
        %4131 = vperm.xlu0 %4130, %v2882
        %v4132 = vpop.permute.xlu0 %4131
        %4134 = vset.pattern.permute.xlu0 3
        %4135 = vperm.xlu0 %4134, %v2883
        %v4136 = vpop.permute.xlu0 %4135
        %4138 = vset.pattern.permute.xlu0 3
        %4139 = vperm.xlu0 %4138, %v2884
        %v4140 = vpop.permute.xlu0 %4139
        %4142 = vset.pattern.permute.xlu0 3
        %4143 = vperm.xlu0 %4142, %v2885
        %v4144 = vpop.permute.xlu0 %4143
        %4146 = vset.pattern.permute.xlu0 3
        %4147 = vperm.xlu0 %4146, %v2886
        %v4148 = vpop.permute.xlu0 %4147
        %4150 = vset.pattern.permute.xlu0 3
        %4151 = vperm.xlu0 %4150, %v2887
        %v4152 = vpop.permute.xlu0 %4151
        %4154 = vset.pattern.permute.xlu0 3
        %4155 = vperm.xlu0 %4154, %v2888
        %v4156 = vpop.permute.xlu0 %4155
        %4158 = vset.pattern.permute.xlu0 3
        %4159 = vperm.xlu0 %4158, %v2889
        %v4160 = vpop.permute.xlu0 %4159
        %4162 = vset.pattern.permute.xlu0 3
        %4163 = vperm.xlu0 %4162, %v2890
        %v4164 = vpop.permute.xlu0 %4163
        %4166 = vset.pattern.permute.xlu0 3
        %4167 = vperm.xlu0 %4166, %v2891
        %v4168 = vpop.permute.xlu0 %4167
        %vm4170 = vcmp.gt.f32.partialorder %v3629, 0.0
        %vm4171 = vcmp.gt.f32.partialorder %v3788, 0.0
        %vm4172 = vcmp.gt.f32.partialorder %v3916, 0.0
        %vm4173 = vcmp.gt.f32.partialorder %v4044, 0.0
        %vm4174 = vcmp.gt.f32.partialorder %v3634, 0.0
        %vm4175 = vcmp.gt.f32.partialorder %v3792, 0.0
        %vm4176 = vcmp.gt.f32.partialorder %v3920, 0.0
        %vm4177 = vcmp.gt.f32.partialorder %v4048, 0.0
        %vm4178 = vcmp.gt.f32.partialorder %v3639, 0.0
        %vm4179 = vcmp.gt.f32.partialorder %v3796, 0.0
        %vm4180 = vcmp.gt.f32.partialorder %v3924, 0.0
        %vm4181 = vcmp.gt.f32.partialorder %v4052, 0.0
        %vm4182 = vcmp.gt.f32.partialorder %v3644, 0.0
        %vm4183 = vcmp.gt.f32.partialorder %v3800, 0.0
        %vm4184 = vcmp.gt.f32.partialorder %v3928, 0.0
        %vm4185 = vcmp.gt.f32.partialorder %v4056, 0.0
        %vm4186 = vcmp.gt.f32.partialorder %v3649, 0.0
        %vm4187 = vcmp.gt.f32.partialorder %v3804, 0.0
        %vm4188 = vcmp.gt.f32.partialorder %v3932, 0.0
        %vm4189 = vcmp.gt.f32.partialorder %v4060, 0.0
        %vm4190 = vcmp.gt.f32.partialorder %v3654, 0.0
        %vm4191 = vcmp.gt.f32.partialorder %v3808, 0.0
        %vm4192 = vcmp.gt.f32.partialorder %v3936, 0.0
        %vm4193 = vcmp.gt.f32.partialorder %v4064, 0.0
        %vm4194 = vcmp.gt.f32.partialorder %v3659, 0.0
        %vm4195 = vcmp.gt.f32.partialorder %v3812, 0.0
        %vm4196 = vcmp.gt.f32.partialorder %v3940, 0.0
        %vm4197 = vcmp.gt.f32.partialorder %v4068, 0.0
        %vm4198 = vcmp.gt.f32.partialorder %v3664, 0.0
        %vm4199 = vcmp.gt.f32.partialorder %v3816, 0.0
        %vm4200 = vcmp.gt.f32.partialorder %v3944, 0.0
        %vm4201 = vcmp.gt.f32.partialorder %v4072, 0.0
        %vm4202 = vcmp.gt.f32.partialorder %v3669, 0.0
        %vm4203 = vcmp.gt.f32.partialorder %v3820, 0.0
        %vm4204 = vcmp.gt.f32.partialorder %v3948, 0.0
        %vm4205 = vcmp.gt.f32.partialorder %v4076, 0.0
        %vm4206 = vcmp.gt.f32.partialorder %v3674, 0.0
        %vm4207 = vcmp.gt.f32.partialorder %v3824, 0.0
        %vm4208 = vcmp.gt.f32.partialorder %v3952, 0.0
        %vm4209 = vcmp.gt.f32.partialorder %v4080, 0.0
        %vm4210 = vcmp.gt.f32.partialorder %v3679, 0.0
        %vm4211 = vcmp.gt.f32.partialorder %v3828, 0.0
        %vm4212 = vcmp.gt.f32.partialorder %v3956, 0.0
        %vm4213 = vcmp.gt.f32.partialorder %v4084, 0.0
        %vm4214 = vcmp.gt.f32.partialorder %v3684, 0.0
        %vm4215 = vcmp.gt.f32.partialorder %v3832, 0.0
        %vm4216 = vcmp.gt.f32.partialorder %v3960, 0.0
        %vm4217 = vcmp.gt.f32.partialorder %v4088, 0.0
        %vm4218 = vcmp.gt.f32.partialorder %v3689, 0.0
        %vm4219 = vcmp.gt.f32.partialorder %v3836, 0.0
        %vm4220 = vcmp.gt.f32.partialorder %v3964, 0.0
        %vm4221 = vcmp.gt.f32.partialorder %v4092, 0.0
        %vm4222 = vcmp.gt.f32.partialorder %v3694, 0.0
        %vm4223 = vcmp.gt.f32.partialorder %v3840, 0.0
        %vm4224 = vcmp.gt.f32.partialorder %v3968, 0.0
        %vm4225 = vcmp.gt.f32.partialorder %v4096, 0.0
        %vm4226 = vcmp.gt.f32.partialorder %v3699, 0.0
        %vm4227 = vcmp.gt.f32.partialorder %v3844, 0.0
        %vm4228 = vcmp.gt.f32.partialorder %v3972, 0.0
        %vm4229 = vcmp.gt.f32.partialorder %v4100, 0.0
        %vm4230 = vcmp.gt.f32.partialorder %v3704, 0.0
        %vm4231 = vcmp.gt.f32.partialorder %v3848, 0.0
        %vm4232 = vcmp.gt.f32.partialorder %v3976, 0.0
        %vm4233 = vcmp.gt.f32.partialorder %v4104, 0.0
        %vm4234 = vcmp.gt.f32.partialorder %v3709, 0.0
        %vm4235 = vcmp.gt.f32.partialorder %v3852, 0.0
        %vm4236 = vcmp.gt.f32.partialorder %v3980, 0.0
        %vm4237 = vcmp.gt.f32.partialorder %v4108, 0.0
        %vm4238 = vcmp.gt.f32.partialorder %v3714, 0.0
        %vm4239 = vcmp.gt.f32.partialorder %v3856, 0.0
        %vm4240 = vcmp.gt.f32.partialorder %v3984, 0.0
        %vm4241 = vcmp.gt.f32.partialorder %v4112, 0.0
        %vm4242 = vcmp.gt.f32.partialorder %v3719, 0.0
        %vm4243 = vcmp.gt.f32.partialorder %v3860, 0.0
        %vm4244 = vcmp.gt.f32.partialorder %v3988, 0.0
        %vm4245 = vcmp.gt.f32.partialorder %v4116, 0.0
        %vm4246 = vcmp.gt.f32.partialorder %v3724, 0.0
        %vm4247 = vcmp.gt.f32.partialorder %v3864, 0.0
        %vm4248 = vcmp.gt.f32.partialorder %v3992, 0.0
        %vm4249 = vcmp.gt.f32.partialorder %v4120, 0.0
        %vm4250 = vcmp.gt.f32.partialorder %v3729, 0.0
        %vm4251 = vcmp.gt.f32.partialorder %v3868, 0.0
        %vm4252 = vcmp.gt.f32.partialorder %v3996, 0.0
        %vm4253 = vcmp.gt.f32.partialorder %v4124, 0.0
        %vm4254 = vcmp.gt.f32.partialorder %v3734, 0.0
        %vm4255 = vcmp.gt.f32.partialorder %v3872, 0.0
        %vm4256 = vcmp.gt.f32.partialorder %v4000, 0.0
        %vm4257 = vcmp.gt.f32.partialorder %v4128, 0.0
        %vm4258 = vcmp.gt.f32.partialorder %v3739, 0.0
        %vm4259 = vcmp.gt.f32.partialorder %v3876, 0.0
        %vm4260 = vcmp.gt.f32.partialorder %v4004, 0.0
        %vm4261 = vcmp.gt.f32.partialorder %v4132, 0.0
        %vm4262 = vcmp.gt.f32.partialorder %v3744, 0.0
        %vm4263 = vcmp.gt.f32.partialorder %v3880, 0.0
        %vm4264 = vcmp.gt.f32.partialorder %v4008, 0.0
        %vm4265 = vcmp.gt.f32.partialorder %v4136, 0.0
        %vm4266 = vcmp.gt.f32.partialorder %v3749, 0.0
        %vm4267 = vcmp.gt.f32.partialorder %v3884, 0.0
        %vm4268 = vcmp.gt.f32.partialorder %v4012, 0.0
        %vm4269 = vcmp.gt.f32.partialorder %v4140, 0.0
        %vm4270 = vcmp.gt.f32.partialorder %v3754, 0.0
        %vm4271 = vcmp.gt.f32.partialorder %v3888, 0.0
        %vm4272 = vcmp.gt.f32.partialorder %v4016, 0.0
        %vm4273 = vcmp.gt.f32.partialorder %v4144, 0.0
        %vm4274 = vcmp.gt.f32.partialorder %v3759, 0.0
        %vm4275 = vcmp.gt.f32.partialorder %v3892, 0.0
        %vm4276 = vcmp.gt.f32.partialorder %v4020, 0.0
        %vm4277 = vcmp.gt.f32.partialorder %v4148, 0.0
        %vm4278 = vcmp.gt.f32.partialorder %v3764, 0.0
        %vm4279 = vcmp.gt.f32.partialorder %v3896, 0.0
        %vm4280 = vcmp.gt.f32.partialorder %v4024, 0.0
        %vm4281 = vcmp.gt.f32.partialorder %v4152, 0.0
        %vm4282 = vcmp.gt.f32.partialorder %v3769, 0.0
        %vm4283 = vcmp.gt.f32.partialorder %v3900, 0.0
        %vm4284 = vcmp.gt.f32.partialorder %v4028, 0.0
        %vm4285 = vcmp.gt.f32.partialorder %v4156, 0.0
        %vm4286 = vcmp.gt.f32.partialorder %v3774, 0.0
        %vm4287 = vcmp.gt.f32.partialorder %v3904, 0.0
        %vm4288 = vcmp.gt.f32.partialorder %v4032, 0.0
        %vm4289 = vcmp.gt.f32.partialorder %v4160, 0.0
        %vm4290 = vcmp.gt.f32.partialorder %v3779, 0.0
        %vm4291 = vcmp.gt.f32.partialorder %v3908, 0.0
        %vm4292 = vcmp.gt.f32.partialorder %v4036, 0.0
        %vm4293 = vcmp.gt.f32.partialorder %v4164, 0.0
        %vm4294 = vcmp.gt.f32.partialorder %v3784, 0.0
        %vm4295 = vcmp.gt.f32.partialorder %v3912, 0.0
        %vm4296 = vcmp.gt.f32.partialorder %v4040, 0.0
        %vm4297 = vcmp.gt.f32.partialorder %v4168, 0.0
        %v4298 = vmul.f32 %v3629, %v3498
        %v4299 = vmul.f32 %v3788, %v3499
        %v4300 = vmul.f32 %v3916, %v3500
        %v4301 = vmul.f32 %v4044, %v3501
        %v4302 = vmul.f32 %v3634, %v3502
        %v4303 = vmul.f32 %v3792, %v3503
        %v4304 = vmul.f32 %v3920, %v3504
        %v4305 = vmul.f32 %v4048, %v3505
        %v4306 = vmul.f32 %v3639, %v3506
        %v4307 = vmul.f32 %v3796, %v3507
        %v4308 = vmul.f32 %v3924, %v3508
        %v4309 = vmul.f32 %v4052, %v3509
        %v4310 = vmul.f32 %v3644, %v3510
        %v4311 = vmul.f32 %v3800, %v3511
        %v4312 = vmul.f32 %v3928, %v3512
        %v4313 = vmul.f32 %v4056, %v3513
        %v4314 = vmul.f32 %v3649, %v3514
        %v4315 = vmul.f32 %v3804, %v3515
        %v4316 = vmul.f32 %v3932, %v3516
        %v4317 = vmul.f32 %v4060, %v3517
        %v4318 = vmul.f32 %v3654, %v3518
        %v4319 = vmul.f32 %v3808, %v3519
        %v4320 = vmul.f32 %v3936, %v3520
        %v4321 = vmul.f32 %v4064, %v3521
        %v4322 = vmul.f32 %v3659, %v3522
        %v4323 = vmul.f32 %v3812, %v3523
        %v4324 = vmul.f32 %v3940, %v3524
        %v4325 = vmul.f32 %v4068, %v3525
        %v4326 = vmul.f32 %v3664, %v3526
        %v4327 = vmul.f32 %v3816, %v3527
        %v4328 = vmul.f32 %v3944, %v3528
        %v4329 = vmul.f32 %v4072, %v3529
        %v4330 = vmul.f32 %v3669, %v3530
        %v4331 = vmul.f32 %v3820, %v3531
        %v4332 = vmul.f32 %v3948, %v3532
        %v4333 = vmul.f32 %v4076, %v3533
        %v4334 = vmul.f32 %v3674, %v3534
        %v4335 = vmul.f32 %v3824, %v3535
        %v4336 = vmul.f32 %v3952, %v3536
        %v4337 = vmul.f32 %v4080, %v3537
        %v4338 = vmul.f32 %v3679, %v3538
        %v4339 = vmul.f32 %v3828, %v3539
        %v4340 = vmul.f32 %v3956, %v3540
        %v4341 = vmul.f32 %v4084, %v3541
        %v4342 = vmul.f32 %v3684, %v3542
        %v4343 = vmul.f32 %v3832, %v3543
        %v4344 = vmul.f32 %v3960, %v3544
        %v4345 = vmul.f32 %v4088, %v3545
        %v4346 = vmul.f32 %v3689, %v3546
        %v4347 = vmul.f32 %v3836, %v3547
        %v4348 = vmul.f32 %v3964, %v3548
        %v4349 = vmul.f32 %v4092, %v3549
        %v4350 = vmul.f32 %v3694, %v3550
        %v4351 = vmul.f32 %v3840, %v3551
        %v4352 = vmul.f32 %v3968, %v3552
        %v4353 = vmul.f32 %v4096, %v3553
        %v4354 = vmul.f32 %v3699, %v3554
        %v4355 = vmul.f32 %v3844, %v3555
        %v4356 = vmul.f32 %v3972, %v3556
        %v4357 = vmul.f32 %v4100, %v3557
        %v4358 = vmul.f32 %v3704, %v3558
        %v4359 = vmul.f32 %v3848, %v3559
        %v4360 = vmul.f32 %v3976, %v3560
        %v4361 = vmul.f32 %v4104, %v3561
        %v4362 = vmul.f32 %v3709, %v3562
        %v4363 = vmul.f32 %v3852, %v3563
        %v4364 = vmul.f32 %v3980, %v3564
        %v4365 = vmul.f32 %v4108, %v3565
        %v4366 = vmul.f32 %v3714, %v3566
        %v4367 = vmul.f32 %v3856, %v3567
        %v4368 = vmul.f32 %v3984, %v3568
        %v4369 = vmul.f32 %v4112, %v3569
        %v4370 = vmul.f32 %v3719, %v3570
        %v4371 = vmul.f32 %v3860, %v3571
        %v4372 = vmul.f32 %v3988, %v3572
        %v4373 = vmul.f32 %v4116, %v3573
        %v4374 = vmul.f32 %v3724, %v3574
        %v4375 = vmul.f32 %v3864, %v3575
        %v4376 = vmul.f32 %v3992, %v3576
        %v4377 = vmul.f32 %v4120, %v3577
        %v4378 = vmul.f32 %v3729, %v3578
        %v4379 = vmul.f32 %v3868, %v3579
        %v4380 = vmul.f32 %v3996, %v3580
        %v4381 = vmul.f32 %v4124, %v3581
        %v4382 = vmul.f32 %v3734, %v3582
        %v4383 = vmul.f32 %v3872, %v3583
        %v4384 = vmul.f32 %v4000, %v3584
        %v4385 = vmul.f32 %v4128, %v3585
        %v4386 = vmul.f32 %v3739, %v3586
        %v4387 = vmul.f32 %v3876, %v3587
        %v4388 = vmul.f32 %v4004, %v3588
        %v4389 = vmul.f32 %v4132, %v3589
        %v4390 = vmul.f32 %v3744, %v3590
        %v4391 = vmul.f32 %v3880, %v3591
        %v4392 = vmul.f32 %v4008, %v3592
        %v4393 = vmul.f32 %v4136, %v3593
        %v4394 = vmul.f32 %v3749, %v3594
        %v4395 = vmul.f32 %v3884, %v3595
        %v4396 = vmul.f32 %v4012, %v3596
        %v4397 = vmul.f32 %v4140, %v3597
        %v4398 = vmul.f32 %v3754, %v3598
        %v4399 = vmul.f32 %v3888, %v3599
        %v4400 = vmul.f32 %v4016, %v3600
        %v4401 = vmul.f32 %v4144, %v3601
        %v4402 = vmul.f32 %v3759, %v3602
        %v4403 = vmul.f32 %v3892, %v3603
        %v4404 = vmul.f32 %v4020, %v3604
        %v4405 = vmul.f32 %v4148, %v3605
        %v4406 = vmul.f32 %v3764, %v3606
        %v4407 = vmul.f32 %v3896, %v3607
        %v4408 = vmul.f32 %v4024, %v3608
        %v4409 = vmul.f32 %v4152, %v3609
        %v4410 = vmul.f32 %v3769, %v3610
        %v4411 = vmul.f32 %v3900, %v3611
        %v4412 = vmul.f32 %v4028, %v3612
        %v4413 = vmul.f32 %v4156, %v3613
        %v4414 = vmul.f32 %v3774, %v3614
        %v4415 = vmul.f32 %v3904, %v3615
        %v4416 = vmul.f32 %v4032, %v3616
        %v4417 = vmul.f32 %v4160, %v3617
        %v4418 = vmul.f32 %v3779, %v3618
        %v4419 = vmul.f32 %v3908, %v3619
        %v4420 = vmul.f32 %v4036, %v3620
        %v4421 = vmul.f32 %v4164, %v3621
        %v4422 = vmul.f32 %v3784, %v3622
        %v4423 = vmul.f32 %v3912, %v3623
        %v4424 = vmul.f32 %v4040, %v3624
        %v4425 = vmul.f32 %v4168, %v3625
        %v4426 = vsel %vm4170, %v4298, 0.0
        %v4427 = vsel %vm4171, %v4299, 0.0
        %v4428 = vsel %vm4172, %v4300, 0.0
        %v4429 = vsel %vm4173, %v4301, 0.0
        %v4430 = vsel %vm4174, %v4302, 0.0
        %v4431 = vsel %vm4175, %v4303, 0.0
        %v4432 = vsel %vm4176, %v4304, 0.0
        %v4433 = vsel %vm4177, %v4305, 0.0
        %v4434 = vsel %vm4178, %v4306, 0.0
        %v4435 = vsel %vm4179, %v4307, 0.0
        %v4436 = vsel %vm4180, %v4308, 0.0
        %v4437 = vsel %vm4181, %v4309, 0.0
        %v4438 = vsel %vm4182, %v4310, 0.0
        %v4439 = vsel %vm4183, %v4311, 0.0
        %v4440 = vsel %vm4184, %v4312, 0.0
        %v4441 = vsel %vm4185, %v4313, 0.0
        %v4442 = vsel %vm4186, %v4314, 0.0
        %v4443 = vsel %vm4187, %v4315, 0.0
        %v4444 = vsel %vm4188, %v4316, 0.0
        %v4445 = vsel %vm4189, %v4317, 0.0
        %v4446 = vsel %vm4190, %v4318, 0.0
        %v4447 = vsel %vm4191, %v4319, 0.0
        %v4448 = vsel %vm4192, %v4320, 0.0
        %v4449 = vsel %vm4193, %v4321, 0.0
        %v4450 = vsel %vm4194, %v4322, 0.0
        %v4451 = vsel %vm4195, %v4323, 0.0
        %v4452 = vsel %vm4196, %v4324, 0.0
        %v4453 = vsel %vm4197, %v4325, 0.0
        %v4454 = vsel %vm4198, %v4326, 0.0
        %v4455 = vsel %vm4199, %v4327, 0.0
        %v4456 = vsel %vm4200, %v4328, 0.0
        %v4457 = vsel %vm4201, %v4329, 0.0
        %v4458 = vsel %vm4202, %v4330, 0.0
        %v4459 = vsel %vm4203, %v4331, 0.0
        %v4460 = vsel %vm4204, %v4332, 0.0
        %v4461 = vsel %vm4205, %v4333, 0.0
        %v4462 = vsel %vm4206, %v4334, 0.0
        %v4463 = vsel %vm4207, %v4335, 0.0
        %v4464 = vsel %vm4208, %v4336, 0.0
        %v4465 = vsel %vm4209, %v4337, 0.0
        %v4466 = vsel %vm4210, %v4338, 0.0
        %v4467 = vsel %vm4211, %v4339, 0.0
        %v4468 = vsel %vm4212, %v4340, 0.0
        %v4469 = vsel %vm4213, %v4341, 0.0
        %v4470 = vsel %vm4214, %v4342, 0.0
        %v4471 = vsel %vm4215, %v4343, 0.0
        %v4472 = vsel %vm4216, %v4344, 0.0
        %v4473 = vsel %vm4217, %v4345, 0.0
        %v4474 = vsel %vm4218, %v4346, 0.0
        %v4475 = vsel %vm4219, %v4347, 0.0
        %v4476 = vsel %vm4220, %v4348, 0.0
        %v4477 = vsel %vm4221, %v4349, 0.0
        %v4478 = vsel %vm4222, %v4350, 0.0
        %v4479 = vsel %vm4223, %v4351, 0.0
        %v4480 = vsel %vm4224, %v4352, 0.0
        %v4481 = vsel %vm4225, %v4353, 0.0
        %v4482 = vsel %vm4226, %v4354, 0.0
        %v4483 = vsel %vm4227, %v4355, 0.0
        %v4484 = vsel %vm4228, %v4356, 0.0
        %v4485 = vsel %vm4229, %v4357, 0.0
        %v4486 = vsel %vm4230, %v4358, 0.0
        %v4487 = vsel %vm4231, %v4359, 0.0
        %v4488 = vsel %vm4232, %v4360, 0.0
        %v4489 = vsel %vm4233, %v4361, 0.0
        %v4490 = vsel %vm4234, %v4362, 0.0
        %v4491 = vsel %vm4235, %v4363, 0.0
        %v4492 = vsel %vm4236, %v4364, 0.0
        %v4493 = vsel %vm4237, %v4365, 0.0
        %v4494 = vsel %vm4238, %v4366, 0.0
        %v4495 = vsel %vm4239, %v4367, 0.0
        %v4496 = vsel %vm4240, %v4368, 0.0
        %v4497 = vsel %vm4241, %v4369, 0.0
        %v4498 = vsel %vm4242, %v4370, 0.0
        %v4499 = vsel %vm4243, %v4371, 0.0
        %v4500 = vsel %vm4244, %v4372, 0.0
        %v4501 = vsel %vm4245, %v4373, 0.0
        %v4502 = vsel %vm4246, %v4374, 0.0
        %v4503 = vsel %vm4247, %v4375, 0.0
        %v4504 = vsel %vm4248, %v4376, 0.0
        %v4505 = vsel %vm4249, %v4377, 0.0
        %v4506 = vsel %vm4250, %v4378, 0.0
        %v4507 = vsel %vm4251, %v4379, 0.0
        %v4508 = vsel %vm4252, %v4380, 0.0
        %v4509 = vsel %vm4253, %v4381, 0.0
        %v4510 = vsel %vm4254, %v4382, 0.0
        %v4511 = vsel %vm4255, %v4383, 0.0
        %v4512 = vsel %vm4256, %v4384, 0.0
        %v4513 = vsel %vm4257, %v4385, 0.0
        %v4514 = vsel %vm4258, %v4386, 0.0
        %v4515 = vsel %vm4259, %v4387, 0.0
        %v4516 = vsel %vm4260, %v4388, 0.0
        %v4517 = vsel %vm4261, %v4389, 0.0
        %v4518 = vsel %vm4262, %v4390, 0.0
        %v4519 = vsel %vm4263, %v4391, 0.0
        %v4520 = vsel %vm4264, %v4392, 0.0
        %v4521 = vsel %vm4265, %v4393, 0.0
        %v4522 = vsel %vm4266, %v4394, 0.0
        %v4523 = vsel %vm4267, %v4395, 0.0
        %v4524 = vsel %vm4268, %v4396, 0.0
        %v4525 = vsel %vm4269, %v4397, 0.0
        %v4526 = vsel %vm4270, %v4398, 0.0
        %v4527 = vsel %vm4271, %v4399, 0.0
        %v4528 = vsel %vm4272, %v4400, 0.0
        %v4529 = vsel %vm4273, %v4401, 0.0
        %v4530 = vsel %vm4274, %v4402, 0.0
        %v4531 = vsel %vm4275, %v4403, 0.0
        %v4532 = vsel %vm4276, %v4404, 0.0
        %v4533 = vsel %vm4277, %v4405, 0.0
        %v4534 = vsel %vm4278, %v4406, 0.0
        %v4535 = vsel %vm4279, %v4407, 0.0
        %v4536 = vsel %vm4280, %v4408, 0.0
        %v4537 = vsel %vm4281, %v4409, 0.0
        %v4538 = vsel %vm4282, %v4410, 0.0
        %v4539 = vsel %vm4283, %v4411, 0.0
        %v4540 = vsel %vm4284, %v4412, 0.0
        %v4541 = vsel %vm4285, %v4413, 0.0
        %v4542 = vsel %vm4286, %v4414, 0.0
        %v4543 = vsel %vm4287, %v4415, 0.0
        %v4544 = vsel %vm4288, %v4416, 0.0
        %v4545 = vsel %vm4289, %v4417, 0.0
        %v4546 = vsel %vm4290, %v4418, 0.0
        %v4547 = vsel %vm4291, %v4419, 0.0
        %v4548 = vsel %vm4292, %v4420, 0.0
        %v4549 = vsel %vm4293, %v4421, 0.0
        %v4550 = vsel %vm4294, %v4422, 0.0
        %v4551 = vsel %vm4295, %v4423, 0.0
        %v4552 = vsel %vm4296, %v4424, 0.0
        %v4553 = vsel %vm4297, %v4425, 0.0
        %v4554 = vpack.c.bf16 %v4430, %v4426
        %v4555 = vpack.c.bf16 %v4431, %v4427
        %v4556 = vpack.c.bf16 %v4432, %v4428
        %v4557 = vpack.c.bf16 %v4433, %v4429
        %v4558 = vpack.c.bf16 %v4438, %v4434
        %v4559 = vpack.c.bf16 %v4439, %v4435
        %v4560 = vpack.c.bf16 %v4440, %v4436
        %v4561 = vpack.c.bf16 %v4441, %v4437
        %v4562 = vpack.c.bf16 %v4446, %v4442
        %v4563 = vpack.c.bf16 %v4447, %v4443
        %v4564 = vpack.c.bf16 %v4448, %v4444
        %v4565 = vpack.c.bf16 %v4449, %v4445
        %v4566 = vpack.c.bf16 %v4454, %v4450
        %v4567 = vpack.c.bf16 %v4455, %v4451
        %v4568 = vpack.c.bf16 %v4456, %v4452
        %v4569 = vpack.c.bf16 %v4457, %v4453
        %v4570 = vpack.c.bf16 %v4462, %v4458
        %v4571 = vpack.c.bf16 %v4463, %v4459
        %v4572 = vpack.c.bf16 %v4464, %v4460
        %v4573 = vpack.c.bf16 %v4465, %v4461
        %v4574 = vpack.c.bf16 %v4470, %v4466
        %v4575 = vpack.c.bf16 %v4471, %v4467
        %v4576 = vpack.c.bf16 %v4472, %v4468
        %v4577 = vpack.c.bf16 %v4473, %v4469
        %v4578 = vpack.c.bf16 %v4478, %v4474
        %v4579 = vpack.c.bf16 %v4479, %v4475
        %v4580 = vpack.c.bf16 %v4480, %v4476
        %v4581 = vpack.c.bf16 %v4481, %v4477
        %v4582 = vpack.c.bf16 %v4486, %v4482
        %v4583 = vpack.c.bf16 %v4487, %v4483
        %v4584 = vpack.c.bf16 %v4488, %v4484
        %v4585 = vpack.c.bf16 %v4489, %v4485
        %v4586 = vpack.c.bf16 %v4494, %v4490
        %v4587 = vpack.c.bf16 %v4495, %v4491
        %v4588 = vpack.c.bf16 %v4496, %v4492
        %v4589 = vpack.c.bf16 %v4497, %v4493
        %v4590 = vpack.c.bf16 %v4502, %v4498
        %v4591 = vpack.c.bf16 %v4503, %v4499
        %v4592 = vpack.c.bf16 %v4504, %v4500
        %v4593 = vpack.c.bf16 %v4505, %v4501
        %v4594 = vpack.c.bf16 %v4510, %v4506
        %v4595 = vpack.c.bf16 %v4511, %v4507
        %v4596 = vpack.c.bf16 %v4512, %v4508
        %v4597 = vpack.c.bf16 %v4513, %v4509
        %v4598 = vpack.c.bf16 %v4518, %v4514
        %v4599 = vpack.c.bf16 %v4519, %v4515
        %v4600 = vpack.c.bf16 %v4520, %v4516
        %v4601 = vpack.c.bf16 %v4521, %v4517
        %v4602 = vpack.c.bf16 %v4526, %v4522
        %v4603 = vpack.c.bf16 %v4527, %v4523
        %v4604 = vpack.c.bf16 %v4528, %v4524
        %v4605 = vpack.c.bf16 %v4529, %v4525
        %v4606 = vpack.c.bf16 %v4534, %v4530
        %v4607 = vpack.c.bf16 %v4535, %v4531
        %v4608 = vpack.c.bf16 %v4536, %v4532
        %v4609 = vpack.c.bf16 %v4537, %v4533
        %v4610 = vpack.c.bf16 %v4542, %v4538
        %v4611 = vpack.c.bf16 %v4543, %v4539
        %v4612 = vpack.c.bf16 %v4544, %v4540
        %v4613 = vpack.c.bf16 %v4545, %v4541
        %v4614 = vpack.c.bf16 %v4550, %v4546
        %v4615 = vpack.c.bf16 %v4551, %v4547
        %v4616 = vpack.c.bf16 %v4552, %v4548
        %v4617 = vpack.c.bf16 %v4553, %v4549
        %v4618 = vld [vmem:[#allocation10] sm:$0xf]
        %v4619 = vld [vmem:[#allocation10 + $0x4] sm:$0xf]
        %v4620 = vld [vmem:[#allocation10 + $0x8] sm:$0xf]
        %v4621 = vld [vmem:[#allocation10 + $0xc] sm:$0xf]
        %v4622 = vld [vmem:[#allocation10 + $0x10] sm:$0xf]
        %v4623 = vld [vmem:[#allocation10 + $0x14] sm:$0xf]
        %v4624 = vld [vmem:[#allocation10 + $0x18] sm:$0xf]
        %v4625 = vld [vmem:[#allocation10 + $0x1c] sm:$0xf]
        %v4626 = vld [vmem:[#allocation10 + $0x20] sm:$0xf]
        %v4627 = vld [vmem:[#allocation10 + $0x24] sm:$0xf]
        %v4628 = vld [vmem:[#allocation10 + $0x28] sm:$0xf]
        %v4629 = vld [vmem:[#allocation10 + $0x2c] sm:$0xf]
        %v4630 = vld [vmem:[#allocation10 + $0x30] sm:$0xf]
        %v4631 = vld [vmem:[#allocation10 + $0x34] sm:$0xf]
        %v4632 = vld [vmem:[#allocation10 + $0x38] sm:$0xf]
        %v4633 = vld [vmem:[#allocation10 + $0x3c] sm:$0xf]
        %v4634 = vld [vmem:[#allocation10 + $0x40] sm:$0xf]
        %v4635 = vld [vmem:[#allocation10 + $0x44] sm:$0xf]
        %v4636 = vld [vmem:[#allocation10 + $0x48] sm:$0xf]
        %v4637 = vld [vmem:[#allocation10 + $0x4c] sm:$0xf]
        %v4638 = vld [vmem:[#allocation10 + $0x50] sm:$0xf]
        %v4639 = vld [vmem:[#allocation10 + $0x54] sm:$0xf]
        %v4640 = vld [vmem:[#allocation10 + $0x58] sm:$0xf]
        %v4641 = vld [vmem:[#allocation10 + $0x5c] sm:$0xf]
        %v4642 = vld [vmem:[#allocation10 + $0x60] sm:$0xf]
        %v4643 = vld [vmem:[#allocation10 + $0x64] sm:$0xf]
        %v4644 = vld [vmem:[#allocation10 + $0x68] sm:$0xf]
        %v4645 = vld [vmem:[#allocation10 + $0x6c] sm:$0xf]
        %v4646 = vld [vmem:[#allocation10 + $0x70] sm:$0xf]
        %v4647 = vld [vmem:[#allocation10 + $0x74] sm:$0xf]
        %v4648 = vld [vmem:[#allocation10 + $0x78] sm:$0xf]
        %v4649 = vld [vmem:[#allocation10 + $0x7c] sm:$0xf]
        %v4650 = vld [vmem:[#allocation10 + $0x80] sm:$0xf]
        %v4651 = vld [vmem:[#allocation10 + $0x84] sm:$0xf]
        %v4652 = vld [vmem:[#allocation10 + $0x88] sm:$0xf]
        %v4653 = vld [vmem:[#allocation10 + $0x8c] sm:$0xf]
        %v4654 = vld [vmem:[#allocation10 + $0x90] sm:$0xf]
        %v4655 = vld [vmem:[#allocation10 + $0x94] sm:$0xf]
        %v4656 = vld [vmem:[#allocation10 + $0x98] sm:$0xf]
        %v4657 = vld [vmem:[#allocation10 + $0x9c] sm:$0xf]
        %v4658 = vld [vmem:[#allocation10 + $0xa0] sm:$0xf]
        %v4659 = vld [vmem:[#allocation10 + $0xa4] sm:$0xf]
        %v4660 = vld [vmem:[#allocation10 + $0xa8] sm:$0xf]
        %v4661 = vld [vmem:[#allocation10 + $0xac] sm:$0xf]
        %v4662 = vld [vmem:[#allocation10 + $0xb0] sm:$0xf]
        %v4663 = vld [vmem:[#allocation10 + $0xb4] sm:$0xf]
        %v4664 = vld [vmem:[#allocation10 + $0xb8] sm:$0xf]
        %v4665 = vld [vmem:[#allocation10 + $0xbc] sm:$0xf]
        %v4666 = vld [vmem:[#allocation10 + $0xc0] sm:$0xf]
        %v4667 = vld [vmem:[#allocation10 + $0xc4] sm:$0xf]
        %v4668 = vld [vmem:[#allocation10 + $0xc8] sm:$0xf]
        %v4669 = vld [vmem:[#allocation10 + $0xcc] sm:$0xf]
        %v4670 = vld [vmem:[#allocation10 + $0xd0] sm:$0xf]
        %v4671 = vld [vmem:[#allocation10 + $0xd4] sm:$0xf]
        %v4672 = vld [vmem:[#allocation10 + $0xd8] sm:$0xf]
        %v4673 = vld [vmem:[#allocation10 + $0xdc] sm:$0xf]
        %v4674 = vld [vmem:[#allocation10 + $0xe0] sm:$0xf]
        %v4675 = vld [vmem:[#allocation10 + $0xe4] sm:$0xf]
        %v4676 = vld [vmem:[#allocation10 + $0xe8] sm:$0xf]
        %v4677 = vld [vmem:[#allocation10 + $0xec] sm:$0xf]
        %v4678 = vld [vmem:[#allocation10 + $0xf0] sm:$0xf]
        %v4679 = vld [vmem:[#allocation10 + $0xf4] sm:$0xf]
        %v4680 = vld [vmem:[#allocation10 + $0xf8] sm:$0xf]
        %v4681 = vld [vmem:[#allocation10 + $0xfc] sm:$0xf]
        %v4682 = vld [vmem:[#allocation11] sm:$0xf]
        %v4683 = vperm.slane %v4682, 0
        %v4684 = vmul.f32 %v3629, %v4683
        %v4685 = vmul.f32 %v3634, %v4683
        %v4686 = vmul.f32 %v3639, %v4683
        %v4687 = vmul.f32 %v3644, %v4683
        %v4688 = vmul.f32 %v3649, %v4683
        %v4689 = vmul.f32 %v3654, %v4683
        %v4690 = vmul.f32 %v3659, %v4683
        %v4691 = vmul.f32 %v3664, %v4683
        %v4692 = vmul.f32 %v3669, %v4683
        %v4693 = vmul.f32 %v3674, %v4683
        %v4694 = vmul.f32 %v3679, %v4683
        %v4695 = vmul.f32 %v3684, %v4683
        %v4696 = vmul.f32 %v3689, %v4683
        %v4697 = vmul.f32 %v3694, %v4683
        %v4698 = vmul.f32 %v3699, %v4683
        %v4699 = vmul.f32 %v3704, %v4683
        %v4700 = vmul.f32 %v3709, %v4683
        %v4701 = vmul.f32 %v3714, %v4683
        %v4702 = vmul.f32 %v3719, %v4683
        %v4703 = vmul.f32 %v3724, %v4683
        %v4704 = vmul.f32 %v3729, %v4683
        %v4705 = vmul.f32 %v3734, %v4683
        %v4706 = vmul.f32 %v3739, %v4683
        %v4707 = vmul.f32 %v3744, %v4683
        %v4708 = vmul.f32 %v3749, %v4683
        %v4709 = vmul.f32 %v3754, %v4683
        %v4710 = vmul.f32 %v3759, %v4683
        %v4711 = vmul.f32 %v3764, %v4683
        %v4712 = vmul.f32 %v3769, %v4683
        %v4713 = vmul.f32 %v3774, %v4683
        %v4714 = vmul.f32 %v3779, %v4683
        %v4715 = vmul.f32 %v3784, %v4683
        %v4780 = vunpack.c.l.b16 %v4618
        %v4781 = vunpack.c.l.b16 %v4619
        %v4782 = vunpack.c.l.b16 %v4620
        %v4783 = vunpack.c.l.b16 %v4621
        %v4784 = vunpack.c.l.b16 %v4622
        %v4785 = vunpack.c.l.b16 %v4623
        %v4786 = vunpack.c.l.b16 %v4624
        %v4787 = vunpack.c.l.b16 %v4625
        %v4788 = vunpack.c.l.b16 %v4626
        %v4789 = vunpack.c.l.b16 %v4627
        %v4790 = vunpack.c.l.b16 %v4628
        %v4791 = vunpack.c.l.b16 %v4629
        %v4792 = vunpack.c.l.b16 %v4630
        %v4793 = vunpack.c.l.b16 %v4631
        %v4794 = vunpack.c.l.b16 %v4632
        %v4795 = vunpack.c.l.b16 %v4633
        %v4796 = vunpack.c.l.b16 %v4634
        %v4797 = vunpack.c.l.b16 %v4635
        %v4798 = vunpack.c.l.b16 %v4636
        %v4799 = vunpack.c.l.b16 %v4637
        %v4800 = vunpack.c.l.b16 %v4638
        %v4801 = vunpack.c.l.b16 %v4639
        %v4802 = vunpack.c.l.b16 %v4640
        %v4803 = vunpack.c.l.b16 %v4641
        %v4804 = vunpack.c.l.b16 %v4642
        %v4805 = vunpack.c.l.b16 %v4643
        %v4806 = vunpack.c.l.b16 %v4644
        %v4807 = vunpack.c.l.b16 %v4645
        %v4808 = vunpack.c.l.b16 %v4646
        %v4809 = vunpack.c.l.b16 %v4647
        %v4810 = vunpack.c.l.b16 %v4648
        %v4811 = vunpack.c.l.b16 %v4649
        %v4812 = vunpack.c.l.b16 %v4650
        %v4813 = vunpack.c.l.b16 %v4651
        %v4814 = vunpack.c.l.b16 %v4652
        %v4815 = vunpack.c.l.b16 %v4653
        %v4816 = vunpack.c.l.b16 %v4654
        %v4817 = vunpack.c.l.b16 %v4655
        %v4818 = vunpack.c.l.b16 %v4656
        %v4819 = vunpack.c.l.b16 %v4657
        %v4820 = vunpack.c.l.b16 %v4658
        %v4821 = vunpack.c.l.b16 %v4659
        %v4822 = vunpack.c.l.b16 %v4660
        %v4823 = vunpack.c.l.b16 %v4661
        %v4824 = vunpack.c.l.b16 %v4662
        %v4825 = vunpack.c.l.b16 %v4663
        %v4826 = vunpack.c.l.b16 %v4664
        %v4827 = vunpack.c.l.b16 %v4665
        %v4828 = vunpack.c.l.b16 %v4666
        %v4829 = vunpack.c.l.b16 %v4667
        %v4830 = vunpack.c.l.b16 %v4668
        %v4831 = vunpack.c.l.b16 %v4669
        %v4832 = vunpack.c.l.b16 %v4670
        %v4833 = vunpack.c.l.b16 %v4671
        %v4834 = vunpack.c.l.b16 %v4672
        %v4835 = vunpack.c.l.b16 %v4673
        %v4836 = vunpack.c.l.b16 %v4674
        %v4837 = vunpack.c.l.b16 %v4675
        %v4838 = vunpack.c.l.b16 %v4676
        %v4839 = vunpack.c.l.b16 %v4677
        %v4840 = vunpack.c.l.b16 %v4678
        %v4841 = vunpack.c.l.b16 %v4679
        %v4842 = vunpack.c.l.b16 %v4680
        %v4843 = vunpack.c.l.b16 %v4681
        %v4844 = vpack.c.b16 %v4781, %v4780
        %v4845 = vpack.c.b16 %v4783, %v4782
        %v4846 = vpack.c.b16 %v4785, %v4784
        %v4847 = vpack.c.b16 %v4787, %v4786
        %v4848 = vpack.c.b16 %v4789, %v4788
        %v4849 = vpack.c.b16 %v4791, %v4790
        %v4850 = vpack.c.b16 %v4793, %v4792
        %v4851 = vpack.c.b16 %v4795, %v4794
        %v4852 = vpack.c.b16 %v4797, %v4796
        %v4853 = vpack.c.b16 %v4799, %v4798
        %v4854 = vpack.c.b16 %v4801, %v4800
        %v4855 = vpack.c.b16 %v4803, %v4802
        %v4856 = vpack.c.b16 %v4805, %v4804
        %v4857 = vpack.c.b16 %v4807, %v4806
        %v4858 = vpack.c.b16 %v4809, %v4808
        %v4859 = vpack.c.b16 %v4811, %v4810
        %v4860 = vpack.c.b16 %v4813, %v4812
        %v4861 = vpack.c.b16 %v4815, %v4814
        %v4862 = vpack.c.b16 %v4817, %v4816
        %v4863 = vpack.c.b16 %v4819, %v4818
        %v4864 = vpack.c.b16 %v4821, %v4820
        %v4865 = vpack.c.b16 %v4823, %v4822
        %v4866 = vpack.c.b16 %v4825, %v4824
        %v4867 = vpack.c.b16 %v4827, %v4826
        %v4868 = vpack.c.b16 %v4829, %v4828
        %v4869 = vpack.c.b16 %v4831, %v4830
        %v4870 = vpack.c.b16 %v4833, %v4832
        %v4871 = vpack.c.b16 %v4835, %v4834
        %v4872 = vpack.c.b16 %v4837, %v4836
        %v4873 = vpack.c.b16 %v4839, %v4838
        %v4874 = vpack.c.b16 %v4841, %v4840
        %v4875 = vpack.c.b16 %v4843, %v4842
        %4908 = vmatpush.bf16.msra.mxu0 %v4851
        %4909 = vmatpush.bf16.msra.mxu0 %v4850
        %4910 = vmatpush.bf16.msra.mxu0 %v4849
        %4911 = vmatpush.bf16.msra.mxu0 %v4848
        %4912 = vmatpush.bf16.msra.mxu0 %v4847
        %4913 = vmatpush.bf16.msra.mxu0 %v4846
        %4914 = vmatpush.bf16.msra.mxu0 %v4845
        %4915 = vmatpush.bf16.msra.mxu0 %v4844
        %4916 = vmatmul.bf16.gmra.mxu0 %v4554
        %v4917 = vpop.f32.mrf.mxu0
        %v4918 = vadd.f32 %v4684, %v4917
        %v4919 = vpop.f32.mrf.mxu0
        %v4920 = vadd.f32 %v4685, %v4919
        %4921 = vmatmul.bf16.gmra.mxu0 %v4558
        %v4922 = vpop.f32.mrf.mxu0
        %v4923 = vadd.f32 %v4686, %v4922
        %v4924 = vpop.f32.mrf.mxu0
        %v4925 = vadd.f32 %v4687, %v4924
        %4926 = vmatmul.bf16.gmra.mxu0 %v4562
        %v4927 = vpop.f32.mrf.mxu0
        %v4928 = vadd.f32 %v4688, %v4927
        %v4929 = vpop.f32.mrf.mxu0
        %v4930 = vadd.f32 %v4689, %v4929
        %4931 = vmatmul.bf16.gmra.mxu0 %v4566
        %v4932 = vpop.f32.mrf.mxu0
        %v4933 = vadd.f32 %v4690, %v4932
        %v4934 = vpop.f32.mrf.mxu0
        %v4935 = vadd.f32 %v4691, %v4934
        %4936 = vmatmul.bf16.gmra.mxu0 %v4570
        %v4937 = vpop.f32.mrf.mxu0
        %v4938 = vadd.f32 %v4692, %v4937
        %v4939 = vpop.f32.mrf.mxu0
        %v4940 = vadd.f32 %v4693, %v4939
        %4941 = vmatmul.bf16.gmra.mxu0 %v4574
        %v4942 = vpop.f32.mrf.mxu0
        %v4943 = vadd.f32 %v4694, %v4942
        %v4944 = vpop.f32.mrf.mxu0
        %v4945 = vadd.f32 %v4695, %v4944
        %4946 = vmatmul.bf16.gmra.mxu0 %v4578
        %v4947 = vpop.f32.mrf.mxu0
        %v4948 = vadd.f32 %v4696, %v4947
        %v4949 = vpop.f32.mrf.mxu0
        %v4950 = vadd.f32 %v4697, %v4949
        %4951 = vmatmul.bf16.gmra.mxu0 %v4582
        %v4952 = vpop.f32.mrf.mxu0
        %v4953 = vadd.f32 %v4698, %v4952
        %v4954 = vpop.f32.mrf.mxu0
        %v4955 = vadd.f32 %v4699, %v4954
        %4956 = vmatmul.bf16.gmra.mxu0 %v4586
        %v4957 = vpop.f32.mrf.mxu0
        %v4958 = vadd.f32 %v4700, %v4957
        %v4959 = vpop.f32.mrf.mxu0
        %v4960 = vadd.f32 %v4701, %v4959
        %4961 = vmatmul.bf16.gmra.mxu0 %v4590
        %v4962 = vpop.f32.mrf.mxu0
        %v4963 = vadd.f32 %v4702, %v4962
        %v4964 = vpop.f32.mrf.mxu0
        %v4965 = vadd.f32 %v4703, %v4964
        %4966 = vmatmul.bf16.gmra.mxu0 %v4594
        %v4967 = vpop.f32.mrf.mxu0
        %v4968 = vadd.f32 %v4704, %v4967
        %v4969 = vpop.f32.mrf.mxu0
        %v4970 = vadd.f32 %v4705, %v4969
        %4971 = vmatmul.bf16.gmra.mxu0 %v4598
        %v4972 = vpop.f32.mrf.mxu0
        %v4973 = vadd.f32 %v4706, %v4972
        %v4974 = vpop.f32.mrf.mxu0
        %v4975 = vadd.f32 %v4707, %v4974
        %4976 = vmatmul.bf16.gmra.mxu0 %v4602
        %v4977 = vpop.f32.mrf.mxu0
        %v4978 = vadd.f32 %v4708, %v4977
        %v4979 = vpop.f32.mrf.mxu0
        %v4980 = vadd.f32 %v4709, %v4979
        %4981 = vmatmul.bf16.gmra.mxu0 %v4606
        %v4982 = vpop.f32.mrf.mxu0
        %v4983 = vadd.f32 %v4710, %v4982
        %v4984 = vpop.f32.mrf.mxu0
        %v4985 = vadd.f32 %v4711, %v4984
        %4986 = vmatmul.bf16.gmra.mxu0 %v4610
        %v4987 = vpop.f32.mrf.mxu0
        %v4988 = vadd.f32 %v4712, %v4987
        %v4989 = vpop.f32.mrf.mxu0
        %v4990 = vadd.f32 %v4713, %v4989
        %4991 = vmatmul.bf16.gmra.mxu0 %v4614
        %v4992 = vpop.f32.mrf.mxu0
        %v4993 = vadd.f32 %v4714, %v4992
        %v4994 = vpop.f32.mrf.mxu0
        %v4995 = vadd.f32 %v4715, %v4994
        %4996 = vdwg.mxu0
        %4997 = vmatpush.bf16.msra.mxu0 %v4859
        %4998 = vmatpush.bf16.msra.mxu0 %v4858
        %4999 = vmatpush.bf16.msra.mxu0 %v4857
        %5000 = vmatpush.bf16.msra.mxu0 %v4856
        %5001 = vmatpush.bf16.msra.mxu0 %v4855
        %5002 = vmatpush.bf16.msra.mxu0 %v4854
        %5003 = vmatpush.bf16.msra.mxu0 %v4853
        %5004 = vmatpush.bf16.msra.mxu0 %v4852
        %5005 = vmatmul.bf16.gmra.mxu0 %v4555
        %v5006 = vpop.f32.mrf.mxu0
        %v5007 = vadd.f32 %v4918, %v5006
        %v5008 = vpop.f32.mrf.mxu0
        %v5009 = vadd.f32 %v4920, %v5008
        %5010 = vmatmul.bf16.gmra.mxu0 %v4559
        %v5011 = vpop.f32.mrf.mxu0
        %v5012 = vadd.f32 %v4923, %v5011
        %v5013 = vpop.f32.mrf.mxu0
        %v5014 = vadd.f32 %v4925, %v5013
        %5015 = vmatmul.bf16.gmra.mxu0 %v4563
        %v5016 = vpop.f32.mrf.mxu0
        %v5017 = vadd.f32 %v4928, %v5016
        %v5018 = vpop.f32.mrf.mxu0
        %v5019 = vadd.f32 %v4930, %v5018
        %5020 = vmatmul.bf16.gmra.mxu0 %v4567
        %v5021 = vpop.f32.mrf.mxu0
        %v5022 = vadd.f32 %v4933, %v5021
        %v5023 = vpop.f32.mrf.mxu0
        %v5024 = vadd.f32 %v4935, %v5023
        %5025 = vmatmul.bf16.gmra.mxu0 %v4571
        %v5026 = vpop.f32.mrf.mxu0
        %v5027 = vadd.f32 %v4938, %v5026
        %v5028 = vpop.f32.mrf.mxu0
        %v5029 = vadd.f32 %v4940, %v5028
        %5030 = vmatmul.bf16.gmra.mxu0 %v4575
        %v5031 = vpop.f32.mrf.mxu0
        %v5032 = vadd.f32 %v4943, %v5031
        %v5033 = vpop.f32.mrf.mxu0
        %v5034 = vadd.f32 %v4945, %v5033
        %5035 = vmatmul.bf16.gmra.mxu0 %v4579
        %v5036 = vpop.f32.mrf.mxu0
        %v5037 = vadd.f32 %v4948, %v5036
        %v5038 = vpop.f32.mrf.mxu0
        %v5039 = vadd.f32 %v4950, %v5038
        %5040 = vmatmul.bf16.gmra.mxu0 %v4583
        %v5041 = vpop.f32.mrf.mxu0
        %v5042 = vadd.f32 %v4953, %v5041
        %v5043 = vpop.f32.mrf.mxu0
        %v5044 = vadd.f32 %v4955, %v5043
        %5045 = vmatmul.bf16.gmra.mxu0 %v4587
        %v5046 = vpop.f32.mrf.mxu0
        %v5047 = vadd.f32 %v4958, %v5046
        %v5048 = vpop.f32.mrf.mxu0
        %v5049 = vadd.f32 %v4960, %v5048
        %5050 = vmatmul.bf16.gmra.mxu0 %v4591
        %v5051 = vpop.f32.mrf.mxu0
        %v5052 = vadd.f32 %v4963, %v5051
        %v5053 = vpop.f32.mrf.mxu0
        %v5054 = vadd.f32 %v4965, %v5053
        %5055 = vmatmul.bf16.gmra.mxu0 %v4595
        %v5056 = vpop.f32.mrf.mxu0
        %v5057 = vadd.f32 %v4968, %v5056
        %v5058 = vpop.f32.mrf.mxu0
        %v5059 = vadd.f32 %v4970, %v5058
        %5060 = vmatmul.bf16.gmra.mxu0 %v4599
        %v5061 = vpop.f32.mrf.mxu0
        %v5062 = vadd.f32 %v4973, %v5061
        %v5063 = vpop.f32.mrf.mxu0
        %v5064 = vadd.f32 %v4975, %v5063
        %5065 = vmatmul.bf16.gmra.mxu0 %v4603
        %v5066 = vpop.f32.mrf.mxu0
        %v5067 = vadd.f32 %v4978, %v5066
        %v5068 = vpop.f32.mrf.mxu0
        %v5069 = vadd.f32 %v4980, %v5068
        %5070 = vmatmul.bf16.gmra.mxu0 %v4607
        %v5071 = vpop.f32.mrf.mxu0
        %v5072 = vadd.f32 %v4983, %v5071
        %v5073 = vpop.f32.mrf.mxu0
        %v5074 = vadd.f32 %v4985, %v5073
        %5075 = vmatmul.bf16.gmra.mxu0 %v4611
        %v5076 = vpop.f32.mrf.mxu0
        %v5077 = vadd.f32 %v4988, %v5076
        %v5078 = vpop.f32.mrf.mxu0
        %v5079 = vadd.f32 %v4990, %v5078
        %5080 = vmatmul.bf16.gmra.mxu0 %v4615
        %v5081 = vpop.f32.mrf.mxu0
        %v5082 = vadd.f32 %v4993, %v5081
        %v5083 = vpop.f32.mrf.mxu0
        %v5084 = vadd.f32 %v4995, %v5083
        %5085 = vdwg.mxu0
        %5086 = vmatpush.bf16.msra.mxu0 %v4867
        %5087 = vmatpush.bf16.msra.mxu0 %v4866
        %5088 = vmatpush.bf16.msra.mxu0 %v4865
        %5089 = vmatpush.bf16.msra.mxu0 %v4864
        %5090 = vmatpush.bf16.msra.mxu0 %v4863
        %5091 = vmatpush.bf16.msra.mxu0 %v4862
        %5092 = vmatpush.bf16.msra.mxu0 %v4861
        %5093 = vmatpush.bf16.msra.mxu0 %v4860
        %5094 = vmatmul.bf16.gmra.mxu0 %v4556
        %v5095 = vpop.f32.mrf.mxu0
        %v5096 = vadd.f32 %v5007, %v5095
        %v5097 = vpop.f32.mrf.mxu0
        %v5098 = vadd.f32 %v5009, %v5097
        %5099 = vmatmul.bf16.gmra.mxu0 %v4560
        %v5100 = vpop.f32.mrf.mxu0
        %v5101 = vadd.f32 %v5012, %v5100
        %v5102 = vpop.f32.mrf.mxu0
        %v5103 = vadd.f32 %v5014, %v5102
        %5104 = vmatmul.bf16.gmra.mxu0 %v4564
        %v5105 = vpop.f32.mrf.mxu0
        %v5106 = vadd.f32 %v5017, %v5105
        %v5107 = vpop.f32.mrf.mxu0
        %v5108 = vadd.f32 %v5019, %v5107
        %5109 = vmatmul.bf16.gmra.mxu0 %v4568
        %v5110 = vpop.f32.mrf.mxu0
        %v5111 = vadd.f32 %v5022, %v5110
        %v5112 = vpop.f32.mrf.mxu0
        %v5113 = vadd.f32 %v5024, %v5112
        %5114 = vmatmul.bf16.gmra.mxu0 %v4572
        %v5115 = vpop.f32.mrf.mxu0
        %v5116 = vadd.f32 %v5027, %v5115
        %v5117 = vpop.f32.mrf.mxu0
        %v5118 = vadd.f32 %v5029, %v5117
        %5119 = vmatmul.bf16.gmra.mxu0 %v4576
        %v5120 = vpop.f32.mrf.mxu0
        %v5121 = vadd.f32 %v5032, %v5120
        %v5122 = vpop.f32.mrf.mxu0
        %v5123 = vadd.f32 %v5034, %v5122
        %5124 = vmatmul.bf16.gmra.mxu0 %v4580
        %v5125 = vpop.f32.mrf.mxu0
        %v5126 = vadd.f32 %v5037, %v5125
        %v5127 = vpop.f32.mrf.mxu0
        %v5128 = vadd.f32 %v5039, %v5127
        %5129 = vmatmul.bf16.gmra.mxu0 %v4584
        %v5130 = vpop.f32.mrf.mxu0
        %v5131 = vadd.f32 %v5042, %v5130
        %v5132 = vpop.f32.mrf.mxu0
        %v5133 = vadd.f32 %v5044, %v5132
        %5134 = vmatmul.bf16.gmra.mxu0 %v4588
        %v5135 = vpop.f32.mrf.mxu0
        %v5136 = vadd.f32 %v5047, %v5135
        %v5137 = vpop.f32.mrf.mxu0
        %v5138 = vadd.f32 %v5049, %v5137
        %5139 = vmatmul.bf16.gmra.mxu0 %v4592
        %v5140 = vpop.f32.mrf.mxu0
        %v5141 = vadd.f32 %v5052, %v5140
        %v5142 = vpop.f32.mrf.mxu0
        %v5143 = vadd.f32 %v5054, %v5142
        %5144 = vmatmul.bf16.gmra.mxu0 %v4596
        %v5145 = vpop.f32.mrf.mxu0
        %v5146 = vadd.f32 %v5057, %v5145
        %v5147 = vpop.f32.mrf.mxu0
        %v5148 = vadd.f32 %v5059, %v5147
        %5149 = vmatmul.bf16.gmra.mxu0 %v4600
        %v5150 = vpop.f32.mrf.mxu0
        %v5151 = vadd.f32 %v5062, %v5150
        %v5152 = vpop.f32.mrf.mxu0
        %v5153 = vadd.f32 %v5064, %v5152
        %5154 = vmatmul.bf16.gmra.mxu0 %v4604
        %v5155 = vpop.f32.mrf.mxu0
        %v5156 = vadd.f32 %v5067, %v5155
        %v5157 = vpop.f32.mrf.mxu0
        %v5158 = vadd.f32 %v5069, %v5157
        %5159 = vmatmul.bf16.gmra.mxu0 %v4608
        %v5160 = vpop.f32.mrf.mxu0
        %v5161 = vadd.f32 %v5072, %v5160
        %v5162 = vpop.f32.mrf.mxu0
        %v5163 = vadd.f32 %v5074, %v5162
        %5164 = vmatmul.bf16.gmra.mxu0 %v4612
        %v5165 = vpop.f32.mrf.mxu0
        %v5166 = vadd.f32 %v5077, %v5165
        %v5167 = vpop.f32.mrf.mxu0
        %v5168 = vadd.f32 %v5079, %v5167
        %5169 = vmatmul.bf16.gmra.mxu0 %v4616
        %v5170 = vpop.f32.mrf.mxu0
        %v5171 = vadd.f32 %v5082, %v5170
        %v5172 = vpop.f32.mrf.mxu0
        %v5173 = vadd.f32 %v5084, %v5172
        %5174 = vdwg.mxu0
        %5175 = vmatpush.bf16.msra.mxu0 %v4875
        %5176 = vmatpush.bf16.msra.mxu0 %v4874
        %5177 = vmatpush.bf16.msra.mxu0 %v4873
        %5178 = vmatpush.bf16.msra.mxu0 %v4872
        %5179 = vmatpush.bf16.msra.mxu0 %v4871
        %5180 = vmatpush.bf16.msra.mxu0 %v4870
        %5181 = vmatpush.bf16.msra.mxu0 %v4869
        %5182 = vmatpush.bf16.msra.mxu0 %v4868
        %5183 = vmatmul.bf16.gmra.mxu0 %v4557
        %v5184 = vpop.f32.mrf.mxu0
        %v5185 = vadd.f32 %v5096, %v5184
        %v5186 = vpop.f32.mrf.mxu0
        %v5187 = vadd.f32 %v5098, %v5186
        %5188 = vmatmul.bf16.gmra.mxu0 %v4561
        %v5189 = vpop.f32.mrf.mxu0
        %v5190 = vadd.f32 %v5101, %v5189
        %v5191 = vpop.f32.mrf.mxu0
        %v5192 = vadd.f32 %v5103, %v5191
        %5193 = vmatmul.bf16.gmra.mxu0 %v4565
        %v5194 = vpop.f32.mrf.mxu0
        %v5195 = vadd.f32 %v5106, %v5194
        %v5196 = vpop.f32.mrf.mxu0
        %v5197 = vadd.f32 %v5108, %v5196
        %5198 = vmatmul.bf16.gmra.mxu0 %v4569
        %v5199 = vpop.f32.mrf.mxu0
        %v5200 = vadd.f32 %v5111, %v5199
        %v5201 = vpop.f32.mrf.mxu0
        %v5202 = vadd.f32 %v5113, %v5201
        %5203 = vmatmul.bf16.gmra.mxu0 %v4573
        %v5204 = vpop.f32.mrf.mxu0
        %v5205 = vadd.f32 %v5116, %v5204
        %v5206 = vpop.f32.mrf.mxu0
        %v5207 = vadd.f32 %v5118, %v5206
        %5208 = vmatmul.bf16.gmra.mxu0 %v4577
        %v5209 = vpop.f32.mrf.mxu0
        %v5210 = vadd.f32 %v5121, %v5209
        %v5211 = vpop.f32.mrf.mxu0
        %v5212 = vadd.f32 %v5123, %v5211
        %5213 = vmatmul.bf16.gmra.mxu0 %v4581
        %v5214 = vpop.f32.mrf.mxu0
        %v5215 = vadd.f32 %v5126, %v5214
        %v5216 = vpop.f32.mrf.mxu0
        %v5217 = vadd.f32 %v5128, %v5216
        %5218 = vmatmul.bf16.gmra.mxu0 %v4585
        %v5219 = vpop.f32.mrf.mxu0
        %v5220 = vadd.f32 %v5131, %v5219
        %v5221 = vpop.f32.mrf.mxu0
        %v5222 = vadd.f32 %v5133, %v5221
        %5223 = vmatmul.bf16.gmra.mxu0 %v4589
        %v5224 = vpop.f32.mrf.mxu0
        %v5225 = vadd.f32 %v5136, %v5224
        %v5226 = vpop.f32.mrf.mxu0
        %v5227 = vadd.f32 %v5138, %v5226
        %5228 = vmatmul.bf16.gmra.mxu0 %v4593
        %v5229 = vpop.f32.mrf.mxu0
        %v5230 = vadd.f32 %v5141, %v5229
        %v5231 = vpop.f32.mrf.mxu0
        %v5232 = vadd.f32 %v5143, %v5231
        %5233 = vmatmul.bf16.gmra.mxu0 %v4597
        %v5234 = vpop.f32.mrf.mxu0
        %v5235 = vadd.f32 %v5146, %v5234
        %v5236 = vpop.f32.mrf.mxu0
        %v5237 = vadd.f32 %v5148, %v5236
        %5238 = vmatmul.bf16.gmra.mxu0 %v4601
        %v5239 = vpop.f32.mrf.mxu0
        %v5240 = vadd.f32 %v5151, %v5239
        %v5241 = vpop.f32.mrf.mxu0
        %v5242 = vadd.f32 %v5153, %v5241
        %5243 = vmatmul.bf16.gmra.mxu0 %v4605
        %v5244 = vpop.f32.mrf.mxu0
        %v5245 = vadd.f32 %v5156, %v5244
        %v5246 = vpop.f32.mrf.mxu0
        %v5247 = vadd.f32 %v5158, %v5246
        %5248 = vmatmul.bf16.gmra.mxu0 %v4609
        %v5249 = vpop.f32.mrf.mxu0
        %v5250 = vadd.f32 %v5161, %v5249
        %v5251 = vpop.f32.mrf.mxu0
        %v5252 = vadd.f32 %v5163, %v5251
        %5253 = vmatmul.bf16.gmra.mxu0 %v4613
        %v5254 = vpop.f32.mrf.mxu0
        %v5255 = vadd.f32 %v5166, %v5254
        %v5256 = vpop.f32.mrf.mxu0
        %v5257 = vadd.f32 %v5168, %v5256
        %5258 = vmatmul.bf16.gmra.mxu0 %v4617
        %v5259 = vpop.f32.mrf.mxu0
        %v5260 = vadd.f32 %v5171, %v5259
        %v5261 = vpop.f32.mrf.mxu0
        %v5262 = vadd.f32 %v5173, %v5261
        %5263 = vdwg.mxu0
        %v5264 = vperm.slane %v4682, 1
        %v5265 = vmul.f32 %v3788, %v5264
        %v5266 = vmul.f32 %v3792, %v5264
        %v5267 = vmul.f32 %v3796, %v5264
        %v5268 = vmul.f32 %v3800, %v5264
        %v5269 = vmul.f32 %v3804, %v5264
        %v5270 = vmul.f32 %v3808, %v5264
        %v5271 = vmul.f32 %v3812, %v5264
        %v5272 = vmul.f32 %v3816, %v5264
        %v5273 = vmul.f32 %v3820, %v5264
        %v5274 = vmul.f32 %v3824, %v5264
        %v5275 = vmul.f32 %v3828, %v5264
        %v5276 = vmul.f32 %v3832, %v5264
        %v5277 = vmul.f32 %v3836, %v5264
        %v5278 = vmul.f32 %v3840, %v5264
        %v5279 = vmul.f32 %v3844, %v5264
        %v5280 = vmul.f32 %v3848, %v5264
        %v5281 = vmul.f32 %v3852, %v5264
        %v5282 = vmul.f32 %v3856, %v5264
        %v5283 = vmul.f32 %v3860, %v5264
        %v5284 = vmul.f32 %v3864, %v5264
        %v5285 = vmul.f32 %v3868, %v5264
        %v5286 = vmul.f32 %v3872, %v5264
        %v5287 = vmul.f32 %v3876, %v5264
        %v5288 = vmul.f32 %v3880, %v5264
        %v5289 = vmul.f32 %v3884, %v5264
        %v5290 = vmul.f32 %v3888, %v5264
        %v5291 = vmul.f32 %v3892, %v5264
        %v5292 = vmul.f32 %v3896, %v5264
        %v5293 = vmul.f32 %v3900, %v5264
        %v5294 = vmul.f32 %v3904, %v5264
        %v5295 = vmul.f32 %v3908, %v5264
        %v5296 = vmul.f32 %v3912, %v5264
        %v5297 = vadd.f32 %v5185, %v5265
        %v5298 = vadd.f32 %v5187, %v5266
        %v5299 = vadd.f32 %v5190, %v5267
        %v5300 = vadd.f32 %v5192, %v5268
        %v5301 = vadd.f32 %v5195, %v5269
        %v5302 = vadd.f32 %v5197, %v5270
        %v5303 = vadd.f32 %v5200, %v5271
        %v5304 = vadd.f32 %v5202, %v5272
        %v5305 = vadd.f32 %v5205, %v5273
        %v5306 = vadd.f32 %v5207, %v5274
        %v5307 = vadd.f32 %v5210, %v5275
        %v5308 = vadd.f32 %v5212, %v5276
        %v5309 = vadd.f32 %v5215, %v5277
        %v5310 = vadd.f32 %v5217, %v5278
        %v5311 = vadd.f32 %v5220, %v5279
        %v5312 = vadd.f32 %v5222, %v5280
        %v5313 = vadd.f32 %v5225, %v5281
        %v5314 = vadd.f32 %v5227, %v5282
        %v5315 = vadd.f32 %v5230, %v5283
        %v5316 = vadd.f32 %v5232, %v5284
        %v5317 = vadd.f32 %v5235, %v5285
        %v5318 = vadd.f32 %v5237, %v5286
        %v5319 = vadd.f32 %v5240, %v5287
        %v5320 = vadd.f32 %v5242, %v5288
        %v5321 = vadd.f32 %v5245, %v5289
        %v5322 = vadd.f32 %v5247, %v5290
        %v5323 = vadd.f32 %v5250, %v5291
        %v5324 = vadd.f32 %v5252, %v5292
        %v5325 = vadd.f32 %v5255, %v5293
        %v5326 = vadd.f32 %v5257, %v5294
        %v5327 = vadd.f32 %v5260, %v5295
        %v5328 = vadd.f32 %v5262, %v5296
        %v5329 = vperm.slane %v4682, 2
        %v5330 = vmul.f32 %v3916, %v5329
        %v5331 = vmul.f32 %v3920, %v5329
        %v5332 = vmul.f32 %v3924, %v5329
        %v5333 = vmul.f32 %v3928, %v5329
        %v5334 = vmul.f32 %v3932, %v5329
        %v5335 = vmul.f32 %v3936, %v5329
        %v5336 = vmul.f32 %v3940, %v5329
        %v5337 = vmul.f32 %v3944, %v5329
        %v5338 = vmul.f32 %v3948, %v5329
        %v5339 = vmul.f32 %v3952, %v5329
        %v5340 = vmul.f32 %v3956, %v5329
        %v5341 = vmul.f32 %v3960, %v5329
        %v5342 = vmul.f32 %v3964, %v5329
        %v5343 = vmul.f32 %v3968, %v5329
        %v5344 = vmul.f32 %v3972, %v5329
        %v5345 = vmul.f32 %v3976, %v5329
        %v5346 = vmul.f32 %v3980, %v5329
        %v5347 = vmul.f32 %v3984, %v5329
        %v5348 = vmul.f32 %v3988, %v5329
        %v5349 = vmul.f32 %v3992, %v5329
        %v5350 = vmul.f32 %v3996, %v5329
        %v5351 = vmul.f32 %v4000, %v5329
        %v5352 = vmul.f32 %v4004, %v5329
        %v5353 = vmul.f32 %v4008, %v5329
        %v5354 = vmul.f32 %v4012, %v5329
        %v5355 = vmul.f32 %v4016, %v5329
        %v5356 = vmul.f32 %v4020, %v5329
        %v5357 = vmul.f32 %v4024, %v5329
        %v5358 = vmul.f32 %v4028, %v5329
        %v5359 = vmul.f32 %v4032, %v5329
        %v5360 = vmul.f32 %v4036, %v5329
        %v5361 = vmul.f32 %v4040, %v5329
        %v5362 = vadd.f32 %v5297, %v5330
        %v5363 = vadd.f32 %v5298, %v5331
        %v5364 = vadd.f32 %v5299, %v5332
        %v5365 = vadd.f32 %v5300, %v5333
        %v5366 = vadd.f32 %v5301, %v5334
        %v5367 = vadd.f32 %v5302, %v5335
        %v5368 = vadd.f32 %v5303, %v5336
        %v5369 = vadd.f32 %v5304, %v5337
        %v5370 = vadd.f32 %v5305, %v5338
        %v5371 = vadd.f32 %v5306, %v5339
        %v5372 = vadd.f32 %v5307, %v5340
        %v5373 = vadd.f32 %v5308, %v5341
        %v5374 = vadd.f32 %v5309, %v5342
        %v5375 = vadd.f32 %v5310, %v5343
        %v5376 = vadd.f32 %v5311, %v5344
        %v5377 = vadd.f32 %v5312, %v5345
        %v5378 = vadd.f32 %v5313, %v5346
        %v5379 = vadd.f32 %v5314, %v5347
        %v5380 = vadd.f32 %v5315, %v5348
        %v5381 = vadd.f32 %v5316, %v5349
        %v5382 = vadd.f32 %v5317, %v5350
        %v5383 = vadd.f32 %v5318, %v5351
        %v5384 = vadd.f32 %v5319, %v5352
        %v5385 = vadd.f32 %v5320, %v5353
        %v5386 = vadd.f32 %v5321, %v5354
        %v5387 = vadd.f32 %v5322, %v5355
        %v5388 = vadd.f32 %v5323, %v5356
        %v5389 = vadd.f32 %v5324, %v5357
        %v5390 = vadd.f32 %v5325, %v5358
        %v5391 = vadd.f32 %v5326, %v5359
        %v5392 = vadd.f32 %v5327, %v5360
        %v5393 = vadd.f32 %v5328, %v5361
        %v5394 = vperm.slane %v4682, 3
        %v5395 = vmul.f32 %v4044, %v5394
        %v5396 = vmul.f32 %v4048, %v5394
        %v5397 = vmul.f32 %v4052, %v5394
        %v5398 = vmul.f32 %v4056, %v5394
        %v5399 = vmul.f32 %v4060, %v5394
        %v5400 = vmul.f32 %v4064, %v5394
        %v5401 = vmul.f32 %v4068, %v5394
        %v5402 = vmul.f32 %v4072, %v5394
        %v5403 = vmul.f32 %v4076, %v5394
        %v5404 = vmul.f32 %v4080, %v5394
        %v5405 = vmul.f32 %v4084, %v5394
        %v5406 = vmul.f32 %v4088, %v5394
        %v5407 = vmul.f32 %v4092, %v5394
        %v5408 = vmul.f32 %v4096, %v5394
        %v5409 = vmul.f32 %v4100, %v5394
        %v5410 = vmul.f32 %v4104, %v5394
        %v5411 = vmul.f32 %v4108, %v5394
        %v5412 = vmul.f32 %v4112, %v5394
        %v5413 = vmul.f32 %v4116, %v5394
        %v5414 = vmul.f32 %v4120, %v5394
        %v5415 = vmul.f32 %v4124, %v5394
        %v5416 = vmul.f32 %v4128, %v5394
        %v5417 = vmul.f32 %v4132, %v5394
        %v5418 = vmul.f32 %v4136, %v5394
        %v5419 = vmul.f32 %v4140, %v5394
        %v5420 = vmul.f32 %v4144, %v5394
        %v5421 = vmul.f32 %v4148, %v5394
        %v5422 = vmul.f32 %v4152, %v5394
        %v5423 = vmul.f32 %v4156, %v5394
        %v5424 = vmul.f32 %v4160, %v5394
        %v5425 = vmul.f32 %v4164, %v5394
        %v5426 = vmul.f32 %v4168, %v5394
        %v5427 = vadd.f32 %v5362, %v5395
        %v5428 = vadd.f32 %v5363, %v5396
        %v5429 = vadd.f32 %v5364, %v5397
        %v5430 = vadd.f32 %v5365, %v5398
        %v5431 = vadd.f32 %v5366, %v5399
        %v5432 = vadd.f32 %v5367, %v5400
        %v5433 = vadd.f32 %v5368, %v5401
        %v5434 = vadd.f32 %v5369, %v5402
        %v5435 = vadd.f32 %v5370, %v5403
        %v5436 = vadd.f32 %v5371, %v5404
        %v5437 = vadd.f32 %v5372, %v5405
        %v5438 = vadd.f32 %v5373, %v5406
        %v5439 = vadd.f32 %v5374, %v5407
        %v5440 = vadd.f32 %v5375, %v5408
        %v5441 = vadd.f32 %v5376, %v5409
        %v5442 = vadd.f32 %v5377, %v5410
        %v5443 = vadd.f32 %v5378, %v5411
        %v5444 = vadd.f32 %v5379, %v5412
        %v5445 = vadd.f32 %v5380, %v5413
        %v5446 = vadd.f32 %v5381, %v5414
        %v5447 = vadd.f32 %v5382, %v5415
        %v5448 = vadd.f32 %v5383, %v5416
        %v5449 = vadd.f32 %v5384, %v5417
        %v5450 = vadd.f32 %v5385, %v5418
        %v5451 = vadd.f32 %v5386, %v5419
        %v5452 = vadd.f32 %v5387, %v5420
        %v5453 = vadd.f32 %v5388, %v5421
        %v5454 = vadd.f32 %v5389, %v5422
        %v5455 = vadd.f32 %v5390, %v5423
        %v5456 = vadd.f32 %v5391, %v5424
        %v5457 = vadd.f32 %v5392, %v5425
        %v5458 = vadd.f32 %v5393, %v5426
        %5459 = vst [vmem:[%s405] sm:$0xff] %v5427
        %5460 = vst [vmem:[%s405 + $0x8] sm:$0xff] %v5428
        %5461 = vst [vmem:[%s405 + $0x10] sm:$0xff] %v5429
        %5462 = vst [vmem:[%s405 + $0x18] sm:$0xff] %v5430
        %5463 = vst [vmem:[%s405 + $0x20] sm:$0xff] %v5431
        %5464 = vst [vmem:[%s405 + $0x28] sm:$0xff] %v5432
        %5465 = vst [vmem:[%s405 + $0x30] sm:$0xff] %v5433
        %5466 = vst [vmem:[%s405 + $0x38] sm:$0xff] %v5434
        %5467 = vst [vmem:[%s405 + $0x40] sm:$0xff] %v5435
        %5468 = vst [vmem:[%s405 + $0x48] sm:$0xff] %v5436
        %5469 = vst [vmem:[%s405 + $0x50] sm:$0xff] %v5437
        %5470 = vst [vmem:[%s405 + $0x58] sm:$0xff] %v5438
        %5471 = vst [vmem:[%s405 + $0x60] sm:$0xff] %v5439
        %5472 = vst [vmem:[%s405 + $0x68] sm:$0xff] %v5440
        %5473 = vst [vmem:[%s405 + $0x70] sm:$0xff] %v5441
        %5474 = vst [vmem:[%s405 + $0x78] sm:$0xff] %v5442
        %5475 = vst [vmem:[%s405 + $0x80] sm:$0xff] %v5443
        %5476 = vst [vmem:[%s405 + $0x88] sm:$0xff] %v5444
        %5477 = vst [vmem:[%s405 + $0x90] sm:$0xff] %v5445
        %5478 = vst [vmem:[%s405 + $0x98] sm:$0xff] %v5446
        %5479 = vst [vmem:[%s405 + $0xa0] sm:$0xff] %v5447
        %5480 = vst [vmem:[%s405 + $0xa8] sm:$0xff] %v5448
        %5481 = vst [vmem:[%s405 + $0xb0] sm:$0xff] %v5449
        %5482 = vst [vmem:[%s405 + $0xb8] sm:$0xff] %v5450
        %5483 = vst [vmem:[%s405 + $0xc0] sm:$0xff] %v5451
        %5484 = vst [vmem:[%s405 + $0xc8] sm:$0xff] %v5452
        %5485 = vst [vmem:[%s405 + $0xd0] sm:$0xff] %v5453
        %5486 = vst [vmem:[%s405 + $0xd8] sm:$0xff] %v5454
        %5487 = vst [vmem:[%s405 + $0xe0] sm:$0xff] %v5455
        %5488 = vst [vmem:[%s405 + $0xe8] sm:$0xff] %v5456
        %5489 = vst [vmem:[%s405 + $0xf0] sm:$0xff] %v5457
        %5490 = vst [vmem:[%s405 + $0xf8] sm:$0xff] %v5458
        %s5491 = sand.u32 %s189, 1
        %s5492 = scalar_lea.sflag [#allocation4], %s5491
        %s5493 = sand.u32 %s189, 1
        %s5494 = smul.addr %s5493, 256
        %s5495 = scalar_lea.vmem [#allocation13], %s5494
        %s5496 = smul.u32 32, %s29
        %p5497 = scmp.lt.s32.totalorder %s5496, 63
        %s5498 = scalar_select %p5497, %s5496, 63
        %s5499 = smul.addr %s5498, 8
        %s5500 = scalar_lea.vmem %s8, %s5499
        // Predicated region
        $region73: #{moe_forward.1} parent=47 // pred_check
          %p5501 = pneg %p199
        $region74: #{moe_forward.1} parent=47 // pred_check_branch
          %5503 = sbr.rel (%p5501) target = $region76
        $region75: #{moe_forward.1} parent=47 // pred_region
          %s5504 = smul.u32 32, %s29
          %5506 = vsyncadd %s5492, 0
          %s5507 = smul.addr %s5504, 8
          %s5508 = scalar_lea.hbm %s7, %s5507
          %s5509 = sshll.u32 %s5495, 4
          %s5510 = int_to_ptr.vmem [resolvable:$true] %s5509
          %s5511 = sshll.u32 %s5508, 4
          %s5512 = int_to_ptr.hbm [resolvable:$true] %s5511
          %5517 = dma.vmem_to_hbm [thread:$0]  %s5510, 4096, %s5512, %s5492, 128, 128, 8
        $region76: #{moe_forward.1} parent=47 // pred_fallthru
          _
        // Predicated region
        $region77: #{moe_forward.1} parent=47 // pred_check
          %p5518 = pneg %p225
        $region78: #{moe_forward.1} parent=47 // pred_check_branch
          %5520 = sbr.rel (%p5518) target = $region80
        $region79: #{moe_forward.1} parent=47 // pred_region
          %s5521 = smul.u32 32, %s29
        $region80: #{moe_forward.1} parent=47 // pred_fallthru
          _
      $region48: #{moe_forward.1} parent=5 // pred_fallthru
        _
      %p5522 = scmp.le.s32.totalorder 2, %s24
      // Predicated region
      $region81: #{moe_forward.1} parent=5 // pred_check
        %p5523 = pneg %p5522
      $region82: #{moe_forward.1} parent=5 // pred_check_branch
        %5525 = sbr.rel (%p5523) target = $region84
      $region83: #{moe_forward.1} parent=5 // pred_region
        %s5526 = ssub.s32 %s24, 2
        // Predicated region
        $region85: #{moe_forward.1} parent=83 // pred_check
          %p5527 = pneg %p205
        $region86: #{moe_forward.1} parent=83 // pred_check_branch
          %5529 = sbr.rel (%p5527) target = $region88
        $region87: #{moe_forward.1} parent=83 // pred_region
          %s5530 = sand.u32 %s190, 1
          %s5531 = scalar_lea.sflag [#allocation4], %s5530
          %s5532 = sand.u32 %s190, 1
          %s5533 = smul.addr %s5532, 256
          %s5534 = scalar_lea.vmem [#allocation13], %s5533
          %5536 = dma.done %s5531, 4096
        $region88: #{moe_forward.1} parent=83 // pred_fallthru
          _
        // Predicated region
        $region89: #{moe_forward.1} parent=83 // pred_check
          %p5537 = pneg %p231
        $region90: #{moe_forward.1} parent=83 // pred_check_branch
          %5539 = sbr.rel (%p5537) target = $region92
        $region91: #{moe_forward.1} parent=83 // pred_region
          %s5540 = smul.u32 32, %s30
          %p5541 = scmp.lt.s32.totalorder %s5540, 63
          %s5542 = scalar_select %p5541, %s5540, 63
          %s5543 = smul.addr %s5542, 8
          %s5544 = scalar_lea.vmem %s8, %s5543
        $region92: #{moe_forward.1} parent=83 // pred_fallthru
          _
      $region84: #{moe_forward.1} parent=5 // pred_fallthru
        _
    $region6: #{moe_forward.1} parent=1 // loop_footer
      %s28 = sadd.s32 1, %s24
    $region7: #{moe_forward.1} parent=1 // loop_footer_branch
      %23 = sbr.rel target = $region3
    $region8: #{moe_forward.1} parent=1 // loop_exit
      _
    %5545 = vsyncpa [#allocation3], 1
    %s5546 = scalar_lea.sflag [#allocation3], 1
    %5547 = vsyncpa %s5546, 1
    %5548 = vsyncpa [#allocation6], 1
    %5549 = vsyncpa [#allocation9], 1
    %5550 = vsyncpa [#allocation12], 1
    %5551 = vsyncpa [#allocation4], 1
    %s5552 = scalar_lea.sflag [#allocation4], 1
    %5553 = vsyncpa %s5552, 1

// kernel: moe_forward.1
$region0: #{moe_forward.1}
  #allocation0 [shape = 'u32[]', space=smem, size = 0x4, offset = 0x4, fixed_abs, tag = 'smem constant byte address 0x4 - core index']
  #allocation1 [shape = 'u32[72,128]{1,0:T(1,128)}', space=vmem, size = 0x9000, scoped, tag = 'internal scratch']
  %s0 = inlined_call_operand.hbm [shape: f32[512,128], index: 0, kind: input, shape index: {}]
  %s1 = inlined_call_operand.hbm [shape: f32[128,128], index: 1, kind: input, shape index: {}]
  %s2 = inlined_call_operand.vmem [shape: f32[1,128], index: 2, kind: input, shape index: {}]
  %s3 = inlined_call_operand.hbm [shape: bf16[128,512], index: 3, kind: input, shape index: {}]
  %s4 = inlined_call_operand.hbm [shape: f32[1,512], index: 4, kind: input, shape index: {}]
  %s5 = inlined_call_operand.hbm [shape: bf16[512,128], index: 5, kind: input, shape index: {}]
  %s6 = inlined_call_operand.hbm [shape: f32[4,128], index: 6, kind: input, shape index: {}]
  %s7 = inlined_call_operand.hbm [shape: f32[512,128], index: 7, kind: output, shape index: {0}]
  %s8 = inlined_call_operand.vmem [shape: f32[512,128], index: 8, kind: output, shape index: {1}]
  %9 = xla_tuple %s7, %s8
  %s10 = sld [smem:[#allocation0]]
  $region93: #{moe_forward.1} parent=0
    _
  %s12 = ssub.s32 1, %s10
  %s13 = scalar_select 0, %s12, %s10
  $region1: #{moe_forward.1} parent=0
    #allocation2 [shape = 'u8[262144]{0}', space=vmem, size = 0x40000, scoped, tag = 'input window, operand 0']
    #allocation3 [shape = 's32[2]{0}', space=sflag, size = 0x8, scoped, tag = 'scoped memory for moe_forward.1']
    #allocation4 [shape = 's32[2]{0}', space=sflag, size = 0x8, scoped, tag = 'scoped memory for moe_forward.1']
    #allocation5 [shape = 'u8[65536]{0}', space=vmem, size = 0x10000, scoped, tag = 'input window, operand 1, single buffered']
    #allocation6 [shape = 's32[1]{0}', space=sflag, size = 0x4, scoped, tag = 'scoped memory for moe_forward.1']
    #allocation7 [shape = 'u8[131072]{0}', space=vmem, size = 0x20000, scoped, tag = 'input window, operand 3, single buffered']
    #allocation8 [shape = 'u8[2048]{0}', space=vmem, size = 0x800, scoped, tag = 'input window, operand 4, single buffered']
    #allocation9 [shape = 's32[1]{0}', space=sflag, size = 0x4, scoped, tag = 'scoped memory for moe_forward.1']
    #allocation10 [shape = 'u8[131072]{0}', space=vmem, size = 0x20000, scoped, tag = 'input window, operand 5, single buffered']
    #allocation11 [shape = 'u8[2048]{0}', space=vmem, size = 0x800, scoped, tag = 'input window, operand 6, single buffered']
    #allocation12 [shape = 's32[1]{0}', space=sflag, size = 0x4, scoped, tag = 'scoped memory for moe_forward.1']
    #allocation13 [shape = 'u8[262144]{0}', space=vmem, size = 0x40000, scoped, tag = 'output window, operand 0']
    %14 = vsyncpa [#allocation3], 0
    %s15 = scalar_lea.sflag [#allocation3], 1
    %16 = vsyncpa %s15, 0
    %17 = vsyncpa [#allocation6], 0
    %18 = vsyncpa [#allocation9], 0
    %19 = vsyncpa [#allocation12], 0
    %20 = vsyncpa [#allocation4], 0
    %s21 = scalar_lea.sflag [#allocation4], 1
    %22 = vsyncpa %s21, 0
    loop: start=0, step=1, limit=4
    $region2: #{moe_forward.1} parent=1 // loop_pre_header
      _
    $region3: #{moe_forward.1} parent=1 // loop_header
      %s24 = sphi 0, %s28
      %p25 = scmp.ge.s32.totalorder %s24, 4
      %s34 = sphi 0, %s36
      %s37 = sphi 0, %s34
      %s38 = sphi 0, %s37
      %s54 = sphi 0, %s38
      %s58 = sphi 0, %s58
      %s60 = sphi 0, %s58
      %s61 = sphi 0, %s60
      %s75 = sphi 0, %s61
      %s79 = sphi 0, %s79
      %s81 = sphi 0, %s79
      %s82 = sphi 0, %s81
      %s96 = sphi 0, %s82
      %s100 = sphi 0, %s100
      %s102 = sphi 0, %s100
      %s103 = sphi 0, %s102
      %s117 = sphi 0, %s103
      %s121 = sphi 0, %s121
      %s123 = sphi 0, %s121
      %s124 = sphi 0, %s123
      %s138 = sphi 0, %s124
      %s142 = sphi 0, %s142
      %s144 = sphi 0, %s142
      %s145 = sphi 0, %s144
      %s159 = sphi 0, %s145
      %s163 = sphi 0, %s163
      %s165 = sphi 0, %s163
      %s166 = sphi 0, %s165
      %s180 = sphi 0, %s166
      %s186 = sphi 0, %s188
      %s189 = sphi 0, %s186
      %s190 = sphi 0, %s189
      %s206 = sphi 0, %s190
      %s212 = sphi 0, %s214
      %s215 = sphi 0, %s212
      %s216 = sphi 0, %s215
      %s232 = sphi 0, %s216
    $region4: #{moe_forward.1} parent=1 // loop_header_branch
      %27 = sbr.rel (%p25) target = $region8
    $region5: #{moe_forward.1} parent=1 // loop_body
      %s29 = ssub.s32 %s24, 1
      %s30 = ssub.s32 %s24, 2
      %s31 = sadd.s32 %s24, 1
      %s32 = ssub.s32 %s24, %s31
      %p33 = scmp.eq.s32.totalorder %s32, 0
      %s35 = sadd.s32 %s34, 1
      %s36 = scalar_select %p33, %s34, %s35
      %p39 = pneg %p33
      %p40 = scmp.eq.s32.totalorder %s24, 1
      %p41 = por %p39, %p40
      %p42 = scmp.ne.s32.totalorder %s34, %s37
      %p43 = scmp.eq.s32.totalorder %s24, 0
      %p44 = por %p42, %p43
      %p45 = scmp.ne.s32.totalorder %s34, %s37
      %p46 = scmp.eq.s32.totalorder %s29, 1
      %p47 = por %p45, %p46
      %p48 = scmp.ne.s32.totalorder %s37, %s38
      %p49 = scmp.eq.s32.totalorder %s29, 0
      %p50 = por %p48, %p49
      %p51 = scmp.ne.s32.totalorder %s37, %s38
      %p52 = scmp.eq.s32.totalorder %s30, 1
      %p53 = por %p51, %p52
      %p55 = scmp.ne.s32.totalorder %s38, %s54
      %p56 = scmp.eq.s32.totalorder %s30, 0
      %p57 = por %p55, %p56
      %s59 = sadd.s32 %s58, 1
      %p62 = scmp.eq.s32.totalorder %s24, 1
      %p63 = scmp.ne.s32.totalorder %s58, %s60
      %p64 = scmp.eq.s32.totalorder %s24, 0
      %p65 = por %p63, %p64
      %p66 = scmp.ne.s32.totalorder %s58, %s60
      %p67 = scmp.eq.s32.totalorder %s29, 1
      %p68 = por %p66, %p67
      %p69 = scmp.ne.s32.totalorder %s60, %s61
      %p70 = scmp.eq.s32.totalorder %s29, 0
      %p71 = por %p69, %p70
      %p72 = scmp.ne.s32.totalorder %s60, %s61
      %p73 = scmp.eq.s32.totalorder %s30, 1
      %p74 = por %p72, %p73
      %p76 = scmp.ne.s32.totalorder %s61, %s75
      %p77 = scmp.eq.s32.totalorder %s30, 0
      %p78 = por %p76, %p77
      %s80 = sadd.s32 %s79, 1
      %p83 = scmp.eq.s32.totalorder %s24, 1
      %p84 = scmp.ne.s32.totalorder %s79, %s81
      %p85 = scmp.eq.s32.totalorder %s24, 0
      %p86 = por %p84, %p85
      %p87 = scmp.ne.s32.totalorder %s79, %s81
      %p88 = scmp.eq.s32.totalorder %s29, 1
      %p89 = por %p87, %p88
      %p90 = scmp.ne.s32.totalorder %s81, %s82
      %p91 = scmp.eq.s32.totalorder %s29, 0
      %p92 = por %p90, %p91
      %p93 = scmp.ne.s32.totalorder %s81, %s82
      %p94 = scmp.eq.s32.totalorder %s30, 1
      %p95 = por %p93, %p94
      %p97 = scmp.ne.s32.totalorder %s82, %s96
      %p98 = scmp.eq.s32.totalorder %s30, 0
      %p99 = por %p97, %p98
      %s101 = sadd.s32 %s100, 1
      %p104 = scmp.eq.s32.totalorder %s24, 1
      %p105 = scmp.ne.s32.totalorder %s100, %s102
      %p106 = scmp.eq.s32.totalorder %s24, 0
      %p107 = por %p105, %p106
      %p108 = scmp.ne.s32.totalorder %s100, %s102
      %p109 = scmp.eq.s32.totalorder %s29, 1
      %p110 = por %p108, %p109
      %p111 = scmp.ne.s32.totalorder %s102, %s103
      %p112 = scmp.eq.s32.totalorder %s29, 0
      %p113 = por %p111, %p112
      %p114 = scmp.ne.s32.totalorder %s102, %s103
      %p115 = scmp.eq.s32.totalorder %s30, 1
      %p116 = por %p114, %p115
      %p118 = scmp.ne.s32.totalorder %s103, %s117
      %p119 = scmp.eq.s32.totalorder %s30, 0
      %p120 = por %p118, %p119
      %s122 = sadd.s32 %s121, 1
      %p125 = scmp.eq.s32.totalorder %s24, 1
      %p126 = scmp.ne.s32.totalorder %s121, %s123
      %p127 = scmp.eq.s32.totalorder %s24, 0
      %p128 = por %p126, %p127
      %p129 = scmp.ne.s32.totalorder %s121, %s123
      %p130 = scmp.eq.s32.totalorder %s29, 1
      %p131 = por %p129, %p130
      %p132 = scmp.ne.s32.totalorder %s123, %s124
      %p133 = scmp.eq.s32.totalorder %s29, 0
      %p134 = por %p132, %p133
      %p135 = scmp.ne.s32.totalorder %s123, %s124
      %p136 = scmp.eq.s32.totalorder %s30, 1
      %p137 = por %p135, %p136
      %p139 = scmp.ne.s32.totalorder %s124, %s138
      %p140 = scmp.eq.s32.totalorder %s30, 0
      %p141 = por %p139, %p140
      %s143 = sadd.s32 %s142, 1
      %p146 = scmp.eq.s32.totalorder %s24, 1
      %p147 = scmp.ne.s32.totalorder %s142, %s144
      %p148 = scmp.eq.s32.totalorder %s24, 0
      %p149 = por %p147, %p148
      %p150 = scmp.ne.s32.totalorder %s142, %s144
      %p151 = scmp.eq.s32.totalorder %s29, 1
      %p152 = por %p150, %p151
      %p153 = scmp.ne.s32.totalorder %s144, %s145
      %p154 = scmp.eq.s32.totalorder %s29, 0
      %p155 = por %p153, %p154
      %p156 = scmp.ne.s32.totalorder %s144, %s145
      %p157 = scmp.eq.s32.totalorder %s30, 1
      %p158 = por %p156, %p157
      %p160 = scmp.ne.s32.totalorder %s145, %s159
      %p161 = scmp.eq.s32.totalorder %s30, 0
      %p162 = por %p160, %p161
      %s164 = sadd.s32 %s163, 1
      %p167 = scmp.eq.s32.totalorder %s24, 1
      %p168 = scmp.ne.s32.totalorder %s163, %s165
      %p169 = scmp.eq.s32.totalorder %s24, 0
      %p170 = por %p168, %p169
      %p171 = scmp.ne.s32.totalorder %s163, %s165
      %p172 = scmp.eq.s32.totalorder %s29, 1
      %p173 = por %p171, %p172
      %p174 = scmp.ne.s32.totalorder %s165, %s166
      %p175 = scmp.eq.s32.totalorder %s29, 0
      %p176 = por %p174, %p175
      %p177 = scmp.ne.s32.totalorder %s165, %s166
      %p178 = scmp.eq.s32.totalorder %s30, 1
      %p179 = por %p177, %p178
      %p181 = scmp.ne.s32.totalorder %s166, %s180
      %p182 = scmp.eq.s32.totalorder %s30, 0
      %p183 = por %p181, %p182
      %s184 = ssub.s32 %s24, %s31
      %p185 = scmp.eq.s32.totalorder %s184, 0
      %s187 = sadd.s32 %s186, 1
      %s188 = scalar_select %p185, %s186, %s187
      %p191 = pneg %p185
      %p192 = scmp.eq.s32.totalorder %s24, 1
      %p193 = por %p191, %p192
      %p194 = scmp.ne.s32.totalorder %s186, %s189
      %p195 = scmp.eq.s32.totalorder %s24, 0
      %p196 = por %p194, %p195
      %p197 = scmp.ne.s32.totalorder %s186, %s189
      %p198 = scmp.eq.s32.totalorder %s29, 1
      %p199 = por %p197, %p198
      %p200 = scmp.ne.s32.totalorder %s189, %s190
      %p201 = scmp.eq.s32.totalorder %s29, 0
      %p202 = por %p200, %p201
      %p203 = scmp.ne.s32.totalorder %s189, %s190
      %p204 = scmp.eq.s32.totalorder %s30, 1
      %p205 = por %p203, %p204
      %p207 = scmp.ne.s32.totalorder %s190, %s206
      %p208 = scmp.eq.s32.totalorder %s30, 0
      %p209 = por %p207, %p208
      %s210 = ssub.s32 %s24, %s31
      %p211 = scmp.eq.s32.totalorder %s210, 0
      %s213 = sadd.s32 %s212, 1
      %s214 = scalar_select %p211, %s212, %s213
      %p217 = pneg %p211
      %p218 = scmp.eq.s32.totalorder %s24, 1
      %p219 = por %p217, %p218
      %p220 = scmp.ne.s32.totalorder %s212, %s215
      %p221 = scmp.eq.s32.totalorder %s24, 0
      %p222 = por %p220, %p221
      %p223 = scmp.ne.s32.totalorder %s212, %s215
      %p224 = scmp.eq.s32.totalorder %s29, 1
      %p225 = por %p223, %p224
      %p226 = scmp.ne.s32.totalorder %s215, %s216
      %p227 = scmp.eq.s32.totalorder %s29, 0
      %p228 = por %p226, %p227
      %p229 = scmp.ne.s32.totalorder %s215, %s216
      %p230 = scmp.eq.s32.totalorder %s30, 1
      %p231 = por %p229, %p230
      %p233 = scmp.ne.s32.totalorder %s216, %s232
      %p234 = scmp.eq.s32.totalorder %s30, 0
      %p235 = por %p233, %p234
      %p236 = scmp.le.s32.totalorder 1, %s24
      %p237 = scmp.lt.s32.totalorder %s24, 3
      %p238 = pnand %p236, %p237
      %p239 = pneg %p238
      // Predicated region
      $region9: #{moe_forward.1} parent=5 // pred_check
        _
      $region10: #{moe_forward.1} parent=5 // pred_check_branch
        %241 = sbr.rel (%p238) target = $region12
      $region11: #{moe_forward.1} parent=5 // pred_region
        %s242 = ssub.s32 %s24, 1
        // Predicated region
        $region13: #{moe_forward.1} parent=11 // pred_check
          %p243 = pneg %p71
        $region14: #{moe_forward.1} parent=11 // pred_check_branch
          %245 = sbr.rel (%p243) target = $region16
        $region15: #{moe_forward.1} parent=11 // pred_region
          %247 = vsyncadd [#allocation6], 0
          %s248 = sshll.u32 %s1, 4
          %s249 = int_to_ptr.hbm [resolvable:$true] %s248
          %s250 = sshll.u32 [#allocation5], 4
          %s251 = int_to_ptr.vmem [resolvable:$true] %s250
          %256 = dma.hbm_to_vmem [thread:$0]  %s249, 2048, %s251, [#allocation6], 128, 128, 8
        $region16: #{moe_forward.1} parent=11 // pred_fallthru
          _
        // Predicated region
        $region17: #{moe_forward.1} parent=11 // pred_check
          %p257 = pneg %p92
        $region18: #{moe_forward.1} parent=11 // pred_check_branch
          %259 = sbr.rel (%p257) target = $region20
        $region19: #{moe_forward.1} parent=11 // pred_region
          _
        $region20: #{moe_forward.1} parent=11 // pred_fallthru
          _
        // Predicated region
        $region21: #{moe_forward.1} parent=11 // pred_check
          %p260 = pneg %p113
        $region22: #{moe_forward.1} parent=11 // pred_check_branch
          %262 = sbr.rel (%p260) target = $region24
        $region23: #{moe_forward.1} parent=11 // pred_region
          %264 = vsyncadd [#allocation6], 0
          %s265 = sshll.u32 %s3, 4
          %s266 = int_to_ptr.hbm [resolvable:$true] %s265
          %s267 = sshll.u32 [#allocation7], 4
          %s268 = int_to_ptr.vmem [resolvable:$true] %s267
          %273 = dma.hbm_to_vmem [thread:$0]  %s266, 4096, %s268, [#allocation6], 256, 256, 16
        $region24: #{moe_forward.1} parent=11 // pred_fallthru
          _
        // Predicated region
        $region25: #{moe_forward.1} parent=11 // pred_check
          %p274 = pneg %p134
        $region26: #{moe_forward.1} parent=11 // pred_check_branch
          %276 = sbr.rel (%p274) target = $region28
        $region27: #{moe_forward.1} parent=11 // pred_region
          %278 = vsyncadd [#allocation9], 0
          %s280 = sshll.u32 %s4, 4
          %s281 = int_to_ptr.hbm [resolvable:$true] %s280
          %s282 = sshll.u32 [#allocation8], 4
          %s283 = int_to_ptr.vmem [resolvable:$true] %s282
          %285 = dma.hbm_to_vmem [thread:$0]  %s281, 64, %s283, [#allocation9]
        $region28: #{moe_forward.1} parent=11 // pred_fallthru
          _
        // Predicated region
        $region29: #{moe_forward.1} parent=11 // pred_check
          %p286 = pneg %p155
        $region30: #{moe_forward.1} parent=11 // pred_check_branch
          %288 = sbr.rel (%p286) target = $region32
        $region31: #{moe_forward.1} parent=11 // pred_region
          %290 = vsyncadd [#allocation9], 0
          %s291 = sshll.u32 %s5, 4
          %s292 = int_to_ptr.hbm [resolvable:$true] %s291
          %s293 = sshll.u32 [#allocation10], 4
          %s294 = int_to_ptr.vmem [resolvable:$true] %s293
          %299 = dma.hbm_to_vmem [thread:$0]  %s292, 4096, %s294, [#allocation9], 64, 64, 4
        $region32: #{moe_forward.1} parent=11 // pred_fallthru
          _
        // Predicated region
        $region33: #{moe_forward.1} parent=11 // pred_check
          %p300 = pneg %p176
        $region34: #{moe_forward.1} parent=11 // pred_check_branch
          %302 = sbr.rel (%p300) target = $region36
        $region35: #{moe_forward.1} parent=11 // pred_region
          %304 = vsyncadd [#allocation12], 0
          %s306 = sshll.u32 %s6, 4
          %s307 = int_to_ptr.hbm [resolvable:$true] %s306
          %s308 = sshll.u32 [#allocation11], 4
          %s309 = int_to_ptr.vmem [resolvable:$true] %s308
          %311 = dma.hbm_to_vmem [thread:$0]  %s307, 64, %s309, [#allocation12]
        $region36: #{moe_forward.1} parent=11 // pred_fallthru
          _
      $region12: #{moe_forward.1} parent=5 // pred_fallthru
        _
      %p312 = scmp.lt.s32.totalorder %s24, 2
      // Predicated region
      $region37: #{moe_forward.1} parent=5 // pred_check
        %p313 = pneg %p312
      $region38: #{moe_forward.1} parent=5 // pred_check_branch
        %315 = sbr.rel (%p313) target = $region40
      $region39: #{moe_forward.1} parent=5 // pred_region
        // Predicated region
        $region41: #{moe_forward.1} parent=39 // pred_check
          %p316 = pneg %p44
        $region42: #{moe_forward.1} parent=39 // pred_check_branch
          %318 = sbr.rel (%p316) target = $region44
        $region43: #{moe_forward.1} parent=39 // pred_region
          %s319 = sand.u32 %s34, 1
          %s320 = scalar_lea.sflag [#allocation3], %s319
          %s321 = sand.u32 %s34, 1
          %s322 = smul.addr %s321, 256
          %s323 = scalar_lea.vmem [#allocation2], %s322
          %s324 = smul.u32 32, %s24
          %326 = vsyncadd %s320, 0
          %s327 = smul.addr %s324, 8
          %s328 = scalar_lea.hbm %s0, %s327
          %s329 = sshll.u32 %s328, 4
          %s330 = int_to_ptr.hbm [resolvable:$true] %s329
          %s331 = sshll.u32 %s323, 4
          %s332 = int_to_ptr.vmem [resolvable:$true] %s331
          %337 = dma.hbm_to_vmem [thread:$0]  %s330, 4096, %s332, %s320, 128, 128, 8
        $region44: #{moe_forward.1} parent=39 // pred_fallthru
          _
      $region40: #{moe_forward.1} parent=5 // pred_fallthru
        _
      %p338 = scmp.le.s32.totalorder 1, %s24
      %p339 = scmp.lt.s32.totalorder %s24, 3
      %p340 = pnand %p338, %p339
      %p341 = pneg %p340
      // Predicated region
      $region45: #{moe_forward.1} parent=5 // pred_check
        _
      $region46: #{moe_forward.1} parent=5 // pred_check_branch
        %343 = sbr.rel (%p340) target = $region48
      $region47: #{moe_forward.1} parent=5 // pred_region
        %s344 = ssub.s32 %s24, 1
        %s345 = sand.u32 %s37, 1
        %s346 = scalar_lea.sflag [#allocation3], %s345
        %s347 = sand.u32 %s37, 1
        %s348 = smul.addr %s347, 256
        %s349 = scalar_lea.vmem [#allocation2], %s348
        // Predicated region
        $region49: #{moe_forward.1} parent=47 // pred_check
          %p350 = pneg %p50
        $region50: #{moe_forward.1} parent=47 // pred_check_branch
          %352 = sbr.rel (%p350) target = $region52
        $region51: #{moe_forward.1} parent=47 // pred_region
          %354 = dma.done %s346, 4096
        $region52: #{moe_forward.1} parent=47 // pred_fallthru
          _
        // Predicated region
        $region53: #{moe_forward.1} parent=47 // pred_check
          %p355 = pneg %p71
        $region54: #{moe_forward.1} parent=47 // pred_check_branch
          %357 = sbr.rel (%p355) target = $region56
        $region55: #{moe_forward.1} parent=47 // pred_region
          %359 = dma.done [#allocation6], 2048
        $region56: #{moe_forward.1} parent=47 // pred_fallthru
          _
        // Predicated region
        $region57: #{moe_forward.1} parent=47 // pred_check
          %p360 = pneg %p113
        $region58: #{moe_forward.1} parent=47 // pred_check_branch
          %362 = sbr.rel (%p360) target = $region60
        $region59: #{moe_forward.1} parent=47 // pred_region
          %364 = dma.done [#allocation6], 4096
        $region60: #{moe_forward.1} parent=47 // pred_fallthru
          _
        // Predicated region
        $region61: #{moe_forward.1} parent=47 // pred_check
          %p365 = pneg %p134
        $region62: #{moe_forward.1} parent=47 // pred_check_branch
          %367 = sbr.rel (%p365) target = $region64
        $region63: #{moe_forward.1} parent=47 // pred_region
          %369 = dma.done [#allocation9], 64
        $region64: #{moe_forward.1} parent=47 // pred_fallthru
          _
        // Predicated region
        $region65: #{moe_forward.1} parent=47 // pred_check
          %p370 = pneg %p155
        $region66: #{moe_forward.1} parent=47 // pred_check_branch
          %372 = sbr.rel (%p370) target = $region68
        $region67: #{moe_forward.1} parent=47 // pred_region
          %374 = dma.done [#allocation9], 4096
        $region68: #{moe_forward.1} parent=47 // pred_fallthru
          _
        // Predicated region
        $region69: #{moe_forward.1} parent=47 // pred_check
          %p375 = pneg %p176
        $region70: #{moe_forward.1} parent=47 // pred_check_branch
          %377 = sbr.rel (%p375) target = $region72
        $region71: #{moe_forward.1} parent=47 // pred_region
          %379 = dma.done [#allocation12], 64
        $region72: #{moe_forward.1} parent=47 // pred_fallthru
          _
        %s380 = sand.u32 %s37, 1
        %s381 = scalar_lea.sflag [#allocation3], %s380
        %s382 = sand.u32 %s37, 1
        %s383 = smul.addr %s382, 256
        %s384 = scalar_lea.vmem [#allocation2], %s383
        %p385 = pneg %p50
        %p386 = pneg %p47
        %p387 = pneg %p71
        %p388 = pneg %p68
        %p389 = pneg %p92
        %p390 = pneg %p89
        %p391 = pneg %p113
        %p392 = pneg %p110
        %p393 = pneg %p134
        %p394 = pneg %p131
        %p395 = pneg %p155
        %p396 = pneg %p152
        %p397 = pneg %p176
        %p398 = pneg %p173
        %p399 = pneg %p202
        %p400 = pneg %p199
        %s401 = sand.u32 %s189, 1
        %s402 = scalar_lea.sflag [#allocation4], %s401
        %s403 = sand.u32 %s189, 1
        %s404 = smul.addr %s403, 256
        %s405 = scalar_lea.vmem [#allocation13], %s404
        %p406 = pneg %p228
        %p407 = pneg %p225
        %s408 = smul.u32 32, %s29
        %p409 = scmp.lt.s32.totalorder %s408, 63
        %s410 = scalar_select %p409, %s408, 63
        %s411 = smul.addr %s410, 8
        %s412 = scalar_lea.vmem %s8, %s411
        %s413 = smul.u32 32, %s29
        %s414 = smul.u32 32, %s29
        %s415 = smul.u32 32, %s29
        %p416 = scmp.lt.s32.totalorder %s415, 63
        %s417 = scalar_select %p416, %s415, 63
        %s418 = smul.addr %s417, 8
        %s419 = scalar_lea.vmem %s8, %s418
        %s420 = smul.u32 32, %s29
        %v421 = vld [vmem:[%s349] sm:$0xff]
        %v422 = vld [vmem:[%s349 + $0x8] sm:$0xff]
        %v423 = vld [vmem:[%s349 + $0x10] sm:$0xff]
        %v424 = vld [vmem:[%s349 + $0x18] sm:$0xff]
        %v425 = vld [vmem:[%s349 + $0x20] sm:$0xff]
        %v426 = vld [vmem:[%s349 + $0x28] sm:$0xff]
        %v427 = vld [vmem:[%s349 + $0x30] sm:$0xff]
        %v428 = vld [vmem:[%s349 + $0x38] sm:$0xff]
        %v429 = vld [vmem:[%s349 + $0x40] sm:$0xff]
        %v430 = vld [vmem:[%s349 + $0x48] sm:$0xff]
        %v431 = vld [vmem:[%s349 + $0x50] sm:$0xff]
        %v432 = vld [vmem:[%s349 + $0x58] sm:$0xff]
        %v433 = vld [vmem:[%s349 + $0x60] sm:$0xff]
        %v434 = vld [vmem:[%s349 + $0x68] sm:$0xff]
        %v435 = vld [vmem:[%s349 + $0x70] sm:$0xff]
        %v436 = vld [vmem:[%s349 + $0x78] sm:$0xff]
        %v437 = vld [vmem:[%s349 + $0x80] sm:$0xff]
        %v438 = vld [vmem:[%s349 + $0x88] sm:$0xff]
        %v439 = vld [vmem:[%s349 + $0x90] sm:$0xff]
        %v440 = vld [vmem:[%s349 + $0x98] sm:$0xff]
        %v441 = vld [vmem:[%s349 + $0xa0] sm:$0xff]
        %v442 = vld [vmem:[%s349 + $0xa8] sm:$0xff]
        %v443 = vld [vmem:[%s349 + $0xb0] sm:$0xff]
        %v444 = vld [vmem:[%s349 + $0xb8] sm:$0xff]
        %v445 = vld [vmem:[%s349 + $0xc0] sm:$0xff]
        %v446 = vld [vmem:[%s349 + $0xc8] sm:$0xff]
        %v447 = vld [vmem:[%s349 + $0xd0] sm:$0xff]
        %v448 = vld [vmem:[%s349 + $0xd8] sm:$0xff]
        %v449 = vld [vmem:[%s349 + $0xe0] sm:$0xff]
        %v450 = vld [vmem:[%s349 + $0xe8] sm:$0xff]
        %v451 = vld [vmem:[%s349 + $0xf0] sm:$0xff]
        %v452 = vld [vmem:[%s349 + $0xf8] sm:$0xff]
        %v453 = vld [vmem:[#allocation5] sm:$0xff]
        %v454 = vld [vmem:[#allocation5 + $0x8] sm:$0xff]
        %v455 = vld [vmem:[#allocation5 + $0x10] sm:$0xff]
        %v456 = vld [vmem:[#allocation5 + $0x18] sm:$0xff]
        %v457 = vld [vmem:[#allocation5 + $0x20] sm:$0xff]
        %v458 = vld [vmem:[#allocation5 + $0x28] sm:$0xff]
        %v459 = vld [vmem:[#allocation5 + $0x30] sm:$0xff]
        %v460 = vld [vmem:[#allocation5 + $0x38] sm:$0xff]
        %v461 = vld [vmem:[#allocation5 + $0x40] sm:$0xff]
        %v462 = vld [vmem:[#allocation5 + $0x48] sm:$0xff]
        %v463 = vld [vmem:[#allocation5 + $0x50] sm:$0xff]
        %v464 = vld [vmem:[#allocation5 + $0x58] sm:$0xff]
        %v465 = vld [vmem:[#allocation5 + $0x60] sm:$0xff]
        %v466 = vld [vmem:[#allocation5 + $0x68] sm:$0xff]
        %v467 = vld [vmem:[#allocation5 + $0x70] sm:$0xff]
        %v468 = vld [vmem:[#allocation5 + $0x78] sm:$0xff]
        %v469 = vld [vmem:[%s2] sm:$0x1]
        %v471 = vperm.slane %v469, 0
        %473 = vmatpush.msra.mxu0 %v468
        %474 = vmatpush.msra.mxu0 %v467
        %475 = vmatpush.msra.mxu0 %v466
        %476 = vmatpush.msra.mxu0 %v465
        %477 = vmatpush.msra.mxu0 %v464
        %478 = vmatpush.msra.mxu0 %v463
        %479 = vmatpush.msra.mxu0 %v462
        %480 = vmatpush.msra.mxu0 %v461
        %481 = vmatpush.msra.mxu0 %v460
        %482 = vmatpush.msra.mxu0 %v459
        %483 = vmatpush.msra.mxu0 %v458
        %484 = vmatpush.msra.mxu0 %v457
        %485 = vmatpush.msra.mxu0 %v456
        %486 = vmatpush.msra.mxu0 %v455
        %487 = vmatpush.msra.mxu0 %v454
        %488 = vmatpush.msra.mxu0 %v453
        %489 = vmatmul.f32.gmra.mxu0 %v421
        %v490 = vpop.f32.mrf.mxu0
        %v491 = vadd.f32 %v471, %v490
        %492 = vmatmul.f32.gmra.mxu0 %v422
        %v493 = vpop.f32.mrf.mxu0
        %v494 = vadd.f32 %v471, %v493
        %495 = vmatmul.f32.gmra.mxu0 %v423
        %v496 = vpop.f32.mrf.mxu0
        %v497 = vadd.f32 %v471, %v496
        %498 = vmatmul.f32.gmra.mxu0 %v424
        %v499 = vpop.f32.mrf.mxu0
        %v500 = vadd.f32 %v471, %v499
        %501 = vmatmul.f32.gmra.mxu0 %v425
        %v502 = vpop.f32.mrf.mxu0
        %v503 = vadd.f32 %v471, %v502
        %504 = vmatmul.f32.gmra.mxu0 %v426
        %v505 = vpop.f32.mrf.mxu0
        %v506 = vadd.f32 %v471, %v505
        %507 = vmatmul.f32.gmra.mxu0 %v427
        %v508 = vpop.f32.mrf.mxu0
        %v509 = vadd.f32 %v471, %v508
        %510 = vmatmul.f32.gmra.mxu0 %v428
        %v511 = vpop.f32.mrf.mxu0
        %v512 = vadd.f32 %v471, %v511
        %513 = vmatmul.f32.gmra.mxu0 %v429
        %v514 = vpop.f32.mrf.mxu0
        %v515 = vadd.f32 %v471, %v514
        %516 = vmatmul.f32.gmra.mxu0 %v430
        %v517 = vpop.f32.mrf.mxu0
        %v518 = vadd.f32 %v471, %v517
        %519 = vmatmul.f32.gmra.mxu0 %v431
        %v520 = vpop.f32.mrf.mxu0
        %v521 = vadd.f32 %v471, %v520
        %522 = vmatmul.f32.gmra.mxu0 %v432
        %v523 = vpop.f32.mrf.mxu0
        %v524 = vadd.f32 %v471, %v523
        %525 = vmatmul.f32.gmra.mxu0 %v433
        %v526 = vpop.f32.mrf.mxu0
        %v527 = vadd.f32 %v471, %v526
        %528 = vmatmul.f32.gmra.mxu0 %v434
        %v529 = vpop.f32.mrf.mxu0
        %v530 = vadd.f32 %v471, %v529
        %531 = vmatmul.f32.gmra.mxu0 %v435
        %v532 = vpop.f32.mrf.mxu0
        %v533 = vadd.f32 %v471, %v532
        %534 = vmatmul.f32.gmra.mxu0 %v436
        %v535 = vpop.f32.mrf.mxu0
        %v536 = vadd.f32 %v471, %v535
        %537 = vmatmul.f32.gmra.mxu0 %v437
        %v538 = vpop.f32.mrf.mxu0
        %v539 = vadd.f32 %v471, %v538
        %540 = vmatmul.f32.gmra.mxu0 %v438
        %v541 = vpop.f32.mrf.mxu0
        %v542 = vadd.f32 %v471, %v541
        %543 = vmatmul.f32.gmra.mxu0 %v439
        %v544 = vpop.f32.mrf.mxu0
        %v545 = vadd.f32 %v471, %v544
        %546 = vmatmul.f32.gmra.mxu0 %v440
        %v547 = vpop.f32.mrf.mxu0
        %v548 = vadd.f32 %v471, %v547
        %549 = vmatmul.f32.gmra.mxu0 %v441
        %v550 = vpop.f32.mrf.mxu0
        %v551 = vadd.f32 %v471, %v550
        %552 = vmatmul.f32.gmra.mxu0 %v442
        %v553 = vpop.f32.mrf.mxu0
        %v554 = vadd.f32 %v471, %v553
        %555 = vmatmul.f32.gmra.mxu0 %v443
        %v556 = vpop.f32.mrf.mxu0
        %v557 = vadd.f32 %v471, %v556
        %558 = vmatmul.f32.gmra.mxu0 %v444
        %v559 = vpop.f32.mrf.mxu0
        %v560 = vadd.f32 %v471, %v559
        %561 = vmatmul.f32.gmra.mxu0 %v445
        %v562 = vpop.f32.mrf.mxu0
        %v563 = vadd.f32 %v471, %v562
        %564 = vmatmul.f32.gmra.mxu0 %v446
        %v565 = vpop.f32.mrf.mxu0
        %v566 = vadd.f32 %v471, %v565
        %567 = vmatmul.f32.gmra.mxu0 %v447
        %v568 = vpop.f32.mrf.mxu0
        %v569 = vadd.f32 %v471, %v568
        %570 = vmatmul.f32.gmra.mxu0 %v448
        %v571 = vpop.f32.mrf.mxu0
        %v572 = vadd.f32 %v471, %v571
        %573 = vmatmul.f32.gmra.mxu0 %v449
        %v574 = vpop.f32.mrf.mxu0
        %v575 = vadd.f32 %v471, %v574
        %576 = vmatmul.f32.gmra.mxu0 %v450
        %v577 = vpop.f32.mrf.mxu0
        %v578 = vadd.f32 %v471, %v577
        %579 = vmatmul.f32.gmra.mxu0 %v451
        %v580 = vpop.f32.mrf.mxu0
        %v581 = vadd.f32 %v471, %v580
        %582 = vmatmul.f32.gmra.mxu0 %v452
        %v583 = vpop.f32.mrf.mxu0
        %v584 = vadd.f32 %v471, %v583
        %585 = vdwg.mxu0
        %v586 = vlaneseq
        %v587 = vand.u32 %v586, 127
        %588 = vmax.xlane.f32.xlu0 %v491
        %v589 = vpop.xlane.xlu0 %588
        %590 = vmax.xlane.f32.xlu0 %v494
        %v591 = vpop.xlane.xlu0 %590
        %592 = vmax.xlane.f32.xlu0 %v497
        %v593 = vpop.xlane.xlu0 %592
        %594 = vmax.xlane.f32.xlu0 %v500
        %v595 = vpop.xlane.xlu0 %594
        %596 = vmax.xlane.f32.xlu0 %v503
        %v597 = vpop.xlane.xlu0 %596
        %598 = vmax.xlane.f32.xlu0 %v506
        %v599 = vpop.xlane.xlu0 %598
        %600 = vmax.xlane.f32.xlu0 %v509
        %v601 = vpop.xlane.xlu0 %600
        %602 = vmax.xlane.f32.xlu0 %v512
        %v603 = vpop.xlane.xlu0 %602
        %604 = vmax.xlane.f32.xlu0 %v515
        %v605 = vpop.xlane.xlu0 %604
        %606 = vmax.xlane.f32.xlu0 %v518
        %v607 = vpop.xlane.xlu0 %606
        %608 = vmax.xlane.f32.xlu0 %v521
        %v609 = vpop.xlane.xlu0 %608
        %610 = vmax.xlane.f32.xlu0 %v524
        %v611 = vpop.xlane.xlu0 %610
        %612 = vmax.xlane.f32.xlu0 %v527
        %v613 = vpop.xlane.xlu0 %612
        %614 = vmax.xlane.f32.xlu0 %v530
        %v615 = vpop.xlane.xlu0 %614
        %616 = vmax.xlane.f32.xlu0 %v533
        %v617 = vpop.xlane.xlu0 %616
        %618 = vmax.xlane.f32.xlu0 %v536
        %v619 = vpop.xlane.xlu0 %618
        %620 = vmax.xlane.f32.xlu0 %v539
        %v621 = vpop.xlane.xlu0 %620
        %622 = vmax.xlane.f32.xlu0 %v542
        %v623 = vpop.xlane.xlu0 %622
        %624 = vmax.xlane.f32.xlu0 %v545
        %v625 = vpop.xlane.xlu0 %624
        %626 = vmax.xlane.f32.xlu0 %v548
        %v627 = vpop.xlane.xlu0 %626
        %628 = vmax.xlane.f32.xlu0 %v551
        %v629 = vpop.xlane.xlu0 %628
        %630 = vmax.xlane.f32.xlu0 %v554
        %v631 = vpop.xlane.xlu0 %630
        %632 = vmax.xlane.f32.xlu0 %v557
        %v633 = vpop.xlane.xlu0 %632
        %634 = vmax.xlane.f32.xlu0 %v560
        %v635 = vpop.xlane.xlu0 %634
        %636 = vmax.xlane.f32.xlu0 %v563
        %v637 = vpop.xlane.xlu0 %636
        %638 = vmax.xlane.f32.xlu0 %v566
        %v639 = vpop.xlane.xlu0 %638
        %640 = vmax.xlane.f32.xlu0 %v569
        %v641 = vpop.xlane.xlu0 %640
        %642 = vmax.xlane.f32.xlu0 %v572
        %v643 = vpop.xlane.xlu0 %642
        %644 = vmax.xlane.f32.xlu0 %v575
        %v645 = vpop.xlane.xlu0 %644
        %646 = vmax.xlane.f32.xlu0 %v578
        %v647 = vpop.xlane.xlu0 %646
        %648 = vmax.xlane.f32.xlu0 %v581
        %v649 = vpop.xlane.xlu0 %648
        %650 = vmax.xlane.f32.xlu0 %v584
        %v651 = vpop.xlane.xlu0 %650
        %vm652 = vcmp.eq.f32.partialorder %v491, %v589
        %vm653 = vcmp.eq.f32.partialorder %v494, %v591
        %vm654 = vcmp.eq.f32.partialorder %v497, %v593
        %vm655 = vcmp.eq.f32.partialorder %v500, %v595
        %vm656 = vcmp.eq.f32.partialorder %v503, %v597
        %vm657 = vcmp.eq.f32.partialorder %v506, %v599
        %vm658 = vcmp.eq.f32.partialorder %v509, %v601
        %vm659 = vcmp.eq.f32.partialorder %v512, %v603
        %vm660 = vcmp.eq.f32.partialorder %v515, %v605
        %vm661 = vcmp.eq.f32.partialorder %v518, %v607
        %vm662 = vcmp.eq.f32.partialorder %v521, %v609
        %vm663 = vcmp.eq.f32.partialorder %v524, %v611
        %vm664 = vcmp.eq.f32.partialorder %v527, %v613
        %vm665 = vcmp.eq.f32.partialorder %v530, %v615
        %vm666 = vcmp.eq.f32.partialorder %v533, %v617
        %vm667 = vcmp.eq.f32.partialorder %v536, %v619
        %vm668 = vcmp.eq.f32.partialorder %v539, %v621
        %vm669 = vcmp.eq.f32.partialorder %v542, %v623
        %vm670 = vcmp.eq.f32.partialorder %v545, %v625
        %vm671 = vcmp.eq.f32.partialorder %v548, %v627
        %vm672 = vcmp.eq.f32.partialorder %v551, %v629
        %vm673 = vcmp.eq.f32.partialorder %v554, %v631
        %vm674 = vcmp.eq.f32.partialorder %v557, %v633
        %vm675 = vcmp.eq.f32.partialorder %v560, %v635
        %vm676 = vcmp.eq.f32.partialorder %v563, %v637
        %vm677 = vcmp.eq.f32.partialorder %v566, %v639
        %vm678 = vcmp.eq.f32.partialorder %v569, %v641
        %vm679 = vcmp.eq.f32.partialorder %v572, %v643
        %vm680 = vcmp.eq.f32.partialorder %v575, %v645
        %vm681 = vcmp.eq.f32.partialorder %v578, %v647
        %vm682 = vcmp.eq.f32.partialorder %v581, %v649
        %vm683 = vcmp.eq.f32.partialorder %v584, %v651
        %v684 = vsel %vm652, %v587, 128
        %v685 = vsel %vm653, %v587, 128
        %v686 = vsel %vm654, %v587, 128
        %v687 = vsel %vm655, %v587, 128
        %v688 = vsel %vm656, %v587, 128
        %v689 = vsel %vm657, %v587, 128
        %v690 = vsel %vm658, %v587, 128
        %v691 = vsel %vm659, %v587, 128
        %v692 = vsel %vm660, %v587, 128
        %v693 = vsel %vm661, %v587, 128
        %v694 = vsel %vm662, %v587, 128
        %v695 = vsel %vm663, %v587, 128
        %v696 = vsel %vm664, %v587, 128
        %v697 = vsel %vm665, %v587, 128
        %v698 = vsel %vm666, %v587, 128
        %v699 = vsel %vm667, %v587, 128
        %v700 = vsel %vm668, %v587, 128
        %v701 = vsel %vm669, %v587, 128
        %v702 = vsel %vm670, %v587, 128
        %v703 = vsel %vm671, %v587, 128
        %v704 = vsel %vm672, %v587, 128
        %v705 = vsel %vm673, %v587, 128
        %v706 = vsel %vm674, %v587, 128
        %v707 = vsel %vm675, %v587, 128
        %v708 = vsel %vm676, %v587, 128
        %v709 = vsel %vm677, %v587, 128
        %v710 = vsel %vm678, %v587, 128
        %v711 = vsel %vm679, %v587, 128
        %v712 = vsel %vm680, %v587, 128
        %v713 = vsel %vm681, %v587, 128
        %v714 = vsel %vm682, %v587, 128
        %v715 = vsel %vm683, %v587, 128
        %v716 = vand.u32 %v684, 65535
        %v717 = vshra.s32 %v684, 16
        %v718 = vcvt.s32.f32 %v716
        %v719 = vcvt.s32.f32 %v717
        %720 = vmin.xlane.f32.xlu0 %v719
        %v721 = vpop.xlane.xlu0 %720
        %vm722 = vcmp.eq.f32.partialorder %v719, %v721
        %v723 = vsel %vm722, %v718, inf
        %724 = vmin.xlane.f32.xlu0 %v723
        %v725 = vpop.xlane.xlu0 %724
        %v726 = vcvt.f32.s32 %v725
        %v727 = vcvt.f32.s32 %v721
        %v728 = vshll.u32 %v727, 16
        %v729 = vadd.s32 %v728, %v726
        %v730 = vand.u32 %v685, 65535
        %v731 = vshra.s32 %v685, 16
        %v732 = vcvt.s32.f32 %v730
        %v733 = vcvt.s32.f32 %v731
        %734 = vmin.xlane.f32.xlu0 %v733
        %v735 = vpop.xlane.xlu0 %734
        %vm736 = vcmp.eq.f32.partialorder %v733, %v735
        %v737 = vsel %vm736, %v732, inf
        %738 = vmin.xlane.f32.xlu0 %v737
        %v739 = vpop.xlane.xlu0 %738
        %v740 = vcvt.f32.s32 %v739
        %v741 = vcvt.f32.s32 %v735
        %v742 = vshll.u32 %v741, 16
        %v743 = vadd.s32 %v742, %v740
        %v744 = vand.u32 %v686, 65535
        %v745 = vshra.s32 %v686, 16
        %v746 = vcvt.s32.f32 %v744
        %v747 = vcvt.s32.f32 %v745
        %748 = vmin.xlane.f32.xlu0 %v747
        %v749 = vpop.xlane.xlu0 %748
        %vm750 = vcmp.eq.f32.partialorder %v747, %v749
        %v751 = vsel %vm750, %v746, inf
        %752 = vmin.xlane.f32.xlu0 %v751
        %v753 = vpop.xlane.xlu0 %752
        %v754 = vcvt.f32.s32 %v753
        %v755 = vcvt.f32.s32 %v749
        %v756 = vshll.u32 %v755, 16
        %v757 = vadd.s32 %v756, %v754
        %v758 = vand.u32 %v687, 65535
        %v759 = vshra.s32 %v687, 16
        %v760 = vcvt.s32.f32 %v758
        %v761 = vcvt.s32.f32 %v759
        %762 = vmin.xlane.f32.xlu0 %v761
        %v763 = vpop.xlane.xlu0 %762
        %vm764 = vcmp.eq.f32.partialorder %v761, %v763
        %v765 = vsel %vm764, %v760, inf
        %766 = vmin.xlane.f32.xlu0 %v765
        %v767 = vpop.xlane.xlu0 %766
        %v768 = vcvt.f32.s32 %v767
        %v769 = vcvt.f32.s32 %v763
        %v770 = vshll.u32 %v769, 16
        %v771 = vadd.s32 %v770, %v768
        %v772 = vand.u32 %v688, 65535
        %v773 = vshra.s32 %v688, 16
        %v774 = vcvt.s32.f32 %v772
        %v775 = vcvt.s32.f32 %v773
        %776 = vmin.xlane.f32.xlu0 %v775
        %v777 = vpop.xlane.xlu0 %776
        %vm778 = vcmp.eq.f32.partialorder %v775, %v777
        %v779 = vsel %vm778, %v774, inf
        %780 = vmin.xlane.f32.xlu0 %v779
        %v781 = vpop.xlane.xlu0 %780
        %v782 = vcvt.f32.s32 %v781
        %v783 = vcvt.f32.s32 %v777
        %v784 = vshll.u32 %v783, 16
        %v785 = vadd.s32 %v784, %v782
        %v786 = vand.u32 %v689, 65535
        %v787 = vshra.s32 %v689, 16
        %v788 = vcvt.s32.f32 %v786
        %v789 = vcvt.s32.f32 %v787
        %790 = vmin.xlane.f32.xlu0 %v789
        %v791 = vpop.xlane.xlu0 %790
        %vm792 = vcmp.eq.f32.partialorder %v789, %v791
        %v793 = vsel %vm792, %v788, inf
        %794 = vmin.xlane.f32.xlu0 %v793
        %v795 = vpop.xlane.xlu0 %794
        %v796 = vcvt.f32.s32 %v795
        %v797 = vcvt.f32.s32 %v791
        %v798 = vshll.u32 %v797, 16
        %v799 = vadd.s32 %v798, %v796
        %v800 = vand.u32 %v690, 65535
        %v801 = vshra.s32 %v690, 16
        %v802 = vcvt.s32.f32 %v800
        %v803 = vcvt.s32.f32 %v801
        %804 = vmin.xlane.f32.xlu0 %v803
        %v805 = vpop.xlane.xlu0 %804
        %vm806 = vcmp.eq.f32.partialorder %v803, %v805
        %v807 = vsel %vm806, %v802, inf
        %808 = vmin.xlane.f32.xlu0 %v807
        %v809 = vpop.xlane.xlu0 %808
        %v810 = vcvt.f32.s32 %v809
        %v811 = vcvt.f32.s32 %v805
        %v812 = vshll.u32 %v811, 16
        %v813 = vadd.s32 %v812, %v810
        %v814 = vand.u32 %v691, 65535
        %v815 = vshra.s32 %v691, 16
        %v816 = vcvt.s32.f32 %v814
        %v817 = vcvt.s32.f32 %v815
        %818 = vmin.xlane.f32.xlu0 %v817
        %v819 = vpop.xlane.xlu0 %818
        %vm820 = vcmp.eq.f32.partialorder %v817, %v819
        %v821 = vsel %vm820, %v816, inf
        %822 = vmin.xlane.f32.xlu0 %v821
        %v823 = vpop.xlane.xlu0 %822
        %v824 = vcvt.f32.s32 %v823
        %v825 = vcvt.f32.s32 %v819
        %v826 = vshll.u32 %v825, 16
        %v827 = vadd.s32 %v826, %v824
        %v828 = vand.u32 %v692, 65535
        %v829 = vshra.s32 %v692, 16
        %v830 = vcvt.s32.f32 %v828
        %v831 = vcvt.s32.f32 %v829
        %832 = vmin.xlane.f32.xlu0 %v831
        %v833 = vpop.xlane.xlu0 %832
        %vm834 = vcmp.eq.f32.partialorder %v831, %v833
        %v835 = vsel %vm834, %v830, inf
        %836 = vmin.xlane.f32.xlu0 %v835
        %v837 = vpop.xlane.xlu0 %836
        %v838 = vcvt.f32.s32 %v837
        %v839 = vcvt.f32.s32 %v833
        %v840 = vshll.u32 %v839, 16
        %v841 = vadd.s32 %v840, %v838
        %v842 = vand.u32 %v693, 65535
        %v843 = vshra.s32 %v693, 16
        %v844 = vcvt.s32.f32 %v842
        %v845 = vcvt.s32.f32 %v843
        %846 = vmin.xlane.f32.xlu0 %v845
        %v847 = vpop.xlane.xlu0 %846
        %vm848 = vcmp.eq.f32.partialorder %v845, %v847
        %v849 = vsel %vm848, %v844, inf
        %850 = vmin.xlane.f32.xlu0 %v849
        %v851 = vpop.xlane.xlu0 %850
        %v852 = vcvt.f32.s32 %v851
        %v853 = vcvt.f32.s32 %v847
        %v854 = vshll.u32 %v853, 16
        %v855 = vadd.s32 %v854, %v852
        %v856 = vand.u32 %v694, 65535
        %v857 = vshra.s32 %v694, 16
        %v858 = vcvt.s32.f32 %v856
        %v859 = vcvt.s32.f32 %v857
        %860 = vmin.xlane.f32.xlu0 %v859
        %v861 = vpop.xlane.xlu0 %860
        %vm862 = vcmp.eq.f32.partialorder %v859, %v861
        %v863 = vsel %vm862, %v858, inf
        %864 = vmin.xlane.f32.xlu0 %v863
        %v865 = vpop.xlane.xlu0 %864
        %v866 = vcvt.f32.s32 %v865
        %v867 = vcvt.f32.s32 %v861
        %v868 = vshll.u32 %v867, 16
        %v869 = vadd.s32 %v868, %v866
        %v870 = vand.u32 %v695, 65535
        %v871 = vshra.s32 %v695, 16
        %v872 = vcvt.s32.f32 %v870
        %v873 = vcvt.s32.f32 %v871
        %874 = vmin.xlane.f32.xlu0 %v873
        %v875 = vpop.xlane.xlu0 %874
        %vm876 = vcmp.eq.f32.partialorder %v873, %v875
        %v877 = vsel %vm876, %v872, inf
        %878 = vmin.xlane.f32.xlu0 %v877
        %v879 = vpop.xlane.xlu0 %878
        %v880 = vcvt.f32.s32 %v879
        %v881 = vcvt.f32.s32 %v875
        %v882 = vshll.u32 %v881, 16
        %v883 = vadd.s32 %v882, %v880
        %v884 = vand.u32 %v696, 65535
        %v885 = vshra.s32 %v696, 16
        %v886 = vcvt.s32.f32 %v884
        %v887 = vcvt.s32.f32 %v885
        %888 = vmin.xlane.f32.xlu0 %v887
        %v889 = vpop.xlane.xlu0 %888
        %vm890 = vcmp.eq.f32.partialorder %v887, %v889
        %v891 = vsel %vm890, %v886, inf
        %892 = vmin.xlane.f32.xlu0 %v891
        %v893 = vpop.xlane.xlu0 %892
        %v894 = vcvt.f32.s32 %v893
        %v895 = vcvt.f32.s32 %v889
        %v896 = vshll.u32 %v895, 16
        %v897 = vadd.s32 %v896, %v894
        %v898 = vand.u32 %v697, 65535
        %v899 = vshra.s32 %v697, 16
        %v900 = vcvt.s32.f32 %v898
        %v901 = vcvt.s32.f32 %v899
        %902 = vmin.xlane.f32.xlu0 %v901
        %v903 = vpop.xlane.xlu0 %902
        %vm904 = vcmp.eq.f32.partialorder %v901, %v903
        %v905 = vsel %vm904, %v900, inf
        %906 = vmin.xlane.f32.xlu0 %v905
        %v907 = vpop.xlane.xlu0 %906
        %v908 = vcvt.f32.s32 %v907
        %v909 = vcvt.f32.s32 %v903
        %v910 = vshll.u32 %v909, 16
        %v911 = vadd.s32 %v910, %v908
        %v912 = vand.u32 %v698, 65535
        %v913 = vshra.s32 %v698, 16
        %v914 = vcvt.s32.f32 %v912
        %v915 = vcvt.s32.f32 %v913
        %916 = vmin.xlane.f32.xlu0 %v915
        %v917 = vpop.xlane.xlu0 %916
        %vm918 = vcmp.eq.f32.partialorder %v915, %v917
        %v919 = vsel %vm918, %v914, inf
        %920 = vmin.xlane.f32.xlu0 %v919
        %v921 = vpop.xlane.xlu0 %920
        %v922 = vcvt.f32.s32 %v921
        %v923 = vcvt.f32.s32 %v917
        %v924 = vshll.u32 %v923, 16
        %v925 = vadd.s32 %v924, %v922
        %v926 = vand.u32 %v699, 65535
        %v927 = vshra.s32 %v699, 16
        %v928 = vcvt.s32.f32 %v926
        %v929 = vcvt.s32.f32 %v927
        %930 = vmin.xlane.f32.xlu0 %v929
        %v931 = vpop.xlane.xlu0 %930
        %vm932 = vcmp.eq.f32.partialorder %v929, %v931
        %v933 = vsel %vm932, %v928, inf
        %934 = vmin.xlane.f32.xlu0 %v933
        %v935 = vpop.xlane.xlu0 %934
        %v936 = vcvt.f32.s32 %v935
        %v937 = vcvt.f32.s32 %v931
        %v938 = vshll.u32 %v937, 16
        %v939 = vadd.s32 %v938, %v936
        %v940 = vand.u32 %v700, 65535
        %v941 = vshra.s32 %v700, 16
        %v942 = vcvt.s32.f32 %v940
        %v943 = vcvt.s32.f32 %v941
        %944 = vmin.xlane.f32.xlu0 %v943
        %v945 = vpop.xlane.xlu0 %944
        %vm946 = vcmp.eq.f32.partialorder %v943, %v945
        %v947 = vsel %vm946, %v942, inf
        %948 = vmin.xlane.f32.xlu0 %v947
        %v949 = vpop.xlane.xlu0 %948
        %v950 = vcvt.f32.s32 %v949
        %v951 = vcvt.f32.s32 %v945
        %v952 = vshll.u32 %v951, 16
        %v953 = vadd.s32 %v952, %v950
        %v954 = vand.u32 %v701, 65535
        %v955 = vshra.s32 %v701, 16
        %v956 = vcvt.s32.f32 %v954
        %v957 = vcvt.s32.f32 %v955
        %958 = vmin.xlane.f32.xlu0 %v957
        %v959 = vpop.xlane.xlu0 %958
        %vm960 = vcmp.eq.f32.partialorder %v957, %v959
        %v961 = vsel %vm960, %v956, inf
        %962 = vmin.xlane.f32.xlu0 %v961
        %v963 = vpop.xlane.xlu0 %962
        %v964 = vcvt.f32.s32 %v963
        %v965 = vcvt.f32.s32 %v959
        %v966 = vshll.u32 %v965, 16
        %v967 = vadd.s32 %v966, %v964
        %v968 = vand.u32 %v702, 65535
        %v969 = vshra.s32 %v702, 16
        %v970 = vcvt.s32.f32 %v968
        %v971 = vcvt.s32.f32 %v969
        %972 = vmin.xlane.f32.xlu0 %v971
        %v973 = vpop.xlane.xlu0 %972
        %vm974 = vcmp.eq.f32.partialorder %v971, %v973
        %v975 = vsel %vm974, %v970, inf
        %976 = vmin.xlane.f32.xlu0 %v975
        %v977 = vpop.xlane.xlu0 %976
        %v978 = vcvt.f32.s32 %v977
        %v979 = vcvt.f32.s32 %v973
        %v980 = vshll.u32 %v979, 16
        %v981 = vadd.s32 %v980, %v978
        %v982 = vand.u32 %v703, 65535
        %v983 = vshra.s32 %v703, 16
        %v984 = vcvt.s32.f32 %v982
        %v985 = vcvt.s32.f32 %v983
        %986 = vmin.xlane.f32.xlu0 %v985
        %v987 = vpop.xlane.xlu0 %986
        %vm988 = vcmp.eq.f32.partialorder %v985, %v987
        %v989 = vsel %vm988, %v984, inf
        %990 = vmin.xlane.f32.xlu0 %v989
        %v991 = vpop.xlane.xlu0 %990
        %v992 = vcvt.f32.s32 %v991
        %v993 = vcvt.f32.s32 %v987
        %v994 = vshll.u32 %v993, 16
        %v995 = vadd.s32 %v994, %v992
        %v996 = vand.u32 %v704, 65535
        %v997 = vshra.s32 %v704, 16
        %v998 = vcvt.s32.f32 %v996
        %v999 = vcvt.s32.f32 %v997
        %1000 = vmin.xlane.f32.xlu0 %v999
        %v1001 = vpop.xlane.xlu0 %1000
        %vm1002 = vcmp.eq.f32.partialorder %v999, %v1001
        %v1003 = vsel %vm1002, %v998, inf
        %1004 = vmin.xlane.f32.xlu0 %v1003
        %v1005 = vpop.xlane.xlu0 %1004
        %v1006 = vcvt.f32.s32 %v1005
        %v1007 = vcvt.f32.s32 %v1001
        %v1008 = vshll.u32 %v1007, 16
        %v1009 = vadd.s32 %v1008, %v1006
        %v1010 = vand.u32 %v705, 65535
        %v1011 = vshra.s32 %v705, 16
        %v1012 = vcvt.s32.f32 %v1010
        %v1013 = vcvt.s32.f32 %v1011
        %1014 = vmin.xlane.f32.xlu0 %v1013
        %v1015 = vpop.xlane.xlu0 %1014
        %vm1016 = vcmp.eq.f32.partialorder %v1013, %v1015
        %v1017 = vsel %vm1016, %v1012, inf
        %1018 = vmin.xlane.f32.xlu0 %v1017
        %v1019 = vpop.xlane.xlu0 %1018
        %v1020 = vcvt.f32.s32 %v1019
        %v1021 = vcvt.f32.s32 %v1015
        %v1022 = vshll.u32 %v1021, 16
        %v1023 = vadd.s32 %v1022, %v1020
        %v1024 = vand.u32 %v706, 65535
        %v1025 = vshra.s32 %v706, 16
        %v1026 = vcvt.s32.f32 %v1024
        %v1027 = vcvt.s32.f32 %v1025
        %1028 = vmin.xlane.f32.xlu0 %v1027
        %v1029 = vpop.xlane.xlu0 %1028
        %vm1030 = vcmp.eq.f32.partialorder %v1027, %v1029
        %v1031 = vsel %vm1030, %v1026, inf
        %1032 = vmin.xlane.f32.xlu0 %v1031
        %v1033 = vpop.xlane.xlu0 %1032
        %v1034 = vcvt.f32.s32 %v1033
        %v1035 = vcvt.f32.s32 %v1029
        %v1036 = vshll.u32 %v1035, 16
        %v1037 = vadd.s32 %v1036, %v1034
        %v1038 = vand.u32 %v707, 65535
        %v1039 = vshra.s32 %v707, 16
        %v1040 = vcvt.s32.f32 %v1038
        %v1041 = vcvt.s32.f32 %v1039
        %1042 = vmin.xlane.f32.xlu0 %v1041
        %v1043 = vpop.xlane.xlu0 %1042
        %vm1044 = vcmp.eq.f32.partialorder %v1041, %v1043
        %v1045 = vsel %vm1044, %v1040, inf
        %1046 = vmin.xlane.f32.xlu0 %v1045
        %v1047 = vpop.xlane.xlu0 %1046
        %v1048 = vcvt.f32.s32 %v1047
        %v1049 = vcvt.f32.s32 %v1043
        %v1050 = vshll.u32 %v1049, 16
        %v1051 = vadd.s32 %v1050, %v1048
        %v1052 = vand.u32 %v708, 65535
        %v1053 = vshra.s32 %v708, 16
        %v1054 = vcvt.s32.f32 %v1052
        %v1055 = vcvt.s32.f32 %v1053
        %1056 = vmin.xlane.f32.xlu0 %v1055
        %v1057 = vpop.xlane.xlu0 %1056
        %vm1058 = vcmp.eq.f32.partialorder %v1055, %v1057
        %v1059 = vsel %vm1058, %v1054, inf
        %1060 = vmin.xlane.f32.xlu0 %v1059
        %v1061 = vpop.xlane.xlu0 %1060
        %v1062 = vcvt.f32.s32 %v1061
        %v1063 = vcvt.f32.s32 %v1057
        %v1064 = vshll.u32 %v1063, 16
        %v1065 = vadd.s32 %v1064, %v1062
        %v1066 = vand.u32 %v709, 65535
        %v1067 = vshra.s32 %v709, 16
        %v1068 = vcvt.s32.f32 %v1066
        %v1069 = vcvt.s32.f32 %v1067
        %1070 = vmin.xlane.f32.xlu0 %v1069
        %v1071 = vpop.xlane.xlu0 %1070
        %vm1072 = vcmp.eq.f32.partialorder %v1069, %v1071
        %v1073 = vsel %vm1072, %v1068, inf
        %1074 = vmin.xlane.f32.xlu0 %v1073
        %v1075 = vpop.xlane.xlu0 %1074
        %v1076 = vcvt.f32.s32 %v1075
        %v1077 = vcvt.f32.s32 %v1071
        %v1078 = vshll.u32 %v1077, 16
        %v1079 = vadd.s32 %v1078, %v1076
        %v1080 = vand.u32 %v710, 65535
        %v1081 = vshra.s32 %v710, 16
        %v1082 = vcvt.s32.f32 %v1080
        %v1083 = vcvt.s32.f32 %v1081
        %1084 = vmin.xlane.f32.xlu0 %v1083
        %v1085 = vpop.xlane.xlu0 %1084
        %vm1086 = vcmp.eq.f32.partialorder %v1083, %v1085
        %v1087 = vsel %vm1086, %v1082, inf
        %1088 = vmin.xlane.f32.xlu0 %v1087
        %v1089 = vpop.xlane.xlu0 %1088
        %v1090 = vcvt.f32.s32 %v1089
        %v1091 = vcvt.f32.s32 %v1085
        %v1092 = vshll.u32 %v1091, 16
        %v1093 = vadd.s32 %v1092, %v1090
        %v1094 = vand.u32 %v711, 65535
        %v1095 = vshra.s32 %v711, 16
        %v1096 = vcvt.s32.f32 %v1094
        %v1097 = vcvt.s32.f32 %v1095
        %1098 = vmin.xlane.f32.xlu0 %v1097
        %v1099 = vpop.xlane.xlu0 %1098
        %vm1100 = vcmp.eq.f32.partialorder %v1097, %v1099
        %v1101 = vsel %vm1100, %v1096, inf
        %1102 = vmin.xlane.f32.xlu0 %v1101
        %v1103 = vpop.xlane.xlu0 %1102
        %v1104 = vcvt.f32.s32 %v1103
        %v1105 = vcvt.f32.s32 %v1099
        %v1106 = vshll.u32 %v1105, 16
        %v1107 = vadd.s32 %v1106, %v1104
        %v1108 = vand.u32 %v712, 65535
        %v1109 = vshra.s32 %v712, 16
        %v1110 = vcvt.s32.f32 %v1108
        %v1111 = vcvt.s32.f32 %v1109
        %1112 = vmin.xlane.f32.xlu0 %v1111
        %v1113 = vpop.xlane.xlu0 %1112
        %vm1114 = vcmp.eq.f32.partialorder %v1111, %v1113
        %v1115 = vsel %vm1114, %v1110, inf
        %1116 = vmin.xlane.f32.xlu0 %v1115
        %v1117 = vpop.xlane.xlu0 %1116
        %v1118 = vcvt.f32.s32 %v1117
        %v1119 = vcvt.f32.s32 %v1113
        %v1120 = vshll.u32 %v1119, 16
        %v1121 = vadd.s32 %v1120, %v1118
        %v1122 = vand.u32 %v713, 65535
        %v1123 = vshra.s32 %v713, 16
        %v1124 = vcvt.s32.f32 %v1122
        %v1125 = vcvt.s32.f32 %v1123
        %1126 = vmin.xlane.f32.xlu0 %v1125
        %v1127 = vpop.xlane.xlu0 %1126
        %vm1128 = vcmp.eq.f32.partialorder %v1125, %v1127
        %v1129 = vsel %vm1128, %v1124, inf
        %1130 = vmin.xlane.f32.xlu0 %v1129
        %v1131 = vpop.xlane.xlu0 %1130
        %v1132 = vcvt.f32.s32 %v1131
        %v1133 = vcvt.f32.s32 %v1127
        %v1134 = vshll.u32 %v1133, 16
        %v1135 = vadd.s32 %v1134, %v1132
        %v1136 = vand.u32 %v714, 65535
        %v1137 = vshra.s32 %v714, 16
        %v1138 = vcvt.s32.f32 %v1136
        %v1139 = vcvt.s32.f32 %v1137
        %1140 = vmin.xlane.f32.xlu0 %v1139
        %v1141 = vpop.xlane.xlu0 %1140
        %vm1142 = vcmp.eq.f32.partialorder %v1139, %v1141
        %v1143 = vsel %vm1142, %v1138, inf
        %1144 = vmin.xlane.f32.xlu0 %v1143
        %v1145 = vpop.xlane.xlu0 %1144
        %v1146 = vcvt.f32.s32 %v1145
        %v1147 = vcvt.f32.s32 %v1141
        %v1148 = vshll.u32 %v1147, 16
        %v1149 = vadd.s32 %v1148, %v1146
        %v1150 = vand.u32 %v715, 65535
        %v1151 = vshra.s32 %v715, 16
        %v1152 = vcvt.s32.f32 %v1150
        %v1153 = vcvt.s32.f32 %v1151
        %1154 = vmin.xlane.f32.xlu0 %v1153
        %v1155 = vpop.xlane.xlu0 %1154
        %vm1156 = vcmp.eq.f32.partialorder %v1153, %v1155
        %v1157 = vsel %vm1156, %v1152, inf
        %1158 = vmin.xlane.f32.xlu0 %v1157
        %v1159 = vpop.xlane.xlu0 %1158
        %v1160 = vcvt.f32.s32 %v1159
        %v1161 = vcvt.f32.s32 %v1155
        %v1162 = vshll.u32 %v1161, 16
        %v1163 = vadd.s32 %v1162, %v1160
        %vm1164 = vcmp.eq.s32.totalorder %v587, %v729
        %vm1165 = vcmp.eq.s32.totalorder %v587, %v743
        %vm1166 = vcmp.eq.s32.totalorder %v587, %v757
        %vm1167 = vcmp.eq.s32.totalorder %v587, %v771
        %vm1168 = vcmp.eq.s32.totalorder %v587, %v785
        %vm1169 = vcmp.eq.s32.totalorder %v587, %v799
        %vm1170 = vcmp.eq.s32.totalorder %v587, %v813
        %vm1171 = vcmp.eq.s32.totalorder %v587, %v827
        %vm1172 = vcmp.eq.s32.totalorder %v587, %v841
        %vm1173 = vcmp.eq.s32.totalorder %v587, %v855
        %vm1174 = vcmp.eq.s32.totalorder %v587, %v869
        %vm1175 = vcmp.eq.s32.totalorder %v587, %v883
        %vm1176 = vcmp.eq.s32.totalorder %v587, %v897
        %vm1177 = vcmp.eq.s32.totalorder %v587, %v911
        %vm1178 = vcmp.eq.s32.totalorder %v587, %v925
        %vm1179 = vcmp.eq.s32.totalorder %v587, %v939
        %vm1180 = vcmp.eq.s32.totalorder %v587, %v953
        %vm1181 = vcmp.eq.s32.totalorder %v587, %v967
        %vm1182 = vcmp.eq.s32.totalorder %v587, %v981
        %vm1183 = vcmp.eq.s32.totalorder %v587, %v995
        %vm1184 = vcmp.eq.s32.totalorder %v587, %v1009
        %vm1185 = vcmp.eq.s32.totalorder %v587, %v1023
        %vm1186 = vcmp.eq.s32.totalorder %v587, %v1037
        %vm1187 = vcmp.eq.s32.totalorder %v587, %v1051
        %vm1188 = vcmp.eq.s32.totalorder %v587, %v1065
        %vm1189 = vcmp.eq.s32.totalorder %v587, %v1079
        %vm1190 = vcmp.eq.s32.totalorder %v587, %v1093
        %vm1191 = vcmp.eq.s32.totalorder %v587, %v1107
        %vm1192 = vcmp.eq.s32.totalorder %v587, %v1121
        %vm1193 = vcmp.eq.s32.totalorder %v587, %v1135
        %vm1194 = vcmp.eq.s32.totalorder %v587, %v1149
        %vm1195 = vcmp.eq.s32.totalorder %v587, %v1163
        %v1196 = vsel %vm1164, 1, 0
        %v1197 = vsel %vm1165, 1, 0
        %v1198 = vsel %vm1166, 1, 0
        %v1199 = vsel %vm1167, 1, 0
        %v1200 = vsel %vm1168, 1, 0
        %v1201 = vsel %vm1169, 1, 0
        %v1202 = vsel %vm1170, 1, 0
        %v1203 = vsel %vm1171, 1, 0
        %v1204 = vsel %vm1172, 1, 0
        %v1205 = vsel %vm1173, 1, 0
        %v1206 = vsel %vm1174, 1, 0
        %v1207 = vsel %vm1175, 1, 0
        %v1208 = vsel %vm1176, 1, 0
        %v1209 = vsel %vm1177, 1, 0
        %v1210 = vsel %vm1178, 1, 0
        %v1211 = vsel %vm1179, 1, 0
        %v1212 = vsel %vm1180, 1, 0
        %v1213 = vsel %vm1181, 1, 0
        %v1214 = vsel %vm1182, 1, 0
        %v1215 = vsel %vm1183, 1, 0
        %v1216 = vsel %vm1184, 1, 0
        %v1217 = vsel %vm1185, 1, 0
        %v1218 = vsel %vm1186, 1, 0
        %v1219 = vsel %vm1187, 1, 0
        %v1220 = vsel %vm1188, 1, 0
        %v1221 = vsel %vm1189, 1, 0
        %v1222 = vsel %vm1190, 1, 0
        %v1223 = vsel %vm1191, 1, 0
        %v1224 = vsel %vm1192, 1, 0
        %v1225 = vsel %vm1193, 1, 0
        %v1226 = vsel %vm1194, 1, 0
        %v1227 = vsel %vm1195, 1, 0
        %v1228 = vcvt.s32.f32 %v1196
        %v1229 = vcvt.s32.f32 %v1197
        %v1230 = vcvt.s32.f32 %v1198
        %v1231 = vcvt.s32.f32 %v1199
        %v1232 = vcvt.s32.f32 %v1200
        %v1233 = vcvt.s32.f32 %v1201
        %v1234 = vcvt.s32.f32 %v1202
        %v1235 = vcvt.s32.f32 %v1203
        %v1236 = vcvt.s32.f32 %v1204
        %v1237 = vcvt.s32.f32 %v1205
        %v1238 = vcvt.s32.f32 %v1206
        %v1239 = vcvt.s32.f32 %v1207
        %v1240 = vcvt.s32.f32 %v1208
        %v1241 = vcvt.s32.f32 %v1209
        %v1242 = vcvt.s32.f32 %v1210
        %v1243 = vcvt.s32.f32 %v1211
        %v1244 = vcvt.s32.f32 %v1212
        %v1245 = vcvt.s32.f32 %v1213
        %v1246 = vcvt.s32.f32 %v1214
        %v1247 = vcvt.s32.f32 %v1215
        %v1248 = vcvt.s32.f32 %v1216
        %v1249 = vcvt.s32.f32 %v1217
        %v1250 = vcvt.s32.f32 %v1218
        %v1251 = vcvt.s32.f32 %v1219
        %v1252 = vcvt.s32.f32 %v1220
        %v1253 = vcvt.s32.f32 %v1221
        %v1254 = vcvt.s32.f32 %v1222
        %v1255 = vcvt.s32.f32 %v1223
        %v1256 = vcvt.s32.f32 %v1224
        %v1257 = vcvt.s32.f32 %v1225
        %v1258 = vcvt.s32.f32 %v1226
        %v1259 = vcvt.s32.f32 %v1227
        %vm1260 = vcmp.gt.f32.partialorder %v1228, 0.0
        %vm1261 = vcmp.gt.f32.partialorder %v1229, 0.0
        %vm1262 = vcmp.gt.f32.partialorder %v1230, 0.0
        %vm1263 = vcmp.gt.f32.partialorder %v1231, 0.0
        %vm1264 = vcmp.gt.f32.partialorder %v1232, 0.0
        %vm1265 = vcmp.gt.f32.partialorder %v1233, 0.0
        %vm1266 = vcmp.gt.f32.partialorder %v1234, 0.0
        %vm1267 = vcmp.gt.f32.partialorder %v1235, 0.0
        %vm1268 = vcmp.gt.f32.partialorder %v1236, 0.0
        %vm1269 = vcmp.gt.f32.partialorder %v1237, 0.0
        %vm1270 = vcmp.gt.f32.partialorder %v1238, 0.0
        %vm1271 = vcmp.gt.f32.partialorder %v1239, 0.0
        %vm1272 = vcmp.gt.f32.partialorder %v1240, 0.0
        %vm1273 = vcmp.gt.f32.partialorder %v1241, 0.0
        %vm1274 = vcmp.gt.f32.partialorder %v1242, 0.0
        %vm1275 = vcmp.gt.f32.partialorder %v1243, 0.0
        %vm1276 = vcmp.gt.f32.partialorder %v1244, 0.0
        %vm1277 = vcmp.gt.f32.partialorder %v1245, 0.0
        %vm1278 = vcmp.gt.f32.partialorder %v1246, 0.0
        %vm1279 = vcmp.gt.f32.partialorder %v1247, 0.0
        %vm1280 = vcmp.gt.f32.partialorder %v1248, 0.0
        %vm1281 = vcmp.gt.f32.partialorder %v1249, 0.0
        %vm1282 = vcmp.gt.f32.partialorder %v1250, 0.0
        %vm1283 = vcmp.gt.f32.partialorder %v1251, 0.0
        %vm1284 = vcmp.gt.f32.partialorder %v1252, 0.0
        %vm1285 = vcmp.gt.f32.partialorder %v1253, 0.0
        %vm1286 = vcmp.gt.f32.partialorder %v1254, 0.0
        %vm1287 = vcmp.gt.f32.partialorder %v1255, 0.0
        %vm1288 = vcmp.gt.f32.partialorder %v1256, 0.0
        %vm1289 = vcmp.gt.f32.partialorder %v1257, 0.0
        %vm1290 = vcmp.gt.f32.partialorder %v1258, 0.0
        %vm1291 = vcmp.gt.f32.partialorder %v1259, 0.0
        %v1292 = vsel %vm1260, -inf, %v491
        %v1293 = vsel %vm1261, -inf, %v494
        %v1294 = vsel %vm1262, -inf, %v497
        %v1295 = vsel %vm1263, -inf, %v500
        %v1296 = vsel %vm1264, -inf, %v503
        %v1297 = vsel %vm1265, -inf, %v506
        %v1298 = vsel %vm1266, -inf, %v509
        %v1299 = vsel %vm1267, -inf, %v512
        %v1300 = vsel %vm1268, -inf, %v515
        %v1301 = vsel %vm1269, -inf, %v518
        %v1302 = vsel %vm1270, -inf, %v521
        %v1303 = vsel %vm1271, -inf, %v524
        %v1304 = vsel %vm1272, -inf, %v527
        %v1305 = vsel %vm1273, -inf, %v530
        %v1306 = vsel %vm1274, -inf, %v533
        %v1307 = vsel %vm1275, -inf, %v536
        %v1308 = vsel %vm1276, -inf, %v539
        %v1309 = vsel %vm1277, -inf, %v542
        %v1310 = vsel %vm1278, -inf, %v545
        %v1311 = vsel %vm1279, -inf, %v548
        %v1312 = vsel %vm1280, -inf, %v551
        %v1313 = vsel %vm1281, -inf, %v554
        %v1314 = vsel %vm1282, -inf, %v557
        %v1315 = vsel %vm1283, -inf, %v560
        %v1316 = vsel %vm1284, -inf, %v563
        %v1317 = vsel %vm1285, -inf, %v566
        %v1318 = vsel %vm1286, -inf, %v569
        %v1319 = vsel %vm1287, -inf, %v572
        %v1320 = vsel %vm1288, -inf, %v575
        %v1321 = vsel %vm1289, -inf, %v578
        %v1322 = vsel %vm1290, -inf, %v581
        %v1323 = vsel %vm1291, -inf, %v584
        %1324 = vmax.xlane.f32.xlu0 %v1292
        %v1325 = vpop.xlane.xlu0 %1324
        %1326 = vmax.xlane.f32.xlu0 %v1293
        %v1327 = vpop.xlane.xlu0 %1326
        %1328 = vmax.xlane.f32.xlu0 %v1294
        %v1329 = vpop.xlane.xlu0 %1328
        %1330 = vmax.xlane.f32.xlu0 %v1295
        %v1331 = vpop.xlane.xlu0 %1330
        %1332 = vmax.xlane.f32.xlu0 %v1296
        %v1333 = vpop.xlane.xlu0 %1332
        %1334 = vmax.xlane.f32.xlu0 %v1297
        %v1335 = vpop.xlane.xlu0 %1334
        %1336 = vmax.xlane.f32.xlu0 %v1298
        %v1337 = vpop.xlane.xlu0 %1336
        %1338 = vmax.xlane.f32.xlu0 %v1299
        %v1339 = vpop.xlane.xlu0 %1338
        %1340 = vmax.xlane.f32.xlu0 %v1300
        %v1341 = vpop.xlane.xlu0 %1340
        %1342 = vmax.xlane.f32.xlu0 %v1301
        %v1343 = vpop.xlane.xlu0 %1342
        %1344 = vmax.xlane.f32.xlu0 %v1302
        %v1345 = vpop.xlane.xlu0 %1344
        %1346 = vmax.xlane.f32.xlu0 %v1303
        %v1347 = vpop.xlane.xlu0 %1346
        %1348 = vmax.xlane.f32.xlu0 %v1304
        %v1349 = vpop.xlane.xlu0 %1348
        %1350 = vmax.xlane.f32.xlu0 %v1305
        %v1351 = vpop.xlane.xlu0 %1350
        %1352 = vmax.xlane.f32.xlu0 %v1306
        %v1353 = vpop.xlane.xlu0 %1352
        %1354 = vmax.xlane.f32.xlu0 %v1307
        %v1355 = vpop.xlane.xlu0 %1354
        %1356 = vmax.xlane.f32.xlu0 %v1308
        %v1357 = vpop.xlane.xlu0 %1356
        %1358 = vmax.xlane.f32.xlu0 %v1309
        %v1359 = vpop.xlane.xlu0 %1358
        %1360 = vmax.xlane.f32.xlu0 %v1310
        %v1361 = vpop.xlane.xlu0 %1360
        %1362 = vmax.xlane.f32.xlu0 %v1311
        %v1363 = vpop.xlane.xlu0 %1362
        %1364 = vmax.xlane.f32.xlu0 %v1312
        %v1365 = vpop.xlane.xlu0 %1364
        %1366 = vmax.xlane.f32.xlu0 %v1313
        %v1367 = vpop.xlane.xlu0 %1366
        %1368 = vmax.xlane.f32.xlu0 %v1314
        %v1369 = vpop.xlane.xlu0 %1368
        %1370 = vmax.xlane.f32.xlu0 %v1315
        %v1371 = vpop.xlane.xlu0 %1370
        %1372 = vmax.xlane.f32.xlu0 %v1316
        %v1373 = vpop.xlane.xlu0 %1372
        %1374 = vmax.xlane.f32.xlu0 %v1317
        %v1375 = vpop.xlane.xlu0 %1374
        %1376 = vmax.xlane.f32.xlu0 %v1318
        %v1377 = vpop.xlane.xlu0 %1376
        %1378 = vmax.xlane.f32.xlu0 %v1319
        %v1379 = vpop.xlane.xlu0 %1378
        %1380 = vmax.xlane.f32.xlu0 %v1320
        %v1381 = vpop.xlane.xlu0 %1380
        %1382 = vmax.xlane.f32.xlu0 %v1321
        %v1383 = vpop.xlane.xlu0 %1382
        %1384 = vmax.xlane.f32.xlu0 %v1322
        %v1385 = vpop.xlane.xlu0 %1384
        %1386 = vmax.xlane.f32.xlu0 %v1323
        %v1387 = vpop.xlane.xlu0 %1386
        %vm1388 = vcmp.eq.f32.partialorder %v1292, %v1325
        %vm1389 = vcmp.eq.f32.partialorder %v1293, %v1327
        %vm1390 = vcmp.eq.f32.partialorder %v1294, %v1329
        %vm1391 = vcmp.eq.f32.partialorder %v1295, %v1331
        %vm1392 = vcmp.eq.f32.partialorder %v1296, %v1333
        %vm1393 = vcmp.eq.f32.partialorder %v1297, %v1335
        %vm1394 = vcmp.eq.f32.partialorder %v1298, %v1337
        %vm1395 = vcmp.eq.f32.partialorder %v1299, %v1339
        %vm1396 = vcmp.eq.f32.partialorder %v1300, %v1341
        %vm1397 = vcmp.eq.f32.partialorder %v1301, %v1343
        %vm1398 = vcmp.eq.f32.partialorder %v1302, %v1345
        %vm1399 = vcmp.eq.f32.partialorder %v1303, %v1347
        %vm1400 = vcmp.eq.f32.partialorder %v1304, %v1349
        %vm1401 = vcmp.eq.f32.partialorder %v1305, %v1351
        %vm1402 = vcmp.eq.f32.partialorder %v1306, %v1353
        %vm1403 = vcmp.eq.f32.partialorder %v1307, %v1355
        %vm1404 = vcmp.eq.f32.partialorder %v1308, %v1357
        %vm1405 = vcmp.eq.f32.partialorder %v1309, %v1359
        %vm1406 = vcmp.eq.f32.partialorder %v1310, %v1361
        %vm1407 = vcmp.eq.f32.partialorder %v1311, %v1363
        %vm1408 = vcmp.eq.f32.partialorder %v1312, %v1365
        %vm1409 = vcmp.eq.f32.partialorder %v1313, %v1367
        %vm1410 = vcmp.eq.f32.partialorder %v1314, %v1369
        %vm1411 = vcmp.eq.f32.partialorder %v1315, %v1371
        %vm1412 = vcmp.eq.f32.partialorder %v1316, %v1373
        %vm1413 = vcmp.eq.f32.partialorder %v1317, %v1375
        %vm1414 = vcmp.eq.f32.partialorder %v1318, %v1377
        %vm1415 = vcmp.eq.f32.partialorder %v1319, %v1379
        %vm1416 = vcmp.eq.f32.partialorder %v1320, %v1381
        %vm1417 = vcmp.eq.f32.partialorder %v1321, %v1383
        %vm1418 = vcmp.eq.f32.partialorder %v1322, %v1385
        %vm1419 = vcmp.eq.f32.partialorder %v1323, %v1387
        %v1420 = vsel %vm1388, %v587, 128
        %v1421 = vsel %vm1389, %v587, 128
        %v1422 = vsel %vm1390, %v587, 128
        %v1423 = vsel %vm1391, %v587, 128
        %v1424 = vsel %vm1392, %v587, 128
        %v1425 = vsel %vm1393, %v587, 128
        %v1426 = vsel %vm1394, %v587, 128
        %v1427 = vsel %vm1395, %v587, 128
        %v1428 = vsel %vm1396, %v587, 128
        %v1429 = vsel %vm1397, %v587, 128
        %v1430 = vsel %vm1398, %v587, 128
        %v1431 = vsel %vm1399, %v587, 128
        %v1432 = vsel %vm1400, %v587, 128
        %v1433 = vsel %vm1401, %v587, 128
        %v1434 = vsel %vm1402, %v587, 128
        %v1435 = vsel %vm1403, %v587, 128
        %v1436 = vsel %vm1404, %v587, 128
        %v1437 = vsel %vm1405, %v587, 128
        %v1438 = vsel %vm1406, %v587, 128
        %v1439 = vsel %vm1407, %v587, 128
        %v1440 = vsel %vm1408, %v587, 128
        %v1441 = vsel %vm1409, %v587, 128
        %v1442 = vsel %vm1410, %v587, 128
        %v1443 = vsel %vm1411, %v587, 128
        %v1444 = vsel %vm1412, %v587, 128
        %v1445 = vsel %vm1413, %v587, 128
        %v1446 = vsel %vm1414, %v587, 128
        %v1447 = vsel %vm1415, %v587, 128
        %v1448 = vsel %vm1416, %v587, 128
        %v1449 = vsel %vm1417, %v587, 128
        %v1450 = vsel %vm1418, %v587, 128
        %v1451 = vsel %vm1419, %v587, 128
        %v1452 = vand.u32 %v1420, 65535
        %v1453 = vshra.s32 %v1420, 16
        %v1454 = vcvt.s32.f32 %v1452
        %v1455 = vcvt.s32.f32 %v1453
        %1456 = vmin.xlane.f32.xlu0 %v1455
        %v1457 = vpop.xlane.xlu0 %1456
        %vm1458 = vcmp.eq.f32.partialorder %v1455, %v1457
        %v1459 = vsel %vm1458, %v1454, inf
        %1460 = vmin.xlane.f32.xlu0 %v1459
        %v1461 = vpop.xlane.xlu0 %1460
        %v1462 = vcvt.f32.s32 %v1461
        %v1463 = vcvt.f32.s32 %v1457
        %v1464 = vshll.u32 %v1463, 16
        %v1465 = vadd.s32 %v1464, %v1462
        %v1466 = vand.u32 %v1421, 65535
        %v1467 = vshra.s32 %v1421, 16
        %v1468 = vcvt.s32.f32 %v1466
        %v1469 = vcvt.s32.f32 %v1467
        %1470 = vmin.xlane.f32.xlu0 %v1469
        %v1471 = vpop.xlane.xlu0 %1470
        %vm1472 = vcmp.eq.f32.partialorder %v1469, %v1471
        %v1473 = vsel %vm1472, %v1468, inf
        %1474 = vmin.xlane.f32.xlu0 %v1473
        %v1475 = vpop.xlane.xlu0 %1474
        %v1476 = vcvt.f32.s32 %v1475
        %v1477 = vcvt.f32.s32 %v1471
        %v1478 = vshll.u32 %v1477, 16
        %v1479 = vadd.s32 %v1478, %v1476
        %v1480 = vand.u32 %v1422, 65535
        %v1481 = vshra.s32 %v1422, 16
        %v1482 = vcvt.s32.f32 %v1480
        %v1483 = vcvt.s32.f32 %v1481
        %1484 = vmin.xlane.f32.xlu0 %v1483
        %v1485 = vpop.xlane.xlu0 %1484
        %vm1486 = vcmp.eq.f32.partialorder %v1483, %v1485
        %v1487 = vsel %vm1486, %v1482, inf
        %1488 = vmin.xlane.f32.xlu0 %v1487
        %v1489 = vpop.xlane.xlu0 %1488
        %v1490 = vcvt.f32.s32 %v1489
        %v1491 = vcvt.f32.s32 %v1485
        %v1492 = vshll.u32 %v1491, 16
        %v1493 = vadd.s32 %v1492, %v1490
        %v1494 = vand.u32 %v1423, 65535
        %v1495 = vshra.s32 %v1423, 16
        %v1496 = vcvt.s32.f32 %v1494
        %v1497 = vcvt.s32.f32 %v1495
        %1498 = vmin.xlane.f32.xlu0 %v1497
        %v1499 = vpop.xlane.xlu0 %1498
        %vm1500 = vcmp.eq.f32.partialorder %v1497, %v1499
        %v1501 = vsel %vm1500, %v1496, inf
        %1502 = vmin.xlane.f32.xlu0 %v1501
        %v1503 = vpop.xlane.xlu0 %1502
        %v1504 = vcvt.f32.s32 %v1503
        %v1505 = vcvt.f32.s32 %v1499
        %v1506 = vshll.u32 %v1505, 16
        %v1507 = vadd.s32 %v1506, %v1504
        %v1508 = vand.u32 %v1424, 65535
        %v1509 = vshra.s32 %v1424, 16
        %v1510 = vcvt.s32.f32 %v1508
        %v1511 = vcvt.s32.f32 %v1509
        %1512 = vmin.xlane.f32.xlu0 %v1511
        %v1513 = vpop.xlane.xlu0 %1512
        %vm1514 = vcmp.eq.f32.partialorder %v1511, %v1513
        %v1515 = vsel %vm1514, %v1510, inf
        %1516 = vmin.xlane.f32.xlu0 %v1515
        %v1517 = vpop.xlane.xlu0 %1516
        %v1518 = vcvt.f32.s32 %v1517
        %v1519 = vcvt.f32.s32 %v1513
        %v1520 = vshll.u32 %v1519, 16
        %v1521 = vadd.s32 %v1520, %v1518
        %v1522 = vand.u32 %v1425, 65535
        %v1523 = vshra.s32 %v1425, 16
        %v1524 = vcvt.s32.f32 %v1522
        %v1525 = vcvt.s32.f32 %v1523
        %1526 = vmin.xlane.f32.xlu0 %v1525
        %v1527 = vpop.xlane.xlu0 %1526
        %vm1528 = vcmp.eq.f32.partialorder %v1525, %v1527
        %v1529 = vsel %vm1528, %v1524, inf
        %1530 = vmin.xlane.f32.xlu0 %v1529
        %v1531 = vpop.xlane.xlu0 %1530
        %v1532 = vcvt.f32.s32 %v1531
        %v1533 = vcvt.f32.s32 %v1527
        %v1534 = vshll.u32 %v1533, 16
        %v1535 = vadd.s32 %v1534, %v1532
        %v1536 = vand.u32 %v1426, 65535
        %v1537 = vshra.s32 %v1426, 16
        %v1538 = vcvt.s32.f32 %v1536
        %v1539 = vcvt.s32.f32 %v1537
        %1540 = vmin.xlane.f32.xlu0 %v1539
        %v1541 = vpop.xlane.xlu0 %1540
        %vm1542 = vcmp.eq.f32.partialorder %v1539, %v1541
        %v1543 = vsel %vm1542, %v1538, inf
        %1544 = vmin.xlane.f32.xlu0 %v1543
        %v1545 = vpop.xlane.xlu0 %1544
        %v1546 = vcvt.f32.s32 %v1545
        %v1547 = vcvt.f32.s32 %v1541
        %v1548 = vshll.u32 %v1547, 16
        %v1549 = vadd.s32 %v1548, %v1546
        %v1550 = vand.u32 %v1427, 65535
        %v1551 = vshra.s32 %v1427, 16
        %v1552 = vcvt.s32.f32 %v1550
        %v1553 = vcvt.s32.f32 %v1551
        %1554 = vmin.xlane.f32.xlu0 %v1553
        %v1555 = vpop.xlane.xlu0 %1554
        %vm1556 = vcmp.eq.f32.partialorder %v1553, %v1555
        %v1557 = vsel %vm1556, %v1552, inf
        %1558 = vmin.xlane.f32.xlu0 %v1557
        %v1559 = vpop.xlane.xlu0 %1558
        %v1560 = vcvt.f32.s32 %v1559
        %v1561 = vcvt.f32.s32 %v1555
        %v1562 = vshll.u32 %v1561, 16
        %v1563 = vadd.s32 %v1562, %v1560
        %v1564 = vand.u32 %v1428, 65535
        %v1565 = vshra.s32 %v1428, 16
        %v1566 = vcvt.s32.f32 %v1564
        %v1567 = vcvt.s32.f32 %v1565
        %1568 = vmin.xlane.f32.xlu0 %v1567
        %v1569 = vpop.xlane.xlu0 %1568
        %vm1570 = vcmp.eq.f32.partialorder %v1567, %v1569
        %v1571 = vsel %vm1570, %v1566, inf
        %1572 = vmin.xlane.f32.xlu0 %v1571
        %v1573 = vpop.xlane.xlu0 %1572
        %v1574 = vcvt.f32.s32 %v1573
        %v1575 = vcvt.f32.s32 %v1569
        %v1576 = vshll.u32 %v1575, 16
        %v1577 = vadd.s32 %v1576, %v1574
        %v1578 = vand.u32 %v1429, 65535
        %v1579 = vshra.s32 %v1429, 16
        %v1580 = vcvt.s32.f32 %v1578
        %v1581 = vcvt.s32.f32 %v1579
        %1582 = vmin.xlane.f32.xlu0 %v1581
        %v1583 = vpop.xlane.xlu0 %1582
        %vm1584 = vcmp.eq.f32.partialorder %v1581, %v1583
        %v1585 = vsel %vm1584, %v1580, inf
        %1586 = vmin.xlane.f32.xlu0 %v1585
        %v1587 = vpop.xlane.xlu0 %1586
        %v1588 = vcvt.f32.s32 %v1587
        %v1589 = vcvt.f32.s32 %v1583
        %v1590 = vshll.u32 %v1589, 16
        %v1591 = vadd.s32 %v1590, %v1588
        %v1592 = vand.u32 %v1430, 65535
        %v1593 = vshra.s32 %v1430, 16
        %v1594 = vcvt.s32.f32 %v1592
        %v1595 = vcvt.s32.f32 %v1593
        %1596 = vmin.xlane.f32.xlu0 %v1595
        %v1597 = vpop.xlane.xlu0 %1596
        %vm1598 = vcmp.eq.f32.partialorder %v1595, %v1597
        %v1599 = vsel %vm1598, %v1594, inf
        %1600 = vmin.xlane.f32.xlu0 %v1599
        %v1601 = vpop.xlane.xlu0 %1600
        %v1602 = vcvt.f32.s32 %v1601
        %v1603 = vcvt.f32.s32 %v1597
        %v1604 = vshll.u32 %v1603, 16
        %v1605 = vadd.s32 %v1604, %v1602
        %v1606 = vand.u32 %v1431, 65535
        %v1607 = vshra.s32 %v1431, 16
        %v1608 = vcvt.s32.f32 %v1606
        %v1609 = vcvt.s32.f32 %v1607
        %1610 = vmin.xlane.f32.xlu0 %v1609
        %v1611 = vpop.xlane.xlu0 %1610
        %vm1612 = vcmp.eq.f32.partialorder %v1609, %v1611
        %v1613 = vsel %vm1612, %v1608, inf
        %1614 = vmin.xlane.f32.xlu0 %v1613
        %v1615 = vpop.xlane.xlu0 %1614
        %v1616 = vcvt.f32.s32 %v1615
        %v1617 = vcvt.f32.s32 %v1611
        %v1618 = vshll.u32 %v1617, 16
        %v1619 = vadd.s32 %v1618, %v1616
        %v1620 = vand.u32 %v1432, 65535
        %v1621 = vshra.s32 %v1432, 16
        %v1622 = vcvt.s32.f32 %v1620
        %v1623 = vcvt.s32.f32 %v1621
        %1624 = vmin.xlane.f32.xlu0 %v1623
        %v1625 = vpop.xlane.xlu0 %1624
        %vm1626 = vcmp.eq.f32.partialorder %v1623, %v1625
        %v1627 = vsel %vm1626, %v1622, inf
        %1628 = vmin.xlane.f32.xlu0 %v1627
        %v1629 = vpop.xlane.xlu0 %1628
        %v1630 = vcvt.f32.s32 %v1629
        %v1631 = vcvt.f32.s32 %v1625
        %v1632 = vshll.u32 %v1631, 16
        %v1633 = vadd.s32 %v1632, %v1630
        %v1634 = vand.u32 %v1433, 65535
        %v1635 = vshra.s32 %v1433, 16
        %v1636 = vcvt.s32.f32 %v1634
        %v1637 = vcvt.s32.f32 %v1635
        %1638 = vmin.xlane.f32.xlu0 %v1637
        %v1639 = vpop.xlane.xlu0 %1638
        %vm1640 = vcmp.eq.f32.partialorder %v1637, %v1639
        %v1641 = vsel %vm1640, %v1636, inf
        %1642 = vmin.xlane.f32.xlu0 %v1641
        %v1643 = vpop.xlane.xlu0 %1642
        %v1644 = vcvt.f32.s32 %v1643
        %v1645 = vcvt.f32.s32 %v1639
        %v1646 = vshll.u32 %v1645, 16
        %v1647 = vadd.s32 %v1646, %v1644
        %v1648 = vand.u32 %v1434, 65535
        %v1649 = vshra.s32 %v1434, 16
        %v1650 = vcvt.s32.f32 %v1648
        %v1651 = vcvt.s32.f32 %v1649
        %1652 = vmin.xlane.f32.xlu0 %v1651
        %v1653 = vpop.xlane.xlu0 %1652
        %vm1654 = vcmp.eq.f32.partialorder %v1651, %v1653
        %v1655 = vsel %vm1654, %v1650, inf
        %1656 = vmin.xlane.f32.xlu0 %v1655
        %v1657 = vpop.xlane.xlu0 %1656
        %v1658 = vcvt.f32.s32 %v1657
        %v1659 = vcvt.f32.s32 %v1653
        %v1660 = vshll.u32 %v1659, 16
        %v1661 = vadd.s32 %v1660, %v1658
        %v1662 = vand.u32 %v1435, 65535
        %v1663 = vshra.s32 %v1435, 16
        %v1664 = vcvt.s32.f32 %v1662
        %v1665 = vcvt.s32.f32 %v1663
        %1666 = vmin.xlane.f32.xlu0 %v1665
        %v1667 = vpop.xlane.xlu0 %1666
        %vm1668 = vcmp.eq.f32.partialorder %v1665, %v1667
        %v1669 = vsel %vm1668, %v1664, inf
        %1670 = vmin.xlane.f32.xlu0 %v1669
        %v1671 = vpop.xlane.xlu0 %1670
        %v1672 = vcvt.f32.s32 %v1671
        %v1673 = vcvt.f32.s32 %v1667
        %v1674 = vshll.u32 %v1673, 16
        %v1675 = vadd.s32 %v1674, %v1672
        %v1676 = vand.u32 %v1436, 65535
        %v1677 = vshra.s32 %v1436, 16
        %v1678 = vcvt.s32.f32 %v1676
        %v1679 = vcvt.s32.f32 %v1677
        %1680 = vmin.xlane.f32.xlu0 %v1679
        %v1681 = vpop.xlane.xlu0 %1680
        %vm1682 = vcmp.eq.f32.partialorder %v1679, %v1681
        %v1683 = vsel %vm1682, %v1678, inf
        %1684 = vmin.xlane.f32.xlu0 %v1683
        %v1685 = vpop.xlane.xlu0 %1684
        %v1686 = vcvt.f32.s32 %v1685
        %v1687 = vcvt.f32.s32 %v1681
        %v1688 = vshll.u32 %v1687, 16
        %v1689 = vadd.s32 %v1688, %v1686
        %v1690 = vand.u32 %v1437, 65535
        %v1691 = vshra.s32 %v1437, 16
        %v1692 = vcvt.s32.f32 %v1690
        %v1693 = vcvt.s32.f32 %v1691
        %1694 = vmin.xlane.f32.xlu0 %v1693
        %v1695 = vpop.xlane.xlu0 %1694
        %vm1696 = vcmp.eq.f32.partialorder %v1693, %v1695
        %v1697 = vsel %vm1696, %v1692, inf
        %1698 = vmin.xlane.f32.xlu0 %v1697
        %v1699 = vpop.xlane.xlu0 %1698
        %v1700 = vcvt.f32.s32 %v1699
        %v1701 = vcvt.f32.s32 %v1695
        %v1702 = vshll.u32 %v1701, 16
        %v1703 = vadd.s32 %v1702, %v1700
        %v1704 = vand.u32 %v1438, 65535
        %v1705 = vshra.s32 %v1438, 16
        %v1706 = vcvt.s32.f32 %v1704
        %v1707 = vcvt.s32.f32 %v1705
        %1708 = vmin.xlane.f32.xlu0 %v1707
        %v1709 = vpop.xlane.xlu0 %1708
        %vm1710 = vcmp.eq.f32.partialorder %v1707, %v1709
        %v1711 = vsel %vm1710, %v1706, inf
        %1712 = vmin.xlane.f32.xlu0 %v1711
        %v1713 = vpop.xlane.xlu0 %1712
        %v1714 = vcvt.f32.s32 %v1713
        %v1715 = vcvt.f32.s32 %v1709
        %v1716 = vshll.u32 %v1715, 16
        %v1717 = vadd.s32 %v1716, %v1714
        %v1718 = vand.u32 %v1439, 65535
        %v1719 = vshra.s32 %v1439, 16
        %v1720 = vcvt.s32.f32 %v1718
        %v1721 = vcvt.s32.f32 %v1719
        %1722 = vmin.xlane.f32.xlu0 %v1721
        %v1723 = vpop.xlane.xlu0 %1722
        %vm1724 = vcmp.eq.f32.partialorder %v1721, %v1723
        %v1725 = vsel %vm1724, %v1720, inf
        %1726 = vmin.xlane.f32.xlu0 %v1725
        %v1727 = vpop.xlane.xlu0 %1726
        %v1728 = vcvt.f32.s32 %v1727
        %v1729 = vcvt.f32.s32 %v1723
        %v1730 = vshll.u32 %v1729, 16
        %v1731 = vadd.s32 %v1730, %v1728
        %v1732 = vand.u32 %v1440, 65535
        %v1733 = vshra.s32 %v1440, 16
        %v1734 = vcvt.s32.f32 %v1732
        %v1735 = vcvt.s32.f32 %v1733
        %1736 = vmin.xlane.f32.xlu0 %v1735
        %v1737 = vpop.xlane.xlu0 %1736
        %vm1738 = vcmp.eq.f32.partialorder %v1735, %v1737
        %v1739 = vsel %vm1738, %v1734, inf
        %1740 = vmin.xlane.f32.xlu0 %v1739
        %v1741 = vpop.xlane.xlu0 %1740
        %v1742 = vcvt.f32.s32 %v1741
        %v1743 = vcvt.f32.s32 %v1737
        %v1744 = vshll.u32 %v1743, 16
        %v1745 = vadd.s32 %v1744, %v1742
        %v1746 = vand.u32 %v1441, 65535
        %v1747 = vshra.s32 %v1441, 16
        %v1748 = vcvt.s32.f32 %v1746
        %v1749 = vcvt.s32.f32 %v1747
        %1750 = vmin.xlane.f32.xlu0 %v1749
        %v1751 = vpop.xlane.xlu0 %1750
        %vm1752 = vcmp.eq.f32.partialorder %v1749, %v1751
        %v1753 = vsel %vm1752, %v1748, inf
        %1754 = vmin.xlane.f32.xlu0 %v1753
        %v1755 = vpop.xlane.xlu0 %1754
        %v1756 = vcvt.f32.s32 %v1755
        %v1757 = vcvt.f32.s32 %v1751
        %v1758 = vshll.u32 %v1757, 16
        %v1759 = vadd.s32 %v1758, %v1756
        %v1760 = vand.u32 %v1442, 65535
        %v1761 = vshra.s32 %v1442, 16
        %v1762 = vcvt.s32.f32 %v1760
        %v1763 = vcvt.s32.f32 %v1761
        %1764 = vmin.xlane.f32.xlu0 %v1763
        %v1765 = vpop.xlane.xlu0 %1764
        %vm1766 = vcmp.eq.f32.partialorder %v1763, %v1765
        %v1767 = vsel %vm1766, %v1762, inf
        %1768 = vmin.xlane.f32.xlu0 %v1767
        %v1769 = vpop.xlane.xlu0 %1768
        %v1770 = vcvt.f32.s32 %v1769
        %v1771 = vcvt.f32.s32 %v1765
        %v1772 = vshll.u32 %v1771, 16
        %v1773 = vadd.s32 %v1772, %v1770
        %v1774 = vand.u32 %v1443, 65535
        %v1775 = vshra.s32 %v1443, 16
        %v1776 = vcvt.s32.f32 %v1774
        %v1777 = vcvt.s32.f32 %v1775
        %1778 = vmin.xlane.f32.xlu0 %v1777
        %v1779 = vpop.xlane.xlu0 %1778
        %vm1780 = vcmp.eq.f32.partialorder %v1777, %v1779
        %v1781 = vsel %vm1780, %v1776, inf
        %1782 = vmin.xlane.f32.xlu0 %v1781
        %v1783 = vpop.xlane.xlu0 %1782
        %v1784 = vcvt.f32.s32 %v1783
        %v1785 = vcvt.f32.s32 %v1779
        %v1786 = vshll.u32 %v1785, 16
        %v1787 = vadd.s32 %v1786, %v1784
        %v1788 = vand.u32 %v1444, 65535
        %v1789 = vshra.s32 %v1444, 16
        %v1790 = vcvt.s32.f32 %v1788
        %v1791 = vcvt.s32.f32 %v1789
        %1792 = vmin.xlane.f32.xlu0 %v1791
        %v1793 = vpop.xlane.xlu0 %1792
        %vm1794 = vcmp.eq.f32.partialorder %v1791, %v1793
        %v1795 = vsel %vm1794, %v1790, inf
        %1796 = vmin.xlane.f32.xlu0 %v1795
        %v1797 = vpop.xlane.xlu0 %1796
        %v1798 = vcvt.f32.s32 %v1797
        %v1799 = vcvt.f32.s32 %v1793
        %v1800 = vshll.u32 %v1799, 16
        %v1801 = vadd.s32 %v1800, %v1798
        %v1802 = vand.u32 %v1445, 65535
        %v1803 = vshra.s32 %v1445, 16
        %v1804 = vcvt.s32.f32 %v1802
        %v1805 = vcvt.s32.f32 %v1803
        %1806 = vmin.xlane.f32.xlu0 %v1805
        %v1807 = vpop.xlane.xlu0 %1806
        %vm1808 = vcmp.eq.f32.partialorder %v1805, %v1807
        %v1809 = vsel %vm1808, %v1804, inf
        %1810 = vmin.xlane.f32.xlu0 %v1809
        %v1811 = vpop.xlane.xlu0 %1810
        %v1812 = vcvt.f32.s32 %v1811
        %v1813 = vcvt.f32.s32 %v1807
        %v1814 = vshll.u32 %v1813, 16
        %v1815 = vadd.s32 %v1814, %v1812
        %v1816 = vand.u32 %v1446, 65535
        %v1817 = vshra.s32 %v1446, 16
        %v1818 = vcvt.s32.f32 %v1816
        %v1819 = vcvt.s32.f32 %v1817
        %1820 = vmin.xlane.f32.xlu0 %v1819
        %v1821 = vpop.xlane.xlu0 %1820
        %vm1822 = vcmp.eq.f32.partialorder %v1819, %v1821
        %v1823 = vsel %vm1822, %v1818, inf
        %1824 = vmin.xlane.f32.xlu0 %v1823
        %v1825 = vpop.xlane.xlu0 %1824
        %v1826 = vcvt.f32.s32 %v1825
        %v1827 = vcvt.f32.s32 %v1821
        %v1828 = vshll.u32 %v1827, 16
        %v1829 = vadd.s32 %v1828, %v1826
        %v1830 = vand.u32 %v1447, 65535
        %v1831 = vshra.s32 %v1447, 16
        %v1832 = vcvt.s32.f32 %v1830
        %v1833 = vcvt.s32.f32 %v1831
        %1834 = vmin.xlane.f32.xlu0 %v1833
        %v1835 = vpop.xlane.xlu0 %1834
        %vm1836 = vcmp.eq.f32.partialorder %v1833, %v1835
        %v1837 = vsel %vm1836, %v1832, inf
        %1838 = vmin.xlane.f32.xlu0 %v1837
        %v1839 = vpop.xlane.xlu0 %1838
        %v1840 = vcvt.f32.s32 %v1839
        %v1841 = vcvt.f32.s32 %v1835
        %v1842 = vshll.u32 %v1841, 16
        %v1843 = vadd.s32 %v1842, %v1840
        %v1844 = vand.u32 %v1448, 65535
        %v1845 = vshra.s32 %v1448, 16
        %v1846 = vcvt.s32.f32 %v1844
        %v1847 = vcvt.s32.f32 %v1845
        %1848 = vmin.xlane.f32.xlu0 %v1847
        %v1849 = vpop.xlane.xlu0 %1848
        %vm1850 = vcmp.eq.f32.partialorder %v1847, %v1849
        %v1851 = vsel %vm1850, %v1846, inf
        %1852 = vmin.xlane.f32.xlu0 %v1851
        %v1853 = vpop.xlane.xlu0 %1852
        %v1854 = vcvt.f32.s32 %v1853
        %v1855 = vcvt.f32.s32 %v1849
        %v1856 = vshll.u32 %v1855, 16
        %v1857 = vadd.s32 %v1856, %v1854
        %v1858 = vand.u32 %v1449, 65535
        %v1859 = vshra.s32 %v1449, 16
        %v1860 = vcvt.s32.f32 %v1858
        %v1861 = vcvt.s32.f32 %v1859
        %1862 = vmin.xlane.f32.xlu0 %v1861
        %v1863 = vpop.xlane.xlu0 %1862
        %vm1864 = vcmp.eq.f32.partialorder %v1861, %v1863
        %v1865 = vsel %vm1864, %v1860, inf
        %1866 = vmin.xlane.f32.xlu0 %v1865
        %v1867 = vpop.xlane.xlu0 %1866
        %v1868 = vcvt.f32.s32 %v1867
        %v1869 = vcvt.f32.s32 %v1863
        %v1870 = vshll.u32 %v1869, 16
        %v1871 = vadd.s32 %v1870, %v1868
        %v1872 = vand.u32 %v1450, 65535
        %v1873 = vshra.s32 %v1450, 16
        %v1874 = vcvt.s32.f32 %v1872
        %v1875 = vcvt.s32.f32 %v1873
        %1876 = vmin.xlane.f32.xlu0 %v1875
        %v1877 = vpop.xlane.xlu0 %1876
        %vm1878 = vcmp.eq.f32.partialorder %v1875, %v1877
        %v1879 = vsel %vm1878, %v1874, inf
        %1880 = vmin.xlane.f32.xlu0 %v1879
        %v1881 = vpop.xlane.xlu0 %1880
        %v1882 = vcvt.f32.s32 %v1881
        %v1883 = vcvt.f32.s32 %v1877
        %v1884 = vshll.u32 %v1883, 16
        %v1885 = vadd.s32 %v1884, %v1882
        %v1886 = vand.u32 %v1451, 65535
        %v1887 = vshra.s32 %v1451, 16
        %v1888 = vcvt.s32.f32 %v1886
        %v1889 = vcvt.s32.f32 %v1887
        %1890 = vmin.xlane.f32.xlu0 %v1889
        %v1891 = vpop.xlane.xlu0 %1890
        %vm1892 = vcmp.eq.f32.partialorder %v1889, %v1891
        %v1893 = vsel %vm1892, %v1888, inf
        %1894 = vmin.xlane.f32.xlu0 %v1893
        %v1895 = vpop.xlane.xlu0 %1894
        %v1896 = vcvt.f32.s32 %v1895
        %v1897 = vcvt.f32.s32 %v1891
        %v1898 = vshll.u32 %v1897, 16
        %v1899 = vadd.s32 %v1898, %v1896
        %vm1900 = vcmp.eq.s32.totalorder %v587, %v1465
        %vm1901 = vcmp.eq.s32.totalorder %v587, %v1479
        %vm1902 = vcmp.eq.s32.totalorder %v587, %v1493
        %vm1903 = vcmp.eq.s32.totalorder %v587, %v1507
        %vm1904 = vcmp.eq.s32.totalorder %v587, %v1521
        %vm1905 = vcmp.eq.s32.totalorder %v587, %v1535
        %vm1906 = vcmp.eq.s32.totalorder %v587, %v1549
        %vm1907 = vcmp.eq.s32.totalorder %v587, %v1563
        %vm1908 = vcmp.eq.s32.totalorder %v587, %v1577
        %vm1909 = vcmp.eq.s32.totalorder %v587, %v1591
        %vm1910 = vcmp.eq.s32.totalorder %v587, %v1605
        %vm1911 = vcmp.eq.s32.totalorder %v587, %v1619
        %vm1912 = vcmp.eq.s32.totalorder %v587, %v1633
        %vm1913 = vcmp.eq.s32.totalorder %v587, %v1647
        %vm1914 = vcmp.eq.s32.totalorder %v587, %v1661
        %vm1915 = vcmp.eq.s32.totalorder %v587, %v1675
        %vm1916 = vcmp.eq.s32.totalorder %v587, %v1689
        %vm1917 = vcmp.eq.s32.totalorder %v587, %v1703
        %vm1918 = vcmp.eq.s32.totalorder %v587, %v1717
        %vm1919 = vcmp.eq.s32.totalorder %v587, %v1731
        %vm1920 = vcmp.eq.s32.totalorder %v587, %v1745
        %vm1921 = vcmp.eq.s32.totalorder %v587, %v1759
        %vm1922 = vcmp.eq.s32.totalorder %v587, %v1773
        %vm1923 = vcmp.eq.s32.totalorder %v587, %v1787
        %vm1924 = vcmp.eq.s32.totalorder %v587, %v1801
        %vm1925 = vcmp.eq.s32.totalorder %v587, %v1815
        %vm1926 = vcmp.eq.s32.totalorder %v587, %v1829
        %vm1927 = vcmp.eq.s32.totalorder %v587, %v1843
        %vm1928 = vcmp.eq.s32.totalorder %v587, %v1857
        %vm1929 = vcmp.eq.s32.totalorder %v587, %v1871
        %vm1930 = vcmp.eq.s32.totalorder %v587, %v1885
        %vm1931 = vcmp.eq.s32.totalorder %v587, %v1899
        %v1932 = vsel %vm1900, 1, 0
        %v1933 = vsel %vm1901, 1, 0
        %v1934 = vsel %vm1902, 1, 0
        %v1935 = vsel %vm1903, 1, 0
        %v1936 = vsel %vm1904, 1, 0
        %v1937 = vsel %vm1905, 1, 0
        %v1938 = vsel %vm1906, 1, 0
        %v1939 = vsel %vm1907, 1, 0
        %v1940 = vsel %vm1908, 1, 0
        %v1941 = vsel %vm1909, 1, 0
        %v1942 = vsel %vm1910, 1, 0
        %v1943 = vsel %vm1911, 1, 0
        %v1944 = vsel %vm1912, 1, 0
        %v1945 = vsel %vm1913, 1, 0
        %v1946 = vsel %vm1914, 1, 0
        %v1947 = vsel %vm1915, 1, 0
        %v1948 = vsel %vm1916, 1, 0
        %v1949 = vsel %vm1917, 1, 0
        %v1950 = vsel %vm1918, 1, 0
        %v1951 = vsel %vm1919, 1, 0
        %v1952 = vsel %vm1920, 1, 0
        %v1953 = vsel %vm1921, 1, 0
        %v1954 = vsel %vm1922, 1, 0
        %v1955 = vsel %vm1923, 1, 0
        %v1956 = vsel %vm1924, 1, 0
        %v1957 = vsel %vm1925, 1, 0
        %v1958 = vsel %vm1926, 1, 0
        %v1959 = vsel %vm1927, 1, 0
        %v1960 = vsel %vm1928, 1, 0
        %v1961 = vsel %vm1929, 1, 0
        %v1962 = vsel %vm1930, 1, 0
        %v1963 = vsel %vm1931, 1, 0
        %v1964 = vcvt.s32.f32 %v1932
        %v1965 = vcvt.s32.f32 %v1933
        %v1966 = vcvt.s32.f32 %v1934
        %v1967 = vcvt.s32.f32 %v1935
        %v1968 = vcvt.s32.f32 %v1936
        %v1969 = vcvt.s32.f32 %v1937
        %v1970 = vcvt.s32.f32 %v1938
        %v1971 = vcvt.s32.f32 %v1939
        %v1972 = vcvt.s32.f32 %v1940
        %v1973 = vcvt.s32.f32 %v1941
        %v1974 = vcvt.s32.f32 %v1942
        %v1975 = vcvt.s32.f32 %v1943
        %v1976 = vcvt.s32.f32 %v1944
        %v1977 = vcvt.s32.f32 %v1945
        %v1978 = vcvt.s32.f32 %v1946
        %v1979 = vcvt.s32.f32 %v1947
        %v1980 = vcvt.s32.f32 %v1948
        %v1981 = vcvt.s32.f32 %v1949
        %v1982 = vcvt.s32.f32 %v1950
        %v1983 = vcvt.s32.f32 %v1951
        %v1984 = vcvt.s32.f32 %v1952
        %v1985 = vcvt.s32.f32 %v1953
        %v1986 = vcvt.s32.f32 %v1954
        %v1987 = vcvt.s32.f32 %v1955
        %v1988 = vcvt.s32.f32 %v1956
        %v1989 = vcvt.s32.f32 %v1957
        %v1990 = vcvt.s32.f32 %v1958
        %v1991 = vcvt.s32.f32 %v1959
        %v1992 = vcvt.s32.f32 %v1960
        %v1993 = vcvt.s32.f32 %v1961
        %v1994 = vcvt.s32.f32 %v1962
        %v1995 = vcvt.s32.f32 %v1963
        %v1996 = vsub.f32 %v589, %v589
        %v1997 = vsub.f32 %v591, %v591
        %v1998 = vsub.f32 %v593, %v593
        %v1999 = vsub.f32 %v595, %v595
        %v2000 = vsub.f32 %v597, %v597
        %v2001 = vsub.f32 %v599, %v599
        %v2002 = vsub.f32 %v601, %v601
        %v2003 = vsub.f32 %v603, %v603
        %v2004 = vsub.f32 %v605, %v605
        %v2005 = vsub.f32 %v607, %v607
        %v2006 = vsub.f32 %v609, %v609
        %v2007 = vsub.f32 %v611, %v611
        %v2008 = vsub.f32 %v613, %v613
        %v2009 = vsub.f32 %v615, %v615
        %v2010 = vsub.f32 %v617, %v617
        %v2011 = vsub.f32 %v619, %v619
        %v2012 = vsub.f32 %v621, %v621
        %v2013 = vsub.f32 %v623, %v623
        %v2014 = vsub.f32 %v625, %v625
        %v2015 = vsub.f32 %v627, %v627
        %v2016 = vsub.f32 %v629, %v629
        %v2017 = vsub.f32 %v631, %v631
        %v2018 = vsub.f32 %v633, %v633
        %v2019 = vsub.f32 %v635, %v635
        %v2020 = vsub.f32 %v637, %v637
        %v2021 = vsub.f32 %v639, %v639
        %v2022 = vsub.f32 %v641, %v641
        %v2023 = vsub.f32 %v643, %v643
        %v2024 = vsub.f32 %v645, %v645
        %v2025 = vsub.f32 %v647, %v647
        %v2026 = vsub.f32 %v649, %v649
        %v2027 = vsub.f32 %v651, %v651
        %v2028 = vmul.f32 %v1996, 1.442695
        %v2029 = vpow.pop %v2028
        %v2030 = vmul.f32 %v1997, 1.442695
        %v2031 = vpow.pop %v2030
        %v2032 = vmul.f32 %v1998, 1.442695
        %v2033 = vpow.pop %v2032
        %v2034 = vmul.f32 %v1999, 1.442695
        %v2035 = vpow.pop %v2034
        %v2036 = vmul.f32 %v2000, 1.442695
        %v2037 = vpow.pop %v2036
        %v2038 = vmul.f32 %v2001, 1.442695
        %v2039 = vpow.pop %v2038
        %v2040 = vmul.f32 %v2002, 1.442695
        %v2041 = vpow.pop %v2040
        %v2042 = vmul.f32 %v2003, 1.442695
        %v2043 = vpow.pop %v2042
        %v2044 = vmul.f32 %v2004, 1.442695
        %v2045 = vpow.pop %v2044
        %v2046 = vmul.f32 %v2005, 1.442695
        %v2047 = vpow.pop %v2046
        %v2048 = vmul.f32 %v2006, 1.442695
        %v2049 = vpow.pop %v2048
        %v2050 = vmul.f32 %v2007, 1.442695
        %v2051 = vpow.pop %v2050
        %v2052 = vmul.f32 %v2008, 1.442695
        %v2053 = vpow.pop %v2052
        %v2054 = vmul.f32 %v2009, 1.442695
        %v2055 = vpow.pop %v2054
        %v2056 = vmul.f32 %v2010, 1.442695
        %v2057 = vpow.pop %v2056
        %v2058 = vmul.f32 %v2011, 1.442695
        %v2059 = vpow.pop %v2058
        %v2060 = vmul.f32 %v2012, 1.442695
        %v2061 = vpow.pop %v2060
        %v2062 = vmul.f32 %v2013, 1.442695
        %v2063 = vpow.pop %v2062
        %v2064 = vmul.f32 %v2014, 1.442695
        %v2065 = vpow.pop %v2064
        %v2066 = vmul.f32 %v2015, 1.442695
        %v2067 = vpow.pop %v2066
        %v2068 = vmul.f32 %v2016, 1.442695
        %v2069 = vpow.pop %v2068
        %v2070 = vmul.f32 %v2017, 1.442695
        %v2071 = vpow.pop %v2070
        %v2072 = vmul.f32 %v2018, 1.442695
        %v2073 = vpow.pop %v2072
        %v2074 = vmul.f32 %v2019, 1.442695
        %v2075 = vpow.pop %v2074
        %v2076 = vmul.f32 %v2020, 1.442695
        %v2077 = vpow.pop %v2076
        %v2078 = vmul.f32 %v2021, 1.442695
        %v2079 = vpow.pop %v2078
        %v2080 = vmul.f32 %v2022, 1.442695
        %v2081 = vpow.pop %v2080
        %v2082 = vmul.f32 %v2023, 1.442695
        %v2083 = vpow.pop %v2082
        %v2084 = vmul.f32 %v2024, 1.442695
        %v2085 = vpow.pop %v2084
        %v2086 = vmul.f32 %v2025, 1.442695
        %v2087 = vpow.pop %v2086
        %v2088 = vmul.f32 %v2026, 1.442695
        %v2089 = vpow.pop %v2088
        %v2090 = vmul.f32 %v2027, 1.442695
        %v2091 = vpow.pop %v2090
        %v2092 = vadd.f32 %v2029, 0.0
        %v2093 = vadd.f32 %v2031, 0.0
        %v2094 = vadd.f32 %v2033, 0.0
        %v2095 = vadd.f32 %v2035, 0.0
        %v2096 = vadd.f32 %v2037, 0.0
        %v2097 = vadd.f32 %v2039, 0.0
        %v2098 = vadd.f32 %v2041, 0.0
        %v2099 = vadd.f32 %v2043, 0.0
        %v2100 = vadd.f32 %v2045, 0.0
        %v2101 = vadd.f32 %v2047, 0.0
        %v2102 = vadd.f32 %v2049, 0.0
        %v2103 = vadd.f32 %v2051, 0.0
        %v2104 = vadd.f32 %v2053, 0.0
        %v2105 = vadd.f32 %v2055, 0.0
        %v2106 = vadd.f32 %v2057, 0.0
        %v2107 = vadd.f32 %v2059, 0.0
        %v2108 = vadd.f32 %v2061, 0.0
        %v2109 = vadd.f32 %v2063, 0.0
        %v2110 = vadd.f32 %v2065, 0.0
        %v2111 = vadd.f32 %v2067, 0.0
        %v2112 = vadd.f32 %v2069, 0.0
        %v2113 = vadd.f32 %v2071, 0.0
        %v2114 = vadd.f32 %v2073, 0.0
        %v2115 = vadd.f32 %v2075, 0.0
        %v2116 = vadd.f32 %v2077, 0.0
        %v2117 = vadd.f32 %v2079, 0.0
        %v2118 = vadd.f32 %v2081, 0.0
        %v2119 = vadd.f32 %v2083, 0.0
        %v2120 = vadd.f32 %v2085, 0.0
        %v2121 = vadd.f32 %v2087, 0.0
        %v2122 = vadd.f32 %v2089, 0.0
        %v2123 = vadd.f32 %v2091, 0.0
        %v2124 = vsub.f32 %v1325, %v589
        %v2125 = vsub.f32 %v1327, %v591
        %v2126 = vsub.f32 %v1329, %v593
        %v2127 = vsub.f32 %v1331, %v595
        %v2128 = vsub.f32 %v1333, %v597
        %v2129 = vsub.f32 %v1335, %v599
        %v2130 = vsub.f32 %v1337, %v601
        %v2131 = vsub.f32 %v1339, %v603
        %v2132 = vsub.f32 %v1341, %v605
        %v2133 = vsub.f32 %v1343, %v607
        %v2134 = vsub.f32 %v1345, %v609
        %v2135 = vsub.f32 %v1347, %v611
        %v2136 = vsub.f32 %v1349, %v613
        %v2137 = vsub.f32 %v1351, %v615
        %v2138 = vsub.f32 %v1353, %v617
        %v2139 = vsub.f32 %v1355, %v619
        %v2140 = vsub.f32 %v1357, %v621
        %v2141 = vsub.f32 %v1359, %v623
        %v2142 = vsub.f32 %v1361, %v625
        %v2143 = vsub.f32 %v1363, %v627
        %v2144 = vsub.f32 %v1365, %v629
        %v2145 = vsub.f32 %v1367, %v631
        %v2146 = vsub.f32 %v1369, %v633
        %v2147 = vsub.f32 %v1371, %v635
        %v2148 = vsub.f32 %v1373, %v637
        %v2149 = vsub.f32 %v1375, %v639
        %v2150 = vsub.f32 %v1377, %v641
        %v2151 = vsub.f32 %v1379, %v643
        %v2152 = vsub.f32 %v1381, %v645
        %v2153 = vsub.f32 %v1383, %v647
        %v2154 = vsub.f32 %v1385, %v649
        %v2155 = vsub.f32 %v1387, %v651
        %v2156 = vmul.f32 %v2124, 1.442695
        %v2157 = vpow.pop %v2156
        %v2158 = vmul.f32 %v2125, 1.442695
        %v2159 = vpow.pop %v2158
        %v2160 = vmul.f32 %v2126, 1.442695
        %v2161 = vpow.pop %v2160
        %v2162 = vmul.f32 %v2127, 1.442695
        %v2163 = vpow.pop %v2162
        %v2164 = vmul.f32 %v2128, 1.442695
        %v2165 = vpow.pop %v2164
        %v2166 = vmul.f32 %v2129, 1.442695
        %v2167 = vpow.pop %v2166
        %v2168 = vmul.f32 %v2130, 1.442695
        %v2169 = vpow.pop %v2168
        %v2170 = vmul.f32 %v2131, 1.442695
        %v2171 = vpow.pop %v2170
        %v2172 = vmul.f32 %v2132, 1.442695
        %v2173 = vpow.pop %v2172
        %v2174 = vmul.f32 %v2133, 1.442695
        %v2175 = vpow.pop %v2174
        %v2176 = vmul.f32 %v2134, 1.442695
        %v2177 = vpow.pop %v2176
        %v2178 = vmul.f32 %v2135, 1.442695
        %v2179 = vpow.pop %v2178
        %v2180 = vmul.f32 %v2136, 1.442695
        %v2181 = vpow.pop %v2180
        %v2182 = vmul.f32 %v2137, 1.442695
        %v2183 = vpow.pop %v2182
        %v2184 = vmul.f32 %v2138, 1.442695
        %v2185 = vpow.pop %v2184
        %v2186 = vmul.f32 %v2139, 1.442695
        %v2187 = vpow.pop %v2186
        %v2188 = vmul.f32 %v2140, 1.442695
        %v2189 = vpow.pop %v2188
        %v2190 = vmul.f32 %v2141, 1.442695
        %v2191 = vpow.pop %v2190
        %v2192 = vmul.f32 %v2142, 1.442695
        %v2193 = vpow.pop %v2192
        %v2194 = vmul.f32 %v2143, 1.442695
        %v2195 = vpow.pop %v2194
        %v2196 = vmul.f32 %v2144, 1.442695
        %v2197 = vpow.pop %v2196
        %v2198 = vmul.f32 %v2145, 1.442695
        %v2199 = vpow.pop %v2198
        %v2200 = vmul.f32 %v2146, 1.442695
        %v2201 = vpow.pop %v2200
        %v2202 = vmul.f32 %v2147, 1.442695
        %v2203 = vpow.pop %v2202
        %v2204 = vmul.f32 %v2148, 1.442695
        %v2205 = vpow.pop %v2204
        %v2206 = vmul.f32 %v2149, 1.442695
        %v2207 = vpow.pop %v2206
        %v2208 = vmul.f32 %v2150, 1.442695
        %v2209 = vpow.pop %v2208
        %v2210 = vmul.f32 %v2151, 1.442695
        %v2211 = vpow.pop %v2210
        %v2212 = vmul.f32 %v2152, 1.442695
        %v2213 = vpow.pop %v2212
        %v2214 = vmul.f32 %v2153, 1.442695
        %v2215 = vpow.pop %v2214
        %v2216 = vmul.f32 %v2154, 1.442695
        %v2217 = vpow.pop %v2216
        %v2218 = vmul.f32 %v2155, 1.442695
        %v2219 = vpow.pop %v2218
        %v2220 = vadd.f32 %v2092, %v2157
        %v2221 = vadd.f32 %v2093, %v2159
        %v2222 = vadd.f32 %v2094, %v2161
        %v2223 = vadd.f32 %v2095, %v2163
        %v2224 = vadd.f32 %v2096, %v2165
        %v2225 = vadd.f32 %v2097, %v2167
        %v2226 = vadd.f32 %v2098, %v2169
        %v2227 = vadd.f32 %v2099, %v2171
        %v2228 = vadd.f32 %v2100, %v2173
        %v2229 = vadd.f32 %v2101, %v2175
        %v2230 = vadd.f32 %v2102, %v2177
        %v2231 = vadd.f32 %v2103, %v2179
        %v2232 = vadd.f32 %v2104, %v2181
        %v2233 = vadd.f32 %v2105, %v2183
        %v2234 = vadd.f32 %v2106, %v2185
        %v2235 = vadd.f32 %v2107, %v2187
        %v2236 = vadd.f32 %v2108, %v2189
        %v2237 = vadd.f32 %v2109, %v2191
        %v2238 = vadd.f32 %v2110, %v2193
        %v2239 = vadd.f32 %v2111, %v2195
        %v2240 = vadd.f32 %v2112, %v2197
        %v2241 = vadd.f32 %v2113, %v2199
        %v2242 = vadd.f32 %v2114, %v2201
        %v2243 = vadd.f32 %v2115, %v2203
        %v2244 = vadd.f32 %v2116, %v2205
        %v2245 = vadd.f32 %v2117, %v2207
        %v2246 = vadd.f32 %v2118, %v2209
        %v2247 = vadd.f32 %v2119, %v2211
        %v2248 = vadd.f32 %v2120, %v2213
        %v2249 = vadd.f32 %v2121, %v2215
        %v2250 = vadd.f32 %v2122, %v2217
        %v2251 = vadd.f32 %v2123, %v2219
        %v2252 = vrcp.pop %v2220
        %v2253 = vmul.f32 %v2220, %v2252
        %v2254 = vsub.f32 1.0, %v2253
        %v2255 = vmul.f32 %v2252, %v2254
        %v2256 = vadd.f32 %v2252, %v2255
        %vm2257 = vweird.f32 %v2220
        %vm2258 = vweird.f32 %v2252
        %vm2259 = vmor %vm2257, %vm2258
        %v2260 = vsel %vm2259, %v2252, %v2256
        %v2261 = vand.u32 2147483647, %v2220
        %vm2262 = vcmp.eq.f32.partialorder %v2261, 8.507059e+37
        %v2263 = vand.u32 %v2220, 2147483648
        %v2264 = vor.u32 1.1754944e-38, %v2263
        %v2265 = vsel %vm2262, %v2264, %v2260
        %v2266 = vrcp.pop %v2221
        %v2267 = vmul.f32 %v2221, %v2266
        %v2268 = vsub.f32 1.0, %v2267
        %v2269 = vmul.f32 %v2266, %v2268
        %v2270 = vadd.f32 %v2266, %v2269
        %vm2271 = vweird.f32 %v2221
        %vm2272 = vweird.f32 %v2266
        %vm2273 = vmor %vm2271, %vm2272
        %v2274 = vsel %vm2273, %v2266, %v2270
        %v2275 = vand.u32 2147483647, %v2221
        %vm2276 = vcmp.eq.f32.partialorder %v2275, 8.507059e+37
        %v2277 = vand.u32 %v2221, 2147483648
        %v2278 = vor.u32 1.1754944e-38, %v2277
        %v2279 = vsel %vm2276, %v2278, %v2274
        %v2280 = vrcp.pop %v2222
        %v2281 = vmul.f32 %v2222, %v2280
        %v2282 = vsub.f32 1.0, %v2281
        %v2283 = vmul.f32 %v2280, %v2282
        %v2284 = vadd.f32 %v2280, %v2283
        %vm2285 = vweird.f32 %v2222
        %vm2286 = vweird.f32 %v2280
        %vm2287 = vmor %vm2285, %vm2286
        %v2288 = vsel %vm2287, %v2280, %v2284
        %v2289 = vand.u32 2147483647, %v2222
        %vm2290 = vcmp.eq.f32.partialorder %v2289, 8.507059e+37
        %v2291 = vand.u32 %v2222, 2147483648
        %v2292 = vor.u32 1.1754944e-38, %v2291
        %v2293 = vsel %vm2290, %v2292, %v2288
        %v2294 = vrcp.pop %v2223
        %v2295 = vmul.f32 %v2223, %v2294
        %v2296 = vsub.f32 1.0, %v2295
        %v2297 = vmul.f32 %v2294, %v2296
        %v2298 = vadd.f32 %v2294, %v2297
        %vm2299 = vweird.f32 %v2223
        %vm2300 = vweird.f32 %v2294
        %vm2301 = vmor %vm2299, %vm2300
        %v2302 = vsel %vm2301, %v2294, %v2298
        %v2303 = vand.u32 2147483647, %v2223
        %vm2304 = vcmp.eq.f32.partialorder %v2303, 8.507059e+37
        %v2305 = vand.u32 %v2223, 2147483648
        %v2306 = vor.u32 1.1754944e-38, %v2305
        %v2307 = vsel %vm2304, %v2306, %v2302
        %v2308 = vrcp.pop %v2224
        %v2309 = vmul.f32 %v2224, %v2308
        %v2310 = vsub.f32 1.0, %v2309
        %v2311 = vmul.f32 %v2308, %v2310
        %v2312 = vadd.f32 %v2308, %v2311
        %vm2313 = vweird.f32 %v2224
        %vm2314 = vweird.f32 %v2308
        %vm2315 = vmor %vm2313, %vm2314
        %v2316 = vsel %vm2315, %v2308, %v2312
        %v2317 = vand.u32 2147483647, %v2224
        %vm2318 = vcmp.eq.f32.partialorder %v2317, 8.507059e+37
        %v2319 = vand.u32 %v2224, 2147483648
        %v2320 = vor.u32 1.1754944e-38, %v2319
        %v2321 = vsel %vm2318, %v2320, %v2316
        %v2322 = vrcp.pop %v2225
        %v2323 = vmul.f32 %v2225, %v2322
        %v2324 = vsub.f32 1.0, %v2323
        %v2325 = vmul.f32 %v2322, %v2324
        %v2326 = vadd.f32 %v2322, %v2325
        %vm2327 = vweird.f32 %v2225
        %vm2328 = vweird.f32 %v2322
        %vm2329 = vmor %vm2327, %vm2328
        %v2330 = vsel %vm2329, %v2322, %v2326
        %v2331 = vand.u32 2147483647, %v2225
        %vm2332 = vcmp.eq.f32.partialorder %v2331, 8.507059e+37
        %v2333 = vand.u32 %v2225, 2147483648
        %v2334 = vor.u32 1.1754944e-38, %v2333
        %v2335 = vsel %vm2332, %v2334, %v2330
        %v2336 = vrcp.pop %v2226
        %v2337 = vmul.f32 %v2226, %v2336
        %v2338 = vsub.f32 1.0, %v2337
        %v2339 = vmul.f32 %v2336, %v2338
        %v2340 = vadd.f32 %v2336, %v2339
        %vm2341 = vweird.f32 %v2226
        %vm2342 = vweird.f32 %v2336
        %vm2343 = vmor %vm2341, %vm2342
        %v2344 = vsel %vm2343, %v2336, %v2340
        %v2345 = vand.u32 2147483647, %v2226
        %vm2346 = vcmp.eq.f32.partialorder %v2345, 8.507059e+37
        %v2347 = vand.u32 %v2226, 2147483648
        %v2348 = vor.u32 1.1754944e-38, %v2347
        %v2349 = vsel %vm2346, %v2348, %v2344
        %v2350 = vrcp.pop %v2227
        %v2351 = vmul.f32 %v2227, %v2350
        %v2352 = vsub.f32 1.0, %v2351
        %v2353 = vmul.f32 %v2350, %v2352
        %v2354 = vadd.f32 %v2350, %v2353
        %vm2355 = vweird.f32 %v2227
        %vm2356 = vweird.f32 %v2350
        %vm2357 = vmor %vm2355, %vm2356
        %v2358 = vsel %vm2357, %v2350, %v2354
        %v2359 = vand.u32 2147483647, %v2227
        %vm2360 = vcmp.eq.f32.partialorder %v2359, 8.507059e+37
        %v2361 = vand.u32 %v2227, 2147483648
        %v2362 = vor.u32 1.1754944e-38, %v2361
        %v2363 = vsel %vm2360, %v2362, %v2358
        %v2364 = vrcp.pop %v2228
        %v2365 = vmul.f32 %v2228, %v2364
        %v2366 = vsub.f32 1.0, %v2365
        %v2367 = vmul.f32 %v2364, %v2366
        %v2368 = vadd.f32 %v2364, %v2367
        %vm2369 = vweird.f32 %v2228
        %vm2370 = vweird.f32 %v2364
        %vm2371 = vmor %vm2369, %vm2370
        %v2372 = vsel %vm2371, %v2364, %v2368
        %v2373 = vand.u32 2147483647, %v2228
        %vm2374 = vcmp.eq.f32.partialorder %v2373, 8.507059e+37
        %v2375 = vand.u32 %v2228, 2147483648
        %v2376 = vor.u32 1.1754944e-38, %v2375
        %v2377 = vsel %vm2374, %v2376, %v2372
        %v2378 = vrcp.pop %v2229
        %v2379 = vmul.f32 %v2229, %v2378
        %v2380 = vsub.f32 1.0, %v2379
        %v2381 = vmul.f32 %v2378, %v2380
        %v2382 = vadd.f32 %v2378, %v2381
        %vm2383 = vweird.f32 %v2229
        %vm2384 = vweird.f32 %v2378
        %vm2385 = vmor %vm2383, %vm2384
        %v2386 = vsel %vm2385, %v2378, %v2382
        %v2387 = vand.u32 2147483647, %v2229
        %vm2388 = vcmp.eq.f32.partialorder %v2387, 8.507059e+37
        %v2389 = vand.u32 %v2229, 2147483648
        %v2390 = vor.u32 1.1754944e-38, %v2389
        %v2391 = vsel %vm2388, %v2390, %v2386
        %v2392 = vrcp.pop %v2230
        %v2393 = vmul.f32 %v2230, %v2392
        %v2394 = vsub.f32 1.0, %v2393
        %v2395 = vmul.f32 %v2392, %v2394
        %v2396 = vadd.f32 %v2392, %v2395
        %vm2397 = vweird.f32 %v2230
        %vm2398 = vweird.f32 %v2392
        %vm2399 = vmor %vm2397, %vm2398
        %v2400 = vsel %vm2399, %v2392, %v2396
        %v2401 = vand.u32 2147483647, %v2230
        %vm2402 = vcmp.eq.f32.partialorder %v2401, 8.507059e+37
        %v2403 = vand.u32 %v2230, 2147483648
        %v2404 = vor.u32 1.1754944e-38, %v2403
        %v2405 = vsel %vm2402, %v2404, %v2400
        %v2406 = vrcp.pop %v2231
        %v2407 = vmul.f32 %v2231, %v2406
        %v2408 = vsub.f32 1.0, %v2407
        %v2409 = vmul.f32 %v2406, %v2408
        %v2410 = vadd.f32 %v2406, %v2409
        %vm2411 = vweird.f32 %v2231
        %vm2412 = vweird.f32 %v2406
        %vm2413 = vmor %vm2411, %vm2412
        %v2414 = vsel %vm2413, %v2406, %v2410
        %v2415 = vand.u32 2147483647, %v2231
        %vm2416 = vcmp.eq.f32.partialorder %v2415, 8.507059e+37
        %v2417 = vand.u32 %v2231, 2147483648
        %v2418 = vor.u32 1.1754944e-38, %v2417
        %v2419 = vsel %vm2416, %v2418, %v2414
        %v2420 = vrcp.pop %v2232
        %v2421 = vmul.f32 %v2232, %v2420
        %v2422 = vsub.f32 1.0, %v2421
        %v2423 = vmul.f32 %v2420, %v2422
        %v2424 = vadd.f32 %v2420, %v2423
        %vm2425 = vweird.f32 %v2232
        %vm2426 = vweird.f32 %v2420
        %vm2427 = vmor %vm2425, %vm2426
        %v2428 = vsel %vm2427, %v2420, %v2424
        %v2429 = vand.u32 2147483647, %v2232
        %vm2430 = vcmp.eq.f32.partialorder %v2429, 8.507059e+37
        %v2431 = vand.u32 %v2232, 2147483648
        %v2432 = vor.u32 1.1754944e-38, %v2431
        %v2433 = vsel %vm2430, %v2432, %v2428
        %v2434 = vrcp.pop %v2233
        %v2435 = vmul.f32 %v2233, %v2434
        %v2436 = vsub.f32 1.0, %v2435
        %v2437 = vmul.f32 %v2434, %v2436
        %v2438 = vadd.f32 %v2434, %v2437
        %vm2439 = vweird.f32 %v2233
        %vm2440 = vweird.f32 %v2434
        %vm2441 = vmor %vm2439, %vm2440
        %v2442 = vsel %vm2441, %v2434, %v2438
        %v2443 = vand.u32 2147483647, %v2233
        %vm2444 = vcmp.eq.f32.partialorder %v2443, 8.507059e+37
        %v2445 = vand.u32 %v2233, 2147483648
        %v2446 = vor.u32 1.1754944e-38, %v2445
        %v2447 = vsel %vm2444, %v2446, %v2442
        %v2448 = vrcp.pop %v2234
        %v2449 = vmul.f32 %v2234, %v2448
        %v2450 = vsub.f32 1.0, %v2449
        %v2451 = vmul.f32 %v2448, %v2450
        %v2452 = vadd.f32 %v2448, %v2451
        %vm2453 = vweird.f32 %v2234
        %vm2454 = vweird.f32 %v2448
        %vm2455 = vmor %vm2453, %vm2454
        %v2456 = vsel %vm2455, %v2448, %v2452
        %v2457 = vand.u32 2147483647, %v2234
        %vm2458 = vcmp.eq.f32.partialorder %v2457, 8.507059e+37
        %v2459 = vand.u32 %v2234, 2147483648
        %v2460 = vor.u32 1.1754944e-38, %v2459
        %v2461 = vsel %vm2458, %v2460, %v2456
        %v2462 = vrcp.pop %v2235
        %v2463 = vmul.f32 %v2235, %v2462
        %v2464 = vsub.f32 1.0, %v2463
        %v2465 = vmul.f32 %v2462, %v2464
        %v2466 = vadd.f32 %v2462, %v2465
        %vm2467 = vweird.f32 %v2235
        %vm2468 = vweird.f32 %v2462
        %vm2469 = vmor %vm2467, %vm2468
        %v2470 = vsel %vm2469, %v2462, %v2466
        %v2471 = vand.u32 2147483647, %v2235
        %vm2472 = vcmp.eq.f32.partialorder %v2471, 8.507059e+37
        %v2473 = vand.u32 %v2235, 2147483648
        %v2474 = vor.u32 1.1754944e-38, %v2473
        %v2475 = vsel %vm2472, %v2474, %v2470
        %v2476 = vrcp.pop %v2236
        %v2477 = vmul.f32 %v2236, %v2476
        %v2478 = vsub.f32 1.0, %v2477
        %v2479 = vmul.f32 %v2476, %v2478
        %v2480 = vadd.f32 %v2476, %v2479
        %vm2481 = vweird.f32 %v2236
        %vm2482 = vweird.f32 %v2476
        %vm2483 = vmor %vm2481, %vm2482
        %v2484 = vsel %vm2483, %v2476, %v2480
        %v2485 = vand.u32 2147483647, %v2236
        %vm2486 = vcmp.eq.f32.partialorder %v2485, 8.507059e+37
        %v2487 = vand.u32 %v2236, 2147483648
        %v2488 = vor.u32 1.1754944e-38, %v2487
        %v2489 = vsel %vm2486, %v2488, %v2484
        %v2490 = vrcp.pop %v2237
        %v2491 = vmul.f32 %v2237, %v2490
        %v2492 = vsub.f32 1.0, %v2491
        %v2493 = vmul.f32 %v2490, %v2492
        %v2494 = vadd.f32 %v2490, %v2493
        %vm2495 = vweird.f32 %v2237
        %vm2496 = vweird.f32 %v2490
        %vm2497 = vmor %vm2495, %vm2496
        %v2498 = vsel %vm2497, %v2490, %v2494
        %v2499 = vand.u32 2147483647, %v2237
        %vm2500 = vcmp.eq.f32.partialorder %v2499, 8.507059e+37
        %v2501 = vand.u32 %v2237, 2147483648
        %v2502 = vor.u32 1.1754944e-38, %v2501
        %v2503 = vsel %vm2500, %v2502, %v2498
        %v2504 = vrcp.pop %v2238
        %v2505 = vmul.f32 %v2238, %v2504
        %v2506 = vsub.f32 1.0, %v2505
        %v2507 = vmul.f32 %v2504, %v2506
        %v2508 = vadd.f32 %v2504, %v2507
        %vm2509 = vweird.f32 %v2238
        %vm2510 = vweird.f32 %v2504
        %vm2511 = vmor %vm2509, %vm2510
        %v2512 = vsel %vm2511, %v2504, %v2508
        %v2513 = vand.u32 2147483647, %v2238
        %vm2514 = vcmp.eq.f32.partialorder %v2513, 8.507059e+37
        %v2515 = vand.u32 %v2238, 2147483648
        %v2516 = vor.u32 1.1754944e-38, %v2515
        %v2517 = vsel %vm2514, %v2516, %v2512
        %v2518 = vrcp.pop %v2239
        %v2519 = vmul.f32 %v2239, %v2518
        %v2520 = vsub.f32 1.0, %v2519
        %v2521 = vmul.f32 %v2518, %v2520
        %v2522 = vadd.f32 %v2518, %v2521
        %vm2523 = vweird.f32 %v2239
        %vm2524 = vweird.f32 %v2518
        %vm2525 = vmor %vm2523, %vm2524
        %v2526 = vsel %vm2525, %v2518, %v2522
        %v2527 = vand.u32 2147483647, %v2239
        %vm2528 = vcmp.eq.f32.partialorder %v2527, 8.507059e+37
        %v2529 = vand.u32 %v2239, 2147483648
        %v2530 = vor.u32 1.1754944e-38, %v2529
        %v2531 = vsel %vm2528, %v2530, %v2526
        %v2532 = vrcp.pop %v2240
        %v2533 = vmul.f32 %v2240, %v2532
        %v2534 = vsub.f32 1.0, %v2533
        %v2535 = vmul.f32 %v2532, %v2534
        %v2536 = vadd.f32 %v2532, %v2535
        %vm2537 = vweird.f32 %v2240
        %vm2538 = vweird.f32 %v2532
        %vm2539 = vmor %vm2537, %vm2538
        %v2540 = vsel %vm2539, %v2532, %v2536
        %v2541 = vand.u32 2147483647, %v2240
        %vm2542 = vcmp.eq.f32.partialorder %v2541, 8.507059e+37
        %v2543 = vand.u32 %v2240, 2147483648
        %v2544 = vor.u32 1.1754944e-38, %v2543
        %v2545 = vsel %vm2542, %v2544, %v2540
        %v2546 = vrcp.pop %v2241
        %v2547 = vmul.f32 %v2241, %v2546
        %v2548 = vsub.f32 1.0, %v2547
        %v2549 = vmul.f32 %v2546, %v2548
        %v2550 = vadd.f32 %v2546, %v2549
        %vm2551 = vweird.f32 %v2241
        %vm2552 = vweird.f32 %v2546
        %vm2553 = vmor %vm2551, %vm2552
        %v2554 = vsel %vm2553, %v2546, %v2550
        %v2555 = vand.u32 2147483647, %v2241
        %vm2556 = vcmp.eq.f32.partialorder %v2555, 8.507059e+37
        %v2557 = vand.u32 %v2241, 2147483648
        %v2558 = vor.u32 1.1754944e-38, %v2557
        %v2559 = vsel %vm2556, %v2558, %v2554
        %v2560 = vrcp.pop %v2242
        %v2561 = vmul.f32 %v2242, %v2560
        %v2562 = vsub.f32 1.0, %v2561
        %v2563 = vmul.f32 %v2560, %v2562
        %v2564 = vadd.f32 %v2560, %v2563
        %vm2565 = vweird.f32 %v2242
        %vm2566 = vweird.f32 %v2560
        %vm2567 = vmor %vm2565, %vm2566
        %v2568 = vsel %vm2567, %v2560, %v2564
        %v2569 = vand.u32 2147483647, %v2242
        %vm2570 = vcmp.eq.f32.partialorder %v2569, 8.507059e+37
        %v2571 = vand.u32 %v2242, 2147483648
        %v2572 = vor.u32 1.1754944e-38, %v2571
        %v2573 = vsel %vm2570, %v2572, %v2568
        %v2574 = vrcp.pop %v2243
        %v2575 = vmul.f32 %v2243, %v2574
        %v2576 = vsub.f32 1.0, %v2575
        %v2577 = vmul.f32 %v2574, %v2576
        %v2578 = vadd.f32 %v2574, %v2577
        %vm2579 = vweird.f32 %v2243
        %vm2580 = vweird.f32 %v2574
        %vm2581 = vmor %vm2579, %vm2580
        %v2582 = vsel %vm2581, %v2574, %v2578
        %v2583 = vand.u32 2147483647, %v2243
        %vm2584 = vcmp.eq.f32.partialorder %v2583, 8.507059e+37
        %v2585 = vand.u32 %v2243, 2147483648
        %v2586 = vor.u32 1.1754944e-38, %v2585
        %v2587 = vsel %vm2584, %v2586, %v2582
        %v2588 = vrcp.pop %v2244
        %v2589 = vmul.f32 %v2244, %v2588
        %v2590 = vsub.f32 1.0, %v2589
        %v2591 = vmul.f32 %v2588, %v2590
        %v2592 = vadd.f32 %v2588, %v2591
        %vm2593 = vweird.f32 %v2244
        %vm2594 = vweird.f32 %v2588
        %vm2595 = vmor %vm2593, %vm2594
        %v2596 = vsel %vm2595, %v2588, %v2592
        %v2597 = vand.u32 2147483647, %v2244
        %vm2598 = vcmp.eq.f32.partialorder %v2597, 8.507059e+37
        %v2599 = vand.u32 %v2244, 2147483648
        %v2600 = vor.u32 1.1754944e-38, %v2599
        %v2601 = vsel %vm2598, %v2600, %v2596
        %v2602 = vrcp.pop %v2245
        %v2603 = vmul.f32 %v2245, %v2602
        %v2604 = vsub.f32 1.0, %v2603
        %v2605 = vmul.f32 %v2602, %v2604
        %v2606 = vadd.f32 %v2602, %v2605
        %vm2607 = vweird.f32 %v2245
        %vm2608 = vweird.f32 %v2602
        %vm2609 = vmor %vm2607, %vm2608
        %v2610 = vsel %vm2609, %v2602, %v2606
        %v2611 = vand.u32 2147483647, %v2245
        %vm2612 = vcmp.eq.f32.partialorder %v2611, 8.507059e+37
        %v2613 = vand.u32 %v2245, 2147483648
        %v2614 = vor.u32 1.1754944e-38, %v2613
        %v2615 = vsel %vm2612, %v2614, %v2610
        %v2616 = vrcp.pop %v2246
        %v2617 = vmul.f32 %v2246, %v2616
        %v2618 = vsub.f32 1.0, %v2617
        %v2619 = vmul.f32 %v2616, %v2618
        %v2620 = vadd.f32 %v2616, %v2619
        %vm2621 = vweird.f32 %v2246
        %vm2622 = vweird.f32 %v2616
        %vm2623 = vmor %vm2621, %vm2622
        %v2624 = vsel %vm2623, %v2616, %v2620
        %v2625 = vand.u32 2147483647, %v2246
        %vm2626 = vcmp.eq.f32.partialorder %v2625, 8.507059e+37
        %v2627 = vand.u32 %v2246, 2147483648
        %v2628 = vor.u32 1.1754944e-38, %v2627
        %v2629 = vsel %vm2626, %v2628, %v2624
        %v2630 = vrcp.pop %v2247
        %v2631 = vmul.f32 %v2247, %v2630
        %v2632 = vsub.f32 1.0, %v2631
        %v2633 = vmul.f32 %v2630, %v2632
        %v2634 = vadd.f32 %v2630, %v2633
        %vm2635 = vweird.f32 %v2247
        %vm2636 = vweird.f32 %v2630
        %vm2637 = vmor %vm2635, %vm2636
        %v2638 = vsel %vm2637, %v2630, %v2634
        %v2639 = vand.u32 2147483647, %v2247
        %vm2640 = vcmp.eq.f32.partialorder %v2639, 8.507059e+37
        %v2641 = vand.u32 %v2247, 2147483648
        %v2642 = vor.u32 1.1754944e-38, %v2641
        %v2643 = vsel %vm2640, %v2642, %v2638
        %v2644 = vrcp.pop %v2248
        %v2645 = vmul.f32 %v2248, %v2644
        %v2646 = vsub.f32 1.0, %v2645
        %v2647 = vmul.f32 %v2644, %v2646
        %v2648 = vadd.f32 %v2644, %v2647
        %vm2649 = vweird.f32 %v2248
        %vm2650 = vweird.f32 %v2644
        %vm2651 = vmor %vm2649, %vm2650
        %v2652 = vsel %vm2651, %v2644, %v2648
        %v2653 = vand.u32 2147483647, %v2248
        %vm2654 = vcmp.eq.f32.partialorder %v2653, 8.507059e+37
        %v2655 = vand.u32 %v2248, 2147483648
        %v2656 = vor.u32 1.1754944e-38, %v2655
        %v2657 = vsel %vm2654, %v2656, %v2652
        %v2658 = vrcp.pop %v2249
        %v2659 = vmul.f32 %v2249, %v2658
        %v2660 = vsub.f32 1.0, %v2659
        %v2661 = vmul.f32 %v2658, %v2660
        %v2662 = vadd.f32 %v2658, %v2661
        %vm2663 = vweird.f32 %v2249
        %vm2664 = vweird.f32 %v2658
        %vm2665 = vmor %vm2663, %vm2664
        %v2666 = vsel %vm2665, %v2658, %v2662
        %v2667 = vand.u32 2147483647, %v2249
        %vm2668 = vcmp.eq.f32.partialorder %v2667, 8.507059e+37
        %v2669 = vand.u32 %v2249, 2147483648
        %v2670 = vor.u32 1.1754944e-38, %v2669
        %v2671 = vsel %vm2668, %v2670, %v2666
        %v2672 = vrcp.pop %v2250
        %v2673 = vmul.f32 %v2250, %v2672
        %v2674 = vsub.f32 1.0, %v2673
        %v2675 = vmul.f32 %v2672, %v2674
        %v2676 = vadd.f32 %v2672, %v2675
        %vm2677 = vweird.f32 %v2250
        %vm2678 = vweird.f32 %v2672
        %vm2679 = vmor %vm2677, %vm2678
        %v2680 = vsel %vm2679, %v2672, %v2676
        %v2681 = vand.u32 2147483647, %v2250
        %vm2682 = vcmp.eq.f32.partialorder %v2681, 8.507059e+37
        %v2683 = vand.u32 %v2250, 2147483648
        %v2684 = vor.u32 1.1754944e-38, %v2683
        %v2685 = vsel %vm2682, %v2684, %v2680
        %v2686 = vrcp.pop %v2251
        %v2687 = vmul.f32 %v2251, %v2686
        %v2688 = vsub.f32 1.0, %v2687
        %v2689 = vmul.f32 %v2686, %v2688
        %v2690 = vadd.f32 %v2686, %v2689
        %vm2691 = vweird.f32 %v2251
        %vm2692 = vweird.f32 %v2686
        %vm2693 = vmor %vm2691, %vm2692
        %v2694 = vsel %vm2693, %v2686, %v2690
        %v2695 = vand.u32 2147483647, %v2251
        %vm2696 = vcmp.eq.f32.partialorder %v2695, 8.507059e+37
        %v2697 = vand.u32 %v2251, 2147483648
        %v2698 = vor.u32 1.1754944e-38, %v2697
        %v2699 = vsel %vm2696, %v2698, %v2694
        %v2700 = vmul.f32 %v2029, %v2265
        %v2701 = vmul.f32 %v2031, %v2279
        %v2702 = vmul.f32 %v2033, %v2293
        %v2703 = vmul.f32 %v2035, %v2307
        %v2704 = vmul.f32 %v2037, %v2321
        %v2705 = vmul.f32 %v2039, %v2335
        %v2706 = vmul.f32 %v2041, %v2349
        %v2707 = vmul.f32 %v2043, %v2363
        %v2708 = vmul.f32 %v2045, %v2377
        %v2709 = vmul.f32 %v2047, %v2391
        %v2710 = vmul.f32 %v2049, %v2405
        %v2711 = vmul.f32 %v2051, %v2419
        %v2712 = vmul.f32 %v2053, %v2433
        %v2713 = vmul.f32 %v2055, %v2447
        %v2714 = vmul.f32 %v2057, %v2461
        %v2715 = vmul.f32 %v2059, %v2475
        %v2716 = vmul.f32 %v2061, %v2489
        %v2717 = vmul.f32 %v2063, %v2503
        %v2718 = vmul.f32 %v2065, %v2517
        %v2719 = vmul.f32 %v2067, %v2531
        %v2720 = vmul.f32 %v2069, %v2545
        %v2721 = vmul.f32 %v2071, %v2559
        %v2722 = vmul.f32 %v2073, %v2573
        %v2723 = vmul.f32 %v2075, %v2587
        %v2724 = vmul.f32 %v2077, %v2601
        %v2725 = vmul.f32 %v2079, %v2615
        %v2726 = vmul.f32 %v2081, %v2629
        %v2727 = vmul.f32 %v2083, %v2643
        %v2728 = vmul.f32 %v2085, %v2657
        %v2729 = vmul.f32 %v2087, %v2671
        %v2730 = vmul.f32 %v2089, %v2685
        %v2731 = vmul.f32 %v2091, %v2699
        %v2732 = vmul.f32 %v2700, %v1228
        %v2733 = vmul.f32 %v2701, %v1229
        %v2734 = vmul.f32 %v2702, %v1230
        %v2735 = vmul.f32 %v2703, %v1231
        %v2736 = vmul.f32 %v2704, %v1232
        %v2737 = vmul.f32 %v2705, %v1233
        %v2738 = vmul.f32 %v2706, %v1234
        %v2739 = vmul.f32 %v2707, %v1235
        %v2740 = vmul.f32 %v2708, %v1236
        %v2741 = vmul.f32 %v2709, %v1237
        %v2742 = vmul.f32 %v2710, %v1238
        %v2743 = vmul.f32 %v2711, %v1239
        %v2744 = vmul.f32 %v2712, %v1240
        %v2745 = vmul.f32 %v2713, %v1241
        %v2746 = vmul.f32 %v2714, %v1242
        %v2747 = vmul.f32 %v2715, %v1243
        %v2748 = vmul.f32 %v2716, %v1244
        %v2749 = vmul.f32 %v2717, %v1245
        %v2750 = vmul.f32 %v2718, %v1246
        %v2751 = vmul.f32 %v2719, %v1247
        %v2752 = vmul.f32 %v2720, %v1248
        %v2753 = vmul.f32 %v2721, %v1249
        %v2754 = vmul.f32 %v2722, %v1250
        %v2755 = vmul.f32 %v2723, %v1251
        %v2756 = vmul.f32 %v2724, %v1252
        %v2757 = vmul.f32 %v2725, %v1253
        %v2758 = vmul.f32 %v2726, %v1254
        %v2759 = vmul.f32 %v2727, %v1255
        %v2760 = vmul.f32 %v2728, %v1256
        %v2761 = vmul.f32 %v2729, %v1257
        %v2762 = vmul.f32 %v2730, %v1258
        %v2763 = vmul.f32 %v2731, %v1259
        %v2764 = vadd.f32 %v2732, 0.0
        %v2765 = vadd.f32 %v2733, 0.0
        %v2766 = vadd.f32 %v2734, 0.0
        %v2767 = vadd.f32 %v2735, 0.0
        %v2768 = vadd.f32 %v2736, 0.0
        %v2769 = vadd.f32 %v2737, 0.0
        %v2770 = vadd.f32 %v2738, 0.0
        %v2771 = vadd.f32 %v2739, 0.0
        %v2772 = vadd.f32 %v2740, 0.0
        %v2773 = vadd.f32 %v2741, 0.0
        %v2774 = vadd.f32 %v2742, 0.0
        %v2775 = vadd.f32 %v2743, 0.0
        %v2776 = vadd.f32 %v2744, 0.0
        %v2777 = vadd.f32 %v2745, 0.0
        %v2778 = vadd.f32 %v2746, 0.0
        %v2779 = vadd.f32 %v2747, 0.0
        %v2780 = vadd.f32 %v2748, 0.0
        %v2781 = vadd.f32 %v2749, 0.0
        %v2782 = vadd.f32 %v2750, 0.0
        %v2783 = vadd.f32 %v2751, 0.0
        %v2784 = vadd.f32 %v2752, 0.0
        %v2785 = vadd.f32 %v2753, 0.0
        %v2786 = vadd.f32 %v2754, 0.0
        %v2787 = vadd.f32 %v2755, 0.0
        %v2788 = vadd.f32 %v2756, 0.0
        %v2789 = vadd.f32 %v2757, 0.0
        %v2790 = vadd.f32 %v2758, 0.0
        %v2791 = vadd.f32 %v2759, 0.0
        %v2792 = vadd.f32 %v2760, 0.0
        %v2793 = vadd.f32 %v2761, 0.0
        %v2794 = vadd.f32 %v2762, 0.0
        %v2795 = vadd.f32 %v2763, 0.0
        %v2796 = vmul.f32 %v2157, %v2265
        %v2797 = vmul.f32 %v2159, %v2279
        %v2798 = vmul.f32 %v2161, %v2293
        %v2799 = vmul.f32 %v2163, %v2307
        %v2800 = vmul.f32 %v2165, %v2321
        %v2801 = vmul.f32 %v2167, %v2335
        %v2802 = vmul.f32 %v2169, %v2349
        %v2803 = vmul.f32 %v2171, %v2363
        %v2804 = vmul.f32 %v2173, %v2377
        %v2805 = vmul.f32 %v2175, %v2391
        %v2806 = vmul.f32 %v2177, %v2405
        %v2807 = vmul.f32 %v2179, %v2419
        %v2808 = vmul.f32 %v2181, %v2433
        %v2809 = vmul.f32 %v2183, %v2447
        %v2810 = vmul.f32 %v2185, %v2461
        %v2811 = vmul.f32 %v2187, %v2475
        %v2812 = vmul.f32 %v2189, %v2489
        %v2813 = vmul.f32 %v2191, %v2503
        %v2814 = vmul.f32 %v2193, %v2517
        %v2815 = vmul.f32 %v2195, %v2531
        %v2816 = vmul.f32 %v2197, %v2545
        %v2817 = vmul.f32 %v2199, %v2559
        %v2818 = vmul.f32 %v2201, %v2573
        %v2819 = vmul.f32 %v2203, %v2587
        %v2820 = vmul.f32 %v2205, %v2601
        %v2821 = vmul.f32 %v2207, %v2615
        %v2822 = vmul.f32 %v2209, %v2629
        %v2823 = vmul.f32 %v2211, %v2643
        %v2824 = vmul.f32 %v2213, %v2657
        %v2825 = vmul.f32 %v2215, %v2671
        %v2826 = vmul.f32 %v2217, %v2685
        %v2827 = vmul.f32 %v2219, %v2699
        %v2828 = vmul.f32 %v2796, %v1964
        %v2829 = vmul.f32 %v2797, %v1965
        %v2830 = vmul.f32 %v2798, %v1966
        %v2831 = vmul.f32 %v2799, %v1967
        %v2832 = vmul.f32 %v2800, %v1968
        %v2833 = vmul.f32 %v2801, %v1969
        %v2834 = vmul.f32 %v2802, %v1970
        %v2835 = vmul.f32 %v2803, %v1971
        %v2836 = vmul.f32 %v2804, %v1972
        %v2837 = vmul.f32 %v2805, %v1973
        %v2838 = vmul.f32 %v2806, %v1974
        %v2839 = vmul.f32 %v2807, %v1975
        %v2840 = vmul.f32 %v2808, %v1976
        %v2841 = vmul.f32 %v2809, %v1977
        %v2842 = vmul.f32 %v2810, %v1978
        %v2843 = vmul.f32 %v2811, %v1979
        %v2844 = vmul.f32 %v2812, %v1980
        %v2845 = vmul.f32 %v2813, %v1981
        %v2846 = vmul.f32 %v2814, %v1982
        %v2847 = vmul.f32 %v2815, %v1983
        %v2848 = vmul.f32 %v2816, %v1984
        %v2849 = vmul.f32 %v2817, %v1985
        %v2850 = vmul.f32 %v2818, %v1986
        %v2851 = vmul.f32 %v2819, %v1987
        %v2852 = vmul.f32 %v2820, %v1988
        %v2853 = vmul.f32 %v2821, %v1989
        %v2854 = vmul.f32 %v2822, %v1990
        %v2855 = vmul.f32 %v2823, %v1991
        %v2856 = vmul.f32 %v2824, %v1992
        %v2857 = vmul.f32 %v2825, %v1993
        %v2858 = vmul.f32 %v2826, %v1994
        %v2859 = vmul.f32 %v2827, %v1995
        %v2860 = vadd.f32 %v2764, %v2828
        %v2861 = vadd.f32 %v2765, %v2829
        %v2862 = vadd.f32 %v2766, %v2830
        %v2863 = vadd.f32 %v2767, %v2831
        %v2864 = vadd.f32 %v2768, %v2832
        %v2865 = vadd.f32 %v2769, %v2833
        %v2866 = vadd.f32 %v2770, %v2834
        %v2867 = vadd.f32 %v2771, %v2835
        %v2868 = vadd.f32 %v2772, %v2836
        %v2869 = vadd.f32 %v2773, %v2837
        %v2870 = vadd.f32 %v2774, %v2838
        %v2871 = vadd.f32 %v2775, %v2839
        %v2872 = vadd.f32 %v2776, %v2840
        %v2873 = vadd.f32 %v2777, %v2841
        %v2874 = vadd.f32 %v2778, %v2842
        %v2875 = vadd.f32 %v2779, %v2843
        %v2876 = vadd.f32 %v2780, %v2844
        %v2877 = vadd.f32 %v2781, %v2845
        %v2878 = vadd.f32 %v2782, %v2846
        %v2879 = vadd.f32 %v2783, %v2847
        %v2880 = vadd.f32 %v2784, %v2848
        %v2881 = vadd.f32 %v2785, %v2849
        %v2882 = vadd.f32 %v2786, %v2850
        %v2883 = vadd.f32 %v2787, %v2851
        %v2884 = vadd.f32 %v2788, %v2852
        %v2885 = vadd.f32 %v2789, %v2853
        %v2886 = vadd.f32 %v2790, %v2854
        %v2887 = vadd.f32 %v2791, %v2855
        %v2888 = vadd.f32 %v2792, %v2856
        %v2889 = vadd.f32 %v2793, %v2857
        %v2890 = vadd.f32 %v2794, %v2858
        %v2891 = vadd.f32 %v2795, %v2859
        %2892 = vst [vmem:[%s419] sm:$0xff] %v2860
        %2893 = vst [vmem:[%s419 + $0x8] sm:$0xff] %v2861
        %2894 = vst [vmem:[%s419 + $0x10] sm:$0xff] %v2862
        %2895 = vst [vmem:[%s419 + $0x18] sm:$0xff] %v2863
        %2896 = vst [vmem:[%s419 + $0x20] sm:$0xff] %v2864
        %2897 = vst [vmem:[%s419 + $0x28] sm:$0xff] %v2865
        %2898 = vst [vmem:[%s419 + $0x30] sm:$0xff] %v2866
        %2899 = vst [vmem:[%s419 + $0x38] sm:$0xff] %v2867
        %2900 = vst [vmem:[%s419 + $0x40] sm:$0xff] %v2868
        %2901 = vst [vmem:[%s419 + $0x48] sm:$0xff] %v2869
        %2902 = vst [vmem:[%s419 + $0x50] sm:$0xff] %v2870
        %2903 = vst [vmem:[%s419 + $0x58] sm:$0xff] %v2871
        %2904 = vst [vmem:[%s419 + $0x60] sm:$0xff] %v2872
        %2905 = vst [vmem:[%s419 + $0x68] sm:$0xff] %v2873
        %2906 = vst [vmem:[%s419 + $0x70] sm:$0xff] %v2874
        %2907 = vst [vmem:[%s419 + $0x78] sm:$0xff] %v2875
        %2908 = vst [vmem:[%s419 + $0x80] sm:$0xff] %v2876
        %2909 = vst [vmem:[%s419 + $0x88] sm:$0xff] %v2877
        %2910 = vst [vmem:[%s419 + $0x90] sm:$0xff] %v2878
        %2911 = vst [vmem:[%s419 + $0x98] sm:$0xff] %v2879
        %2912 = vst [vmem:[%s419 + $0xa0] sm:$0xff] %v2880
        %2913 = vst [vmem:[%s419 + $0xa8] sm:$0xff] %v2881
        %2914 = vst [vmem:[%s419 + $0xb0] sm:$0xff] %v2882
        %2915 = vst [vmem:[%s419 + $0xb8] sm:$0xff] %v2883
        %2916 = vst [vmem:[%s419 + $0xc0] sm:$0xff] %v2884
        %2917 = vst [vmem:[%s419 + $0xc8] sm:$0xff] %v2885
        %2918 = vst [vmem:[%s419 + $0xd0] sm:$0xff] %v2886
        %2919 = vst [vmem:[%s419 + $0xd8] sm:$0xff] %v2887
        %2920 = vst [vmem:[%s419 + $0xe0] sm:$0xff] %v2888
        %2921 = vst [vmem:[%s419 + $0xe8] sm:$0xff] %v2889
        %2922 = vst [vmem:[%s419 + $0xf0] sm:$0xff] %v2890
        %2923 = vst [vmem:[%s419 + $0xf8] sm:$0xff] %v2891
        %v2924 = vpack.c.bf16 %v422, %v421
        %v2925 = vpack.c.bf16 %v424, %v423
        %v2926 = vpack.c.bf16 %v426, %v425
        %v2927 = vpack.c.bf16 %v428, %v427
        %v2928 = vpack.c.bf16 %v430, %v429
        %v2929 = vpack.c.bf16 %v432, %v431
        %v2930 = vpack.c.bf16 %v434, %v433
        %v2931 = vpack.c.bf16 %v436, %v435
        %v2932 = vpack.c.bf16 %v438, %v437
        %v2933 = vpack.c.bf16 %v440, %v439
        %v2934 = vpack.c.bf16 %v442, %v441
        %v2935 = vpack.c.bf16 %v444, %v443
        %v2936 = vpack.c.bf16 %v446, %v445
        %v2937 = vpack.c.bf16 %v448, %v447
        %v2938 = vpack.c.bf16 %v450, %v449
        %v2939 = vpack.c.bf16 %v452, %v451
        %v2940 = vld [vmem:[#allocation7] sm:$0xff]
        %v2941 = vld [vmem:[#allocation7 + $0x8] sm:$0xff]
        %v2942 = vld [vmem:[#allocation7 + $0x10] sm:$0xff]
        %v2943 = vld [vmem:[#allocation7 + $0x18] sm:$0xff]
        %v2944 = vld [vmem:[#allocation7 + $0x20] sm:$0xff]
        %v2945 = vld [vmem:[#allocation7 + $0x28] sm:$0xff]
        %v2946 = vld [vmem:[#allocation7 + $0x30] sm:$0xff]
        %v2947 = vld [vmem:[#allocation7 + $0x38] sm:$0xff]
        %v2948 = vld [vmem:[#allocation7 + $0x40] sm:$0xff]
        %v2949 = vld [vmem:[#allocation7 + $0x48] sm:$0xff]
        %v2950 = vld [vmem:[#allocation7 + $0x50] sm:$0xff]
        %v2951 = vld [vmem:[#allocation7 + $0x58] sm:$0xff]
        %v2952 = vld [vmem:[#allocation7 + $0x60] sm:$0xff]
        %v2953 = vld [vmem:[#allocation7 + $0x68] sm:$0xff]
        %v2954 = vld [vmem:[#allocation7 + $0x70] sm:$0xff]
        %v2955 = vld [vmem:[#allocation7 + $0x78] sm:$0xff]
        %v2956 = vld [vmem:[#allocation7 + $0x80] sm:$0xff]
        %v2957 = vld [vmem:[#allocation7 + $0x88] sm:$0xff]
        %v2958 = vld [vmem:[#allocation7 + $0x90] sm:$0xff]
        %v2959 = vld [vmem:[#allocation7 + $0x98] sm:$0xff]
        %v2960 = vld [vmem:[#allocation7 + $0xa0] sm:$0xff]
        %v2961 = vld [vmem:[#allocation7 + $0xa8] sm:$0xff]
        %v2962 = vld [vmem:[#allocation7 + $0xb0] sm:$0xff]
        %v2963 = vld [vmem:[#allocation7 + $0xb8] sm:$0xff]
        %v2964 = vld [vmem:[#allocation7 + $0xc0] sm:$0xff]
        %v2965 = vld [vmem:[#allocation7 + $0xc8] sm:$0xff]
        %v2966 = vld [vmem:[#allocation7 + $0xd0] sm:$0xff]
        %v2967 = vld [vmem:[#allocation7 + $0xd8] sm:$0xff]
        %v2968 = vld [vmem:[#allocation7 + $0xe0] sm:$0xff]
        %v2969 = vld [vmem:[#allocation7 + $0xe8] sm:$0xff]
        %v2970 = vld [vmem:[#allocation7 + $0xf0] sm:$0xff]
        %v2971 = vld [vmem:[#allocation7 + $0xf8] sm:$0xff]
        %v2972 = vld [vmem:[#allocation8] sm:$0xf]
        %v2974 = vperm.slane %v2972, 0
        %v2975 = vperm.slane %v2972, 1
        %v2976 = vperm.slane %v2972, 2
        %v2977 = vperm.slane %v2972, 3
        %v3014 = vunpack.c.l.b16 %v2940
        %v3015 = vunpack.c.h.b16 %v2940
        %v3016 = vunpack.c.l.b16 %v2941
        %v3017 = vunpack.c.h.b16 %v2941
        %v3018 = vunpack.c.l.b16 %v2942
        %v3019 = vunpack.c.h.b16 %v2942
        %v3020 = vunpack.c.l.b16 %v2943
        %v3021 = vunpack.c.h.b16 %v2943
        %v3022 = vunpack.c.l.b16 %v2944
        %v3023 = vunpack.c.h.b16 %v2944
        %v3024 = vunpack.c.l.b16 %v2945
        %v3025 = vunpack.c.h.b16 %v2945
        %v3026 = vunpack.c.l.b16 %v2946
        %v3027 = vunpack.c.h.b16 %v2946
        %v3028 = vunpack.c.l.b16 %v2947
        %v3029 = vunpack.c.h.b16 %v2947
        %v3030 = vunpack.c.l.b16 %v2948
        %v3031 = vunpack.c.h.b16 %v2948
        %v3032 = vunpack.c.l.b16 %v2949
        %v3033 = vunpack.c.h.b16 %v2949
        %v3034 = vunpack.c.l.b16 %v2950
        %v3035 = vunpack.c.h.b16 %v2950
        %v3036 = vunpack.c.l.b16 %v2951
        %v3037 = vunpack.c.h.b16 %v2951
        %v3038 = vunpack.c.l.b16 %v2952
        %v3039 = vunpack.c.h.b16 %v2952
        %v3040 = vunpack.c.l.b16 %v2953
        %v3041 = vunpack.c.h.b16 %v2953
        %v3042 = vunpack.c.l.b16 %v2954
        %v3043 = vunpack.c.h.b16 %v2954
        %v3044 = vunpack.c.l.b16 %v2955
        %v3045 = vunpack.c.h.b16 %v2955
        %v3046 = vunpack.c.l.b16 %v2956
        %v3047 = vunpack.c.h.b16 %v2956
        %v3048 = vunpack.c.l.b16 %v2957
        %v3049 = vunpack.c.h.b16 %v2957
        %v3050 = vunpack.c.l.b16 %v2958
        %v3051 = vunpack.c.h.b16 %v2958
        %v3052 = vunpack.c.l.b16 %v2959
        %v3053 = vunpack.c.h.b16 %v2959
        %v3054 = vunpack.c.l.b16 %v2960
        %v3055 = vunpack.c.h.b16 %v2960
        %v3056 = vunpack.c.l.b16 %v2961
        %v3057 = vunpack.c.h.b16 %v2961
        %v3058 = vunpack.c.l.b16 %v2962
        %v3059 = vunpack.c.h.b16 %v2962
        %v3060 = vunpack.c.l.b16 %v2963
        %v3061 = vunpack.c.h.b16 %v2963
        %v3062 = vunpack.c.l.b16 %v2964
        %v3063 = vunpack.c.h.b16 %v2964
        %v3064 = vunpack.c.l.b16 %v2965
        %v3065 = vunpack.c.h.b16 %v2965
        %v3066 = vunpack.c.l.b16 %v2966
        %v3067 = vunpack.c.h.b16 %v2966
        %v3068 = vunpack.c.l.b16 %v2967
        %v3069 = vunpack.c.h.b16 %v2967
        %v3070 = vunpack.c.l.b16 %v2968
        %v3071 = vunpack.c.h.b16 %v2968
        %v3072 = vunpack.c.l.b16 %v2969
        %v3073 = vunpack.c.h.b16 %v2969
        %v3074 = vunpack.c.l.b16 %v2970
        %v3075 = vunpack.c.h.b16 %v2970
        %v3076 = vunpack.c.l.b16 %v2971
        %v3077 = vunpack.c.h.b16 %v2971
        %v3078 = vpack.c.b16 %v3018, %v3014
        %v3079 = vpack.c.b16 %v3019, %v3015
        %v3080 = vpack.c.b16 %v3020, %v3016
        %v3081 = vpack.c.b16 %v3021, %v3017
        %v3082 = vpack.c.b16 %v3026, %v3022
        %v3083 = vpack.c.b16 %v3027, %v3023
        %v3084 = vpack.c.b16 %v3028, %v3024
        %v3085 = vpack.c.b16 %v3029, %v3025
        %v3086 = vpack.c.b16 %v3034, %v3030
        %v3087 = vpack.c.b16 %v3035, %v3031
        %v3088 = vpack.c.b16 %v3036, %v3032
        %v3089 = vpack.c.b16 %v3037, %v3033
        %v3090 = vpack.c.b16 %v3042, %v3038
        %v3091 = vpack.c.b16 %v3043, %v3039
        %v3092 = vpack.c.b16 %v3044, %v3040
        %v3093 = vpack.c.b16 %v3045, %v3041
        %v3094 = vpack.c.b16 %v3050, %v3046
        %v3095 = vpack.c.b16 %v3051, %v3047
        %v3096 = vpack.c.b16 %v3052, %v3048
        %v3097 = vpack.c.b16 %v3053, %v3049
        %v3098 = vpack.c.b16 %v3058, %v3054
        %v3099 = vpack.c.b16 %v3059, %v3055
        %v3100 = vpack.c.b16 %v3060, %v3056
        %v3101 = vpack.c.b16 %v3061, %v3057
        %v3102 = vpack.c.b16 %v3066, %v3062
        %v3103 = vpack.c.b16 %v3067, %v3063
        %v3104 = vpack.c.b16 %v3068, %v3064
        %v3105 = vpack.c.b16 %v3069, %v3065
        %v3106 = vpack.c.b16 %v3074, %v3070
        %v3107 = vpack.c.b16 %v3075, %v3071
        %v3108 = vpack.c.b16 %v3076, %v3072
        %v3109 = vpack.c.b16 %v3077, %v3073
        %3142 = vmatpush.bf16.msra.mxu0 %v3106
        %3143 = vmatpush.bf16.msra.mxu0 %v3102
        %3144 = vmatpush.bf16.msra.mxu0 %v3098
        %3145 = vmatpush.bf16.msra.mxu0 %v3094
        %3146 = vmatpush.bf16.msra.mxu0 %v3090
        %3147 = vmatpush.bf16.msra.mxu0 %v3086
        %3148 = vmatpush.bf16.msra.mxu0 %v3082
        %3149 = vmatpush.bf16.msra.mxu0 %v3078
        %3150 = vmatmul.bf16.gmra.mxu0 %v2924
        %v3151 = vpop.f32.mrf.mxu0
        %v3152 = vadd.f32 %v2974, %v3151
        %v3153 = vpop.f32.mrf.mxu0
        %v3154 = vadd.f32 %v2974, %v3153
        %3155 = vmatmul.bf16.gmra.mxu0 %v2925
        %v3156 = vpop.f32.mrf.mxu0
        %v3157 = vadd.f32 %v2974, %v3156
        %v3158 = vpop.f32.mrf.mxu0
        %v3159 = vadd.f32 %v2974, %v3158
        %3160 = vmatmul.bf16.gmra.mxu0 %v2926
        %v3161 = vpop.f32.mrf.mxu0
        %v3162 = vadd.f32 %v2974, %v3161
        %v3163 = vpop.f32.mrf.mxu0
        %v3164 = vadd.f32 %v2974, %v3163
        %3165 = vmatmul.bf16.gmra.mxu0 %v2927
        %v3166 = vpop.f32.mrf.mxu0
        %v3167 = vadd.f32 %v2974, %v3166
        %v3168 = vpop.f32.mrf.mxu0
        %v3169 = vadd.f32 %v2974, %v3168
        %3170 = vmatmul.bf16.gmra.mxu0 %v2928
        %v3171 = vpop.f32.mrf.mxu0
        %v3172 = vadd.f32 %v2974, %v3171
        %v3173 = vpop.f32.mrf.mxu0
        %v3174 = vadd.f32 %v2974, %v3173
        %3175 = vmatmul.bf16.gmra.mxu0 %v2929
        %v3176 = vpop.f32.mrf.mxu0
        %v3177 = vadd.f32 %v2974, %v3176
        %v3178 = vpop.f32.mrf.mxu0
        %v3179 = vadd.f32 %v2974, %v3178
        %3180 = vmatmul.bf16.gmra.mxu0 %v2930
        %v3181 = vpop.f32.mrf.mxu0
        %v3182 = vadd.f32 %v2974, %v3181
        %v3183 = vpop.f32.mrf.mxu0
        %v3184 = vadd.f32 %v2974, %v3183
        %3185 = vmatmul.bf16.gmra.mxu0 %v2931
        %v3186 = vpop.f32.mrf.mxu0
        %v3187 = vadd.f32 %v2974, %v3186
        %v3188 = vpop.f32.mrf.mxu0
        %v3189 = vadd.f32 %v2974, %v3188
        %3190 = vmatmul.bf16.gmra.mxu0 %v2932
        %v3191 = vpop.f32.mrf.mxu0
        %v3192 = vadd.f32 %v2974, %v3191
        %v3193 = vpop.f32.mrf.mxu0
        %v3194 = vadd.f32 %v2974, %v3193
        %3195 = vmatmul.bf16.gmra.mxu0 %v2933
        %v3196 = vpop.f32.mrf.mxu0
        %v3197 = vadd.f32 %v2974, %v3196
        %v3198 = vpop.f32.mrf.mxu0
        %v3199 = vadd.f32 %v2974, %v3198
        %3200 = vmatmul.bf16.gmra.mxu0 %v2934
        %v3201 = vpop.f32.mrf.mxu0
        %v3202 = vadd.f32 %v2974, %v3201
        %v3203 = vpop.f32.mrf.mxu0
        %v3204 = vadd.f32 %v2974, %v3203
        %3205 = vmatmul.bf16.gmra.mxu0 %v2935
        %v3206 = vpop.f32.mrf.mxu0
        %v3207 = vadd.f32 %v2974, %v3206
        %v3208 = vpop.f32.mrf.mxu0
        %v3209 = vadd.f32 %v2974, %v3208
        %3210 = vmatmul.bf16.gmra.mxu0 %v2936
        %v3211 = vpop.f32.mrf.mxu0
        %v3212 = vadd.f32 %v2974, %v3211
        %v3213 = vpop.f32.mrf.mxu0
        %v3214 = vadd.f32 %v2974, %v3213
        %3215 = vmatmul.bf16.gmra.mxu0 %v2937
        %v3216 = vpop.f32.mrf.mxu0
        %v3217 = vadd.f32 %v2974, %v3216
        %v3218 = vpop.f32.mrf.mxu0
        %v3219 = vadd.f32 %v2974, %v3218
        %3220 = vmatmul.bf16.gmra.mxu0 %v2938
        %v3221 = vpop.f32.mrf.mxu0
        %v3222 = vadd.f32 %v2974, %v3221
        %v3223 = vpop.f32.mrf.mxu0
        %v3224 = vadd.f32 %v2974, %v3223
        %3225 = vmatmul.bf16.gmra.mxu0 %v2939
        %v3226 = vpop.f32.mrf.mxu0
        %v3227 = vadd.f32 %v2974, %v3226
        %v3228 = vpop.f32.mrf.mxu0
        %v3229 = vadd.f32 %v2974, %v3228
        %3230 = vdwg.mxu0
        %3231 = vmatpush.bf16.msra.mxu0 %v3107
        %3232 = vmatpush.bf16.msra.mxu0 %v3103
        %3233 = vmatpush.bf16.msra.mxu0 %v3099
        %3234 = vmatpush.bf16.msra.mxu0 %v3095
        %3235 = vmatpush.bf16.msra.mxu0 %v3091
        %3236 = vmatpush.bf16.msra.mxu0 %v3087
        %3237 = vmatpush.bf16.msra.mxu0 %v3083
        %3238 = vmatpush.bf16.msra.mxu0 %v3079
        %3239 = vmatmul.bf16.gmra.mxu0 %v2924
        %v3240 = vpop.f32.mrf.mxu0
        %v3241 = vadd.f32 %v2975, %v3240
        %v3242 = vpop.f32.mrf.mxu0
        %v3243 = vadd.f32 %v2975, %v3242
        %3244 = vmatmul.bf16.gmra.mxu0 %v2925
        %v3245 = vpop.f32.mrf.mxu0
        %v3246 = vadd.f32 %v2975, %v3245
        %v3247 = vpop.f32.mrf.mxu0
        %v3248 = vadd.f32 %v2975, %v3247
        %3249 = vmatmul.bf16.gmra.mxu0 %v2926
        %v3250 = vpop.f32.mrf.mxu0
        %v3251 = vadd.f32 %v2975, %v3250
        %v3252 = vpop.f32.mrf.mxu0
        %v3253 = vadd.f32 %v2975, %v3252
        %3254 = vmatmul.bf16.gmra.mxu0 %v2927
        %v3255 = vpop.f32.mrf.mxu0
        %v3256 = vadd.f32 %v2975, %v3255
        %v3257 = vpop.f32.mrf.mxu0
        %v3258 = vadd.f32 %v2975, %v3257
        %3259 = vmatmul.bf16.gmra.mxu0 %v2928
        %v3260 = vpop.f32.mrf.mxu0
        %v3261 = vadd.f32 %v2975, %v3260
        %v3262 = vpop.f32.mrf.mxu0
        %v3263 = vadd.f32 %v2975, %v3262
        %3264 = vmatmul.bf16.gmra.mxu0 %v2929
        %v3265 = vpop.f32.mrf.mxu0
        %v3266 = vadd.f32 %v2975, %v3265
        %v3267 = vpop.f32.mrf.mxu0
        %v3268 = vadd.f32 %v2975, %v3267
        %3269 = vmatmul.bf16.gmra.mxu0 %v2930
        %v3270 = vpop.f32.mrf.mxu0
        %v3271 = vadd.f32 %v2975, %v3270
        %v3272 = vpop.f32.mrf.mxu0
        %v3273 = vadd.f32 %v2975, %v3272
        %3274 = vmatmul.bf16.gmra.mxu0 %v2931
        %v3275 = vpop.f32.mrf.mxu0
        %v3276 = vadd.f32 %v2975, %v3275
        %v3277 = vpop.f32.mrf.mxu0
        %v3278 = vadd.f32 %v2975, %v3277
        %3279 = vmatmul.bf16.gmra.mxu0 %v2932
        %v3280 = vpop.f32.mrf.mxu0
        %v3281 = vadd.f32 %v2975, %v3280
        %v3282 = vpop.f32.mrf.mxu0
        %v3283 = vadd.f32 %v2975, %v3282
        %3284 = vmatmul.bf16.gmra.mxu0 %v2933
        %v3285 = vpop.f32.mrf.mxu0
        %v3286 = vadd.f32 %v2975, %v3285
        %v3287 = vpop.f32.mrf.mxu0
        %v3288 = vadd.f32 %v2975, %v3287
        %3289 = vmatmul.bf16.gmra.mxu0 %v2934
        %v3290 = vpop.f32.mrf.mxu0
        %v3291 = vadd.f32 %v2975, %v3290
        %v3292 = vpop.f32.mrf.mxu0
        %v3293 = vadd.f32 %v2975, %v3292
        %3294 = vmatmul.bf16.gmra.mxu0 %v2935
        %v3295 = vpop.f32.mrf.mxu0
        %v3296 = vadd.f32 %v2975, %v3295
        %v3297 = vpop.f32.mrf.mxu0
        %v3298 = vadd.f32 %v2975, %v3297
        %3299 = vmatmul.bf16.gmra.mxu0 %v2936
        %v3300 = vpop.f32.mrf.mxu0
        %v3301 = vadd.f32 %v2975, %v3300
        %v3302 = vpop.f32.mrf.mxu0
        %v3303 = vadd.f32 %v2975, %v3302
        %3304 = vmatmul.bf16.gmra.mxu0 %v2937
        %v3305 = vpop.f32.mrf.mxu0
        %v3306 = vadd.f32 %v2975, %v3305
        %v3307 = vpop.f32.mrf.mxu0
        %v3308 = vadd.f32 %v2975, %v3307
        %3309 = vmatmul.bf16.gmra.mxu0 %v2938
        %v3310 = vpop.f32.mrf.mxu0
        %v3311 = vadd.f32 %v2975, %v3310
        %v3312 = vpop.f32.mrf.mxu0
        %v3313 = vadd.f32 %v2975, %v3312
        %3314 = vmatmul.bf16.gmra.mxu0 %v2939
        %v3315 = vpop.f32.mrf.mxu0
        %v3316 = vadd.f32 %v2975, %v3315
        %v3317 = vpop.f32.mrf.mxu0
        %v3318 = vadd.f32 %v2975, %v3317
        %3319 = vdwg.mxu0
        %3320 = vmatpush.bf16.msra.mxu0 %v3108
        %3321 = vmatpush.bf16.msra.mxu0 %v3104
        %3322 = vmatpush.bf16.msra.mxu0 %v3100
        %3323 = vmatpush.bf16.msra.mxu0 %v3096
        %3324 = vmatpush.bf16.msra.mxu0 %v3092
        %3325 = vmatpush.bf16.msra.mxu0 %v3088
        %3326 = vmatpush.bf16.msra.mxu0 %v3084
        %3327 = vmatpush.bf16.msra.mxu0 %v3080
        %3328 = vmatmul.bf16.gmra.mxu0 %v2924
        %v3329 = vpop.f32.mrf.mxu0
        %v3330 = vadd.f32 %v2976, %v3329
        %v3331 = vpop.f32.mrf.mxu0
        %v3332 = vadd.f32 %v2976, %v3331
        %3333 = vmatmul.bf16.gmra.mxu0 %v2925
        %v3334 = vpop.f32.mrf.mxu0
        %v3335 = vadd.f32 %v2976, %v3334
        %v3336 = vpop.f32.mrf.mxu0
        %v3337 = vadd.f32 %v2976, %v3336
        %3338 = vmatmul.bf16.gmra.mxu0 %v2926
        %v3339 = vpop.f32.mrf.mxu0
        %v3340 = vadd.f32 %v2976, %v3339
        %v3341 = vpop.f32.mrf.mxu0
        %v3342 = vadd.f32 %v2976, %v3341
        %3343 = vmatmul.bf16.gmra.mxu0 %v2927
        %v3344 = vpop.f32.mrf.mxu0
        %v3345 = vadd.f32 %v2976, %v3344
        %v3346 = vpop.f32.mrf.mxu0
        %v3347 = vadd.f32 %v2976, %v3346
        %3348 = vmatmul.bf16.gmra.mxu0 %v2928
        %v3349 = vpop.f32.mrf.mxu0
        %v3350 = vadd.f32 %v2976, %v3349
        %v3351 = vpop.f32.mrf.mxu0
        %v3352 = vadd.f32 %v2976, %v3351
        %3353 = vmatmul.bf16.gmra.mxu0 %v2929
        %v3354 = vpop.f32.mrf.mxu0
        %v3355 = vadd.f32 %v2976, %v3354
        %v3356 = vpop.f32.mrf.mxu0
        %v3357 = vadd.f32 %v2976, %v3356
        %3358 = vmatmul.bf16.gmra.mxu0 %v2930
        %v3359 = vpop.f32.mrf.mxu0
        %v3360 = vadd.f32 %v2976, %v3359
        %v3361 = vpop.f32.mrf.mxu0
        %v3362 = vadd.f32 %v2976, %v3361
        %3363 = vmatmul.bf16.gmra.mxu0 %v2931
        %v3364 = vpop.f32.mrf.mxu0
        %v3365 = vadd.f32 %v2976, %v3364
        %v3366 = vpop.f32.mrf.mxu0
        %v3367 = vadd.f32 %v2976, %v3366
        %3368 = vmatmul.bf16.gmra.mxu0 %v2932
        %v3369 = vpop.f32.mrf.mxu0
        %v3370 = vadd.f32 %v2976, %v3369
        %v3371 = vpop.f32.mrf.mxu0
        %v3372 = vadd.f32 %v2976, %v3371
        %3373 = vmatmul.bf16.gmra.mxu0 %v2933
        %v3374 = vpop.f32.mrf.mxu0
        %v3375 = vadd.f32 %v2976, %v3374
        %v3376 = vpop.f32.mrf.mxu0
        %v3377 = vadd.f32 %v2976, %v3376
        %3378 = vmatmul.bf16.gmra.mxu0 %v2934
        %v3379 = vpop.f32.mrf.mxu0
        %v3380 = vadd.f32 %v2976, %v3379
        %v3381 = vpop.f32.mrf.mxu0
        %v3382 = vadd.f32 %v2976, %v3381
        %3383 = vmatmul.bf16.gmra.mxu0 %v2935
        %v3384 = vpop.f32.mrf.mxu0
        %v3385 = vadd.f32 %v2976, %v3384
        %v3386 = vpop.f32.mrf.mxu0
        %v3387 = vadd.f32 %v2976, %v3386
        %3388 = vmatmul.bf16.gmra.mxu0 %v2936
        %v3389 = vpop.f32.mrf.mxu0
        %v3390 = vadd.f32 %v2976, %v3389
        %v3391 = vpop.f32.mrf.mxu0
        %v3392 = vadd.f32 %v2976, %v3391
        %3393 = vmatmul.bf16.gmra.mxu0 %v2937
        %v3394 = vpop.f32.mrf.mxu0
        %v3395 = vadd.f32 %v2976, %v3394
        %v3396 = vpop.f32.mrf.mxu0
        %v3397 = vadd.f32 %v2976, %v3396
        %3398 = vmatmul.bf16.gmra.mxu0 %v2938
        %v3399 = vpop.f32.mrf.mxu0
        %v3400 = vadd.f32 %v2976, %v3399
        %v3401 = vpop.f32.mrf.mxu0
        %v3402 = vadd.f32 %v2976, %v3401
        %3403 = vmatmul.bf16.gmra.mxu0 %v2939
        %v3404 = vpop.f32.mrf.mxu0
        %v3405 = vadd.f32 %v2976, %v3404
        %v3406 = vpop.f32.mrf.mxu0
        %v3407 = vadd.f32 %v2976, %v3406
        %3408 = vdwg.mxu0
        %3409 = vmatpush.bf16.msra.mxu0 %v3109
        %3410 = vmatpush.bf16.msra.mxu0 %v3105
        %3411 = vmatpush.bf16.msra.mxu0 %v3101
        %3412 = vmatpush.bf16.msra.mxu0 %v3097
        %3413 = vmatpush.bf16.msra.mxu0 %v3093
        %3414 = vmatpush.bf16.msra.mxu0 %v3089
        %3415 = vmatpush.bf16.msra.mxu0 %v3085
        %3416 = vmatpush.bf16.msra.mxu0 %v3081
        %3417 = vmatmul.bf16.gmra.mxu0 %v2924
        %v3418 = vpop.f32.mrf.mxu0
        %v3419 = vadd.f32 %v2977, %v3418
        %v3420 = vpop.f32.mrf.mxu0
        %v3421 = vadd.f32 %v2977, %v3420
        %3422 = vmatmul.bf16.gmra.mxu0 %v2925
        %v3423 = vpop.f32.mrf.mxu0
        %v3424 = vadd.f32 %v2977, %v3423
        %v3425 = vpop.f32.mrf.mxu0
        %v3426 = vadd.f32 %v2977, %v3425
        %3427 = vmatmul.bf16.gmra.mxu0 %v2926
        %v3428 = vpop.f32.mrf.mxu0
        %v3429 = vadd.f32 %v2977, %v3428
        %v3430 = vpop.f32.mrf.mxu0
        %v3431 = vadd.f32 %v2977, %v3430
        %3432 = vmatmul.bf16.gmra.mxu0 %v2927
        %v3433 = vpop.f32.mrf.mxu0
        %v3434 = vadd.f32 %v2977, %v3433
        %v3435 = vpop.f32.mrf.mxu0
        %v3436 = vadd.f32 %v2977, %v3435
        %3437 = vmatmul.bf16.gmra.mxu0 %v2928
        %v3438 = vpop.f32.mrf.mxu0
        %v3439 = vadd.f32 %v2977, %v3438
        %v3440 = vpop.f32.mrf.mxu0
        %v3441 = vadd.f32 %v2977, %v3440
        %3442 = vmatmul.bf16.gmra.mxu0 %v2929
        %v3443 = vpop.f32.mrf.mxu0
        %v3444 = vadd.f32 %v2977, %v3443
        %v3445 = vpop.f32.mrf.mxu0
        %v3446 = vadd.f32 %v2977, %v3445
        %3447 = vmatmul.bf16.gmra.mxu0 %v2930
        %v3448 = vpop.f32.mrf.mxu0
        %v3449 = vadd.f32 %v2977, %v3448
        %v3450 = vpop.f32.mrf.mxu0
        %v3451 = vadd.f32 %v2977, %v3450
        %3452 = vmatmul.bf16.gmra.mxu0 %v2931
        %v3453 = vpop.f32.mrf.mxu0
        %v3454 = vadd.f32 %v2977, %v3453
        %v3455 = vpop.f32.mrf.mxu0
        %v3456 = vadd.f32 %v2977, %v3455
        %3457 = vmatmul.bf16.gmra.mxu0 %v2932
        %v3458 = vpop.f32.mrf.mxu0
        %v3459 = vadd.f32 %v2977, %v3458
        %v3460 = vpop.f32.mrf.mxu0
        %v3461 = vadd.f32 %v2977, %v3460
        %3462 = vmatmul.bf16.gmra.mxu0 %v2933
        %v3463 = vpop.f32.mrf.mxu0
        %v3464 = vadd.f32 %v2977, %v3463
        %v3465 = vpop.f32.mrf.mxu0
        %v3466 = vadd.f32 %v2977, %v3465
        %3467 = vmatmul.bf16.gmra.mxu0 %v2934
        %v3468 = vpop.f32.mrf.mxu0
        %v3469 = vadd.f32 %v2977, %v3468
        %v3470 = vpop.f32.mrf.mxu0
        %v3471 = vadd.f32 %v2977, %v3470
        %3472 = vmatmul.bf16.gmra.mxu0 %v2935
        %v3473 = vpop.f32.mrf.mxu0
        %v3474 = vadd.f32 %v2977, %v3473
        %v3475 = vpop.f32.mrf.mxu0
        %v3476 = vadd.f32 %v2977, %v3475
        %3477 = vmatmul.bf16.gmra.mxu0 %v2936
        %v3478 = vpop.f32.mrf.mxu0
        %v3479 = vadd.f32 %v2977, %v3478
        %v3480 = vpop.f32.mrf.mxu0
        %v3481 = vadd.f32 %v2977, %v3480
        %3482 = vmatmul.bf16.gmra.mxu0 %v2937
        %v3483 = vpop.f32.mrf.mxu0
        %v3484 = vadd.f32 %v2977, %v3483
        %v3485 = vpop.f32.mrf.mxu0
        %v3486 = vadd.f32 %v2977, %v3485
        %3487 = vmatmul.bf16.gmra.mxu0 %v2938
        %v3488 = vpop.f32.mrf.mxu0
        %v3489 = vadd.f32 %v2977, %v3488
        %v3490 = vpop.f32.mrf.mxu0
        %v3491 = vadd.f32 %v2977, %v3490
        %3492 = vmatmul.bf16.gmra.mxu0 %v2939
        %v3493 = vpop.f32.mrf.mxu0
        %v3494 = vadd.f32 %v2977, %v3493
        %v3495 = vpop.f32.mrf.mxu0
        %v3496 = vadd.f32 %v2977, %v3495
        %3497 = vdwg.mxu0
        %v3498 = vmax.f32 %v3152, 0.0
        %v3499 = vmax.f32 %v3241, 0.0
        %v3500 = vmax.f32 %v3330, 0.0
        %v3501 = vmax.f32 %v3419, 0.0
        %v3502 = vmax.f32 %v3154, 0.0
        %v3503 = vmax.f32 %v3243, 0.0
        %v3504 = vmax.f32 %v3332, 0.0
        %v3505 = vmax.f32 %v3421, 0.0
        %v3506 = vmax.f32 %v3157, 0.0
        %v3507 = vmax.f32 %v3246, 0.0
        %v3508 = vmax.f32 %v3335, 0.0
        %v3509 = vmax.f32 %v3424, 0.0
        %v3510 = vmax.f32 %v3159, 0.0
        %v3511 = vmax.f32 %v3248, 0.0
        %v3512 = vmax.f32 %v3337, 0.0
        %v3513 = vmax.f32 %v3426, 0.0
        %v3514 = vmax.f32 %v3162, 0.0
        %v3515 = vmax.f32 %v3251, 0.0
        %v3516 = vmax.f32 %v3340, 0.0
        %v3517 = vmax.f32 %v3429, 0.0
        %v3518 = vmax.f32 %v3164, 0.0
        %v3519 = vmax.f32 %v3253, 0.0
        %v3520 = vmax.f32 %v3342, 0.0
        %v3521 = vmax.f32 %v3431, 0.0
        %v3522 = vmax.f32 %v3167, 0.0
        %v3523 = vmax.f32 %v3256, 0.0
        %v3524 = vmax.f32 %v3345, 0.0
        %v3525 = vmax.f32 %v3434, 0.0
        %v3526 = vmax.f32 %v3169, 0.0
        %v3527 = vmax.f32 %v3258, 0.0
        %v3528 = vmax.f32 %v3347, 0.0
        %v3529 = vmax.f32 %v3436, 0.0
        %v3530 = vmax.f32 %v3172, 0.0
        %v3531 = vmax.f32 %v3261, 0.0
        %v3532 = vmax.f32 %v3350, 0.0
        %v3533 = vmax.f32 %v3439, 0.0
        %v3534 = vmax.f32 %v3174, 0.0
        %v3535 = vmax.f32 %v3263, 0.0
        %v3536 = vmax.f32 %v3352, 0.0
        %v3537 = vmax.f32 %v3441, 0.0
        %v3538 = vmax.f32 %v3177, 0.0
        %v3539 = vmax.f32 %v3266, 0.0
        %v3540 = vmax.f32 %v3355, 0.0
        %v3541 = vmax.f32 %v3444, 0.0
        %v3542 = vmax.f32 %v3179, 0.0
        %v3543 = vmax.f32 %v3268, 0.0
        %v3544 = vmax.f32 %v3357, 0.0
        %v3545 = vmax.f32 %v3446, 0.0
        %v3546 = vmax.f32 %v3182, 0.0
        %v3547 = vmax.f32 %v3271, 0.0
        %v3548 = vmax.f32 %v3360, 0.0
        %v3549 = vmax.f32 %v3449, 0.0
        %v3550 = vmax.f32 %v3184, 0.0
        %v3551 = vmax.f32 %v3273, 0.0
        %v3552 = vmax.f32 %v3362, 0.0
        %v3553 = vmax.f32 %v3451, 0.0
        %v3554 = vmax.f32 %v3187, 0.0
        %v3555 = vmax.f32 %v3276, 0.0
        %v3556 = vmax.f32 %v3365, 0.0
        %v3557 = vmax.f32 %v3454, 0.0
        %v3558 = vmax.f32 %v3189, 0.0
        %v3559 = vmax.f32 %v3278, 0.0
        %v3560 = vmax.f32 %v3367, 0.0
        %v3561 = vmax.f32 %v3456, 0.0
        %v3562 = vmax.f32 %v3192, 0.0
        %v3563 = vmax.f32 %v3281, 0.0
        %v3564 = vmax.f32 %v3370, 0.0
        %v3565 = vmax.f32 %v3459, 0.0
        %v3566 = vmax.f32 %v3194, 0.0
        %v3567 = vmax.f32 %v3283, 0.0
        %v3568 = vmax.f32 %v3372, 0.0
        %v3569 = vmax.f32 %v3461, 0.0
        %v3570 = vmax.f32 %v3197, 0.0
        %v3571 = vmax.f32 %v3286, 0.0
        %v3572 = vmax.f32 %v3375, 0.0
        %v3573 = vmax.f32 %v3464, 0.0
        %v3574 = vmax.f32 %v3199, 0.0
        %v3575 = vmax.f32 %v3288, 0.0
        %v3576 = vmax.f32 %v3377, 0.0
        %v3577 = vmax.f32 %v3466, 0.0
        %v3578 = vmax.f32 %v3202, 0.0
        %v3579 = vmax.f32 %v3291, 0.0
        %v3580 = vmax.f32 %v3380, 0.0
        %v3581 = vmax.f32 %v3469, 0.0
        %v3582 = vmax.f32 %v3204, 0.0
        %v3583 = vmax.f32 %v3293, 0.0
        %v3584 = vmax.f32 %v3382, 0.0
        %v3585 = vmax.f32 %v3471, 0.0
        %v3586 = vmax.f32 %v3207, 0.0
        %v3587 = vmax.f32 %v3296, 0.0
        %v3588 = vmax.f32 %v3385, 0.0
        %v3589 = vmax.f32 %v3474, 0.0
        %v3590 = vmax.f32 %v3209, 0.0
        %v3591 = vmax.f32 %v3298, 0.0
        %v3592 = vmax.f32 %v3387, 0.0
        %v3593 = vmax.f32 %v3476, 0.0
        %v3594 = vmax.f32 %v3212, 0.0
        %v3595 = vmax.f32 %v3301, 0.0
        %v3596 = vmax.f32 %v3390, 0.0
        %v3597 = vmax.f32 %v3479, 0.0
        %v3598 = vmax.f32 %v3214, 0.0
        %v3599 = vmax.f32 %v3303, 0.0
        %v3600 = vmax.f32 %v3392, 0.0
        %v3601 = vmax.f32 %v3481, 0.0
        %v3602 = vmax.f32 %v3217, 0.0
        %v3603 = vmax.f32 %v3306, 0.0
        %v3604 = vmax.f32 %v3395, 0.0
        %v3605 = vmax.f32 %v3484, 0.0
        %v3606 = vmax.f32 %v3219, 0.0
        %v3607 = vmax.f32 %v3308, 0.0
        %v3608 = vmax.f32 %v3397, 0.0
        %v3609 = vmax.f32 %v3486, 0.0
        %v3610 = vmax.f32 %v3222, 0.0
        %v3611 = vmax.f32 %v3311, 0.0
        %v3612 = vmax.f32 %v3400, 0.0
        %v3613 = vmax.f32 %v3489, 0.0
        %v3614 = vmax.f32 %v3224, 0.0
        %v3615 = vmax.f32 %v3313, 0.0
        %v3616 = vmax.f32 %v3402, 0.0
        %v3617 = vmax.f32 %v3491, 0.0
        %v3618 = vmax.f32 %v3227, 0.0
        %v3619 = vmax.f32 %v3316, 0.0
        %v3620 = vmax.f32 %v3405, 0.0
        %v3621 = vmax.f32 %v3494, 0.0
        %v3622 = vmax.f32 %v3229, 0.0
        %v3623 = vmax.f32 %v3318, 0.0
        %v3624 = vmax.f32 %v3407, 0.0
        %v3625 = vmax.f32 %v3496, 0.0
        %3627 = vset.pattern.permute.xlu0 0
        %3628 = vperm.xlu0 %3627, %v2860
        %v3629 = vpop.permute.xlu0 %3628
        %3632 = vset.pattern.permute.xlu0 0
        %3633 = vperm.xlu0 %3632, %v2861
        %v3634 = vpop.permute.xlu0 %3633
        %3637 = vset.pattern.permute.xlu0 0
        %3638 = vperm.xlu0 %3637, %v2862
        %v3639 = vpop.permute.xlu0 %3638
        %3642 = vset.pattern.permute.xlu0 0
        %3643 = vperm.xlu0 %3642, %v2863
        %v3644 = vpop.permute.xlu0 %3643
        %3647 = vset.pattern.permute.xlu0 0
        %3648 = vperm.xlu0 %3647, %v2864
        %v3649 = vpop.permute.xlu0 %3648
        %3652 = vset.pattern.permute.xlu0 0
        %3653 = vperm.xlu0 %3652, %v2865
        %v3654 = vpop.permute.xlu0 %3653
        %3657 = vset.pattern.permute.xlu0 0
        %3658 = vperm.xlu0 %3657, %v2866
        %v3659 = vpop.permute.xlu0 %3658
        %3662 = vset.pattern.permute.xlu0 0
        %3663 = vperm.xlu0 %3662, %v2867
        %v3664 = vpop.permute.xlu0 %3663
        %3667 = vset.pattern.permute.xlu0 0
        %3668 = vperm.xlu0 %3667, %v2868
        %v3669 = vpop.permute.xlu0 %3668
        %3672 = vset.pattern.permute.xlu0 0
        %3673 = vperm.xlu0 %3672, %v2869
        %v3674 = vpop.permute.xlu0 %3673
        %3677 = vset.pattern.permute.xlu0 0
        %3678 = vperm.xlu0 %3677, %v2870
        %v3679 = vpop.permute.xlu0 %3678
        %3682 = vset.pattern.permute.xlu0 0
        %3683 = vperm.xlu0 %3682, %v2871
        %v3684 = vpop.permute.xlu0 %3683
        %3687 = vset.pattern.permute.xlu0 0
        %3688 = vperm.xlu0 %3687, %v2872
        %v3689 = vpop.permute.xlu0 %3688
        %3692 = vset.pattern.permute.xlu0 0
        %3693 = vperm.xlu0 %3692, %v2873
        %v3694 = vpop.permute.xlu0 %3693
        %3697 = vset.pattern.permute.xlu0 0
        %3698 = vperm.xlu0 %3697, %v2874
        %v3699 = vpop.permute.xlu0 %3698
        %3702 = vset.pattern.permute.xlu0 0
        %3703 = vperm.xlu0 %3702, %v2875
        %v3704 = vpop.permute.xlu0 %3703
        %3707 = vset.pattern.permute.xlu0 0
        %3708 = vperm.xlu0 %3707, %v2876
        %v3709 = vpop.permute.xlu0 %3708
        %3712 = vset.pattern.permute.xlu0 0
        %3713 = vperm.xlu0 %3712, %v2877
        %v3714 = vpop.permute.xlu0 %3713
        %3717 = vset.pattern.permute.xlu0 0
        %3718 = vperm.xlu0 %3717, %v2878
        %v3719 = vpop.permute.xlu0 %3718
        %3722 = vset.pattern.permute.xlu0 0
        %3723 = vperm.xlu0 %3722, %v2879
        %v3724 = vpop.permute.xlu0 %3723
        %3727 = vset.pattern.permute.xlu0 0
        %3728 = vperm.xlu0 %3727, %v2880
        %v3729 = vpop.permute.xlu0 %3728
        %3732 = vset.pattern.permute.xlu0 0
        %3733 = vperm.xlu0 %3732, %v2881
        %v3734 = vpop.permute.xlu0 %3733
        %3737 = vset.pattern.permute.xlu0 0
        %3738 = vperm.xlu0 %3737, %v2882
        %v3739 = vpop.permute.xlu0 %3738
        %3742 = vset.pattern.permute.xlu0 0
        %3743 = vperm.xlu0 %3742, %v2883
        %v3744 = vpop.permute.xlu0 %3743
        %3747 = vset.pattern.permute.xlu0 0
        %3748 = vperm.xlu0 %3747, %v2884
        %v3749 = vpop.permute.xlu0 %3748
        %3752 = vset.pattern.permute.xlu0 0
        %3753 = vperm.xlu0 %3752, %v2885
        %v3754 = vpop.permute.xlu0 %3753
        %3757 = vset.pattern.permute.xlu0 0
        %3758 = vperm.xlu0 %3757, %v2886
        %v3759 = vpop.permute.xlu0 %3758
        %3762 = vset.pattern.permute.xlu0 0
        %3763 = vperm.xlu0 %3762, %v2887
        %v3764 = vpop.permute.xlu0 %3763
        %3767 = vset.pattern.permute.xlu0 0
        %3768 = vperm.xlu0 %3767, %v2888
        %v3769 = vpop.permute.xlu0 %3768
        %3772 = vset.pattern.permute.xlu0 0
        %3773 = vperm.xlu0 %3772, %v2889
        %v3774 = vpop.permute.xlu0 %3773
        %3777 = vset.pattern.permute.xlu0 0
        %3778 = vperm.xlu0 %3777, %v2890
        %v3779 = vpop.permute.xlu0 %3778
        %3782 = vset.pattern.permute.xlu0 0
        %3783 = vperm.xlu0 %3782, %v2891
        %v3784 = vpop.permute.xlu0 %3783
        %3786 = vset.pattern.permute.xlu0 1
        %3787 = vperm.xlu0 %3786, %v2860
        %v3788 = vpop.permute.xlu0 %3787
        %3790 = vset.pattern.permute.xlu0 1
        %3791 = vperm.xlu0 %3790, %v2861
        %v3792 = vpop.permute.xlu0 %3791
        %3794 = vset.pattern.permute.xlu0 1
        %3795 = vperm.xlu0 %3794, %v2862
        %v3796 = vpop.permute.xlu0 %3795
        %3798 = vset.pattern.permute.xlu0 1
        %3799 = vperm.xlu0 %3798, %v2863
        %v3800 = vpop.permute.xlu0 %3799
        %3802 = vset.pattern.permute.xlu0 1
        %3803 = vperm.xlu0 %3802, %v2864
        %v3804 = vpop.permute.xlu0 %3803
        %3806 = vset.pattern.permute.xlu0 1
        %3807 = vperm.xlu0 %3806, %v2865
        %v3808 = vpop.permute.xlu0 %3807
        %3810 = vset.pattern.permute.xlu0 1
        %3811 = vperm.xlu0 %3810, %v2866
        %v3812 = vpop.permute.xlu0 %3811
        %3814 = vset.pattern.permute.xlu0 1
        %3815 = vperm.xlu0 %3814, %v2867
        %v3816 = vpop.permute.xlu0 %3815
        %3818 = vset.pattern.permute.xlu0 1
        %3819 = vperm.xlu0 %3818, %v2868
        %v3820 = vpop.permute.xlu0 %3819
        %3822 = vset.pattern.permute.xlu0 1
        %3823 = vperm.xlu0 %3822, %v2869
        %v3824 = vpop.permute.xlu0 %3823
        %3826 = vset.pattern.permute.xlu0 1
        %3827 = vperm.xlu0 %3826, %v2870
        %v3828 = vpop.permute.xlu0 %3827
        %3830 = vset.pattern.permute.xlu0 1
        %3831 = vperm.xlu0 %3830, %v2871
        %v3832 = vpop.permute.xlu0 %3831
        %3834 = vset.pattern.permute.xlu0 1
        %3835 = vperm.xlu0 %3834, %v2872
        %v3836 = vpop.permute.xlu0 %3835
        %3838 = vset.pattern.permute.xlu0 1
        %3839 = vperm.xlu0 %3838, %v2873
        %v3840 = vpop.permute.xlu0 %3839
        %3842 = vset.pattern.permute.xlu0 1
        %3843 = vperm.xlu0 %3842, %v2874
        %v3844 = vpop.permute.xlu0 %3843
        %3846 = vset.pattern.permute.xlu0 1
        %3847 = vperm.xlu0 %3846, %v2875
        %v3848 = vpop.permute.xlu0 %3847
        %3850 = vset.pattern.permute.xlu0 1
        %3851 = vperm.xlu0 %3850, %v2876
        %v3852 = vpop.permute.xlu0 %3851
        %3854 = vset.pattern.permute.xlu0 1
        %3855 = vperm.xlu0 %3854, %v2877
        %v3856 = vpop.permute.xlu0 %3855
        %3858 = vset.pattern.permute.xlu0 1
        %3859 = vperm.xlu0 %3858, %v2878
        %v3860 = vpop.permute.xlu0 %3859
        %3862 = vset.pattern.permute.xlu0 1
        %3863 = vperm.xlu0 %3862, %v2879
        %v3864 = vpop.permute.xlu0 %3863
        %3866 = vset.pattern.permute.xlu0 1
        %3867 = vperm.xlu0 %3866, %v2880
        %v3868 = vpop.permute.xlu0 %3867
        %3870 = vset.pattern.permute.xlu0 1
        %3871 = vperm.xlu0 %3870, %v2881
        %v3872 = vpop.permute.xlu0 %3871
        %3874 = vset.pattern.permute.xlu0 1
        %3875 = vperm.xlu0 %3874, %v2882
        %v3876 = vpop.permute.xlu0 %3875
        %3878 = vset.pattern.permute.xlu0 1
        %3879 = vperm.xlu0 %3878, %v2883
        %v3880 = vpop.permute.xlu0 %3879
        %3882 = vset.pattern.permute.xlu0 1
        %3883 = vperm.xlu0 %3882, %v2884
        %v3884 = vpop.permute.xlu0 %3883
        %3886 = vset.pattern.permute.xlu0 1
        %3887 = vperm.xlu0 %3886, %v2885
        %v3888 = vpop.permute.xlu0 %3887
        %3890 = vset.pattern.permute.xlu0 1
        %3891 = vperm.xlu0 %3890, %v2886
        %v3892 = vpop.permute.xlu0 %3891
        %3894 = vset.pattern.permute.xlu0 1
        %3895 = vperm.xlu0 %3894, %v2887
        %v3896 = vpop.permute.xlu0 %3895
        %3898 = vset.pattern.permute.xlu0 1
        %3899 = vperm.xlu0 %3898, %v2888
        %v3900 = vpop.permute.xlu0 %3899
        %3902 = vset.pattern.permute.xlu0 1
        %3903 = vperm.xlu0 %3902, %v2889
        %v3904 = vpop.permute.xlu0 %3903
        %3906 = vset.pattern.permute.xlu0 1
        %3907 = vperm.xlu0 %3906, %v2890
        %v3908 = vpop.permute.xlu0 %3907
        %3910 = vset.pattern.permute.xlu0 1
        %3911 = vperm.xlu0 %3910, %v2891
        %v3912 = vpop.permute.xlu0 %3911
        %3914 = vset.pattern.permute.xlu0 2
        %3915 = vperm.xlu0 %3914, %v2860
        %v3916 = vpop.permute.xlu0 %3915
        %3918 = vset.pattern.permute.xlu0 2
        %3919 = vperm.xlu0 %3918, %v2861
        %v3920 = vpop.permute.xlu0 %3919
        %3922 = vset.pattern.permute.xlu0 2
        %3923 = vperm.xlu0 %3922, %v2862
        %v3924 = vpop.permute.xlu0 %3923
        %3926 = vset.pattern.permute.xlu0 2
        %3927 = vperm.xlu0 %3926, %v2863
        %v3928 = vpop.permute.xlu0 %3927
        %3930 = vset.pattern.permute.xlu0 2
        %3931 = vperm.xlu0 %3930, %v2864
        %v3932 = vpop.permute.xlu0 %3931
        %3934 = vset.pattern.permute.xlu0 2
        %3935 = vperm.xlu0 %3934, %v2865
        %v3936 = vpop.permute.xlu0 %3935
        %3938 = vset.pattern.permute.xlu0 2
        %3939 = vperm.xlu0 %3938, %v2866
        %v3940 = vpop.permute.xlu0 %3939
        %3942 = vset.pattern.permute.xlu0 2
        %3943 = vperm.xlu0 %3942, %v2867
        %v3944 = vpop.permute.xlu0 %3943
        %3946 = vset.pattern.permute.xlu0 2
        %3947 = vperm.xlu0 %3946, %v2868
        %v3948 = vpop.permute.xlu0 %3947
        %3950 = vset.pattern.permute.xlu0 2
        %3951 = vperm.xlu0 %3950, %v2869
        %v3952 = vpop.permute.xlu0 %3951
        %3954 = vset.pattern.permute.xlu0 2
        %3955 = vperm.xlu0 %3954, %v2870
        %v3956 = vpop.permute.xlu0 %3955
        %3958 = vset.pattern.permute.xlu0 2
        %3959 = vperm.xlu0 %3958, %v2871
        %v3960 = vpop.permute.xlu0 %3959
        %3962 = vset.pattern.permute.xlu0 2
        %3963 = vperm.xlu0 %3962, %v2872
        %v3964 = vpop.permute.xlu0 %3963
        %3966 = vset.pattern.permute.xlu0 2
        %3967 = vperm.xlu0 %3966, %v2873
        %v3968 = vpop.permute.xlu0 %3967
        %3970 = vset.pattern.permute.xlu0 2
        %3971 = vperm.xlu0 %3970, %v2874
        %v3972 = vpop.permute.xlu0 %3971
        %3974 = vset.pattern.permute.xlu0 2
        %3975 = vperm.xlu0 %3974, %v2875
        %v3976 = vpop.permute.xlu0 %3975
        %3978 = vset.pattern.permute.xlu0 2
        %3979 = vperm.xlu0 %3978, %v2876
        %v3980 = vpop.permute.xlu0 %3979
        %3982 = vset.pattern.permute.xlu0 2
        %3983 = vperm.xlu0 %3982, %v2877
        %v3984 = vpop.permute.xlu0 %3983
        %3986 = vset.pattern.permute.xlu0 2
        %3987 = vperm.xlu0 %3986, %v2878
        %v3988 = vpop.permute.xlu0 %3987
        %3990 = vset.pattern.permute.xlu0 2
        %3991 = vperm.xlu0 %3990, %v2879
        %v3992 = vpop.permute.xlu0 %3991
        %3994 = vset.pattern.permute.xlu0 2
        %3995 = vperm.xlu0 %3994, %v2880
        %v3996 = vpop.permute.xlu0 %3995
        %3998 = vset.pattern.permute.xlu0 2
        %3999 = vperm.xlu0 %3998, %v2881
        %v4000 = vpop.permute.xlu0 %3999
        %4002 = vset.pattern.permute.xlu0 2
        %4003 = vperm.xlu0 %4002, %v2882
        %v4004 = vpop.permute.xlu0 %4003
        %4006 = vset.pattern.permute.xlu0 2
        %4007 = vperm.xlu0 %4006, %v2883
        %v4008 = vpop.permute.xlu0 %4007
        %4010 = vset.pattern.permute.xlu0 2
        %4011 = vperm.xlu0 %4010, %v2884
        %v4012 = vpop.permute.xlu0 %4011
        %4014 = vset.pattern.permute.xlu0 2
        %4015 = vperm.xlu0 %4014, %v2885
        %v4016 = vpop.permute.xlu0 %4015
        %4018 = vset.pattern.permute.xlu0 2
        %4019 = vperm.xlu0 %4018, %v2886
        %v4020 = vpop.permute.xlu0 %4019
        %4022 = vset.pattern.permute.xlu0 2
        %4023 = vperm.xlu0 %4022, %v2887
        %v4024 = vpop.permute.xlu0 %4023
        %4026 = vset.pattern.permute.xlu0 2
        %4027 = vperm.xlu0 %4026, %v2888
        %v4028 = vpop.permute.xlu0 %4027
        %4030 = vset.pattern.permute.xlu0 2
        %4031 = vperm.xlu0 %4030, %v2889
        %v4032 = vpop.permute.xlu0 %4031
        %4034 = vset.pattern.permute.xlu0 2
        %4035 = vperm.xlu0 %4034, %v2890
        %v4036 = vpop.permute.xlu0 %4035
        %4038 = vset.pattern.permute.xlu0 2
        %4039 = vperm.xlu0 %4038, %v2891
        %v4040 = vpop.permute.xlu0 %4039
        %4042 = vset.pattern.permute.xlu0 3
        %4043 = vperm.xlu0 %4042, %v2860
        %v4044 = vpop.permute.xlu0 %4043
        %4046 = vset.pattern.permute.xlu0 3
        %4047 = vperm.xlu0 %4046, %v2861
        %v4048 = vpop.permute.xlu0 %4047
        %4050 = vset.pattern.permute.xlu0 3
        %4051 = vperm.xlu0 %4050, %v2862
        %v4052 = vpop.permute.xlu0 %4051
        %4054 = vset.pattern.permute.xlu0 3
        %4055 = vperm.xlu0 %4054, %v2863
        %v4056 = vpop.permute.xlu0 %4055
        %4058 = vset.pattern.permute.xlu0 3
        %4059 = vperm.xlu0 %4058, %v2864
        %v4060 = vpop.permute.xlu0 %4059
        %4062 = vset.pattern.permute.xlu0 3
        %4063 = vperm.xlu0 %4062, %v2865
        %v4064 = vpop.permute.xlu0 %4063
        %4066 = vset.pattern.permute.xlu0 3
        %4067 = vperm.xlu0 %4066, %v2866
        %v4068 = vpop.permute.xlu0 %4067
        %4070 = vset.pattern.permute.xlu0 3
        %4071 = vperm.xlu0 %4070, %v2867
        %v4072 = vpop.permute.xlu0 %4071
        %4074 = vset.pattern.permute.xlu0 3
        %4075 = vperm.xlu0 %4074, %v2868
        %v4076 = vpop.permute.xlu0 %4075
        %4078 = vset.pattern.permute.xlu0 3
        %4079 = vperm.xlu0 %4078, %v2869
        %v4080 = vpop.permute.xlu0 %4079
        %4082 = vset.pattern.permute.xlu0 3
        %4083 = vperm.xlu0 %4082, %v2870
        %v4084 = vpop.permute.xlu0 %4083
        %4086 = vset.pattern.permute.xlu0 3
        %4087 = vperm.xlu0 %4086, %v2871
        %v4088 = vpop.permute.xlu0 %4087
        %4090 = vset.pattern.permute.xlu0 3
        %4091 = vperm.xlu0 %4090, %v2872
        %v4092 = vpop.permute.xlu0 %4091
        %4094 = vset.pattern.permute.xlu0 3
        %4095 = vperm.xlu0 %4094, %v2873
        %v4096 = vpop.permute.xlu0 %4095
        %4098 = vset.pattern.permute.xlu0 3
        %4099 = vperm.xlu0 %4098, %v2874
        %v4100 = vpop.permute.xlu0 %4099
        %4102 = vset.pattern.permute.xlu0 3
        %4103 = vperm.xlu0 %4102, %v2875
        %v4104 = vpop.permute.xlu0 %4103
        %4106 = vset.pattern.permute.xlu0 3
        %4107 = vperm.xlu0 %4106, %v2876
        %v4108 = vpop.permute.xlu0 %4107
        %4110 = vset.pattern.permute.xlu0 3
        %4111 = vperm.xlu0 %4110, %v2877
        %v4112 = vpop.permute.xlu0 %4111
        %4114 = vset.pattern.permute.xlu0 3
        %4115 = vperm.xlu0 %4114, %v2878
        %v4116 = vpop.permute.xlu0 %4115
        %4118 = vset.pattern.permute.xlu0 3
        %4119 = vperm.xlu0 %4118, %v2879
        %v4120 = vpop.permute.xlu0 %4119
        %4122 = vset.pattern.permute.xlu0 3
        %4123 = vperm.xlu0 %4122, %v2880
        %v4124 = vpop.permute.xlu0 %4123
        %4126 = vset.pattern.permute.xlu0 3
        %4127 = vperm.xlu0 %4126, %v2881
        %v4128 = vpop.permute.xlu0 %4127
        %4130 = vset.pattern.permute.xlu0 3
        %4131 = vperm.xlu0 %4130, %v2882
        %v4132 = vpop.permute.xlu0 %4131
        %4134 = vset.pattern.permute.xlu0 3
        %4135 = vperm.xlu0 %4134, %v2883
        %v4136 = vpop.permute.xlu0 %4135
        %4138 = vset.pattern.permute.xlu0 3
        %4139 = vperm.xlu0 %4138, %v2884
        %v4140 = vpop.permute.xlu0 %4139
        %4142 = vset.pattern.permute.xlu0 3
        %4143 = vperm.xlu0 %4142, %v2885
        %v4144 = vpop.permute.xlu0 %4143
        %4146 = vset.pattern.permute.xlu0 3
        %4147 = vperm.xlu0 %4146, %v2886
        %v4148 = vpop.permute.xlu0 %4147
        %4150 = vset.pattern.permute.xlu0 3
        %4151 = vperm.xlu0 %4150, %v2887
        %v4152 = vpop.permute.xlu0 %4151
        %4154 = vset.pattern.permute.xlu0 3
        %4155 = vperm.xlu0 %4154, %v2888
        %v4156 = vpop.permute.xlu0 %4155
        %4158 = vset.pattern.permute.xlu0 3
        %4159 = vperm.xlu0 %4158, %v2889
        %v4160 = vpop.permute.xlu0 %4159
        %4162 = vset.pattern.permute.xlu0 3
        %4163 = vperm.xlu0 %4162, %v2890
        %v4164 = vpop.permute.xlu0 %4163
        %4166 = vset.pattern.permute.xlu0 3
        %4167 = vperm.xlu0 %4166, %v2891
        %v4168 = vpop.permute.xlu0 %4167
        %vm4170 = vcmp.gt.f32.partialorder %v3629, 0.0
        %vm4171 = vcmp.gt.f32.partialorder %v3788, 0.0
        %vm4172 = vcmp.gt.f32.partialorder %v3916, 0.0
        %vm4173 = vcmp.gt.f32.partialorder %v4044, 0.0
        %vm4174 = vcmp.gt.f32.partialorder %v3634, 0.0
        %vm4175 = vcmp.gt.f32.partialorder %v3792, 0.0
        %vm4176 = vcmp.gt.f32.partialorder %v3920, 0.0
        %vm4177 = vcmp.gt.f32.partialorder %v4048, 0.0
        %vm4178 = vcmp.gt.f32.partialorder %v3639, 0.0
        %vm4179 = vcmp.gt.f32.partialorder %v3796, 0.0
        %vm4180 = vcmp.gt.f32.partialorder %v3924, 0.0
        %vm4181 = vcmp.gt.f32.partialorder %v4052, 0.0
        %vm4182 = vcmp.gt.f32.partialorder %v3644, 0.0
        %vm4183 = vcmp.gt.f32.partialorder %v3800, 0.0
        %vm4184 = vcmp.gt.f32.partialorder %v3928, 0.0
        %vm4185 = vcmp.gt.f32.partialorder %v4056, 0.0
        %vm4186 = vcmp.gt.f32.partialorder %v3649, 0.0
        %vm4187 = vcmp.gt.f32.partialorder %v3804, 0.0
        %vm4188 = vcmp.gt.f32.partialorder %v3932, 0.0
        %vm4189 = vcmp.gt.f32.partialorder %v4060, 0.0
        %vm4190 = vcmp.gt.f32.partialorder %v3654, 0.0
        %vm4191 = vcmp.gt.f32.partialorder %v3808, 0.0
        %vm4192 = vcmp.gt.f32.partialorder %v3936, 0.0
        %vm4193 = vcmp.gt.f32.partialorder %v4064, 0.0
        %vm4194 = vcmp.gt.f32.partialorder %v3659, 0.0
        %vm4195 = vcmp.gt.f32.partialorder %v3812, 0.0
        %vm4196 = vcmp.gt.f32.partialorder %v3940, 0.0
        %vm4197 = vcmp.gt.f32.partialorder %v4068, 0.0
        %vm4198 = vcmp.gt.f32.partialorder %v3664, 0.0
        %vm4199 = vcmp.gt.f32.partialorder %v3816, 0.0
        %vm4200 = vcmp.gt.f32.partialorder %v3944, 0.0
        %vm4201 = vcmp.gt.f32.partialorder %v4072, 0.0
        %vm4202 = vcmp.gt.f32.partialorder %v3669, 0.0
        %vm4203 = vcmp.gt.f32.partialorder %v3820, 0.0
        %vm4204 = vcmp.gt.f32.partialorder %v3948, 0.0
        %vm4205 = vcmp.gt.f32.partialorder %v4076, 0.0
        %vm4206 = vcmp.gt.f32.partialorder %v3674, 0.0
        %vm4207 = vcmp.gt.f32.partialorder %v3824, 0.0
        %vm4208 = vcmp.gt.f32.partialorder %v3952, 0.0
        %vm4209 = vcmp.gt.f32.partialorder %v4080, 0.0
        %vm4210 = vcmp.gt.f32.partialorder %v3679, 0.0
        %vm4211 = vcmp.gt.f32.partialorder %v3828, 0.0
        %vm4212 = vcmp.gt.f32.partialorder %v3956, 0.0
        %vm4213 = vcmp.gt.f32.partialorder %v4084, 0.0
        %vm4214 = vcmp.gt.f32.partialorder %v3684, 0.0
        %vm4215 = vcmp.gt.f32.partialorder %v3832, 0.0
        %vm4216 = vcmp.gt.f32.partialorder %v3960, 0.0
        %vm4217 = vcmp.gt.f32.partialorder %v4088, 0.0
        %vm4218 = vcmp.gt.f32.partialorder %v3689, 0.0
        %vm4219 = vcmp.gt.f32.partialorder %v3836, 0.0
        %vm4220 = vcmp.gt.f32.partialorder %v3964, 0.0
        %vm4221 = vcmp.gt.f32.partialorder %v4092, 0.0
        %vm4222 = vcmp.gt.f32.partialorder %v3694, 0.0
        %vm4223 = vcmp.gt.f32.partialorder %v3840, 0.0
        %vm4224 = vcmp.gt.f32.partialorder %v3968, 0.0
        %vm4225 = vcmp.gt.f32.partialorder %v4096, 0.0
        %vm4226 = vcmp.gt.f32.partialorder %v3699, 0.0
        %vm4227 = vcmp.gt.f32.partialorder %v3844, 0.0
        %vm4228 = vcmp.gt.f32.partialorder %v3972, 0.0
        %vm4229 = vcmp.gt.f32.partialorder %v4100, 0.0
        %vm4230 = vcmp.gt.f32.partialorder %v3704, 0.0
        %vm4231 = vcmp.gt.f32.partialorder %v3848, 0.0
        %vm4232 = vcmp.gt.f32.partialorder %v3976, 0.0
        %vm4233 = vcmp.gt.f32.partialorder %v4104, 0.0
        %vm4234 = vcmp.gt.f32.partialorder %v3709, 0.0
        %vm4235 = vcmp.gt.f32.partialorder %v3852, 0.0
        %vm4236 = vcmp.gt.f32.partialorder %v3980, 0.0
        %vm4237 = vcmp.gt.f32.partialorder %v4108, 0.0
        %vm4238 = vcmp.gt.f32.partialorder %v3714, 0.0
        %vm4239 = vcmp.gt.f32.partialorder %v3856, 0.0
        %vm4240 = vcmp.gt.f32.partialorder %v3984, 0.0
        %vm4241 = vcmp.gt.f32.partialorder %v4112, 0.0
        %vm4242 = vcmp.gt.f32.partialorder %v3719, 0.0
        %vm4243 = vcmp.gt.f32.partialorder %v3860, 0.0
        %vm4244 = vcmp.gt.f32.partialorder %v3988, 0.0
        %vm4245 = vcmp.gt.f32.partialorder %v4116, 0.0
        %vm4246 = vcmp.gt.f32.partialorder %v3724, 0.0
        %vm4247 = vcmp.gt.f32.partialorder %v3864, 0.0
        %vm4248 = vcmp.gt.f32.partialorder %v3992, 0.0
        %vm4249 = vcmp.gt.f32.partialorder %v4120, 0.0
        %vm4250 = vcmp.gt.f32.partialorder %v3729, 0.0
        %vm4251 = vcmp.gt.f32.partialorder %v3868, 0.0
        %vm4252 = vcmp.gt.f32.partialorder %v3996, 0.0
        %vm4253 = vcmp.gt.f32.partialorder %v4124, 0.0
        %vm4254 = vcmp.gt.f32.partialorder %v3734, 0.0
        %vm4255 = vcmp.gt.f32.partialorder %v3872, 0.0
        %vm4256 = vcmp.gt.f32.partialorder %v4000, 0.0
        %vm4257 = vcmp.gt.f32.partialorder %v4128, 0.0
        %vm4258 = vcmp.gt.f32.partialorder %v3739, 0.0
        %vm4259 = vcmp.gt.f32.partialorder %v3876, 0.0
        %vm4260 = vcmp.gt.f32.partialorder %v4004, 0.0
        %vm4261 = vcmp.gt.f32.partialorder %v4132, 0.0
        %vm4262 = vcmp.gt.f32.partialorder %v3744, 0.0
        %vm4263 = vcmp.gt.f32.partialorder %v3880, 0.0
        %vm4264 = vcmp.gt.f32.partialorder %v4008, 0.0
        %vm4265 = vcmp.gt.f32.partialorder %v4136, 0.0
        %vm4266 = vcmp.gt.f32.partialorder %v3749, 0.0
        %vm4267 = vcmp.gt.f32.partialorder %v3884, 0.0
        %vm4268 = vcmp.gt.f32.partialorder %v4012, 0.0
        %vm4269 = vcmp.gt.f32.partialorder %v4140, 0.0
        %vm4270 = vcmp.gt.f32.partialorder %v3754, 0.0
        %vm4271 = vcmp.gt.f32.partialorder %v3888, 0.0
        %vm4272 = vcmp.gt.f32.partialorder %v4016, 0.0
        %vm4273 = vcmp.gt.f32.partialorder %v4144, 0.0
        %vm4274 = vcmp.gt.f32.partialorder %v3759, 0.0
        %vm4275 = vcmp.gt.f32.partialorder %v3892, 0.0
        %vm4276 = vcmp.gt.f32.partialorder %v4020, 0.0
        %vm4277 = vcmp.gt.f32.partialorder %v4148, 0.0
        %vm4278 = vcmp.gt.f32.partialorder %v3764, 0.0
        %vm4279 = vcmp.gt.f32.partialorder %v3896, 0.0
        %vm4280 = vcmp.gt.f32.partialorder %v4024, 0.0
        %vm4281 = vcmp.gt.f32.partialorder %v4152, 0.0
        %vm4282 = vcmp.gt.f32.partialorder %v3769, 0.0
        %vm4283 = vcmp.gt.f32.partialorder %v3900, 0.0
        %vm4284 = vcmp.gt.f32.partialorder %v4028, 0.0
        %vm4285 = vcmp.gt.f32.partialorder %v4156, 0.0
        %vm4286 = vcmp.gt.f32.partialorder %v3774, 0.0
        %vm4287 = vcmp.gt.f32.partialorder %v3904, 0.0
        %vm4288 = vcmp.gt.f32.partialorder %v4032, 0.0
        %vm4289 = vcmp.gt.f32.partialorder %v4160, 0.0
        %vm4290 = vcmp.gt.f32.partialorder %v3779, 0.0
        %vm4291 = vcmp.gt.f32.partialorder %v3908, 0.0
        %vm4292 = vcmp.gt.f32.partialorder %v4036, 0.0
        %vm4293 = vcmp.gt.f32.partialorder %v4164, 0.0
        %vm4294 = vcmp.gt.f32.partialorder %v3784, 0.0
        %vm4295 = vcmp.gt.f32.partialorder %v3912, 0.0
        %vm4296 = vcmp.gt.f32.partialorder %v4040, 0.0
        %vm4297 = vcmp.gt.f32.partialorder %v4168, 0.0
        %v4298 = vmul.f32 %v3629, %v3498
        %v4299 = vmul.f32 %v3788, %v3499
        %v4300 = vmul.f32 %v3916, %v3500
        %v4301 = vmul.f32 %v4044, %v3501
        %v4302 = vmul.f32 %v3634, %v3502
        %v4303 = vmul.f32 %v3792, %v3503
        %v4304 = vmul.f32 %v3920, %v3504
        %v4305 = vmul.f32 %v4048, %v3505
        %v4306 = vmul.f32 %v3639, %v3506
        %v4307 = vmul.f32 %v3796, %v3507
        %v4308 = vmul.f32 %v3924, %v3508
        %v4309 = vmul.f32 %v4052, %v3509
        %v4310 = vmul.f32 %v3644, %v3510
        %v4311 = vmul.f32 %v3800, %v3511
        %v4312 = vmul.f32 %v3928, %v3512
        %v4313 = vmul.f32 %v4056, %v3513
        %v4314 = vmul.f32 %v3649, %v3514
        %v4315 = vmul.f32 %v3804, %v3515
        %v4316 = vmul.f32 %v3932, %v3516
        %v4317 = vmul.f32 %v4060, %v3517
        %v4318 = vmul.f32 %v3654, %v3518
        %v4319 = vmul.f32 %v3808, %v3519
        %v4320 = vmul.f32 %v3936, %v3520
        %v4321 = vmul.f32 %v4064, %v3521
        %v4322 = vmul.f32 %v3659, %v3522
        %v4323 = vmul.f32 %v3812, %v3523
        %v4324 = vmul.f32 %v3940, %v3524
        %v4325 = vmul.f32 %v4068, %v3525
        %v4326 = vmul.f32 %v3664, %v3526
        %v4327 = vmul.f32 %v3816, %v3527
        %v4328 = vmul.f32 %v3944, %v3528
        %v4329 = vmul.f32 %v4072, %v3529
        %v4330 = vmul.f32 %v3669, %v3530
        %v4331 = vmul.f32 %v3820, %v3531
        %v4332 = vmul.f32 %v3948, %v3532
        %v4333 = vmul.f32 %v4076, %v3533
        %v4334 = vmul.f32 %v3674, %v3534
        %v4335 = vmul.f32 %v3824, %v3535
        %v4336 = vmul.f32 %v3952, %v3536
        %v4337 = vmul.f32 %v4080, %v3537
        %v4338 = vmul.f32 %v3679, %v3538
        %v4339 = vmul.f32 %v3828, %v3539
        %v4340 = vmul.f32 %v3956, %v3540
        %v4341 = vmul.f32 %v4084, %v3541
        %v4342 = vmul.f32 %v3684, %v3542
        %v4343 = vmul.f32 %v3832, %v3543
        %v4344 = vmul.f32 %v3960, %v3544
        %v4345 = vmul.f32 %v4088, %v3545
        %v4346 = vmul.f32 %v3689, %v3546
        %v4347 = vmul.f32 %v3836, %v3547
        %v4348 = vmul.f32 %v3964, %v3548
        %v4349 = vmul.f32 %v4092, %v3549
        %v4350 = vmul.f32 %v3694, %v3550
        %v4351 = vmul.f32 %v3840, %v3551
        %v4352 = vmul.f32 %v3968, %v3552
        %v4353 = vmul.f32 %v4096, %v3553
        %v4354 = vmul.f32 %v3699, %v3554
        %v4355 = vmul.f32 %v3844, %v3555
        %v4356 = vmul.f32 %v3972, %v3556
        %v4357 = vmul.f32 %v4100, %v3557
        %v4358 = vmul.f32 %v3704, %v3558
        %v4359 = vmul.f32 %v3848, %v3559
        %v4360 = vmul.f32 %v3976, %v3560
        %v4361 = vmul.f32 %v4104, %v3561
        %v4362 = vmul.f32 %v3709, %v3562
        %v4363 = vmul.f32 %v3852, %v3563
        %v4364 = vmul.f32 %v3980, %v3564
        %v4365 = vmul.f32 %v4108, %v3565
        %v4366 = vmul.f32 %v3714, %v3566
        %v4367 = vmul.f32 %v3856, %v3567
        %v4368 = vmul.f32 %v3984, %v3568
        %v4369 = vmul.f32 %v4112, %v3569
        %v4370 = vmul.f32 %v3719, %v3570
        %v4371 = vmul.f32 %v3860, %v3571
        %v4372 = vmul.f32 %v3988, %v3572
        %v4373 = vmul.f32 %v4116, %v3573
        %v4374 = vmul.f32 %v3724, %v3574
        %v4375 = vmul.f32 %v3864, %v3575
        %v4376 = vmul.f32 %v3992, %v3576
        %v4377 = vmul.f32 %v4120, %v3577
        %v4378 = vmul.f32 %v3729, %v3578
        %v4379 = vmul.f32 %v3868, %v3579
        %v4380 = vmul.f32 %v3996, %v3580
        %v4381 = vmul.f32 %v4124, %v3581
        %v4382 = vmul.f32 %v3734, %v3582
        %v4383 = vmul.f32 %v3872, %v3583
        %v4384 = vmul.f32 %v4000, %v3584
        %v4385 = vmul.f32 %v4128, %v3585
        %v4386 = vmul.f32 %v3739, %v3586
        %v4387 = vmul.f32 %v3876, %v3587
        %v4388 = vmul.f32 %v4004, %v3588
        %v4389 = vmul.f32 %v4132, %v3589
        %v4390 = vmul.f32 %v3744, %v3590
        %v4391 = vmul.f32 %v3880, %v3591
        %v4392 = vmul.f32 %v4008, %v3592
        %v4393 = vmul.f32 %v4136, %v3593
        %v4394 = vmul.f32 %v3749, %v3594
        %v4395 = vmul.f32 %v3884, %v3595
        %v4396 = vmul.f32 %v4012, %v3596
        %v4397 = vmul.f32 %v4140, %v3597
        %v4398 = vmul.f32 %v3754, %v3598
        %v4399 = vmul.f32 %v3888, %v3599
        %v4400 = vmul.f32 %v4016, %v3600
        %v4401 = vmul.f32 %v4144, %v3601
        %v4402 = vmul.f32 %v3759, %v3602
        %v4403 = vmul.f32 %v3892, %v3603
        %v4404 = vmul.f32 %v4020, %v3604
        %v4405 = vmul.f32 %v4148, %v3605
        %v4406 = vmul.f32 %v3764, %v3606
        %v4407 = vmul.f32 %v3896, %v3607
        %v4408 = vmul.f32 %v4024, %v3608
        %v4409 = vmul.f32 %v4152, %v3609
        %v4410 = vmul.f32 %v3769, %v3610
        %v4411 = vmul.f32 %v3900, %v3611
        %v4412 = vmul.f32 %v4028, %v3612
        %v4413 = vmul.f32 %v4156, %v3613
        %v4414 = vmul.f32 %v3774, %v3614
        %v4415 = vmul.f32 %v3904, %v3615
        %v4416 = vmul.f32 %v4032, %v3616
        %v4417 = vmul.f32 %v4160, %v3617
        %v4418 = vmul.f32 %v3779, %v3618
        %v4419 = vmul.f32 %v3908, %v3619
        %v4420 = vmul.f32 %v4036, %v3620
        %v4421 = vmul.f32 %v4164, %v3621
        %v4422 = vmul.f32 %v3784, %v3622
        %v4423 = vmul.f32 %v3912, %v3623
        %v4424 = vmul.f32 %v4040, %v3624
        %v4425 = vmul.f32 %v4168, %v3625
        %v4426 = vsel %vm4170, %v4298, 0.0
        %v4427 = vsel %vm4171, %v4299, 0.0
        %v4428 = vsel %vm4172, %v4300, 0.0
        %v4429 = vsel %vm4173, %v4301, 0.0
        %v4430 = vsel %vm4174, %v4302, 0.0
        %v4431 = vsel %vm4175, %v4303, 0.0
        %v4432 = vsel %vm4176, %v4304, 0.0
        %v4433 = vsel %vm4177, %v4305, 0.0
        %v4434 = vsel %vm4178, %v4306, 0.0
        %v4435 = vsel %vm4179, %v4307, 0.0
        %v4436 = vsel %vm4180, %v4308, 0.0
        %v4437 = vsel %vm4181, %v4309, 0.0
        %v4438 = vsel %vm4182, %v4310, 0.0
        %v4439 = vsel %vm4183, %v4311, 0.0
        %v4440 = vsel %vm4184, %v4312, 0.0
        %v4441 = vsel %vm4185, %v4313, 0.0
        %v4442 = vsel %vm4186, %v4314, 0.0
        %v4443 = vsel %vm4187, %v4315, 0.0
        %v4444 = vsel %vm4188, %v4316, 0.0
        %v4445 = vsel %vm4189, %v4317, 0.0
        %v4446 = vsel %vm4190, %v4318, 0.0
        %v4447 = vsel %vm4191, %v4319, 0.0
        %v4448 = vsel %vm4192, %v4320, 0.0
        %v4449 = vsel %vm4193, %v4321, 0.0
        %v4450 = vsel %vm4194, %v4322, 0.0
        %v4451 = vsel %vm4195, %v4323, 0.0
        %v4452 = vsel %vm4196, %v4324, 0.0
        %v4453 = vsel %vm4197, %v4325, 0.0
        %v4454 = vsel %vm4198, %v4326, 0.0
        %v4455 = vsel %vm4199, %v4327, 0.0
        %v4456 = vsel %vm4200, %v4328, 0.0
        %v4457 = vsel %vm4201, %v4329, 0.0
        %v4458 = vsel %vm4202, %v4330, 0.0
        %v4459 = vsel %vm4203, %v4331, 0.0
        %v4460 = vsel %vm4204, %v4332, 0.0
        %v4461 = vsel %vm4205, %v4333, 0.0
        %v4462 = vsel %vm4206, %v4334, 0.0
        %v4463 = vsel %vm4207, %v4335, 0.0
        %v4464 = vsel %vm4208, %v4336, 0.0
        %v4465 = vsel %vm4209, %v4337, 0.0
        %v4466 = vsel %vm4210, %v4338, 0.0
        %v4467 = vsel %vm4211, %v4339, 0.0
        %v4468 = vsel %vm4212, %v4340, 0.0
        %v4469 = vsel %vm4213, %v4341, 0.0
        %v4470 = vsel %vm4214, %v4342, 0.0
        %v4471 = vsel %vm4215, %v4343, 0.0
        %v4472 = vsel %vm4216, %v4344, 0.0
        %v4473 = vsel %vm4217, %v4345, 0.0
        %v4474 = vsel %vm4218, %v4346, 0.0
        %v4475 = vsel %vm4219, %v4347, 0.0
        %v4476 = vsel %vm4220, %v4348, 0.0
        %v4477 = vsel %vm4221, %v4349, 0.0
        %v4478 = vsel %vm4222, %v4350, 0.0
        %v4479 = vsel %vm4223, %v4351, 0.0
        %v4480 = vsel %vm4224, %v4352, 0.0
        %v4481 = vsel %vm4225, %v4353, 0.0
        %v4482 = vsel %vm4226, %v4354, 0.0
        %v4483 = vsel %vm4227, %v4355, 0.0
        %v4484 = vsel %vm4228, %v4356, 0.0
        %v4485 = vsel %vm4229, %v4357, 0.0
        %v4486 = vsel %vm4230, %v4358, 0.0
        %v4487 = vsel %vm4231, %v4359, 0.0
        %v4488 = vsel %vm4232, %v4360, 0.0
        %v4489 = vsel %vm4233, %v4361, 0.0
        %v4490 = vsel %vm4234, %v4362, 0.0
        %v4491 = vsel %vm4235, %v4363, 0.0
        %v4492 = vsel %vm4236, %v4364, 0.0
        %v4493 = vsel %vm4237, %v4365, 0.0
        %v4494 = vsel %vm4238, %v4366, 0.0
        %v4495 = vsel %vm4239, %v4367, 0.0
        %v4496 = vsel %vm4240, %v4368, 0.0
        %v4497 = vsel %vm4241, %v4369, 0.0
        %v4498 = vsel %vm4242, %v4370, 0.0
        %v4499 = vsel %vm4243, %v4371, 0.0
        %v4500 = vsel %vm4244, %v4372, 0.0
        %v4501 = vsel %vm4245, %v4373, 0.0
        %v4502 = vsel %vm4246, %v4374, 0.0
        %v4503 = vsel %vm4247, %v4375, 0.0
        %v4504 = vsel %vm4248, %v4376, 0.0
        %v4505 = vsel %vm4249, %v4377, 0.0
        %v4506 = vsel %vm4250, %v4378, 0.0
        %v4507 = vsel %vm4251, %v4379, 0.0
        %v4508 = vsel %vm4252, %v4380, 0.0
        %v4509 = vsel %vm4253, %v4381, 0.0
        %v4510 = vsel %vm4254, %v4382, 0.0
        %v4511 = vsel %vm4255, %v4383, 0.0
        %v4512 = vsel %vm4256, %v4384, 0.0
        %v4513 = vsel %vm4257, %v4385, 0.0
        %v4514 = vsel %vm4258, %v4386, 0.0
        %v4515 = vsel %vm4259, %v4387, 0.0
        %v4516 = vsel %vm4260, %v4388, 0.0
        %v4517 = vsel %vm4261, %v4389, 0.0
        %v4518 = vsel %vm4262, %v4390, 0.0
        %v4519 = vsel %vm4263, %v4391, 0.0
        %v4520 = vsel %vm4264, %v4392, 0.0
        %v4521 = vsel %vm4265, %v4393, 0.0
        %v4522 = vsel %vm4266, %v4394, 0.0
        %v4523 = vsel %vm4267, %v4395, 0.0
        %v4524 = vsel %vm4268, %v4396, 0.0
        %v4525 = vsel %vm4269, %v4397, 0.0
        %v4526 = vsel %vm4270, %v4398, 0.0
        %v4527 = vsel %vm4271, %v4399, 0.0
        %v4528 = vsel %vm4272, %v4400, 0.0
        %v4529 = vsel %vm4273, %v4401, 0.0
        %v4530 = vsel %vm4274, %v4402, 0.0
        %v4531 = vsel %vm4275, %v4403, 0.0
        %v4532 = vsel %vm4276, %v4404, 0.0
        %v4533 = vsel %vm4277, %v4405, 0.0
        %v4534 = vsel %vm4278, %v4406, 0.0
        %v4535 = vsel %vm4279, %v4407, 0.0
        %v4536 = vsel %vm4280, %v4408, 0.0
        %v4537 = vsel %vm4281, %v4409, 0.0
        %v4538 = vsel %vm4282, %v4410, 0.0
        %v4539 = vsel %vm4283, %v4411, 0.0
        %v4540 = vsel %vm4284, %v4412, 0.0
        %v4541 = vsel %vm4285, %v4413, 0.0
        %v4542 = vsel %vm4286, %v4414, 0.0
        %v4543 = vsel %vm4287, %v4415, 0.0
        %v4544 = vsel %vm4288, %v4416, 0.0
        %v4545 = vsel %vm4289, %v4417, 0.0
        %v4546 = vsel %vm4290, %v4418, 0.0
        %v4547 = vsel %vm4291, %v4419, 0.0
        %v4548 = vsel %vm4292, %v4420, 0.0
        %v4549 = vsel %vm4293, %v4421, 0.0
        %v4550 = vsel %vm4294, %v4422, 0.0
        %v4551 = vsel %vm4295, %v4423, 0.0
        %v4552 = vsel %vm4296, %v4424, 0.0
        %v4553 = vsel %vm4297, %v4425, 0.0
        %v4554 = vpack.c.bf16 %v4430, %v4426
        %v4555 = vpack.c.bf16 %v4431, %v4427
        %v4556 = vpack.c.bf16 %v4432, %v4428
        %v4557 = vpack.c.bf16 %v4433, %v4429
        %v4558 = vpack.c.bf16 %v4438, %v4434
        %v4559 = vpack.c.bf16 %v4439, %v4435
        %v4560 = vpack.c.bf16 %v4440, %v4436
        %v4561 = vpack.c.bf16 %v4441, %v4437
        %v4562 = vpack.c.bf16 %v4446, %v4442
        %v4563 = vpack.c.bf16 %v4447, %v4443
        %v4564 = vpack.c.bf16 %v4448, %v4444
        %v4565 = vpack.c.bf16 %v4449, %v4445
        %v4566 = vpack.c.bf16 %v4454, %v4450
        %v4567 = vpack.c.bf16 %v4455, %v4451
        %v4568 = vpack.c.bf16 %v4456, %v4452
        %v4569 = vpack.c.bf16 %v4457, %v4453
        %v4570 = vpack.c.bf16 %v4462, %v4458
        %v4571 = vpack.c.bf16 %v4463, %v4459
        %v4572 = vpack.c.bf16 %v4464, %v4460
        %v4573 = vpack.c.bf16 %v4465, %v4461
        %v4574 = vpack.c.bf16 %v4470, %v4466
        %v4575 = vpack.c.bf16 %v4471, %v4467
        %v4576 = vpack.c.bf16 %v4472, %v4468
        %v4577 = vpack.c.bf16 %v4473, %v4469
        %v4578 = vpack.c.bf16 %v4478, %v4474
        %v4579 = vpack.c.bf16 %v4479, %v4475
        %v4580 = vpack.c.bf16 %v4480, %v4476
        %v4581 = vpack.c.bf16 %v4481, %v4477
        %v4582 = vpack.c.bf16 %v4486, %v4482
        %v4583 = vpack.c.bf16 %v4487, %v4483
        %v4584 = vpack.c.bf16 %v4488, %v4484
        %v4585 = vpack.c.bf16 %v4489, %v4485
        %v4586 = vpack.c.bf16 %v4494, %v4490
        %v4587 = vpack.c.bf16 %v4495, %v4491
        %v4588 = vpack.c.bf16 %v4496, %v4492
        %v4589 = vpack.c.bf16 %v4497, %v4493
        %v4590 = vpack.c.bf16 %v4502, %v4498
        %v4591 = vpack.c.bf16 %v4503, %v4499
        %v4592 = vpack.c.bf16 %v4504, %v4500
        %v4593 = vpack.c.bf16 %v4505, %v4501
        %v4594 = vpack.c.bf16 %v4510, %v4506
        %v4595 = vpack.c.bf16 %v4511, %v4507
        %v4596 = vpack.c.bf16 %v4512, %v4508
        %v4597 = vpack.c.bf16 %v4513, %v4509
        %v4598 = vpack.c.bf16 %v4518, %v4514
        %v4599 = vpack.c.bf16 %v4519, %v4515
        %v4600 = vpack.c.bf16 %v4520, %v4516
        %v4601 = vpack.c.bf16 %v4521, %v4517
        %v4602 = vpack.c.bf16 %v4526, %v4522
        %v4603 = vpack.c.bf16 %v4527, %v4523
        %v4604 = vpack.c.bf16 %v4528, %v4524
        %v4605 = vpack.c.bf16 %v4529, %v4525
        %v4606 = vpack.c.bf16 %v4534, %v4530
        %v4607 = vpack.c.bf16 %v4535, %v4531
        %v4608 = vpack.c.bf16 %v4536, %v4532
        %v4609 = vpack.c.bf16 %v4537, %v4533
        %v4610 = vpack.c.bf16 %v4542, %v4538
        %v4611 = vpack.c.bf16 %v4543, %v4539
        %v4612 = vpack.c.bf16 %v4544, %v4540
        %v4613 = vpack.c.bf16 %v4545, %v4541
        %v4614 = vpack.c.bf16 %v4550, %v4546
        %v4615 = vpack.c.bf16 %v4551, %v4547
        %v4616 = vpack.c.bf16 %v4552, %v4548
        %v4617 = vpack.c.bf16 %v4553, %v4549
        %v4618 = vld [vmem:[#allocation10] sm:$0xf]
        %v4619 = vld [vmem:[#allocation10 + $0x4] sm:$0xf]
        %v4620 = vld [vmem:[#allocation10 + $0x8] sm:$0xf]
        %v4621 = vld [vmem:[#allocation10 + $0xc] sm:$0xf]
        %v4622 = vld [vmem:[#allocation10 + $0x10] sm:$0xf]
        %v4623 = vld [vmem:[#allocation10 + $0x14] sm:$0xf]
        %v4624 = vld [vmem:[#allocation10 + $0x18] sm:$0xf]
        %v4625 = vld [vmem:[#allocation10 + $0x1c] sm:$0xf]
        %v4626 = vld [vmem:[#allocation10 + $0x20] sm:$0xf]
        %v4627 = vld [vmem:[#allocation10 + $0x24] sm:$0xf]
        %v4628 = vld [vmem:[#allocation10 + $0x28] sm:$0xf]
        %v4629 = vld [vmem:[#allocation10 + $0x2c] sm:$0xf]
        %v4630 = vld [vmem:[#allocation10 + $0x30] sm:$0xf]
        %v4631 = vld [vmem:[#allocation10 + $0x34] sm:$0xf]
        %v4632 = vld [vmem:[#allocation10 + $0x38] sm:$0xf]
        %v4633 = vld [vmem:[#allocation10 + $0x3c] sm:$0xf]
        %v4634 = vld [vmem:[#allocation10 + $0x40] sm:$0xf]
        %v4635 = vld [vmem:[#allocation10 + $0x44] sm:$0xf]
        %v4636 = vld [vmem:[#allocation10 + $0x48] sm:$0xf]
        %v4637 = vld [vmem:[#allocation10 + $0x4c] sm:$0xf]
        %v4638 = vld [vmem:[#allocation10 + $0x50] sm:$0xf]
        %v4639 = vld [vmem:[#allocation10 + $0x54] sm:$0xf]
        %v4640 = vld [vmem:[#allocation10 + $0x58] sm:$0xf]
        %v4641 = vld [vmem:[#allocation10 + $0x5c] sm:$0xf]
        %v4642 = vld [vmem:[#allocation10 + $0x60] sm:$0xf]
        %v4643 = vld [vmem:[#allocation10 + $0x64] sm:$0xf]
        %v4644 = vld [vmem:[#allocation10 + $0x68] sm:$0xf]
        %v4645 = vld [vmem:[#allocation10 + $0x6c] sm:$0xf]
        %v4646 = vld [vmem:[#allocation10 + $0x70] sm:$0xf]
        %v4647 = vld [vmem:[#allocation10 + $0x74] sm:$0xf]
        %v4648 = vld [vmem:[#allocation10 + $0x78] sm:$0xf]
        %v4649 = vld [vmem:[#allocation10 + $0x7c] sm:$0xf]
        %v4650 = vld [vmem:[#allocation10 + $0x80] sm:$0xf]
        %v4651 = vld [vmem:[#allocation10 + $0x84] sm:$0xf]
        %v4652 = vld [vmem:[#allocation10 + $0x88] sm:$0xf]
        %v4653 = vld [vmem:[#allocation10 + $0x8c] sm:$0xf]
        %v4654 = vld [vmem:[#allocation10 + $0x90] sm:$0xf]
        %v4655 = vld [vmem:[#allocation10 + $0x94] sm:$0xf]
        %v4656 = vld [vmem:[#allocation10 + $0x98] sm:$0xf]
        %v4657 = vld [vmem:[#allocation10 + $0x9c] sm:$0xf]
        %v4658 = vld [vmem:[#allocation10 + $0xa0] sm:$0xf]
        %v4659 = vld [vmem:[#allocation10 + $0xa4] sm:$0xf]
        %v4660 = vld [vmem:[#allocation10 + $0xa8] sm:$0xf]
        %v4661 = vld [vmem:[#allocation10 + $0xac] sm:$0xf]
        %v4662 = vld [vmem:[#allocation10 + $0xb0] sm:$0xf]
        %v4663 = vld [vmem:[#allocation10 + $0xb4] sm:$0xf]
        %v4664 = vld [vmem:[#allocation10 + $0xb8] sm:$0xf]
        %v4665 = vld [vmem:[#allocation10 + $0xbc] sm:$0xf]
        %v4666 = vld [vmem:[#allocation10 + $0xc0] sm:$0xf]
        %v4667 = vld [vmem:[#allocation10 + $0xc4] sm:$0xf]
        %v4668 = vld [vmem:[#allocation10 + $0xc8] sm:$0xf]
        %v4669 = vld [vmem:[#allocation10 + $0xcc] sm:$0xf]
        %v4670 = vld [vmem:[#allocation10 + $0xd0] sm:$0xf]
        %v4671 = vld [vmem:[#allocation10 + $0xd4] sm:$0xf]
        %v4672 = vld [vmem:[#allocation10 + $0xd8] sm:$0xf]
        %v4673 = vld [vmem:[#allocation10 + $0xdc] sm:$0xf]
        %v4674 = vld [vmem:[#allocation10 + $0xe0] sm:$0xf]
        %v4675 = vld [vmem:[#allocation10 + $0xe4] sm:$0xf]
        %v4676 = vld [vmem:[#allocation10 + $0xe8] sm:$0xf]
        %v4677 = vld [vmem:[#allocation10 + $0xec] sm:$0xf]
        %v4678 = vld [vmem:[#allocation10 + $0xf0] sm:$0xf]
        %v4679 = vld [vmem:[#allocation10 + $0xf4] sm:$0xf]
        %v4680 = vld [vmem:[#allocation10 + $0xf8] sm:$0xf]
        %v4681 = vld [vmem:[#allocation10 + $0xfc] sm:$0xf]
        %v4682 = vld [vmem:[#allocation11] sm:$0xf]
        %v4683 = vperm.slane %v4682, 0
        %v4684 = vmul.f32 %v3629, %v4683
        %v4685 = vmul.f32 %v3634, %v4683
        %v4686 = vmul.f32 %v3639, %v4683
        %v4687 = vmul.f32 %v3644, %v4683
        %v4688 = vmul.f32 %v3649, %v4683
        %v4689 = vmul.f32 %v3654, %v4683
        %v4690 = vmul.f32 %v3659, %v4683
        %v4691 = vmul.f32 %v3664, %v4683
        %v4692 = vmul.f32 %v3669, %v4683
        %v4693 = vmul.f32 %v3674, %v4683
        %v4694 = vmul.f32 %v3679, %v4683
        %v4695 = vmul.f32 %v3684, %v4683
        %v4696 = vmul.f32 %v3689, %v4683
        %v4697 = vmul.f32 %v3694, %v4683
        %v4698 = vmul.f32 %v3699, %v4683
        %v4699 = vmul.f32 %v3704, %v4683
        %v4700 = vmul.f32 %v3709, %v4683
        %v4701 = vmul.f32 %v3714, %v4683
        %v4702 = vmul.f32 %v3719, %v4683
        %v4703 = vmul.f32 %v3724, %v4683
        %v4704 = vmul.f32 %v3729, %v4683
        %v4705 = vmul.f32 %v3734, %v4683
        %v4706 = vmul.f32 %v3739, %v4683
        %v4707 = vmul.f32 %v3744, %v4683
        %v4708 = vmul.f32 %v3749, %v4683
        %v4709 = vmul.f32 %v3754, %v4683
        %v4710 = vmul.f32 %v3759, %v4683
        %v4711 = vmul.f32 %v3764, %v4683
        %v4712 = vmul.f32 %v3769, %v4683
        %v4713 = vmul.f32 %v3774, %v4683
        %v4714 = vmul.f32 %v3779, %v4683
        %v4715 = vmul.f32 %v3784, %v4683
        %v4780 = vunpack.c.l.b16 %v4618
        %v4781 = vunpack.c.l.b16 %v4619
        %v4782 = vunpack.c.l.b16 %v4620
        %v4783 = vunpack.c.l.b16 %v4621
        %v4784 = vunpack.c.l.b16 %v4622
        %v4785 = vunpack.c.l.b16 %v4623
        %v4786 = vunpack.c.l.b16 %v4624
        %v4787 = vunpack.c.l.b16 %v4625
        %v4788 = vunpack.c.l.b16 %v4626
        %v4789 = vunpack.c.l.b16 %v4627
        %v4790 = vunpack.c.l.b16 %v4628
        %v4791 = vunpack.c.l.b16 %v4629
        %v4792 = vunpack.c.l.b16 %v4630
        %v4793 = vunpack.c.l.b16 %v4631
        %v4794 = vunpack.c.l.b16 %v4632
        %v4795 = vunpack.c.l.b16 %v4633
        %v4796 = vunpack.c.l.b16 %v4634
        %v4797 = vunpack.c.l.b16 %v4635
        %v4798 = vunpack.c.l.b16 %v4636
        %v4799 = vunpack.c.l.b16 %v4637
        %v4800 = vunpack.c.l.b16 %v4638
        %v4801 = vunpack.c.l.b16 %v4639
        %v4802 = vunpack.c.l.b16 %v4640
        %v4803 = vunpack.c.l.b16 %v4641
        %v4804 = vunpack.c.l.b16 %v4642
        %v4805 = vunpack.c.l.b16 %v4643
        %v4806 = vunpack.c.l.b16 %v4644
        %v4807 = vunpack.c.l.b16 %v4645
        %v4808 = vunpack.c.l.b16 %v4646
        %v4809 = vunpack.c.l.b16 %v4647
        %v4810 = vunpack.c.l.b16 %v4648
        %v4811 = vunpack.c.l.b16 %v4649
        %v4812 = vunpack.c.l.b16 %v4650
        %v4813 = vunpack.c.l.b16 %v4651
        %v4814 = vunpack.c.l.b16 %v4652
        %v4815 = vunpack.c.l.b16 %v4653
        %v4816 = vunpack.c.l.b16 %v4654
        %v4817 = vunpack.c.l.b16 %v4655
        %v4818 = vunpack.c.l.b16 %v4656
        %v4819 = vunpack.c.l.b16 %v4657
        %v4820 = vunpack.c.l.b16 %v4658
        %v4821 = vunpack.c.l.b16 %v4659
        %v4822 = vunpack.c.l.b16 %v4660
        %v4823 = vunpack.c.l.b16 %v4661
        %v4824 = vunpack.c.l.b16 %v4662
        %v4825 = vunpack.c.l.b16 %v4663
        %v4826 = vunpack.c.l.b16 %v4664
        %v4827 = vunpack.c.l.b16 %v4665
        %v4828 = vunpack.c.l.b16 %v4666
        %v4829 = vunpack.c.l.b16 %v4667
        %v4830 = vunpack.c.l.b16 %v4668
        %v4831 = vunpack.c.l.b16 %v4669
        %v4832 = vunpack.c.l.b16 %v4670
        %v4833 = vunpack.c.l.b16 %v4671
        %v4834 = vunpack.c.l.b16 %v4672
        %v4835 = vunpack.c.l.b16 %v4673
        %v4836 = vunpack.c.l.b16 %v4674
        %v4837 = vunpack.c.l.b16 %v4675
        %v4838 = vunpack.c.l.b16 %v4676
        %v4839 = vunpack.c.l.b16 %v4677
        %v4840 = vunpack.c.l.b16 %v4678
        %v4841 = vunpack.c.l.b16 %v4679
        %v4842 = vunpack.c.l.b16 %v4680
        %v4843 = vunpack.c.l.b16 %v4681
        %v4844 = vpack.c.b16 %v4781, %v4780
        %v4845 = vpack.c.b16 %v4783, %v4782
        %v4846 = vpack.c.b16 %v4785, %v4784
        %v4847 = vpack.c.b16 %v4787, %v4786
        %v4848 = vpack.c.b16 %v4789, %v4788
        %v4849 = vpack.c.b16 %v4791, %v4790
        %v4850 = vpack.c.b16 %v4793, %v4792
        %v4851 = vpack.c.b16 %v4795, %v4794
        %v4852 = vpack.c.b16 %v4797, %v4796
        %v4853 = vpack.c.b16 %v4799, %v4798
        %v4854 = vpack.c.b16 %v4801, %v4800
        %v4855 = vpack.c.b16 %v4803, %v4802
        %v4856 = vpack.c.b16 %v4805, %v4804
        %v4857 = vpack.c.b16 %v4807, %v4806
        %v4858 = vpack.c.b16 %v4809, %v4808
        %v4859 = vpack.c.b16 %v4811, %v4810
        %v4860 = vpack.c.b16 %v4813, %v4812
        %v4861 = vpack.c.b16 %v4815, %v4814
        %v4862 = vpack.c.b16 %v4817, %v4816
        %v4863 = vpack.c.b16 %v4819, %v4818
        %v4864 = vpack.c.b16 %v4821, %v4820
        %v4865 = vpack.c.b16 %v4823, %v4822
        %v4866 = vpack.c.b16 %v4825, %v4824
        %v4867 = vpack.c.b16 %v4827, %v4826
        %v4868 = vpack.c.b16 %v4829, %v4828
        %v4869 = vpack.c.b16 %v4831, %v4830
        %v4870 = vpack.c.b16 %v4833, %v4832
        %v4871 = vpack.c.b16 %v4835, %v4834
        %v4872 = vpack.c.b16 %v4837, %v4836
        %v4873 = vpack.c.b16 %v4839, %v4838
        %v4874 = vpack.c.b16 %v4841, %v4840
        %v4875 = vpack.c.b16 %v4843, %v4842
        %4908 = vmatpush.bf16.msra.mxu0 %v4851
        %4909 = vmatpush.bf16.msra.mxu0 %v4850
        %4910 = vmatpush.bf16.msra.mxu0 %v4849
        %4911 = vmatpush.bf16.msra.mxu0 %v4848
        %4912 = vmatpush.bf16.msra.mxu0 %v4847
        %4913 = vmatpush.bf16.msra.mxu0 %v4846
        %4914 = vmatpush.bf16.msra.mxu0 %v4845
        %4915 = vmatpush.bf16.msra.mxu0 %v4844
        %4916 = vmatmul.bf16.gmra.mxu0 %v4554
        %v4917 = vpop.f32.mrf.mxu0
        %v4918 = vadd.f32 %v4684, %v4917
        %v4919 = vpop.f32.mrf.mxu0
        %v4920 = vadd.f32 %v4685, %v4919
        %4921 = vmatmul.bf16.gmra.mxu0 %v4558
        %v4922 = vpop.f32.mrf.mxu0
        %v4923 = vadd.f32 %v4686, %v4922
        %v4924 = vpop.f32.mrf.mxu0
        %v4925 = vadd.f32 %v4687, %v4924
        %4926 = vmatmul.bf16.gmra.mxu0 %v4562
        %v4927 = vpop.f32.mrf.mxu0
        %v4928 = vadd.f32 %v4688, %v4927
        %v4929 = vpop.f32.mrf.mxu0
        %v4930 = vadd.f32 %v4689, %v4929
        %4931 = vmatmul.bf16.gmra.mxu0 %v4566
        %v4932 = vpop.f32.mrf.mxu0
        %v4933 = vadd.f32 %v4690, %v4932
        %v4934 = vpop.f32.mrf.mxu0
        %v4935 = vadd.f32 %v4691, %v4934
        %4936 = vmatmul.bf16.gmra.mxu0 %v4570
        %v4937 = vpop.f32.mrf.mxu0
        %v4938 = vadd.f32 %v4692, %v4937
        %v4939 = vpop.f32.mrf.mxu0
        %v4940 = vadd.f32 %v4693, %v4939
        %4941 = vmatmul.bf16.gmra.mxu0 %v4574
        %v4942 = vpop.f32.mrf.mxu0
        %v4943 = vadd.f32 %v4694, %v4942
        %v4944 = vpop.f32.mrf.mxu0
        %v4945 = vadd.f32 %v4695, %v4944
        %4946 = vmatmul.bf16.gmra.mxu0 %v4578
        %v4947 = vpop.f32.mrf.mxu0
        %v4948 = vadd.f32 %v4696, %v4947
        %v4949 = vpop.f32.mrf.mxu0
        %v4950 = vadd.f32 %v4697, %v4949
        %4951 = vmatmul.bf16.gmra.mxu0 %v4582
        %v4952 = vpop.f32.mrf.mxu0
        %v4953 = vadd.f32 %v4698, %v4952
        %v4954 = vpop.f32.mrf.mxu0
        %v4955 = vadd.f32 %v4699, %v4954
        %4956 = vmatmul.bf16.gmra.mxu0 %v4586
        %v4957 = vpop.f32.mrf.mxu0
        %v4958 = vadd.f32 %v4700, %v4957
        %v4959 = vpop.f32.mrf.mxu0
        %v4960 = vadd.f32 %v4701, %v4959
        %4961 = vmatmul.bf16.gmra.mxu0 %v4590
        %v4962 = vpop.f32.mrf.mxu0
        %v4963 = vadd.f32 %v4702, %v4962
        %v4964 = vpop.f32.mrf.mxu0
        %v4965 = vadd.f32 %v4703, %v4964
        %4966 = vmatmul.bf16.gmra.mxu0 %v4594
        %v4967 = vpop.f32.mrf.mxu0
        %v4968 = vadd.f32 %v4704, %v4967
        %v4969 = vpop.f32.mrf.mxu0
        %v4970 = vadd.f32 %v4705, %v4969
        %4971 = vmatmul.bf16.gmra.mxu0 %v4598
        %v4972 = vpop.f32.mrf.mxu0
        %v4973 = vadd.f32 %v4706, %v4972
        %v4974 = vpop.f32.mrf.mxu0
        %v4975 = vadd.f32 %v4707, %v4974
        %4976 = vmatmul.bf16.gmra.mxu0 %v4602
        %v4977 = vpop.f32.mrf.mxu0
        %v4978 = vadd.f32 %v4708, %v4977
        %v4979 = vpop.f32.mrf.mxu0
        %v4980 = vadd.f32 %v4709, %v4979
        %4981 = vmatmul.bf16.gmra.mxu0 %v4606
        %v4982 = vpop.f32.mrf.mxu0
        %v4983 = vadd.f32 %v4710, %v4982
        %v4984 = vpop.f32.mrf.mxu0
        %v4985 = vadd.f32 %v4711, %v4984
        %4986 = vmatmul.bf16.gmra.mxu0 %v4610
        %v4987 = vpop.f32.mrf.mxu0
        %v4988 = vadd.f32 %v4712, %v4987
        %v4989 = vpop.f32.mrf.mxu0
        %v4990 = vadd.f32 %v4713, %v4989
        %4991 = vmatmul.bf16.gmra.mxu0 %v4614
        %v4992 = vpop.f32.mrf.mxu0
        %v4993 = vadd.f32 %v4714, %v4992
        %v4994 = vpop.f32.mrf.mxu0
        %v4995 = vadd.f32 %v4715, %v4994
        %4996 = vdwg.mxu0
        %4997 = vmatpush.bf16.msra.mxu0 %v4859
        %4998 = vmatpush.bf16.msra.mxu0 %v4858
        %4999 = vmatpush.bf16.msra.mxu0 %v4857
        %5000 = vmatpush.bf16.msra.mxu0 %v4856
        %5001 = vmatpush.bf16.msra.mxu0 %v4855
        %5002 = vmatpush.bf16.msra.mxu0 %v4854
        %5003 = vmatpush.bf16.msra.mxu0 %v4853
        %5004 = vmatpush.bf16.msra.mxu0 %v4852
        %5005 = vmatmul.bf16.gmra.mxu0 %v4555
        %v5006 = vpop.f32.mrf.mxu0
        %v5007 = vadd.f32 %v4918, %v5006
        %v5008 = vpop.f32.mrf.mxu0
        %v5009 = vadd.f32 %v4920, %v5008
        %5010 = vmatmul.bf16.gmra.mxu0 %v4559
        %v5011 = vpop.f32.mrf.mxu0
        %v5012 = vadd.f32 %v4923, %v5011
        %v5013 = vpop.f32.mrf.mxu0
        %v5014 = vadd.f32 %v4925, %v5013
        %5015 = vmatmul.bf16.gmra.mxu0 %v4563
        %v5016 = vpop.f32.mrf.mxu0
        %v5017 = vadd.f32 %v4928, %v5016
        %v5018 = vpop.f32.mrf.mxu0
        %v5019 = vadd.f32 %v4930, %v5018
        %5020 = vmatmul.bf16.gmra.mxu0 %v4567
        %v5021 = vpop.f32.mrf.mxu0
        %v5022 = vadd.f32 %v4933, %v5021
        %v5023 = vpop.f32.mrf.mxu0
        %v5024 = vadd.f32 %v4935, %v5023
        %5025 = vmatmul.bf16.gmra.mxu0 %v4571
        %v5026 = vpop.f32.mrf.mxu0
        %v5027 = vadd.f32 %v4938, %v5026
        %v5028 = vpop.f32.mrf.mxu0
        %v5029 = vadd.f32 %v4940, %v5028
        %5030 = vmatmul.bf16.gmra.mxu0 %v4575
        %v5031 = vpop.f32.mrf.mxu0
        %v5032 = vadd.f32 %v4943, %v5031
        %v5033 = vpop.f32.mrf.mxu0
        %v5034 = vadd.f32 %v4945, %v5033
        %5035 = vmatmul.bf16.gmra.mxu0 %v4579
        %v5036 = vpop.f32.mrf.mxu0
        %v5037 = vadd.f32 %v4948, %v5036
        %v5038 = vpop.f32.mrf.mxu0
        %v5039 = vadd.f32 %v4950, %v5038
        %5040 = vmatmul.bf16.gmra.mxu0 %v4583
        %v5041 = vpop.f32.mrf.mxu0
        %v5042 = vadd.f32 %v4953, %v5041
        %v5043 = vpop.f32.mrf.mxu0
        %v5044 = vadd.f32 %v4955, %v5043
        %5045 = vmatmul.bf16.gmra.mxu0 %v4587
        %v5046 = vpop.f32.mrf.mxu0
        %v5047 = vadd.f32 %v4958, %v5046
        %v5048 = vpop.f32.mrf.mxu0
        %v5049 = vadd.f32 %v4960, %v5048
        %5050 = vmatmul.bf16.gmra.mxu0 %v4591
        %v5051 = vpop.f32.mrf.mxu0
        %v5052 = vadd.f32 %v4963, %v5051
        %v5053 = vpop.f32.mrf.mxu0
        %v5054 = vadd.f32 %v4965, %v5053
        %5055 = vmatmul.bf16.gmra.mxu0 %v4595
        %v5056 = vpop.f32.mrf.mxu0
        %v5057 = vadd.f32 %v4968, %v5056
        %v5058 = vpop.f32.mrf.mxu0
        %v5059 = vadd.f32 %v4970, %v5058
        %5060 = vmatmul.bf16.gmra.mxu0 %v4599
        %v5061 = vpop.f32.mrf.mxu0
        %v5062 = vadd.f32 %v4973, %v5061
        %v5063 = vpop.f32.mrf.mxu0
        %v5064 = vadd.f32 %v4975, %v5063
        %5065 = vmatmul.bf16.gmra.mxu0 %v4603
        %v5066 = vpop.f32.mrf.mxu0
        %v5067 = vadd.f32 %v4978, %v5066
        %v5068 = vpop.f32.mrf.mxu0
        %v5069 = vadd.f32 %v4980, %v5068
        %5070 = vmatmul.bf16.gmra.mxu0 %v4607
        %v5071 = vpop.f32.mrf.mxu0
        %v5072 = vadd.f32 %v4983, %v5071
        %v5073 = vpop.f32.mrf.mxu0
        %v5074 = vadd.f32 %v4985, %v5073
        %5075 = vmatmul.bf16.gmra.mxu0 %v4611
        %v5076 = vpop.f32.mrf.mxu0
        %v5077 = vadd.f32 %v4988, %v5076
        %v5078 = vpop.f32.mrf.mxu0
        %v5079 = vadd.f32 %v4990, %v5078
        %5080 = vmatmul.bf16.gmra.mxu0 %v4615
        %v5081 = vpop.f32.mrf.mxu0
        %v5082 = vadd.f32 %v4993, %v5081
        %v5083 = vpop.f32.mrf.mxu0
        %v5084 = vadd.f32 %v4995, %v5083
        %5085 = vdwg.mxu0
        %5086 = vmatpush.bf16.msra.mxu0 %v4867
        %5087 = vmatpush.bf16.msra.mxu0 %v4866
        %5088 = vmatpush.bf16.msra.mxu0 %v4865
        %5089 = vmatpush.bf16.msra.mxu0 %v4864
        %5090 = vmatpush.bf16.msra.mxu0 %v4863
        %5091 = vmatpush.bf16.msra.mxu0 %v4862
        %5092 = vmatpush.bf16.msra.mxu0 %v4861
        %5093 = vmatpush.bf16.msra.mxu0 %v4860
        %5094 = vmatmul.bf16.gmra.mxu0 %v4556
        %v5095 = vpop.f32.mrf.mxu0
        %v5096 = vadd.f32 %v5007, %v5095
        %v5097 = vpop.f32.mrf.mxu0
        %v5098 = vadd.f32 %v5009, %v5097
        %5099 = vmatmul.bf16.gmra.mxu0 %v4560
        %v5100 = vpop.f32.mrf.mxu0
        %v5101 = vadd.f32 %v5012, %v5100
        %v5102 = vpop.f32.mrf.mxu0
        %v5103 = vadd.f32 %v5014, %v5102
        %5104 = vmatmul.bf16.gmra.mxu0 %v4564
        %v5105 = vpop.f32.mrf.mxu0
        %v5106 = vadd.f32 %v5017, %v5105
        %v5107 = vpop.f32.mrf.mxu0
        %v5108 = vadd.f32 %v5019, %v5107
        %5109 = vmatmul.bf16.gmra.mxu0 %v4568
        %v5110 = vpop.f32.mrf.mxu0
        %v5111 = vadd.f32 %v5022, %v5110
        %v5112 = vpop.f32.mrf.mxu0
        %v5113 = vadd.f32 %v5024, %v5112
        %5114 = vmatmul.bf16.gmra.mxu0 %v4572
        %v5115 = vpop.f32.mrf.mxu0
        %v5116 = vadd.f32 %v5027, %v5115
        %v5117 = vpop.f32.mrf.mxu0
        %v5118 = vadd.f32 %v5029, %v5117
        %5119 = vmatmul.bf16.gmra.mxu0 %v4576
        %v5120 = vpop.f32.mrf.mxu0
        %v5121 = vadd.f32 %v5032, %v5120
        %v5122 = vpop.f32.mrf.mxu0
        %v5123 = vadd.f32 %v5034, %v5122
        %5124 = vmatmul.bf16.gmra.mxu0 %v4580
        %v5125 = vpop.f32.mrf.mxu0
        %v5126 = vadd.f32 %v5037, %v5125
        %v5127 = vpop.f32.mrf.mxu0
        %v5128 = vadd.f32 %v5039, %v5127
        %5129 = vmatmul.bf16.gmra.mxu0 %v4584
        %v5130 = vpop.f32.mrf.mxu0
        %v5131 = vadd.f32 %v5042, %v5130
        %v5132 = vpop.f32.mrf.mxu0
        %v5133 = vadd.f32 %v5044, %v5132
        %5134 = vmatmul.bf16.gmra.mxu0 %v4588
        %v5135 = vpop.f32.mrf.mxu0
        %v5136 = vadd.f32 %v5047, %v5135
        %v5137 = vpop.f32.mrf.mxu0
        %v5138 = vadd.f32 %v5049, %v5137
        %5139 = vmatmul.bf16.gmra.mxu0 %v4592
        %v5140 = vpop.f32.mrf.mxu0
        %v5141 = vadd.f32 %v5052, %v5140
        %v5142 = vpop.f32.mrf.mxu0
        %v5143 = vadd.f32 %v5054, %v5142
        %5144 = vmatmul.bf16.gmra.mxu0 %v4596
        %v5145 = vpop.f32.mrf.mxu0
        %v5146 = vadd.f32 %v5057, %v5145
        %v5147 = vpop.f32.mrf.mxu0
        %v5148 = vadd.f32 %v5059, %v5147
        %5149 = vmatmul.bf16.gmra.mxu0 %v4600
        %v5150 = vpop.f32.mrf.mxu0
        %v5151 = vadd.f32 %v5062, %v5150
        %v5152 = vpop.f32.mrf.mxu0
        %v5153 = vadd.f32 %v5064, %v5152
        %5154 = vmatmul.bf16.gmra.mxu0 %v4604
        %v5155 = vpop.f32.mrf.mxu0
        %v5156 = vadd.f32 %v5067, %v5155
        %v5157 = vpop.f32.mrf.mxu0
        %v5158 = vadd.f32 %v5069, %v5157
        %5159 = vmatmul.bf16.gmra.mxu0 %v4608
        %v5160 = vpop.f32.mrf.mxu0
        %v5161 = vadd.f32 %v5072, %v5160
        %v5162 = vpop.f32.mrf.mxu0
        %v5163 = vadd.f32 %v5074, %v5162
        %5164 = vmatmul.bf16.gmra.mxu0 %v4612
        %v5165 = vpop.f32.mrf.mxu0
        %v5166 = vadd.f32 %v5077, %v5165
        %v5167 = vpop.f32.mrf.mxu0
        %v5168 = vadd.f32 %v5079, %v5167
        %5169 = vmatmul.bf16.gmra.mxu0 %v4616
        %v5170 = vpop.f32.mrf.mxu0
        %v5171 = vadd.f32 %v5082, %v5170
        %v5172 = vpop.f32.mrf.mxu0
        %v5173 = vadd.f32 %v5084, %v5172
        %5174 = vdwg.mxu0
        %5175 = vmatpush.bf16.msra.mxu0 %v4875
        %5176 = vmatpush.bf16.msra.mxu0 %v4874
        %5177 = vmatpush.bf16.msra.mxu0 %v4873
        %5178 = vmatpush.bf16.msra.mxu0 %v4872
        %5179 = vmatpush.bf16.msra.mxu0 %v4871
        %5180 = vmatpush.bf16.msra.mxu0 %v4870
        %5181 = vmatpush.bf16.msra.mxu0 %v4869
        %5182 = vmatpush.bf16.msra.mxu0 %v4868
        %5183 = vmatmul.bf16.gmra.mxu0 %v4557
        %v5184 = vpop.f32.mrf.mxu0
        %v5185 = vadd.f32 %v5096, %v5184
        %v5186 = vpop.f32.mrf.mxu0
        %v5187 = vadd.f32 %v5098, %v5186
        %5188 = vmatmul.bf16.gmra.mxu0 %v4561
        %v5189 = vpop.f32.mrf.mxu0
        %v5190 = vadd.f32 %v5101, %v5189
        %v5191 = vpop.f32.mrf.mxu0
        %v5192 = vadd.f32 %v5103, %v5191
        %5193 = vmatmul.bf16.gmra.mxu0 %v4565
        %v5194 = vpop.f32.mrf.mxu0
        %v5195 = vadd.f32 %v5106, %v5194
        %v5196 = vpop.f32.mrf.mxu0
        %v5197 = vadd.f32 %v5108, %v5196
        %5198 = vmatmul.bf16.gmra.mxu0 %v4569
        %v5199 = vpop.f32.mrf.mxu0
        %v5200 = vadd.f32 %v5111, %v5199
        %v5201 = vpop.f32.mrf.mxu0
        %v5202 = vadd.f32 %v5113, %v5201
        %5203 = vmatmul.bf16.gmra.mxu0 %v4573
        %v5204 = vpop.f32.mrf.mxu0
        %v5205 = vadd.f32 %v5116, %v5204
        %v5206 = vpop.f32.mrf.mxu0
        %v5207 = vadd.f32 %v5118, %v5206
        %5208 = vmatmul.bf16.gmra.mxu0 %v4577
        %v5209 = vpop.f32.mrf.mxu0
        %v5210 = vadd.f32 %v5121, %v5209
        %v5211 = vpop.f32.mrf.mxu0
        %v5212 = vadd.f32 %v5123, %v5211
        %5213 = vmatmul.bf16.gmra.mxu0 %v4581
        %v5214 = vpop.f32.mrf.mxu0
        %v5215 = vadd.f32 %v5126, %v5214
        %v5216 = vpop.f32.mrf.mxu0
        %v5217 = vadd.f32 %v5128, %v5216
        %5218 = vmatmul.bf16.gmra.mxu0 %v4585
        %v5219 = vpop.f32.mrf.mxu0
        %v5220 = vadd.f32 %v5131, %v5219
        %v5221 = vpop.f32.mrf.mxu0
        %v5222 = vadd.f32 %v5133, %v5221
        %5223 = vmatmul.bf16.gmra.mxu0 %v4589
        %v5224 = vpop.f32.mrf.mxu0
        %v5225 = vadd.f32 %v5136, %v5224
        %v5226 = vpop.f32.mrf.mxu0
        %v5227 = vadd.f32 %v5138, %v5226
        %5228 = vmatmul.bf16.gmra.mxu0 %v4593
        %v5229 = vpop.f32.mrf.mxu0
        %v5230 = vadd.f32 %v5141, %v5229
        %v5231 = vpop.f32.mrf.mxu0
        %v5232 = vadd.f32 %v5143, %v5231
        %5233 = vmatmul.bf16.gmra.mxu0 %v4597
        %v5234 = vpop.f32.mrf.mxu0
        %v5235 = vadd.f32 %v5146, %v5234
        %v5236 = vpop.f32.mrf.mxu0
        %v5237 = vadd.f32 %v5148, %v5236
        %5238 = vmatmul.bf16.gmra.mxu0 %v4601
        %v5239 = vpop.f32.mrf.mxu0
        %v5240 = vadd.f32 %v5151, %v5239
        %v5241 = vpop.f32.mrf.mxu0
        %v5242 = vadd.f32 %v5153, %v5241
        %5243 = vmatmul.bf16.gmra.mxu0 %v4605
        %v5244 = vpop.f32.mrf.mxu0
        %v5245 = vadd.f32 %v5156, %v5244
        %v5246 = vpop.f32.mrf.mxu0
        %v5247 = vadd.f32 %v5158, %v5246
        %5248 = vmatmul.bf16.gmra.mxu0 %v4609
        %v5249 = vpop.f32.mrf.mxu0
        %v5250 = vadd.f32 %v5161, %v5249
        %v5251 = vpop.f32.mrf.mxu0
        %v5252 = vadd.f32 %v5163, %v5251
        %5253 = vmatmul.bf16.gmra.mxu0 %v4613
        %v5254 = vpop.f32.mrf.mxu0
        %v5255 = vadd.f32 %v5166, %v5254
        %v5256 = vpop.f32.mrf.mxu0
        %v5257 = vadd.f32 %v5168, %v5256
        %5258 = vmatmul.bf16.gmra.mxu0 %v4617
        %v5259 = vpop.f32.mrf.mxu0
        %v5260 = vadd.f32 %v5171, %v5259
        %v5261 = vpop.f32.mrf.mxu0
        %v5262 = vadd.f32 %v5173, %v5261
        %5263 = vdwg.mxu0
        %v5264 = vperm.slane %v4682, 1
        %v5265 = vmul.f32 %v3788, %v5264
        %v5266 = vmul.f32 %v3792, %v5264
        %v5267 = vmul.f32 %v3796, %v5264
        %v5268 = vmul.f32 %v3800, %v5264
        %v5269 = vmul.f32 %v3804, %v5264
        %v5270 = vmul.f32 %v3808, %v5264
        %v5271 = vmul.f32 %v3812, %v5264
        %v5272 = vmul.f32 %v3816, %v5264
        %v5273 = vmul.f32 %v3820, %v5264
        %v5274 = vmul.f32 %v3824, %v5264
        %v5275 = vmul.f32 %v3828, %v5264
        %v5276 = vmul.f32 %v3832, %v5264
        %v5277 = vmul.f32 %v3836, %v5264
        %v5278 = vmul.f32 %v3840, %v5264
        %v5279 = vmul.f32 %v3844, %v5264
        %v5280 = vmul.f32 %v3848, %v5264
        %v5281 = vmul.f32 %v3852, %v5264
        %v5282 = vmul.f32 %v3856, %v5264
        %v5283 = vmul.f32 %v3860, %v5264
        %v5284 = vmul.f32 %v3864, %v5264
        %v5285 = vmul.f32 %v3868, %v5264
        %v5286 = vmul.f32 %v3872, %v5264
        %v5287 = vmul.f32 %v3876, %v5264
        %v5288 = vmul.f32 %v3880, %v5264
        %v5289 = vmul.f32 %v3884, %v5264
        %v5290 = vmul.f32 %v3888, %v5264
        %v5291 = vmul.f32 %v3892, %v5264
        %v5292 = vmul.f32 %v3896, %v5264
        %v5293 = vmul.f32 %v3900, %v5264
        %v5294 = vmul.f32 %v3904, %v5264
        %v5295 = vmul.f32 %v3908, %v5264
        %v5296 = vmul.f32 %v3912, %v5264
        %v5297 = vadd.f32 %v5185, %v5265
        %v5298 = vadd.f32 %v5187, %v5266
        %v5299 = vadd.f32 %v5190, %v5267
        %v5300 = vadd.f32 %v5192, %v5268
        %v5301 = vadd.f32 %v5195, %v5269
        %v5302 = vadd.f32 %v5197, %v5270
        %v5303 = vadd.f32 %v5200, %v5271
        %v5304 = vadd.f32 %v5202, %v5272
        %v5305 = vadd.f32 %v5205, %v5273
        %v5306 = vadd.f32 %v5207, %v5274
        %v5307 = vadd.f32 %v5210, %v5275
        %v5308 = vadd.f32 %v5212, %v5276
        %v5309 = vadd.f32 %v5215, %v5277
        %v5310 = vadd.f32 %v5217, %v5278
        %v5311 = vadd.f32 %v5220, %v5279
        %v5312 = vadd.f32 %v5222, %v5280
        %v5313 = vadd.f32 %v5225, %v5281
        %v5314 = vadd.f32 %v5227, %v5282
        %v5315 = vadd.f32 %v5230, %v5283
        %v5316 = vadd.f32 %v5232, %v5284
        %v5317 = vadd.f32 %v5235, %v5285
        %v5318 = vadd.f32 %v5237, %v5286
        %v5319 = vadd.f32 %v5240, %v5287
        %v5320 = vadd.f32 %v5242, %v5288
        %v5321 = vadd.f32 %v5245, %v5289
        %v5322 = vadd.f32 %v5247, %v5290
        %v5323 = vadd.f32 %v5250, %v5291
        %v5324 = vadd.f32 %v5252, %v5292
        %v5325 = vadd.f32 %v5255, %v5293
        %v5326 = vadd.f32 %v5257, %v5294
        %v5327 = vadd.f32 %v5260, %v5295
        %v5328 = vadd.f32 %v5262, %v5296
        %v5329 = vperm.slane %v4682, 2
        %v5330 = vmul.f32 %v3916, %v5329
        %v5331 = vmul.f32 %v3920, %v5329
        %v5332 = vmul.f32 %v3924, %v5329
        %v5333 = vmul.f32 %v3928, %v5329
        %v5334 = vmul.f32 %v3932, %v5329
        %v5335 = vmul.f32 %v3936, %v5329
        %v5336 = vmul.f32 %v3940, %v5329
        %v5337 = vmul.f32 %v3944, %v5329
        %v5338 = vmul.f32 %v3948, %v5329
        %v5339 = vmul.f32 %v3952, %v5329
        %v5340 = vmul.f32 %v3956, %v5329
        %v5341 = vmul.f32 %v3960, %v5329
        %v5342 = vmul.f32 %v3964, %v5329
        %v5343 = vmul.f32 %v3968, %v5329
        %v5344 = vmul.f32 %v3972, %v5329
        %v5345 = vmul.f32 %v3976, %v5329
        %v5346 = vmul.f32 %v3980, %v5329
        %v5347 = vmul.f32 %v3984, %v5329
        %v5348 = vmul.f32 %v3988, %v5329
        %v5349 = vmul.f32 %v3992, %v5329
        %v5350 = vmul.f32 %v3996, %v5329
        %v5351 = vmul.f32 %v4000, %v5329
        %v5352 = vmul.f32 %v4004, %v5329
        %v5353 = vmul.f32 %v4008, %v5329
        %v5354 = vmul.f32 %v4012, %v5329
        %v5355 = vmul.f32 %v4016, %v5329
        %v5356 = vmul.f32 %v4020, %v5329
        %v5357 = vmul.f32 %v4024, %v5329
        %v5358 = vmul.f32 %v4028, %v5329
        %v5359 = vmul.f32 %v4032, %v5329
        %v5360 = vmul.f32 %v4036, %v5329
        %v5361 = vmul.f32 %v4040, %v5329
        %v5362 = vadd.f32 %v5297, %v5330
        %v5363 = vadd.f32 %v5298, %v5331
        %v5364 = vadd.f32 %v5299, %v5332
        %v5365 = vadd.f32 %v5300, %v5333
        %v5366 = vadd.f32 %v5301, %v5334
        %v5367 = vadd.f32 %v5302, %v5335
        %v5368 = vadd.f32 %v5303, %v5336
        %v5369 = vadd.f32 %v5304, %v5337
        %v5370 = vadd.f32 %v5305, %v5338
        %v5371 = vadd.f32 %v5306, %v5339
        %v5372 = vadd.f32 %v5307, %v5340
        %v5373 = vadd.f32 %v5308, %v5341
        %v5374 = vadd.f32 %v5309, %v5342
        %v5375 = vadd.f32 %v5310, %v5343
        %v5376 = vadd.f32 %v5311, %v5344
        %v5377 = vadd.f32 %v5312, %v5345
        %v5378 = vadd.f32 %v5313, %v5346
        %v5379 = vadd.f32 %v5314, %v5347
        %v5380 = vadd.f32 %v5315, %v5348
        %v5381 = vadd.f32 %v5316, %v5349
        %v5382 = vadd.f32 %v5317, %v5350
        %v5383 = vadd.f32 %v5318, %v5351
        %v5384 = vadd.f32 %v5319, %v5352
        %v5385 = vadd.f32 %v5320, %v5353
        %v5386 = vadd.f32 %v5321, %v5354
        %v5387 = vadd.f32 %v5322, %v5355
        %v5388 = vadd.f32 %v5323, %v5356
        %v5389 = vadd.f32 %v5324, %v5357
        %v5390 = vadd.f32 %v5325, %v5358
        %v5391 = vadd.f32 %v5326, %v5359
        %v5392 = vadd.f32 %v5327, %v5360
        %v5393 = vadd.f32 %v5328, %v5361
        %v5394 = vperm.slane %v4682, 3
        %v5395 = vmul.f32 %v4044, %v5394
        %v5396 = vmul.f32 %v4048, %v5394
        %v5397 = vmul.f32 %v4052, %v5394
        %v5398 = vmul.f32 %v4056, %v5394
        %v5399 = vmul.f32 %v4060, %v5394
        %v5400 = vmul.f32 %v4064, %v5394
        %v5401 = vmul.f32 %v4068, %v5394
        %v5402 = vmul.f32 %v4072, %v5394
        %v5403 = vmul.f32 %v4076, %v5394
        %v5404 = vmul.f32 %v4080, %v5394
        %v5405 = vmul.f32 %v4084, %v5394
        %v5406 = vmul.f32 %v4088, %v5394
        %v5407 = vmul.f32 %v4092, %v5394
        %v5408 = vmul.f32 %v4096, %v5394
        %v5409 = vmul.f32 %v4100, %v5394
        %v5410 = vmul.f32 %v4104, %v5394
        %v5411 = vmul.f32 %v4108, %v5394
        %v5412 = vmul.f32 %v4112, %v5394
        %v5413 = vmul.f32 %v4116, %v5394
        %v5414 = vmul.f32 %v4120, %v5394
        %v5415 = vmul.f32 %v4124, %v5394
        %v5416 = vmul.f32 %v4128, %v5394
        %v5417 = vmul.f32 %v4132, %v5394
        %v5418 = vmul.f32 %v4136, %v5394
        %v5419 = vmul.f32 %v4140, %v5394
        %v5420 = vmul.f32 %v4144, %v5394
        %v5421 = vmul.f32 %v4148, %v5394
        %v5422 = vmul.f32 %v4152, %v5394
        %v5423 = vmul.f32 %v4156, %v5394
        %v5424 = vmul.f32 %v4160, %v5394
        %v5425 = vmul.f32 %v4164, %v5394
        %v5426 = vmul.f32 %v4168, %v5394
        %v5427 = vadd.f32 %v5362, %v5395
        %v5428 = vadd.f32 %v5363, %v5396
        %v5429 = vadd.f32 %v5364, %v5397
        %v5430 = vadd.f32 %v5365, %v5398
        %v5431 = vadd.f32 %v5366, %v5399
        %v5432 = vadd.f32 %v5367, %v5400
        %v5433 = vadd.f32 %v5368, %v5401
        %v5434 = vadd.f32 %v5369, %v5402
        %v5435 = vadd.f32 %v5370, %v5403
        %v5436 = vadd.f32 %v5371, %v5404
        %v5437 = vadd.f32 %v5372, %v5405
        %v5438 = vadd.f32 %v5373, %v5406
        %v5439 = vadd.f32 %v5374, %v5407
        %v5440 = vadd.f32 %v5375, %v5408
        %v5441 = vadd.f32 %v5376, %v5409
        %v5442 = vadd.f32 %v5377, %v5410
        %v5443 = vadd.f32 %v5378, %v5411
        %v5444 = vadd.f32 %v5379, %v5412
        %v5445 = vadd.f32 %v5380, %v5413
        %v5446 = vadd.f32 %v5381, %v5414
        %v5447 = vadd.f32 %v5382, %v5415
        %v5448 = vadd.f32 %v5383, %v5416
        %v5449 = vadd.f32 %v5384, %v5417
        %v5450 = vadd.f32 %v5385, %v5418
        %v5451 = vadd.f32 %v5386, %v5419
        %v5452 = vadd.f32 %v5387, %v5420
        %v5453 = vadd.f32 %v5388, %v5421
        %v5454 = vadd.f32 %v5389, %v5422
        %v5455 = vadd.f32 %v5390, %v5423
        %v5456 = vadd.f32 %v5391, %v5424
        %v5457 = vadd.f32 %v5392, %v5425
        %v5458 = vadd.f32 %v5393, %v5426
        %5459 = vst [vmem:[%s405] sm:$0xff] %v5427
        %5460 = vst [vmem:[%s405 + $0x8] sm:$0xff] %v5428
        %5461 = vst [vmem:[%s405 + $0x10] sm:$0xff] %v5429
        %5462 = vst [vmem:[%s405 + $0x18] sm:$0xff] %v5430
        %5463 = vst [vmem:[%s405 + $0x20] sm:$0xff] %v5431
        %5464 = vst [vmem:[%s405 + $0x28] sm:$0xff] %v5432
        %5465 = vst [vmem:[%s405 + $0x30] sm:$0xff] %v5433
        %5466 = vst [vmem:[%s405 + $0x38] sm:$0xff] %v5434
        %5467 = vst [vmem:[%s405 + $0x40] sm:$0xff] %v5435
        %5468 = vst [vmem:[%s405 + $0x48] sm:$0xff] %v5436
        %5469 = vst [vmem:[%s405 + $0x50] sm:$0xff] %v5437
        %5470 = vst [vmem:[%s405 + $0x58] sm:$0xff] %v5438
        %5471 = vst [vmem:[%s405 + $0x60] sm:$0xff] %v5439
        %5472 = vst [vmem:[%s405 + $0x68] sm:$0xff] %v5440
        %5473 = vst [vmem:[%s405 + $0x70] sm:$0xff] %v5441
        %5474 = vst [vmem:[%s405 + $0x78] sm:$0xff] %v5442
        %5475 = vst [vmem:[%s405 + $0x80] sm:$0xff] %v5443
        %5476 = vst [vmem:[%s405 + $0x88] sm:$0xff] %v5444
        %5477 = vst [vmem:[%s405 + $0x90] sm:$0xff] %v5445
        %5478 = vst [vmem:[%s405 + $0x98] sm:$0xff] %v5446
        %5479 = vst [vmem:[%s405 + $0xa0] sm:$0xff] %v5447
        %5480 = vst [vmem:[%s405 + $0xa8] sm:$0xff] %v5448
        %5481 = vst [vmem:[%s405 + $0xb0] sm:$0xff] %v5449
        %5482 = vst [vmem:[%s405 + $0xb8] sm:$0xff] %v5450
        %5483 = vst [vmem:[%s405 + $0xc0] sm:$0xff] %v5451
        %5484 = vst [vmem:[%s405 + $0xc8] sm:$0xff] %v5452
        %5485 = vst [vmem:[%s405 + $0xd0] sm:$0xff] %v5453
        %5486 = vst [vmem:[%s405 + $0xd8] sm:$0xff] %v5454
        %5487 = vst [vmem:[%s405 + $0xe0] sm:$0xff] %v5455
        %5488 = vst [vmem:[%s405 + $0xe8] sm:$0xff] %v5456
        %5489 = vst [vmem:[%s405 + $0xf0] sm:$0xff] %v5457
        %5490 = vst [vmem:[%s405 + $0xf8] sm:$0xff] %v5458
        %s5491 = sand.u32 %s189, 1
        %s5492 = scalar_lea.sflag [#allocation4], %s5491
        %s5493 = sand.u32 %s189, 1
        %s5494 = smul.addr %s5493, 256
        %s5495 = scalar_lea.vmem [#allocation13], %s5494
        %s5496 = smul.u32 32, %s29
        %p5497 = scmp.lt.s32.totalorder %s5496, 63
        %s5498 = scalar_select %p5497, %s5496, 63
        %s5499 = smul.addr %s5498, 8
        %s5500 = scalar_lea.vmem %s8, %s5499
        // Predicated region
        $region73: #{moe_forward.1} parent=47 // pred_check
          %p5501 = pneg %p199
        $region74: #{moe_forward.1} parent=47 // pred_check_branch
          %5503 = sbr.rel (%p5501) target = $region76
        $region75: #{moe_forward.1} parent=47 // pred_region
          %s5504 = smul.u32 32, %s29
          %5506 = vsyncadd %s5492, 0
          %s5507 = smul.addr %s5504, 8
          %s5508 = scalar_lea.hbm %s7, %s5507
          %s5509 = sshll.u32 %s5495, 4
          %s5510 = int_to_ptr.vmem [resolvable:$true] %s5509
          %s5511 = sshll.u32 %s5508, 4
          %s5512 = int_to_ptr.hbm [resolvable:$true] %s5511
          %5517 = dma.vmem_to_hbm [thread:$0]  %s5510, 4096, %s5512, %s5492, 128, 128, 8
        $region76: #{moe_forward.1} parent=47 // pred_fallthru
          _
        // Predicated region
        $region77: #{moe_forward.1} parent=47 // pred_check
          %p5518 = pneg %p225
        $region78: #{moe_forward.1} parent=47 // pred_check_branch
          %5520 = sbr.rel (%p5518) target = $region80
        $region79: #{moe_forward.1} parent=47 // pred_region
          %s5521 = smul.u32 32, %s29
        $region80: #{moe_forward.1} parent=47 // pred_fallthru
          _
      $region48: #{moe_forward.1} parent=5 // pred_fallthru
        _
      %p5522 = scmp.le.s32.totalorder 2, %s24
      // Predicated region
      $region81: #{moe_forward.1} parent=5 // pred_check
        %p5523 = pneg %p5522
      $region82: #{moe_forward.1} parent=5 // pred_check_branch
        %5525 = sbr.rel (%p5523) target = $region84
      $region83: #{moe_forward.1} parent=5 // pred_region
        %s5526 = ssub.s32 %s24, 2
        // Predicated region
        $region85: #{moe_forward.1} parent=83 // pred_check
          %p5527 = pneg %p205
        $region86: #{moe_forward.1} parent=83 // pred_check_branch
          %5529 = sbr.rel (%p5527) target = $region88
        $region87: #{moe_forward.1} parent=83 // pred_region
          %s5530 = sand.u32 %s190, 1
          %s5531 = scalar_lea.sflag [#allocation4], %s5530
          %s5532 = sand.u32 %s190, 1
          %s5533 = smul.addr %s5532, 256
          %s5534 = scalar_lea.vmem [#allocation13], %s5533
          %5536 = dma.done %s5531, 4096
        $region88: #{moe_forward.1} parent=83 // pred_fallthru
          _
        // Predicated region
        $region89: #{moe_forward.1} parent=83 // pred_check
          %p5537 = pneg %p231
        $region90: #{moe_forward.1} parent=83 // pred_check_branch
          %5539 = sbr.rel (%p5537) target = $region92
        $region91: #{moe_forward.1} parent=83 // pred_region
          %s5540 = smul.u32 32, %s30
          %p5541 = scmp.lt.s32.totalorder %s5540, 63
          %s5542 = scalar_select %p5541, %s5540, 63
          %s5543 = smul.addr %s5542, 8
          %s5544 = scalar_lea.vmem %s8, %s5543
        $region92: #{moe_forward.1} parent=83 // pred_fallthru
          _
      $region84: #{moe_forward.1} parent=5 // pred_fallthru
        _
    $region6: #{moe_forward.1} parent=1 // loop_footer
      %s28 = sadd.s32 1, %s24
    $region7: #{moe_forward.1} parent=1 // loop_footer_branch
      %23 = sbr.rel target = $region3
    $region8: #{moe_forward.1} parent=1 // loop_exit
      _
    %5545 = vsyncpa [#allocation3], 1
    %s5546 = scalar_lea.sflag [#allocation3], 1
    %5547 = vsyncpa %s5546, 1
    %5548 = vsyncpa [#allocation6], 1
    %5549 = vsyncpa [#allocation9], 1
    %5550 = vsyncpa [#allocation12], 1
    %5551 = vsyncpa [#allocation4], 1
    %s5552 = scalar_lea.sflag [#allocation4], 1
    %5553 = vsyncpa %s5552, 1

</llo_original>
